<compile_context>
chip_gen: v7x
topology: tpu7x:2x2x1
jax: 0.10.0
libtpu: 0.0.40
codegen_flags: <defaults>
</compile_context>

<pallas_src>
import functools

import jax
import jax.numpy as jnp
from jax.experimental import pallas as pl
from jax.experimental.pallas import tpu as pltpu


def _vq_kernel(x_ref, cb_ref, cb_bf16_ref, hcs_ref, q_ref, idx_ref, loss_ref, *,
               tm, n_tok, need_mask, apply_rotation):
    i = pl.program_id(0)

    x = x_ref[...]                       # (TM, D) f32 tokens
    cb = cb_ref[...]                     # (C,  D) f32 implicit codebook (exact, for gather)
    cb_bf = cb_bf16_ref[...]             # (C,  D) bf16 copy (distance matmul only)
    half_cb_sq = hcs_ref[...]            # (1,  C) f32 precomputed 0.5 * ||icb||^2

    # Distance scores.  argmin_c ||x - c||^2 == argmin_c (0.5*||c||^2 - x.c);
    # the per-token ||x||^2 term does not affect the argmin.  The dominant
    # (TM, D) x (D, C) matmul uses bf16 inputs with f32 accumulation (MXU is
    # bf16-native on v5e/v6e/v7x; f32 x f32 is a multi-pass emulation), while
    # the bias term comes from the exact f32 codebook norms.
    # TODO(synk): near-exact distance ties can resolve differently than torch
    # under the bf16 cast; switch this matmul to f32 if bit-exact index parity matters.
    xc = jax.lax.dot_general(x.astype(jnp.bfloat16), cb_bf,
                             (((1,), (1,)), ((), ())),
                             preferred_element_type=jnp.float32)       # (TM, C)
    d = half_cb_sq - xc                                                # (TM, C)

    # argmin over codes with first-index tie-break (matches torch.argmin).
    dmin = jnp.min(d, axis=-1, keepdims=True)                          # (TM, 1)
    c_iota = jax.lax.broadcasted_iota(jnp.int32, d.shape, 1)           # (TM, C)
    big = jnp.iinfo(jnp.int32).max
    idx = jnp.min(jnp.where(d <= dmin, c_iota, big),
                  axis=-1, keepdims=True)                              # (TM, 1)

    # Gather the selected codes with a one-hot matmul (kept f32 => exact codes).
    onehot = (c_iota == idx).astype(jnp.float32)                       # (TM, C)
    q = jnp.dot(onehot, cb, preferred_element_type=jnp.float32)        # (TM, D)

    # Lane-dense index output: a (1, TM) row via an NT matmul against the
    # one-hot rows (exact: each row has a single 1.0).  Avoids a last-dim-1
    # (TM, 1) masked-store output.
    c_row = jax.lax.broadcasted_iota(jnp.int32, (1, d.shape[1]), 1)
    idx_row = jax.lax.dot_general(c_row.astype(jnp.float32), onehot,
                                  (((1,), (1,)), ((), ())),
                                  preferred_element_type=jnp.float32)  # (1, TM)
    idx_ref[0] = (idx_row + 0.5).astype(jnp.int32)    # +0.5: robust float->int

    # Three lane reductions shared by the commitment loss and rotation trick.
    x_sq = jnp.sum(x * x, axis=-1, keepdims=True)                      # (TM, 1)
    q_sq = jnp.sum(q * q, axis=-1, keepdims=True)                      # (TM, 1)
    xq = jnp.sum(x * q, axis=-1, keepdims=True)                        # (TM, 1)

    # Commitment-loss partial for this tile, folded from the reductions above
    # (no (TM, D) diff temporary, no (TM, D) -> (1, D) sublane reduce).  The
    # final scalar reduction happens in the wrapper so the grid axis has no
    # carried state and stays "parallel" (megacore-friendly on v7x).
    sq_rows = x_sq + q_sq - 2.0 * xq                                   # (TM, 1)
    if need_mask:                         # zero the padded tokens' contribution
        rows = i * tm + jax.lax.broadcasted_iota(jnp.int32, (tm, 1), 0)
        sq_rows = jnp.where(rows < n_tok, sq_rows, 0.0)
    loss_ref[...] = jnp.sum(sq_rows, axis=0, keepdims=True)[None]      # (1, 1, 1)

    if apply_rotation:
        # Rotation trick rotate_to(x, q) (forward values), folded into per-row
        # scalars so no (TM, D) u / qn / w temporaries are materialized:
        #   rotated = x*(1 - a*inv_src) + q*(2*eu - a)*inv_tgt,
        #   a = 2*(x.w)*inv_w,  w = l2norm(u + q_hat)  (never built explicitly).
        # rsqrt runs on the EUP; the clamps reproduce the library's safe_div
        # (eps 1e-6) and F.normalize (eps 1e-12) behavior.
        inv_src = jnp.minimum(jax.lax.rsqrt(x_sq), 1e6)     # 1 / max(||x||, 1e-6)
        inv_tgt = jnp.minimum(jax.lax.rsqrt(q_sq), 1e6)     # 1 / max(||q||, 1e-6)
        uq_sq = (x_sq * inv_src * inv_src + q_sq * inv_tgt * inv_tgt
                 + 2.0 * xq * (inv_src * inv_tgt))          # ||u + q_hat||^2
        inv_w = jnp.minimum(jax.lax.rsqrt(uq_sq), 1e12)
        ew = (x_sq * inv_src + xq * inv_tgt) * inv_w        # x . w
        eu = x_sq * inv_src                                 # x . u == ||x||
        a = 2.0 * ew * inv_w
        scale = jnp.sqrt(q_sq) * inv_src                    # ||q|| / max(||x||, eps)
        coef_x = (1.0 - a * inv_src) * scale
        coef_q = (2.0 * eu - a) * inv_tgt * scale
        q_ref[...] = (x * coef_x + q * coef_q).astype(q_ref.dtype)
    else:
        # Straight-through forward value (and rotate_to's forward value) == q.
        q_ref[...] = q.astype(q_ref.dtype)


def _round_up(a, b):
    return (a + b - 1) // b * b


def group_sim_vq_forward(x, frozen_codebook, conv_weight, *, num_groups,
                         input_to_quantize_commit_loss_weight=0.25,
                         commitment_weight=1.0, rotation_trick=True):
    """x: channels-last (B, ..., D) (the module's default channel_first=False).

    Returns (quantized (B, ..., D), indices (B, ...) int32, commit_loss scalar).
    """
    x = jnp.asarray(x, jnp.float32)
    *lead, D = x.shape
    C, FD = frozen_codebook.shape
    dim, fpg = conv_weight.shape[0], conv_weight.shape[1]
    G = num_groups
    assert dim == D and FD == fpg * G and dim % G == 0
    dpg = dim // G

    # Implicit codebook = grouped 1x1 conv applied to the frozen codebook,
    # computed once by XLA (grouped einsum) so the kernel gets one resident
    # (C, D) input; its bf16 copy (distance matmul) and halved squared norms
    # are hoisted too.
    w = jnp.asarray(conv_weight, jnp.float32).reshape(dim, fpg)
    icb = jnp.einsum(
        'cgf,gdf->cgd',
        jnp.asarray(frozen_codebook, jnp.float32).reshape(C, G, fpg),
        w.reshape(G, dpg, fpg)).reshape(C, dim)
    icb_bf16 = icb.astype(jnp.bfloat16)
    half_cb_sq = 0.5 * jnp.sum(icb * icb, axis=-1)[None, :]            # (1, C)

    x_tok = x.reshape(-1, D)
    n_tok = x_tok.shape[0]

    # ---- Tile sizing --------------------------------------------------------
    # Generation-aware VMEM budget: v7x has 64 MiB physical VMEM per core,
    # v5e/v6e have 128 MiB, so the fixed heuristic of v1 either under-used
    # v5e/v6e or was marginal on v7x.
    try:
        vmem_cap = int(pltpu.get_tpu_info().vmem_capacity_bytes)
    except Exception:
        vmem_cap = 64 * 1024 * 1024           # conservative (v7x-sized) fallback
    budget = min(int(vmem_cap * 0.65), 88 * 1024 * 1024)
    vmem_limit = min(int(vmem_cap * 0.80), 100 * 1024 * 1024)

    # Resident codebook buffers are single-buffered (constant index_map +
    # pl.Buffered(1)), so exactly one copy of each lives in VMEM.
    resident = C * D * 4 + C * D * 2 + C * 4
    # Per-token bytes: double-buffered x/q f32 tiles and idx row, ~3 live
    # (tm, C) f32 score/one-hot/iota intermediates, and a few (tm, D)
    # epilogue temporaries plus the bf16 x cast.
    per_tok = (2 * D * 4) * 2 + 2 * 4 + 3 * C * 4 + 3 * D * 4 + D * 2
    tm_cap = max(0, budget - resident) // per_tok
    tm_cap = max(128, tm_cap // 128 * 128)
    # TODO(synk): for very large codebooks (C >~ 8-16K) add an inner grid axis
    # over codebook chunks with a running (min, argmin, q) carried in VMEM
    # scratch instead of letting tm collapse to fit the resident scores.

    tm_max = int(min(1024, tm_cap, _round_up(n_tok, 128)))
    # Balance tiles across v7x's two TensorCores (the grid axis is "parallel"):
    # keep the tile count (preferring an even count) and shrink tm so both
    # cores get real work instead of one full tile plus a mostly-padding one.
    n_tiles = -(-n_tok // tm_max)
    if n_tiles > 1 and n_tiles % 2:
        n_tiles += 1
    tm = _round_up(-(-n_tok // n_tiles), 128)
    n_tiles = -(-n_tok // tm)
    n_pad = n_tiles * tm
    if n_pad != n_tok:
        x_tok = jnp.pad(x_tok, ((0, n_pad - n_tok), (0, 0)))

    kernel = functools.partial(_vq_kernel, tm=tm, n_tok=n_tok,
                               need_mask=(n_pad != n_tok),
                               apply_rotation=bool(rotation_trick))

    const2 = lambda i: (0, 0)
    q_tok, idx_rows, loss_parts = pl.pallas_call(
        kernel,
        out_shape=(jax.ShapeDtypeStruct((n_pad, D), jnp.float32),
                   jax.ShapeDtypeStruct((n_tiles, 1, tm), jnp.int32),
                   jax.ShapeDtypeStruct((n_tiles, 1, 1), jnp.float32)),
        grid=(n_tiles,),
        in_specs=[
            pl.BlockSpec((tm, D), lambda i: (i, 0)),
            # Constant-index codebook inputs: single-buffered (one VMEM copy).
            pl.BlockSpec((C, D), const2, pipeline_mode=pl.Buffered(1)),
            pl.BlockSpec((C, D), const2, pipeline_mode=pl.Buffered(1)),
            pl.BlockSpec((1, C), const2, pipeline_mode=pl.Buffered(1)),
        ],
        out_specs=(pl.BlockSpec((tm, D), lambda i: (i, 0)),
                   pl.BlockSpec((1, 1, tm), lambda i: (i, 0, 0)),
                   pl.BlockSpec((1, 1, 1), lambda i: (i, 0, 0))),
        compiler_params=pltpu.CompilerParams(
            dimension_semantics=("parallel",),       # no cross-tile carried state
            vmem_limit_bytes=vmem_limit),
    )(x_tok, icb, icb_bf16, half_cb_sq)

    # commit_loss = mse(x.detach(), q) + 0.25 * mse(x, q.detach())
    #             = 1.25 * mean((x - q)^2), scaled by commitment_weight.
    loss_scale = (1.0 + input_to_quantize_commit_loss_weight) * commitment_weight
    commit_loss = jnp.sum(loss_parts) * (loss_scale / float(n_tok * D))

    quantized = q_tok[:n_tok].reshape(*lead, D)
    indices = idx_rows.reshape(n_pad)[:n_tok].reshape(*lead)
    return quantized, indices, commit_loss


if __name__ == "__main__":
    key = jax.random.PRNGKey(0)
    k1, k2, k3 = jax.random.split(key, 3)

    # Channels-last input (module default layout); 2*24*25 = 1200 tokens, which
    # exercises multi-tile gridding, balanced tiles (2 x 640) and the padded /
    # masked last tile.
    B, H, W, D = 2, 24, 25, 32
    codebook_size = 256
    num_groups = 4
    frozen_dim = D                        # frozen_codebook_dim defaults to dim
    fpg = frozen_dim // num_groups

    x = jax.random.normal(k1, (B, H, W, D), jnp.float32)
    frozen_codebook = (jax.random.normal(k2, (codebook_size, frozen_dim), jnp.float32)
                       * frozen_dim ** -0.5)
    # nn.Conv2d(frozen_dim, D, kernel_size=1, groups=num_groups, bias=False) weight
    conv_weight = (jax.random.normal(k3, (D, fpg, 1, 1), jnp.float32) * fpg ** -0.5)

    quantized, indices, loss = group_sim_vq_forward(
        x, frozen_codebook, conv_weight, num_groups=num_groups)
    jax.block_until_ready((quantized, indices, loss))

    assert quantized.shape == (B, H, W, D)
    assert indices.shape == (B, H, W)
    assert loss.shape == ()
    assert int(indices.min()) >= 0 and int(indices.max()) < codebook_size
    assert bool(jnp.isfinite(loss)) and bool(jnp.all(jnp.isfinite(quantized)))
    print("KERNEL_OK")
</pallas_src>

<mosaic_0001>
module attributes {stable_mosaic.version = 11 : i64} {
  func.func @_vq_kernel(%arg0: i32, %arg1: memref<640x32xf32, #tpu.memory_space<vmem>>, %arg2: memref<256x32xf32, #tpu.memory_space<vmem>>, %arg3: memref<256x32xbf16, #tpu.memory_space<vmem>>, %arg4: memref<1x256xf32, #tpu.memory_space<vmem>>, %arg5: memref<640x32xf32, #tpu.memory_space<vmem>>, %arg6: memref<1x1x640xi32, #tpu.memory_space<vmem>>, %arg7: memref<1x1x1xf32, #tpu.memory_space<vmem>>) attributes {dimension_semantics = [#tpu.dimension_semantics<parallel>], iteration_bounds = array<i64: 2>, scalar_prefetch = 0 : i64, scratch_operands = 0 : i64, tpu.core_type = #tpu.core_type<tc>, window_params = [{transform_indices = @transform_0, window_bounds = array<i64: 640, 32>}, {pipeline_mode = #tpu.pipeline_mode<synchronous>, transform_indices = @transform_1, window_bounds = array<i64: 256, 32>}, {pipeline_mode = #tpu.pipeline_mode<synchronous>, transform_indices = @transform_2, window_bounds = array<i64: 256, 32>}, {pipeline_mode = #tpu.pipeline_mode<synchronous>, transform_indices = @transform_3, window_bounds = array<i64: 1, 256>}, {transform_indices = @transform_4, window_bounds = array<i64: 640, 32>}, {transform_indices = @transform_5, window_bounds = array<i64: 1, 1, 640>}, {transform_indices = @transform_6, window_bounds = array<i64: 1, 1, 1>}]} {
    %c0 = arith.constant 0 : index
    %c0_0 = arith.constant 0 : index
    %0 = vector.load %arg1[%c0, %c0_0] : memref<640x32xf32, #tpu.memory_space<vmem>>, vector<640x32xf32>
    %c0_1 = arith.constant 0 : index
    %c0_2 = arith.constant 0 : index
    %1 = vector.load %arg2[%c0_1, %c0_2] : memref<256x32xf32, #tpu.memory_space<vmem>>, vector<256x32xf32>
    %c0_3 = arith.constant 0 : index
    %c0_4 = arith.constant 0 : index
    %2 = vector.load %arg3[%c0_3, %c0_4] : memref<256x32xbf16, #tpu.memory_space<vmem>>, vector<256x32xbf16>
    %c0_5 = arith.constant 0 : index
    %c0_6 = arith.constant 0 : index
    %3 = vector.load %arg4[%c0_5, %c0_6] : memref<1x256xf32, #tpu.memory_space<vmem>>, vector<1x256xf32>
    %4 = arith.truncf %0 : vector<640x32xf32> to vector<640x32xbf16>
    %cst = arith.constant dense<0.000000e+00> : vector<640x256xf32>
    %5 = tpu.matmul %4, %2, %cst {dimension_numbers = #tpu.dot_dimension_numbers<[1], [1], [0], [0], [0, 0, 1, 0], [], []>} : vector<640x32xbf16>, vector<256x32xbf16>, vector<640x256xf32> -> vector<640x256xf32>
    %6 = vector.broadcast %3 : vector<1x256xf32> to vector<640x256xf32>
    %7 = arith.subf %6, %5 : vector<640x256xf32>
    %cst_7 = arith.constant dense<0x7F800000> : vector<640xf32>
    %8 = vector.multi_reduction <minimumf>, %7, %cst_7 [1] : vector<640x256xf32> to vector<640xf32>
    %9 = vector.shape_cast %8 : vector<640xf32> to vector<640x1xf32>
    %10 = tpu.iota {dimensions = array<i32: 1>} : vector<640x256xi32>
    %11 = vector.broadcast %9 : vector<640x1xf32> to vector<640x256xf32>
    %12 = arith.cmpf ole, %7, %11 : vector<640x256xf32>
    %c2147483647_i32 = arith.constant 2147483647 : i32
    %13 = vector.broadcast %c2147483647_i32 : i32 to vector<640x256xi32>
    %14 = arith.select %12, %10, %13 : vector<640x256xi1>, vector<640x256xi32>
    %cst_8 = arith.constant dense<2147483647> : vector<640xi32>
    %15 = vector.multi_reduction <minsi>, %14, %cst_8 [1] : vector<640x256xi32> to vector<640xi32>
    %16 = vector.shape_cast %15 : vector<640xi32> to vector<640x1xi32>
    %17 = vector.broadcast %16 : vector<640x1xi32> to vector<640x256xi32>
    %18 = arith.cmpi eq, %10, %17 : vector<640x256xi32>
    %19 = arith.extui %18 : vector<640x256xi1> to vector<640x256xi32>
    %20 = arith.sitofp %19 : vector<640x256xi32> to vector<640x256xf32>
    %cst_9 = arith.constant dense<0.000000e+00> : vector<640x32xf32>
    %21 = tpu.matmul %20, %1, %cst_9 {dimension_numbers = #tpu.dot_dimension_numbers<[1], [0], [0], [1], [0, 0, 1, 1], [], []>} : vector<640x256xf32>, vector<256x32xf32>, vector<640x32xf32> -> vector<640x32xf32>
    %22 = tpu.iota {dimensions = array<i32: 1>} : vector<1x256xi32>
    %23 = arith.sitofp %22 : vector<1x256xi32> to vector<1x256xf32>
    %cst_10 = arith.constant dense<0.000000e+00> : vector<1x640xf32>
    %24 = tpu.matmul %23, %20, %cst_10 {dimension_numbers = #tpu.dot_dimension_numbers<[1], [1], [0], [0], [0, 0, 1, 0], [], []>} : vector<1x256xf32>, vector<640x256xf32>, vector<1x640xf32> -> vector<1x640xf32>
    %cst_11 = arith.constant 5.000000e-01 : f32
    %25 = vector.broadcast %cst_11 : f32 to vector<1x640xf32>
    %26 = arith.addf %24, %25 : vector<1x640xf32>
    %27 = arith.fptosi %26 : vector<1x640xf32> to vector<1x640xi32>
    %c0_12 = arith.constant 0 : index
    %c0_13 = arith.constant 0 : index
    %c0_14 = arith.constant 0 : index
    %28 = vector.load %arg6[%c0_12, %c0_13, %c0_14] : memref<1x1x640xi32, #tpu.memory_space<vmem>>, vector<1x1x640xi32>
    %29 = vector.shape_cast %28 : vector<1x1x640xi32> to vector<1x640xi32>
    %30 = vector.shape_cast %27 : vector<1x640xi32> to vector<1x1x640xi32>
    tpu.vector_store %arg6[%c0_12, %c0_13, %c0_14], %30 {strides = array<i32>} : memref<1x1x640xi32, #tpu.memory_space<vmem>>, vector<1x1x640xi32>,
    %31 = arith.mulf %0, %0 : vector<640x32xf32>
    %cst_15 = arith.constant dense<0.000000e+00> : vector<640xf32>
    %32 = vector.multi_reduction <add>, %31, %cst_15 [1] : vector<640x32xf32> to vector<640xf32>
    %33 = vector.shape_cast %32 : vector<640xf32> to vector<640x1xf32>
    %34 = arith.mulf %21, %21 : vector<640x32xf32>
    %cst_16 = arith.constant dense<0.000000e+00> : vector<640xf32>
    %35 = vector.multi_reduction <add>, %34, %cst_16 [1] : vector<640x32xf32> to vector<640xf32>
    %36 = vector.shape_cast %35 : vector<640xf32> to vector<640x1xf32>
    %37 = arith.mulf %0, %21 : vector<640x32xf32>
    %cst_17 = arith.constant dense<0.000000e+00> : vector<640xf32>
    %38 = vector.multi_reduction <add>, %37, %cst_17 [1] : vector<640x32xf32> to vector<640xf32>
    %39 = vector.shape_cast %38 : vector<640xf32> to vector<640x1xf32>
    %40 = arith.addf %33, %36 : vector<640x1xf32>
    %cst_18 = arith.constant 2.000000e+00 : f32
    %41 = vector.broadcast %cst_18 : f32 to vector<640x1xf32>
    %42 = arith.mulf %41, %39 : vector<640x1xf32>
    %43 = arith.subf %40, %42 : vector<640x1xf32>
    %c640_i32 = arith.constant 640 : i32
    %44 = arith.muli %arg0, %c640_i32 : i32
    %45 = tpu.iota {dimensions = array<i32: 0>} : vector<640x1xi32>
    %46 = vector.broadcast %44 : i32 to vector<640x1xi32>
    %47 = arith.addi %46, %45 : vector<640x1xi32>
    %c1200_i32 = arith.constant 1200 : i32
    %48 = vector.broadcast %c1200_i32 : i32 to vector<640x1xi32>
    %49 = arith.cmpi slt, %47, %48 : vector<640x1xi32>
    %cst_19 = arith.constant 0.000000e+00 : f32
    %50 = vector.broadcast %cst_19 : f32 to vector<640x1xf32>
    %51 = arith.select %49, %43, %50 : vector<640x1xi1>, vector<640x1xf32>
    %cst_20 = arith.constant dense<0.000000e+00> : vector<1xf32>
    %52 = vector.multi_reduction <add>, %51, %cst_20 [0] : vector<640x1xf32> to vector<1xf32>
    %53 = vector.shape_cast %52 : vector<1xf32> to vector<1x1xf32>
    %54 = vector.shape_cast %53 : vector<1x1xf32> to vector<1x1x1xf32>
    %c0_21 = arith.constant 0 : index
    %c0_22 = arith.constant 0 : index
    %c0_23 = arith.constant 0 : index
    %55 = vector.load %arg7[%c0_21, %c0_22, %c0_23] : memref<1x1x1xf32, #tpu.memory_space<vmem>>, vector<1x1x1xf32>
    tpu.vector_store %arg7[%c0_21, %c0_22, %c0_23], %54 {strides = array<i32>} : memref<1x1x1xf32, #tpu.memory_space<vmem>>, vector<1x1x1xf32>,
    %56 = math.rsqrt %33 : vector<640x1xf32>
    %cst_24 = arith.constant 1.000000e+06 : f32
    %57 = vector.broadcast %cst_24 : f32 to vector<640x1xf32>
    %58 = arith.minimumf %56, %57 : vector<640x1xf32>
    %59 = math.rsqrt %36 : vector<640x1xf32>
    %cst_25 = arith.constant 1.000000e+06 : f32
    %60 = vector.broadcast %cst_25 : f32 to vector<640x1xf32>
    %61 = arith.minimumf %59, %60 : vector<640x1xf32>
    %62 = arith.mulf %33, %58 : vector<640x1xf32>
    %63 = arith.mulf %62, %58 : vector<640x1xf32>
    %64 = arith.mulf %36, %61 : vector<640x1xf32>
    %65 = arith.mulf %64, %61 : vector<640x1xf32>
    %66 = arith.addf %63, %65 : vector<640x1xf32>
    %cst_26 = arith.constant 2.000000e+00 : f32
    %67 = vector.broadcast %cst_26 : f32 to vector<640x1xf32>
    %68 = arith.mulf %67, %39 : vector<640x1xf32>
    %69 = arith.mulf %58, %61 : vector<640x1xf32>
    %70 = arith.mulf %68, %69 : vector<640x1xf32>
    %71 = arith.addf %66, %70 : vector<640x1xf32>
    %72 = math.rsqrt %71 : vector<640x1xf32>
    %cst_27 = arith.constant 9.99999995E+11 : f32
    %73 = vector.broadcast %cst_27 : f32 to vector<640x1xf32>
    %74 = arith.minimumf %72, %73 : vector<640x1xf32>
    %75 = arith.mulf %33, %58 : vector<640x1xf32>
    %76 = arith.mulf %39, %61 : vector<640x1xf32>
    %77 = arith.addf %75, %76 : vector<640x1xf32>
    %78 = arith.mulf %77, %74 : vector<640x1xf32>
    %79 = arith.mulf %33, %58 : vector<640x1xf32>
    %cst_28 = arith.constant 2.000000e+00 : f32
    %80 = vector.broadcast %cst_28 : f32 to vector<640x1xf32>
    %81 = arith.mulf %80, %78 : vector<640x1xf32>
    %82 = arith.mulf %81, %74 : vector<640x1xf32>
    %83 = math.sqrt %36 : vector<640x1xf32>
    %84 = arith.mulf %83, %58 : vector<640x1xf32>
    %85 = arith.mulf %82, %58 : vector<640x1xf32>
    %cst_29 = arith.constant 1.000000e+00 : f32
    %86 = vector.broadcast %cst_29 : f32 to vector<640x1xf32>
    %87 = arith.subf %86, %85 : vector<640x1xf32>
    %88 = arith.mulf %87, %84 : vector<640x1xf32>
    %cst_30 = arith.constant 2.000000e+00 : f32
    %89 = vector.broadcast %cst_30 : f32 to vector<640x1xf32>
    %90 = arith.mulf %89, %79 : vector<640x1xf32>
    %91 = arith.subf %90, %82 : vector<640x1xf32>
    %92 = arith.mulf %91, %61 : vector<640x1xf32>
    %93 = arith.mulf %92, %84 : vector<640x1xf32>
    %94 = vector.broadcast %88 : vector<640x1xf32> to vector<640x32xf32>
    %95 = arith.mulf %0, %94 : vector<640x32xf32>
    %96 = vector.broadcast %93 : vector<640x1xf32> to vector<640x32xf32>
    %97 = arith.mulf %21, %96 : vector<640x32xf32>
    %98 = arith.addf %95, %97 : vector<640x32xf32>
    %c0_31 = arith.constant 0 : index
    %c0_32 = arith.constant 0 : index
    %99 = vector.load %arg5[%c0_31, %c0_32] : memref<640x32xf32, #tpu.memory_space<vmem>>, vector<640x32xf32>
    tpu.vector_store %arg5[%c0_31, %c0_32], %98 {strides = array<i32>} : memref<640x32xf32, #tpu.memory_space<vmem>>, vector<640x32xf32>,
    return
  }
  func.func @transform_0(%arg0: i32) -> (i32, i32) {
    %c0_i32 = arith.constant 0 : i32
    %c0_i32_0 = arith.constant 0 : i32
    return %arg0, %c0_i32 : i32, i32
  }
  func.func @transform_1(%arg0: i32) -> (i32, i32) {
    %c0_i32 = arith.constant 0 : i32
    %c0_i32_0 = arith.constant 0 : i32
    %c0_i32_1 = arith.constant 0 : i32
    return %c0_i32, %c0_i32_0 : i32, i32
  }
  func.func @transform_2(%arg0: i32) -> (i32, i32) {
    %c0_i32 = arith.constant 0 : i32
    %c0_i32_0 = arith.constant 0 : i32
    %c0_i32_1 = arith.constant 0 : i32
    return %c0_i32, %c0_i32_0 : i32, i32
  }
  func.func @transform_3(%arg0: i32) -> (i32, i32) {
    %c0_i32 = arith.constant 0 : i32
    %c0_i32_0 = arith.constant 0 : i32
    %c0_i32_1 = arith.constant 0 : i32
    return %c0_i32, %c0_i32_0 : i32, i32
  }
  func.func @transform_4(%arg0: i32) -> (i32, i32) {
    %c0_i32 = arith.constant 0 : i32
    %c0_i32_0 = arith.constant 0 : i32
    return %arg0, %c0_i32 : i32, i32
  }
  func.func @transform_5(%arg0: i32) -> (i32, i32, i32) {
    %c0_i32 = arith.constant 0 : i32
    %c0_i32_0 = arith.constant 0 : i32
    %c0_i32_1 = arith.constant 0 : i32
    return %arg0, %c0_i32, %c0_i32_0 : i32, i32, i32
  }
  func.func @transform_6(%arg0: i32) -> (i32, i32, i32) {
    %c0_i32 = arith.constant 0 : i32
    %c0_i32_0 = arith.constant 0 : i32
    %c0_i32_1 = arith.constant 0 : i32
    return %arg0, %c0_i32, %c0_i32_0 : i32, i32, i32
  }
}

</mosaic_0001>

<llo_original>
// kernel: tpu_custom_call.1
$region0: #{tpu_custom_call.1}
  #allocation0 [shape = 'u32[]', space=smem, size = 0x4, offset = 0x4, fixed_abs, tag = 'smem constant byte address 0x4 - core index']
  #allocation1 [shape = 'u32[144,128]{1,0:T(1,128)}', space=vmem, size = 0x12000, scoped, tag = 'internal scratch']
  %s0 = inlined_call_operand.vmem [shape: f32[1280,32], index: 0, kind: input, shape index: {}]
  %s1 = inlined_call_operand.vmem [shape: f32[256,32], index: 1, kind: input, shape index: {}]
  %s2 = inlined_call_operand.vmem [shape: bf16[256,32], index: 2, kind: input, shape index: {}]
  %s3 = inlined_call_operand.vmem [shape: f32[1,256], index: 3, kind: input, shape index: {}]
  %s4 = inlined_call_operand.vmem [shape: f32[1280,32], index: 4, kind: output, shape index: {0}]
  %s5 = inlined_call_operand.hbm [shape: s32[2,1,640], index: 5, kind: output, shape index: {1}]
  %s6 = inlined_call_operand.vmem [shape: f32[2,1,1], index: 6, kind: output, shape index: {2}]
  %7 = xla_tuple %s4, %s5, %s6
  %s8 = sld [smem:[#allocation0]]
  $region65: #{tpu_custom_call.1} parent=0
    _
  %s10 = ssub.s32 1, %s8
  %s11 = scalar_select 0, %s10, %s8
  $region1: #{tpu_custom_call.1} parent=0
    #allocation2 [shape = 'u8[5120]{0}', space=vmem, size = 0x1400, scoped, tag = 'output window, operand 1']
    #allocation3 [shape = 's32[2]{0}', space=sflag, size = 0x8, scoped, tag = 'scoped memory for tpu_custom_call.1']
    %12 = vsyncpa [#allocation3], 0
    %s13 = scalar_lea.sflag [#allocation3], 1
    %14 = vsyncpa %s13, 0
    loop: start=0, step=1, limit=4
    $region2: #{tpu_custom_call.1} parent=1 // loop_pre_header
      _
    $region3: #{tpu_custom_call.1} parent=1 // loop_header
      %s16 = sphi 0, %s20
      %p17 = scmp.ge.s32.totalorder %s16, 4
      %s26 = sphi 0, %s28
      %s29 = sphi 0, %s26
      %s30 = sphi 0, %s29
      %s46 = sphi 0, %s30
      %s50 = sphi 0, %s50
      %s52 = sphi 0, %s50
      %s53 = sphi 0, %s52
      %s67 = sphi 0, %s53
      %s71 = sphi 0, %s71
      %s73 = sphi 0, %s71
      %s74 = sphi 0, %s73
      %s88 = sphi 0, %s74
      %s92 = sphi 0, %s92
      %s94 = sphi 0, %s92
      %s95 = sphi 0, %s94
      %s109 = sphi 0, %s95
      %s115 = sphi 0, %s117
      %s118 = sphi 0, %s115
      %s119 = sphi 0, %s118
      %s135 = sphi 0, %s119
      %s141 = sphi 0, %s143
      %s144 = sphi 0, %s141
      %s145 = sphi 0, %s144
      %s161 = sphi 0, %s145
      %s167 = sphi 0, %s169
      %s170 = sphi 0, %s167
      %s171 = sphi 0, %s170
      %s187 = sphi 0, %s171
    $region4: #{tpu_custom_call.1} parent=1 // loop_header_branch
      %19 = sbr.rel (%p17) target = $region8
    $region5: #{tpu_custom_call.1} parent=1 // loop_body
      %s21 = ssub.s32 %s16, 1
      %s22 = ssub.s32 %s16, 2
      %s23 = sadd.s32 %s16, 1
      %s24 = ssub.s32 %s16, %s23
      %p25 = scmp.eq.s32.totalorder %s24, 0
      %s27 = sadd.s32 %s26, 1
      %s28 = scalar_select %p25, %s26, %s27
      %p31 = pneg %p25
      %p32 = scmp.eq.s32.totalorder %s16, 1
      %p33 = por %p31, %p32
      %p34 = scmp.ne.s32.totalorder %s26, %s29
      %p35 = scmp.eq.s32.totalorder %s16, 0
      %p36 = por %p34, %p35
      %p37 = scmp.ne.s32.totalorder %s26, %s29
      %p38 = scmp.eq.s32.totalorder %s21, 1
      %p39 = por %p37, %p38
      %p40 = scmp.ne.s32.totalorder %s29, %s30
      %p41 = scmp.eq.s32.totalorder %s21, 0
      %p42 = por %p40, %p41
      %p43 = scmp.ne.s32.totalorder %s29, %s30
      %p44 = scmp.eq.s32.totalorder %s22, 1
      %p45 = por %p43, %p44
      %p47 = scmp.ne.s32.totalorder %s30, %s46
      %p48 = scmp.eq.s32.totalorder %s22, 0
      %p49 = por %p47, %p48
      %s51 = sadd.s32 %s50, 1
      %p54 = scmp.eq.s32.totalorder %s16, 1
      %p55 = scmp.ne.s32.totalorder %s50, %s52
      %p56 = scmp.eq.s32.totalorder %s16, 0
      %p57 = por %p55, %p56
      %p58 = scmp.ne.s32.totalorder %s50, %s52
      %p59 = scmp.eq.s32.totalorder %s21, 1
      %p60 = por %p58, %p59
      %p61 = scmp.ne.s32.totalorder %s52, %s53
      %p62 = scmp.eq.s32.totalorder %s21, 0
      %p63 = por %p61, %p62
      %p64 = scmp.ne.s32.totalorder %s52, %s53
      %p65 = scmp.eq.s32.totalorder %s22, 1
      %p66 = por %p64, %p65
      %p68 = scmp.ne.s32.totalorder %s53, %s67
      %p69 = scmp.eq.s32.totalorder %s22, 0
      %p70 = por %p68, %p69
      %s72 = sadd.s32 %s71, 1
      %p75 = scmp.eq.s32.totalorder %s16, 1
      %p76 = scmp.ne.s32.totalorder %s71, %s73
      %p77 = scmp.eq.s32.totalorder %s16, 0
      %p78 = por %p76, %p77
      %p79 = scmp.ne.s32.totalorder %s71, %s73
      %p80 = scmp.eq.s32.totalorder %s21, 1
      %p81 = por %p79, %p80
      %p82 = scmp.ne.s32.totalorder %s73, %s74
      %p83 = scmp.eq.s32.totalorder %s21, 0
      %p84 = por %p82, %p83
      %p85 = scmp.ne.s32.totalorder %s73, %s74
      %p86 = scmp.eq.s32.totalorder %s22, 1
      %p87 = por %p85, %p86
      %p89 = scmp.ne.s32.totalorder %s74, %s88
      %p90 = scmp.eq.s32.totalorder %s22, 0
      %p91 = por %p89, %p90
      %s93 = sadd.s32 %s92, 1
      %p96 = scmp.eq.s32.totalorder %s16, 1
      %p97 = scmp.ne.s32.totalorder %s92, %s94
      %p98 = scmp.eq.s32.totalorder %s16, 0
      %p99 = por %p97, %p98
      %p100 = scmp.ne.s32.totalorder %s92, %s94
      %p101 = scmp.eq.s32.totalorder %s21, 1
      %p102 = por %p100, %p101
      %p103 = scmp.ne.s32.totalorder %s94, %s95
      %p104 = scmp.eq.s32.totalorder %s21, 0
      %p105 = por %p103, %p104
      %p106 = scmp.ne.s32.totalorder %s94, %s95
      %p107 = scmp.eq.s32.totalorder %s22, 1
      %p108 = por %p106, %p107
      %p110 = scmp.ne.s32.totalorder %s95, %s109
      %p111 = scmp.eq.s32.totalorder %s22, 0
      %p112 = por %p110, %p111
      %s113 = ssub.s32 %s16, %s23
      %p114 = scmp.eq.s32.totalorder %s113, 0
      %s116 = sadd.s32 %s115, 1
      %s117 = scalar_select %p114, %s115, %s116
      %p120 = pneg %p114
      %p121 = scmp.eq.s32.totalorder %s16, 1
      %p122 = por %p120, %p121
      %p123 = scmp.ne.s32.totalorder %s115, %s118
      %p124 = scmp.eq.s32.totalorder %s16, 0
      %p125 = por %p123, %p124
      %p126 = scmp.ne.s32.totalorder %s115, %s118
      %p127 = scmp.eq.s32.totalorder %s21, 1
      %p128 = por %p126, %p127
      %p129 = scmp.ne.s32.totalorder %s118, %s119
      %p130 = scmp.eq.s32.totalorder %s21, 0
      %p131 = por %p129, %p130
      %p132 = scmp.ne.s32.totalorder %s118, %s119
      %p133 = scmp.eq.s32.totalorder %s22, 1
      %p134 = por %p132, %p133
      %p136 = scmp.ne.s32.totalorder %s119, %s135
      %p137 = scmp.eq.s32.totalorder %s22, 0
      %p138 = por %p136, %p137
      %s139 = ssub.s32 %s16, %s23
      %p140 = scmp.eq.s32.totalorder %s139, 0
      %s142 = sadd.s32 %s141, 1
      %s143 = scalar_select %p140, %s141, %s142
      %p146 = pneg %p140
      %p147 = scmp.eq.s32.totalorder %s16, 1
      %p148 = por %p146, %p147
      %p149 = scmp.ne.s32.totalorder %s141, %s144
      %p150 = scmp.eq.s32.totalorder %s16, 0
      %p151 = por %p149, %p150
      %p152 = scmp.ne.s32.totalorder %s141, %s144
      %p153 = scmp.eq.s32.totalorder %s21, 1
      %p154 = por %p152, %p153
      %p155 = scmp.ne.s32.totalorder %s144, %s145
      %p156 = scmp.eq.s32.totalorder %s21, 0
      %p157 = por %p155, %p156
      %p158 = scmp.ne.s32.totalorder %s144, %s145
      %p159 = scmp.eq.s32.totalorder %s22, 1
      %p160 = por %p158, %p159
      %p162 = scmp.ne.s32.totalorder %s145, %s161
      %p163 = scmp.eq.s32.totalorder %s22, 0
      %p164 = por %p162, %p163
      %s165 = ssub.s32 %s16, %s23
      %p166 = scmp.eq.s32.totalorder %s165, 0
      %s168 = sadd.s32 %s167, 1
      %s169 = scalar_select %p166, %s167, %s168
      %p172 = pneg %p166
      %p173 = scmp.eq.s32.totalorder %s16, 1
      %p174 = por %p172, %p173
      %p175 = scmp.ne.s32.totalorder %s167, %s170
      %p176 = scmp.eq.s32.totalorder %s16, 0
      %p177 = por %p175, %p176
      %p178 = scmp.ne.s32.totalorder %s167, %s170
      %p179 = scmp.eq.s32.totalorder %s21, 1
      %p180 = por %p178, %p179
      %p181 = scmp.ne.s32.totalorder %s170, %s171
      %p182 = scmp.eq.s32.totalorder %s21, 0
      %p183 = por %p181, %p182
      %p184 = scmp.ne.s32.totalorder %s170, %s171
      %p185 = scmp.eq.s32.totalorder %s22, 1
      %p186 = por %p184, %p185
      %p188 = scmp.ne.s32.totalorder %s171, %s187
      %p189 = scmp.eq.s32.totalorder %s22, 0
      %p190 = por %p188, %p189
      %p191 = scmp.le.s32.totalorder 1, %s16
      %p192 = scmp.lt.s32.totalorder %s16, 3
      %p193 = pnand %p191, %p192
      %p194 = pneg %p193
      // Predicated region
      $region9: #{tpu_custom_call.1} parent=5 // pred_check
        _
      $region10: #{tpu_custom_call.1} parent=5 // pred_check_branch
        %196 = sbr.rel (%p193) target = $region12
      $region11: #{tpu_custom_call.1} parent=5 // pred_region
        %s197 = ssub.s32 %s16, 1
        // Predicated region
        $region13: #{tpu_custom_call.1} parent=11 // pred_check
          %p198 = pneg %p63
        $region14: #{tpu_custom_call.1} parent=11 // pred_check_branch
          %200 = sbr.rel (%p198) target = $region16
        $region15: #{tpu_custom_call.1} parent=11 // pred_region
          _
        $region16: #{tpu_custom_call.1} parent=11 // pred_fallthru
          _
        // Predicated region
        $region17: #{tpu_custom_call.1} parent=11 // pred_check
          %p201 = pneg %p84
        $region18: #{tpu_custom_call.1} parent=11 // pred_check_branch
          %203 = sbr.rel (%p201) target = $region20
        $region19: #{tpu_custom_call.1} parent=11 // pred_region
          _
        $region20: #{tpu_custom_call.1} parent=11 // pred_fallthru
          _
        // Predicated region
        $region21: #{tpu_custom_call.1} parent=11 // pred_check
          %p204 = pneg %p105
        $region22: #{tpu_custom_call.1} parent=11 // pred_check_branch
          %206 = sbr.rel (%p204) target = $region24
        $region23: #{tpu_custom_call.1} parent=11 // pred_region
          _
        $region24: #{tpu_custom_call.1} parent=11 // pred_fallthru
          _
      $region12: #{tpu_custom_call.1} parent=5 // pred_fallthru
        _
      %p207 = scmp.lt.s32.totalorder %s16, 2
      // Predicated region
      $region25: #{tpu_custom_call.1} parent=5 // pred_check
        %p208 = pneg %p207
      $region26: #{tpu_custom_call.1} parent=5 // pred_check_branch
        %210 = sbr.rel (%p208) target = $region28
      $region27: #{tpu_custom_call.1} parent=5 // pred_region
        // Predicated region
        $region29: #{tpu_custom_call.1} parent=27 // pred_check
          %p211 = pneg %p36
        $region30: #{tpu_custom_call.1} parent=27 // pred_check_branch
          %213 = sbr.rel (%p211) target = $region32
        $region31: #{tpu_custom_call.1} parent=27 // pred_region
          %s214 = smul.u32 80, %s16
          %p215 = scmp.lt.s32.totalorder %s214, 159
          %s216 = scalar_select %p215, %s214, 159
          %s217 = smul.addr %s216, 8
          %s218 = scalar_lea.vmem %s0, %s217
          %s219 = smul.u32 80, %s16
        $region32: #{tpu_custom_call.1} parent=27 // pred_fallthru
          _
      $region28: #{tpu_custom_call.1} parent=5 // pred_fallthru
        _
      %p220 = scmp.le.s32.totalorder 1, %s16
      %p221 = scmp.lt.s32.totalorder %s16, 3
      %p222 = pnand %p220, %p221
      %p223 = pneg %p222
      // Predicated region
      $region33: #{tpu_custom_call.1} parent=5 // pred_check
        _
      $region34: #{tpu_custom_call.1} parent=5 // pred_check_branch
        %225 = sbr.rel (%p222) target = $region36
      $region35: #{tpu_custom_call.1} parent=5 // pred_region
        %s226 = ssub.s32 %s16, 1
        %s227 = smul.u32 80, %s21
        %p228 = scmp.lt.s32.totalorder %s227, 159
        %s229 = scalar_select %p228, %s227, 159
        %s230 = smul.addr %s229, 8
        %s231 = scalar_lea.vmem %s0, %s230
        %p232 = pneg %p42
        %p233 = pneg %p39
        %p234 = pneg %p63
        %p235 = pneg %p60
        %p236 = pneg %p84
        %p237 = pneg %p81
        %p238 = pneg %p105
        %p239 = pneg %p102
        %p240 = pneg %p131
        %p241 = pneg %p128
        %s242 = smul.u32 80, %s21
        %p243 = scmp.lt.s32.totalorder %s242, 159
        %s244 = scalar_select %p243, %s242, 159
        %s245 = smul.addr %s244, 8
        %s246 = scalar_lea.vmem %s4, %s245
        %p247 = pneg %p157
        %p248 = pneg %p154
        %s249 = sand.u32 %s144, 1
        %s250 = scalar_lea.sflag [#allocation3], %s249
        %s251 = sand.u32 %s144, 1
        %s252 = smul.addr %s251, 5
        %s253 = scalar_lea.vmem [#allocation2], %s252
        %p254 = pneg %p183
        %p255 = pneg %p180
        %p256 = scmp.lt.s32.totalorder %s21, 1
        %s257 = scalar_select %p256, %s21, 1
        %s258 = scalar_lea.vmem %s6, %s257
        %s259 = smul.u32 80, %s21
        %p260 = scmp.lt.s32.totalorder %s259, 159
        %s261 = scalar_select %p260, %s259, 159
        %s262 = smul.addr %s261, 8
        %s263 = scalar_lea.vmem %s0, %s262
        %s264 = smul.u32 80, %s21
        %s265 = smul.u32 80, %s21
        %p266 = scmp.lt.s32.totalorder %s265, 159
        %s267 = scalar_select %p266, %s265, 159
        %s268 = smul.addr %s267, 8
        %s269 = scalar_lea.vmem %s4, %s268
        %s270 = smul.u32 80, %s21
        %p271 = scmp.lt.s32.totalorder %s21, 1
        %s272 = scalar_select %p271, %s21, 1
        %s273 = scalar_lea.vmem %s6, %s272
        %v275 = vld [vmem:[%s263] sm:$0xff]
        %v276 = vld [vmem:[%s263 + $0x8] sm:$0xff]
        %v277 = vld [vmem:[%s263 + $0x10] sm:$0xff]
        %v278 = vld [vmem:[%s263 + $0x18] sm:$0xff]
        %v279 = vld [vmem:[%s263 + $0x20] sm:$0xff]
        %v280 = vld [vmem:[%s263 + $0x28] sm:$0xff]
        %v281 = vld [vmem:[%s263 + $0x30] sm:$0xff]
        %v282 = vld [vmem:[%s263 + $0x38] sm:$0xff]
        %v283 = vld [vmem:[%s263 + $0x40] sm:$0xff]
        %v284 = vld [vmem:[%s263 + $0x48] sm:$0xff]
        %v285 = vld [vmem:[%s263 + $0x50] sm:$0xff]
        %v286 = vld [vmem:[%s263 + $0x58] sm:$0xff]
        %v287 = vld [vmem:[%s263 + $0x60] sm:$0xff]
        %v288 = vld [vmem:[%s263 + $0x68] sm:$0xff]
        %v289 = vld [vmem:[%s263 + $0x70] sm:$0xff]
        %v290 = vld [vmem:[%s263 + $0x78] sm:$0xff]
        %v291 = vld [vmem:[%s263 + $0x80] sm:$0xff]
        %v292 = vld [vmem:[%s263 + $0x88] sm:$0xff]
        %v293 = vld [vmem:[%s263 + $0x90] sm:$0xff]
        %v294 = vld [vmem:[%s263 + $0x98] sm:$0xff]
        %v295 = vld [vmem:[%s263 + $0xa0] sm:$0xff]
        %v296 = vld [vmem:[%s263 + $0xa8] sm:$0xff]
        %v297 = vld [vmem:[%s263 + $0xb0] sm:$0xff]
        %v298 = vld [vmem:[%s263 + $0xb8] sm:$0xff]
        %v299 = vld [vmem:[%s263 + $0xc0] sm:$0xff]
        %v300 = vld [vmem:[%s263 + $0xc8] sm:$0xff]
        %v301 = vld [vmem:[%s263 + $0xd0] sm:$0xff]
        %v302 = vld [vmem:[%s263 + $0xd8] sm:$0xff]
        %v303 = vld [vmem:[%s263 + $0xe0] sm:$0xff]
        %v304 = vld [vmem:[%s263 + $0xe8] sm:$0xff]
        %v305 = vld [vmem:[%s263 + $0xf0] sm:$0xff]
        %v306 = vld [vmem:[%s263 + $0xf8] sm:$0xff]
        %v307 = vld [vmem:[%s263 + $0x100] sm:$0xff]
        %v308 = vld [vmem:[%s263 + $0x108] sm:$0xff]
        %v309 = vld [vmem:[%s263 + $0x110] sm:$0xff]
        %v310 = vld [vmem:[%s263 + $0x118] sm:$0xff]
        %v311 = vld [vmem:[%s263 + $0x120] sm:$0xff]
        %v312 = vld [vmem:[%s263 + $0x128] sm:$0xff]
        %v313 = vld [vmem:[%s263 + $0x130] sm:$0xff]
        %v314 = vld [vmem:[%s263 + $0x138] sm:$0xff]
        %v315 = vld [vmem:[%s263 + $0x140] sm:$0xff]
        %v316 = vld [vmem:[%s263 + $0x148] sm:$0xff]
        %v317 = vld [vmem:[%s263 + $0x150] sm:$0xff]
        %v318 = vld [vmem:[%s263 + $0x158] sm:$0xff]
        %v319 = vld [vmem:[%s263 + $0x160] sm:$0xff]
        %v320 = vld [vmem:[%s263 + $0x168] sm:$0xff]
        %v321 = vld [vmem:[%s263 + $0x170] sm:$0xff]
        %v322 = vld [vmem:[%s263 + $0x178] sm:$0xff]
        %v323 = vld [vmem:[%s263 + $0x180] sm:$0xff]
        %v324 = vld [vmem:[%s263 + $0x188] sm:$0xff]
        %v325 = vld [vmem:[%s263 + $0x190] sm:$0xff]
        %v326 = vld [vmem:[%s263 + $0x198] sm:$0xff]
        %v327 = vld [vmem:[%s263 + $0x1a0] sm:$0xff]
        %v328 = vld [vmem:[%s263 + $0x1a8] sm:$0xff]
        %v329 = vld [vmem:[%s263 + $0x1b0] sm:$0xff]
        %v330 = vld [vmem:[%s263 + $0x1b8] sm:$0xff]
        %v331 = vld [vmem:[%s263 + $0x1c0] sm:$0xff]
        %v332 = vld [vmem:[%s263 + $0x1c8] sm:$0xff]
        %v333 = vld [vmem:[%s263 + $0x1d0] sm:$0xff]
        %v334 = vld [vmem:[%s263 + $0x1d8] sm:$0xff]
        %v335 = vld [vmem:[%s263 + $0x1e0] sm:$0xff]
        %v336 = vld [vmem:[%s263 + $0x1e8] sm:$0xff]
        %v337 = vld [vmem:[%s263 + $0x1f0] sm:$0xff]
        %v338 = vld [vmem:[%s263 + $0x1f8] sm:$0xff]
        %v339 = vld [vmem:[%s263 + $0x200] sm:$0xff]
        %v340 = vld [vmem:[%s263 + $0x208] sm:$0xff]
        %v341 = vld [vmem:[%s263 + $0x210] sm:$0xff]
        %v342 = vld [vmem:[%s263 + $0x218] sm:$0xff]
        %v343 = vld [vmem:[%s263 + $0x220] sm:$0xff]
        %v344 = vld [vmem:[%s263 + $0x228] sm:$0xff]
        %v345 = vld [vmem:[%s263 + $0x230] sm:$0xff]
        %v346 = vld [vmem:[%s263 + $0x238] sm:$0xff]
        %v347 = vld [vmem:[%s263 + $0x240] sm:$0xff]
        %v348 = vld [vmem:[%s263 + $0x248] sm:$0xff]
        %v349 = vld [vmem:[%s263 + $0x250] sm:$0xff]
        %v350 = vld [vmem:[%s263 + $0x258] sm:$0xff]
        %v351 = vld [vmem:[%s263 + $0x260] sm:$0xff]
        %v352 = vld [vmem:[%s263 + $0x268] sm:$0xff]
        %v353 = vld [vmem:[%s263 + $0x270] sm:$0xff]
        %v354 = vld [vmem:[%s263 + $0x278] sm:$0xff]
        %v355 = vld [vmem:[%s1] sm:$0xff]
        %v356 = vld [vmem:[%s1 + $0x8] sm:$0xff]
        %v357 = vld [vmem:[%s1 + $0x10] sm:$0xff]
        %v358 = vld [vmem:[%s1 + $0x18] sm:$0xff]
        %v359 = vld [vmem:[%s1 + $0x20] sm:$0xff]
        %v360 = vld [vmem:[%s1 + $0x28] sm:$0xff]
        %v361 = vld [vmem:[%s1 + $0x30] sm:$0xff]
        %v362 = vld [vmem:[%s1 + $0x38] sm:$0xff]
        %v363 = vld [vmem:[%s1 + $0x40] sm:$0xff]
        %v364 = vld [vmem:[%s1 + $0x48] sm:$0xff]
        %v365 = vld [vmem:[%s1 + $0x50] sm:$0xff]
        %v366 = vld [vmem:[%s1 + $0x58] sm:$0xff]
        %v367 = vld [vmem:[%s1 + $0x60] sm:$0xff]
        %v368 = vld [vmem:[%s1 + $0x68] sm:$0xff]
        %v369 = vld [vmem:[%s1 + $0x70] sm:$0xff]
        %v370 = vld [vmem:[%s1 + $0x78] sm:$0xff]
        %v371 = vld [vmem:[%s1 + $0x80] sm:$0xff]
        %v372 = vld [vmem:[%s1 + $0x88] sm:$0xff]
        %v373 = vld [vmem:[%s1 + $0x90] sm:$0xff]
        %v374 = vld [vmem:[%s1 + $0x98] sm:$0xff]
        %v375 = vld [vmem:[%s1 + $0xa0] sm:$0xff]
        %v376 = vld [vmem:[%s1 + $0xa8] sm:$0xff]
        %v377 = vld [vmem:[%s1 + $0xb0] sm:$0xff]
        %v378 = vld [vmem:[%s1 + $0xb8] sm:$0xff]
        %v379 = vld [vmem:[%s1 + $0xc0] sm:$0xff]
        %v380 = vld [vmem:[%s1 + $0xc8] sm:$0xff]
        %v381 = vld [vmem:[%s1 + $0xd0] sm:$0xff]
        %v382 = vld [vmem:[%s1 + $0xd8] sm:$0xff]
        %v383 = vld [vmem:[%s1 + $0xe0] sm:$0xff]
        %v384 = vld [vmem:[%s1 + $0xe8] sm:$0xff]
        %v385 = vld [vmem:[%s1 + $0xf0] sm:$0xff]
        %v386 = vld [vmem:[%s1 + $0xf8] sm:$0xff]
        %v387 = vld [vmem:[%s2] sm:$0xf]
        %v388 = vld [vmem:[%s2 + $0x4] sm:$0xf]
        %v389 = vld [vmem:[%s2 + $0x8] sm:$0xf]
        %v390 = vld [vmem:[%s2 + $0xc] sm:$0xf]
        %v391 = vld [vmem:[%s2 + $0x10] sm:$0xf]
        %v392 = vld [vmem:[%s2 + $0x14] sm:$0xf]
        %v393 = vld [vmem:[%s2 + $0x18] sm:$0xf]
        %v394 = vld [vmem:[%s2 + $0x1c] sm:$0xf]
        %v395 = vld [vmem:[%s2 + $0x20] sm:$0xf]
        %v396 = vld [vmem:[%s2 + $0x24] sm:$0xf]
        %v397 = vld [vmem:[%s2 + $0x28] sm:$0xf]
        %v398 = vld [vmem:[%s2 + $0x2c] sm:$0xf]
        %v399 = vld [vmem:[%s2 + $0x30] sm:$0xf]
        %v400 = vld [vmem:[%s2 + $0x34] sm:$0xf]
        %v401 = vld [vmem:[%s2 + $0x38] sm:$0xf]
        %v402 = vld [vmem:[%s2 + $0x3c] sm:$0xf]
        %v403 = vld [vmem:[%s2 + $0x40] sm:$0xf]
        %v404 = vld [vmem:[%s2 + $0x44] sm:$0xf]
        %v405 = vld [vmem:[%s2 + $0x48] sm:$0xf]
        %v406 = vld [vmem:[%s2 + $0x4c] sm:$0xf]
        %v407 = vld [vmem:[%s2 + $0x50] sm:$0xf]
        %v408 = vld [vmem:[%s2 + $0x54] sm:$0xf]
        %v409 = vld [vmem:[%s2 + $0x58] sm:$0xf]
        %v410 = vld [vmem:[%s2 + $0x5c] sm:$0xf]
        %v411 = vld [vmem:[%s2 + $0x60] sm:$0xf]
        %v412 = vld [vmem:[%s2 + $0x64] sm:$0xf]
        %v413 = vld [vmem:[%s2 + $0x68] sm:$0xf]
        %v414 = vld [vmem:[%s2 + $0x6c] sm:$0xf]
        %v415 = vld [vmem:[%s2 + $0x70] sm:$0xf]
        %v416 = vld [vmem:[%s2 + $0x74] sm:$0xf]
        %v417 = vld [vmem:[%s2 + $0x78] sm:$0xf]
        %v418 = vld [vmem:[%s2 + $0x7c] sm:$0xf]
        %v419 = vld [vmem:[%s3] sm:$0x3]
        %v420 = vpack.c.bf16 %v276, %v275
        %v421 = vpack.c.bf16 %v278, %v277
        %v422 = vpack.c.bf16 %v280, %v279
        %v423 = vpack.c.bf16 %v282, %v281
        %v424 = vpack.c.bf16 %v284, %v283
        %v425 = vpack.c.bf16 %v286, %v285
        %v426 = vpack.c.bf16 %v288, %v287
        %v427 = vpack.c.bf16 %v290, %v289
        %v428 = vpack.c.bf16 %v292, %v291
        %v429 = vpack.c.bf16 %v294, %v293
        %v430 = vpack.c.bf16 %v296, %v295
        %v431 = vpack.c.bf16 %v298, %v297
        %v432 = vpack.c.bf16 %v300, %v299
        %v433 = vpack.c.bf16 %v302, %v301
        %v434 = vpack.c.bf16 %v304, %v303
        %v435 = vpack.c.bf16 %v306, %v305
        %v436 = vpack.c.bf16 %v308, %v307
        %v437 = vpack.c.bf16 %v310, %v309
        %v438 = vpack.c.bf16 %v312, %v311
        %v439 = vpack.c.bf16 %v314, %v313
        %v440 = vpack.c.bf16 %v316, %v315
        %v441 = vpack.c.bf16 %v318, %v317
        %v442 = vpack.c.bf16 %v320, %v319
        %v443 = vpack.c.bf16 %v322, %v321
        %v444 = vpack.c.bf16 %v324, %v323
        %v445 = vpack.c.bf16 %v326, %v325
        %v446 = vpack.c.bf16 %v328, %v327
        %v447 = vpack.c.bf16 %v330, %v329
        %v448 = vpack.c.bf16 %v332, %v331
        %v449 = vpack.c.bf16 %v334, %v333
        %v450 = vpack.c.bf16 %v336, %v335
        %v451 = vpack.c.bf16 %v338, %v337
        %v452 = vpack.c.bf16 %v340, %v339
        %v453 = vpack.c.bf16 %v342, %v341
        %v454 = vpack.c.bf16 %v344, %v343
        %v455 = vpack.c.bf16 %v346, %v345
        %v456 = vpack.c.bf16 %v348, %v347
        %v457 = vpack.c.bf16 %v350, %v349
        %v458 = vpack.c.bf16 %v352, %v351
        %v459 = vpack.c.bf16 %v354, %v353
        %v492 = vunpack.c.l.b16 %v387
        %v493 = vunpack.c.l.b16 %v388
        %v494 = vunpack.c.l.b16 %v389
        %v495 = vunpack.c.l.b16 %v390
        %v496 = vunpack.c.l.b16 %v391
        %v497 = vunpack.c.l.b16 %v392
        %v498 = vunpack.c.l.b16 %v393
        %v499 = vunpack.c.l.b16 %v394
        %v500 = vunpack.c.l.b16 %v395
        %v501 = vunpack.c.l.b16 %v396
        %v502 = vunpack.c.l.b16 %v397
        %v503 = vunpack.c.l.b16 %v398
        %v504 = vunpack.c.l.b16 %v399
        %v505 = vunpack.c.l.b16 %v400
        %v506 = vunpack.c.l.b16 %v401
        %v507 = vunpack.c.l.b16 %v402
        %v508 = vunpack.c.l.b16 %v403
        %v509 = vunpack.c.l.b16 %v404
        %v510 = vunpack.c.l.b16 %v405
        %v511 = vunpack.c.l.b16 %v406
        %v512 = vunpack.c.l.b16 %v407
        %v513 = vunpack.c.l.b16 %v408
        %v514 = vunpack.c.l.b16 %v409
        %v515 = vunpack.c.l.b16 %v410
        %v516 = vunpack.c.l.b16 %v411
        %v517 = vunpack.c.l.b16 %v412
        %v518 = vunpack.c.l.b16 %v413
        %v519 = vunpack.c.l.b16 %v414
        %v520 = vunpack.c.l.b16 %v415
        %v521 = vunpack.c.l.b16 %v416
        %v522 = vunpack.c.l.b16 %v417
        %v523 = vunpack.c.l.b16 %v418
        %v524 = vpack.c.b16 %v493, %v492
        %v525 = vpack.c.b16 %v495, %v494
        %v526 = vpack.c.b16 %v497, %v496
        %v527 = vpack.c.b16 %v499, %v498
        %v528 = vpack.c.b16 %v501, %v500
        %v529 = vpack.c.b16 %v503, %v502
        %v530 = vpack.c.b16 %v505, %v504
        %v531 = vpack.c.b16 %v507, %v506
        %v532 = vpack.c.b16 %v509, %v508
        %v533 = vpack.c.b16 %v511, %v510
        %v534 = vpack.c.b16 %v513, %v512
        %v535 = vpack.c.b16 %v515, %v514
        %v536 = vpack.c.b16 %v517, %v516
        %v537 = vpack.c.b16 %v519, %v518
        %v538 = vpack.c.b16 %v521, %v520
        %v539 = vpack.c.b16 %v523, %v522
        %vm540 = vcmask 261120
        %v542 = vsel %vm540, %v420, 0
        %v545 = vsel %vm540, %v421, 0
        %v548 = vsel %vm540, %v422, 0
        %v551 = vsel %vm540, %v423, 0
        %v554 = vsel %vm540, %v424, 0
        %v557 = vsel %vm540, %v425, 0
        %v560 = vsel %vm540, %v426, 0
        %v563 = vsel %vm540, %v427, 0
        %v566 = vsel %vm540, %v428, 0
        %v569 = vsel %vm540, %v429, 0
        %v572 = vsel %vm540, %v430, 0
        %v575 = vsel %vm540, %v431, 0
        %v578 = vsel %vm540, %v432, 0
        %v581 = vsel %vm540, %v433, 0
        %v584 = vsel %vm540, %v434, 0
        %v587 = vsel %vm540, %v435, 0
        %v590 = vsel %vm540, %v436, 0
        %v593 = vsel %vm540, %v437, 0
        %v596 = vsel %vm540, %v438, 0
        %v599 = vsel %vm540, %v439, 0
        %v602 = vsel %vm540, %v440, 0
        %v605 = vsel %vm540, %v441, 0
        %v608 = vsel %vm540, %v442, 0
        %v611 = vsel %vm540, %v443, 0
        %v614 = vsel %vm540, %v444, 0
        %v617 = vsel %vm540, %v445, 0
        %v620 = vsel %vm540, %v446, 0
        %v623 = vsel %vm540, %v447, 0
        %v626 = vsel %vm540, %v448, 0
        %v629 = vsel %vm540, %v449, 0
        %v632 = vsel %vm540, %v450, 0
        %v635 = vsel %vm540, %v451, 0
        %v638 = vsel %vm540, %v452, 0
        %v641 = vsel %vm540, %v453, 0
        %v644 = vsel %vm540, %v454, 0
        %v647 = vsel %vm540, %v455, 0
        %v650 = vsel %vm540, %v456, 0
        %v653 = vsel %vm540, %v457, 0
        %v656 = vsel %vm540, %v458, 0
        %v659 = vsel %vm540, %v459, 0
        %v662 = vsel %vm540, %v524, 0
        %v665 = vsel %vm540, %v525, 0
        %v668 = vsel %vm540, %v526, 0
        %v671 = vsel %vm540, %v527, 0
        %v674 = vsel %vm540, %v528, 0
        %v677 = vsel %vm540, %v529, 0
        %v680 = vsel %vm540, %v530, 0
        %v683 = vsel %vm540, %v531, 0
        %v686 = vsel %vm540, %v532, 0
        %v689 = vsel %vm540, %v533, 0
        %v692 = vsel %vm540, %v534, 0
        %v695 = vsel %vm540, %v535, 0
        %v698 = vsel %vm540, %v536, 0
        %v701 = vsel %vm540, %v537, 0
        %v704 = vsel %vm540, %v538, 0
        %v707 = vsel %vm540, %v539, 0
        %709 = vmatprep.subr.bf16.mxu0 0
        %710 = vmatpush1.bf16.xpose.msra.mxu0 %v662
        %711 = vmatprep.subr.bf16.mxu0 0
        %712 = vmatpush1.bf16.xpose.msra.mxu0 %v665
        %713 = vmatprep.subr.bf16.mxu0 0
        %714 = vmatpush1.bf16.xpose.msra.mxu0 %v668
        %715 = vmatprep.subr.bf16.mxu0 0
        %716 = vmatpush1.bf16.xpose.msra.mxu0 %v671
        %717 = vmatprep.subr.bf16.mxu0 0
        %718 = vmatpush1.bf16.xpose.msra.mxu0 %v674
        %719 = vmatprep.subr.bf16.mxu0 0
        %720 = vmatpush1.bf16.xpose.msra.mxu0 %v677
        %721 = vmatprep.subr.bf16.mxu0 0
        %722 = vmatpush1.bf16.xpose.msra.mxu0 %v680
        %723 = vmatprep.subr.bf16.mxu0 0
        %724 = vmatpush1.bf16.xpose.msra.mxu0 %v683
        %725 = vmatprep.subr.bf16.mxu0 0
        %726 = vmatpush1.bf16.xpose.msra.mxu0 %v686
        %727 = vmatprep.subr.bf16.mxu0 0
        %728 = vmatpush1.bf16.xpose.msra.mxu0 %v689
        %729 = vmatprep.subr.bf16.mxu0 0
        %730 = vmatpush1.bf16.xpose.msra.mxu0 %v692
        %731 = vmatprep.subr.bf16.mxu0 0
        %732 = vmatpush1.bf16.xpose.msra.mxu0 %v695
        %733 = vmatprep.subr.bf16.mxu0 0
        %734 = vmatpush1.bf16.xpose.msra.mxu0 %v698
        %735 = vmatprep.subr.bf16.mxu0 0
        %736 = vmatpush1.bf16.xpose.msra.mxu0 %v701
        %737 = vmatprep.subr.bf16.mxu0 0
        %738 = vmatpush1.bf16.xpose.msra.mxu0 %v704
        %739 = vmatprep.subr.bf16.mxu0 0
        %740 = vmatpush1.bf16.xpose.msra.mxu0 %v707
        %741 = vmatprep.mubr.bf16.mxu0 0
        %742 = vmatmul.mubr.bf16.gmra.mrb[0].mxu0 %v542
        %v743 = vpop.f32.mrb[0].mxu0
        %v744 = vadd.f32 0.0, %v743
        %v745 = vpop.f32.mrb[0].mxu0
        %v746 = vadd.f32 0.0, %v745
        %v747 = vpop.f32.mrb[0].mxu0
        %v748 = vadd.f32 0.0, %v747
        %v749 = vpop.f32.mrb[0].mxu0
        %v750 = vadd.f32 0.0, %v749
        %751 = vmatprep.mubr.bf16.mxu0 0
        %752 = vmatmul.mubr.bf16.gmra.mrb[0].mxu0 %v545
        %v753 = vpop.f32.mrb[0].mxu0
        %v754 = vadd.f32 0.0, %v753
        %v755 = vpop.f32.mrb[0].mxu0
        %v756 = vadd.f32 0.0, %v755
        %v757 = vpop.f32.mrb[0].mxu0
        %v758 = vadd.f32 0.0, %v757
        %v759 = vpop.f32.mrb[0].mxu0
        %v760 = vadd.f32 0.0, %v759
        %761 = vmatprep.mubr.bf16.mxu0 0
        %762 = vmatmul.mubr.bf16.gmra.mrb[0].mxu0 %v548
        %v763 = vpop.f32.mrb[0].mxu0
        %v764 = vadd.f32 0.0, %v763
        %v765 = vpop.f32.mrb[0].mxu0
        %v766 = vadd.f32 0.0, %v765
        %v767 = vpop.f32.mrb[0].mxu0
        %v768 = vadd.f32 0.0, %v767
        %v769 = vpop.f32.mrb[0].mxu0
        %v770 = vadd.f32 0.0, %v769
        %771 = vmatprep.mubr.bf16.mxu0 0
        %772 = vmatmul.mubr.bf16.gmra.mrb[0].mxu0 %v551
        %v773 = vpop.f32.mrb[0].mxu0
        %v774 = vadd.f32 0.0, %v773
        %v775 = vpop.f32.mrb[0].mxu0
        %v776 = vadd.f32 0.0, %v775
        %v777 = vpop.f32.mrb[0].mxu0
        %v778 = vadd.f32 0.0, %v777
        %v779 = vpop.f32.mrb[0].mxu0
        %v780 = vadd.f32 0.0, %v779
        %781 = vmatprep.mubr.bf16.mxu0 0
        %782 = vmatmul.mubr.bf16.gmra.mrb[0].mxu0 %v554
        %v783 = vpop.f32.mrb[0].mxu0
        %v784 = vadd.f32 0.0, %v783
        %v785 = vpop.f32.mrb[0].mxu0
        %v786 = vadd.f32 0.0, %v785
        %v787 = vpop.f32.mrb[0].mxu0
        %v788 = vadd.f32 0.0, %v787
        %v789 = vpop.f32.mrb[0].mxu0
        %v790 = vadd.f32 0.0, %v789
        %791 = vmatprep.mubr.bf16.mxu0 0
        %792 = vmatmul.mubr.bf16.gmra.mrb[0].mxu0 %v557
        %v793 = vpop.f32.mrb[0].mxu0
        %v794 = vadd.f32 0.0, %v793
        %v795 = vpop.f32.mrb[0].mxu0
        %v796 = vadd.f32 0.0, %v795
        %v797 = vpop.f32.mrb[0].mxu0
        %v798 = vadd.f32 0.0, %v797
        %v799 = vpop.f32.mrb[0].mxu0
        %v800 = vadd.f32 0.0, %v799
        %801 = vmatprep.mubr.bf16.mxu0 0
        %802 = vmatmul.mubr.bf16.gmra.mrb[0].mxu0 %v560
        %v803 = vpop.f32.mrb[0].mxu0
        %v804 = vadd.f32 0.0, %v803
        %v805 = vpop.f32.mrb[0].mxu0
        %v806 = vadd.f32 0.0, %v805
        %v807 = vpop.f32.mrb[0].mxu0
        %v808 = vadd.f32 0.0, %v807
        %v809 = vpop.f32.mrb[0].mxu0
        %v810 = vadd.f32 0.0, %v809
        %811 = vmatprep.mubr.bf16.mxu0 0
        %812 = vmatmul.mubr.bf16.gmra.mrb[0].mxu0 %v563
        %v813 = vpop.f32.mrb[0].mxu0
        %v814 = vadd.f32 0.0, %v813
        %v815 = vpop.f32.mrb[0].mxu0
        %v816 = vadd.f32 0.0, %v815
        %v817 = vpop.f32.mrb[0].mxu0
        %v818 = vadd.f32 0.0, %v817
        %v819 = vpop.f32.mrb[0].mxu0
        %v820 = vadd.f32 0.0, %v819
        %821 = vmatprep.mubr.bf16.mxu0 0
        %822 = vmatmul.mubr.bf16.gmra.mrb[0].mxu0 %v566
        %v823 = vpop.f32.mrb[0].mxu0
        %v824 = vadd.f32 0.0, %v823
        %v825 = vpop.f32.mrb[0].mxu0
        %v826 = vadd.f32 0.0, %v825
        %v827 = vpop.f32.mrb[0].mxu0
        %v828 = vadd.f32 0.0, %v827
        %v829 = vpop.f32.mrb[0].mxu0
        %v830 = vadd.f32 0.0, %v829
        %831 = vmatprep.mubr.bf16.mxu0 0
        %832 = vmatmul.mubr.bf16.gmra.mrb[0].mxu0 %v569
        %v833 = vpop.f32.mrb[0].mxu0
        %v834 = vadd.f32 0.0, %v833
        %v835 = vpop.f32.mrb[0].mxu0
        %v836 = vadd.f32 0.0, %v835
        %v837 = vpop.f32.mrb[0].mxu0
        %v838 = vadd.f32 0.0, %v837
        %v839 = vpop.f32.mrb[0].mxu0
        %v840 = vadd.f32 0.0, %v839
        %841 = vmatprep.mubr.bf16.mxu0 0
        %842 = vmatmul.mubr.bf16.gmra.mrb[0].mxu0 %v572
        %v843 = vpop.f32.mrb[0].mxu0
        %v844 = vadd.f32 0.0, %v843
        %v845 = vpop.f32.mrb[0].mxu0
        %v846 = vadd.f32 0.0, %v845
        %v847 = vpop.f32.mrb[0].mxu0
        %v848 = vadd.f32 0.0, %v847
        %v849 = vpop.f32.mrb[0].mxu0
        %v850 = vadd.f32 0.0, %v849
        %851 = vmatprep.mubr.bf16.mxu0 0
        %852 = vmatmul.mubr.bf16.gmra.mrb[0].mxu0 %v575
        %v853 = vpop.f32.mrb[0].mxu0
        %v854 = vadd.f32 0.0, %v853
        %v855 = vpop.f32.mrb[0].mxu0
        %v856 = vadd.f32 0.0, %v855
        %v857 = vpop.f32.mrb[0].mxu0
        %v858 = vadd.f32 0.0, %v857
        %v859 = vpop.f32.mrb[0].mxu0
        %v860 = vadd.f32 0.0, %v859
        %861 = vmatprep.mubr.bf16.mxu0 0
        %862 = vmatmul.mubr.bf16.gmra.mrb[0].mxu0 %v578
        %v863 = vpop.f32.mrb[0].mxu0
        %v864 = vadd.f32 0.0, %v863
        %v865 = vpop.f32.mrb[0].mxu0
        %v866 = vadd.f32 0.0, %v865
        %v867 = vpop.f32.mrb[0].mxu0
        %v868 = vadd.f32 0.0, %v867
        %v869 = vpop.f32.mrb[0].mxu0
        %v870 = vadd.f32 0.0, %v869
        %871 = vmatprep.mubr.bf16.mxu0 0
        %872 = vmatmul.mubr.bf16.gmra.mrb[0].mxu0 %v581
        %v873 = vpop.f32.mrb[0].mxu0
        %v874 = vadd.f32 0.0, %v873
        %v875 = vpop.f32.mrb[0].mxu0
        %v876 = vadd.f32 0.0, %v875
        %v877 = vpop.f32.mrb[0].mxu0
        %v878 = vadd.f32 0.0, %v877
        %v879 = vpop.f32.mrb[0].mxu0
        %v880 = vadd.f32 0.0, %v879
        %881 = vmatprep.mubr.bf16.mxu0 0
        %882 = vmatmul.mubr.bf16.gmra.mrb[0].mxu0 %v584
        %v883 = vpop.f32.mrb[0].mxu0
        %v884 = vadd.f32 0.0, %v883
        %v885 = vpop.f32.mrb[0].mxu0
        %v886 = vadd.f32 0.0, %v885
        %v887 = vpop.f32.mrb[0].mxu0
        %v888 = vadd.f32 0.0, %v887
        %v889 = vpop.f32.mrb[0].mxu0
        %v890 = vadd.f32 0.0, %v889
        %891 = vmatprep.mubr.bf16.mxu0 0
        %892 = vmatmul.mubr.bf16.gmra.mrb[0].mxu0 %v587
        %v893 = vpop.f32.mrb[0].mxu0
        %v894 = vadd.f32 0.0, %v893
        %v895 = vpop.f32.mrb[0].mxu0
        %v896 = vadd.f32 0.0, %v895
        %v897 = vpop.f32.mrb[0].mxu0
        %v898 = vadd.f32 0.0, %v897
        %v899 = vpop.f32.mrb[0].mxu0
        %v900 = vadd.f32 0.0, %v899
        %901 = vmatprep.mubr.bf16.mxu0 0
        %902 = vmatmul.mubr.bf16.gmra.mrb[0].mxu0 %v590
        %v903 = vpop.f32.mrb[0].mxu0
        %v904 = vadd.f32 0.0, %v903
        %v905 = vpop.f32.mrb[0].mxu0
        %v906 = vadd.f32 0.0, %v905
        %v907 = vpop.f32.mrb[0].mxu0
        %v908 = vadd.f32 0.0, %v907
        %v909 = vpop.f32.mrb[0].mxu0
        %v910 = vadd.f32 0.0, %v909
        %911 = vmatprep.mubr.bf16.mxu0 0
        %912 = vmatmul.mubr.bf16.gmra.mrb[0].mxu0 %v593
        %v913 = vpop.f32.mrb[0].mxu0
        %v914 = vadd.f32 0.0, %v913
        %v915 = vpop.f32.mrb[0].mxu0
        %v916 = vadd.f32 0.0, %v915
        %v917 = vpop.f32.mrb[0].mxu0
        %v918 = vadd.f32 0.0, %v917
        %v919 = vpop.f32.mrb[0].mxu0
        %v920 = vadd.f32 0.0, %v919
        %921 = vmatprep.mubr.bf16.mxu0 0
        %922 = vmatmul.mubr.bf16.gmra.mrb[0].mxu0 %v596
        %v923 = vpop.f32.mrb[0].mxu0
        %v924 = vadd.f32 0.0, %v923
        %v925 = vpop.f32.mrb[0].mxu0
        %v926 = vadd.f32 0.0, %v925
        %v927 = vpop.f32.mrb[0].mxu0
        %v928 = vadd.f32 0.0, %v927
        %v929 = vpop.f32.mrb[0].mxu0
        %v930 = vadd.f32 0.0, %v929
        %931 = vmatprep.mubr.bf16.mxu0 0
        %932 = vmatmul.mubr.bf16.gmra.mrb[0].mxu0 %v599
        %v933 = vpop.f32.mrb[0].mxu0
        %v934 = vadd.f32 0.0, %v933
        %v935 = vpop.f32.mrb[0].mxu0
        %v936 = vadd.f32 0.0, %v935
        %v937 = vpop.f32.mrb[0].mxu0
        %v938 = vadd.f32 0.0, %v937
        %v939 = vpop.f32.mrb[0].mxu0
        %v940 = vadd.f32 0.0, %v939
        %941 = vmatprep.mubr.bf16.mxu0 0
        %942 = vmatmul.mubr.bf16.gmra.mrb[0].mxu0 %v602
        %v943 = vpop.f32.mrb[0].mxu0
        %v944 = vadd.f32 0.0, %v943
        %v945 = vpop.f32.mrb[0].mxu0
        %v946 = vadd.f32 0.0, %v945
        %v947 = vpop.f32.mrb[0].mxu0
        %v948 = vadd.f32 0.0, %v947
        %v949 = vpop.f32.mrb[0].mxu0
        %v950 = vadd.f32 0.0, %v949
        %951 = vmatprep.mubr.bf16.mxu0 0
        %952 = vmatmul.mubr.bf16.gmra.mrb[0].mxu0 %v605
        %v953 = vpop.f32.mrb[0].mxu0
        %v954 = vadd.f32 0.0, %v953
        %v955 = vpop.f32.mrb[0].mxu0
        %v956 = vadd.f32 0.0, %v955
        %v957 = vpop.f32.mrb[0].mxu0
        %v958 = vadd.f32 0.0, %v957
        %v959 = vpop.f32.mrb[0].mxu0
        %v960 = vadd.f32 0.0, %v959
        %961 = vmatprep.mubr.bf16.mxu0 0
        %962 = vmatmul.mubr.bf16.gmra.mrb[0].mxu0 %v608
        %v963 = vpop.f32.mrb[0].mxu0
        %v964 = vadd.f32 0.0, %v963
        %v965 = vpop.f32.mrb[0].mxu0
        %v966 = vadd.f32 0.0, %v965
        %v967 = vpop.f32.mrb[0].mxu0
        %v968 = vadd.f32 0.0, %v967
        %v969 = vpop.f32.mrb[0].mxu0
        %v970 = vadd.f32 0.0, %v969
        %971 = vmatprep.mubr.bf16.mxu0 0
        %972 = vmatmul.mubr.bf16.gmra.mrb[0].mxu0 %v611
        %v973 = vpop.f32.mrb[0].mxu0
        %v974 = vadd.f32 0.0, %v973
        %v975 = vpop.f32.mrb[0].mxu0
        %v976 = vadd.f32 0.0, %v975
        %v977 = vpop.f32.mrb[0].mxu0
        %v978 = vadd.f32 0.0, %v977
        %v979 = vpop.f32.mrb[0].mxu0
        %v980 = vadd.f32 0.0, %v979
        %981 = vmatprep.mubr.bf16.mxu0 0
        %982 = vmatmul.mubr.bf16.gmra.mrb[0].mxu0 %v614
        %v983 = vpop.f32.mrb[0].mxu0
        %v984 = vadd.f32 0.0, %v983
        %v985 = vpop.f32.mrb[0].mxu0
        %v986 = vadd.f32 0.0, %v985
        %v987 = vpop.f32.mrb[0].mxu0
        %v988 = vadd.f32 0.0, %v987
        %v989 = vpop.f32.mrb[0].mxu0
        %v990 = vadd.f32 0.0, %v989
        %991 = vmatprep.mubr.bf16.mxu0 0
        %992 = vmatmul.mubr.bf16.gmra.mrb[0].mxu0 %v617
        %v993 = vpop.f32.mrb[0].mxu0
        %v994 = vadd.f32 0.0, %v993
        %v995 = vpop.f32.mrb[0].mxu0
        %v996 = vadd.f32 0.0, %v995
        %v997 = vpop.f32.mrb[0].mxu0
        %v998 = vadd.f32 0.0, %v997
        %v999 = vpop.f32.mrb[0].mxu0
        %v1000 = vadd.f32 0.0, %v999
        %1001 = vmatprep.mubr.bf16.mxu0 0
        %1002 = vmatmul.mubr.bf16.gmra.mrb[0].mxu0 %v620
        %v1003 = vpop.f32.mrb[0].mxu0
        %v1004 = vadd.f32 0.0, %v1003
        %v1005 = vpop.f32.mrb[0].mxu0
        %v1006 = vadd.f32 0.0, %v1005
        %v1007 = vpop.f32.mrb[0].mxu0
        %v1008 = vadd.f32 0.0, %v1007
        %v1009 = vpop.f32.mrb[0].mxu0
        %v1010 = vadd.f32 0.0, %v1009
        %1011 = vmatprep.mubr.bf16.mxu0 0
        %1012 = vmatmul.mubr.bf16.gmra.mrb[0].mxu0 %v623
        %v1013 = vpop.f32.mrb[0].mxu0
        %v1014 = vadd.f32 0.0, %v1013
        %v1015 = vpop.f32.mrb[0].mxu0
        %v1016 = vadd.f32 0.0, %v1015
        %v1017 = vpop.f32.mrb[0].mxu0
        %v1018 = vadd.f32 0.0, %v1017
        %v1019 = vpop.f32.mrb[0].mxu0
        %v1020 = vadd.f32 0.0, %v1019
        %1021 = vmatprep.mubr.bf16.mxu0 0
        %1022 = vmatmul.mubr.bf16.gmra.mrb[0].mxu0 %v626
        %v1023 = vpop.f32.mrb[0].mxu0
        %v1024 = vadd.f32 0.0, %v1023
        %v1025 = vpop.f32.mrb[0].mxu0
        %v1026 = vadd.f32 0.0, %v1025
        %v1027 = vpop.f32.mrb[0].mxu0
        %v1028 = vadd.f32 0.0, %v1027
        %v1029 = vpop.f32.mrb[0].mxu0
        %v1030 = vadd.f32 0.0, %v1029
        %1031 = vmatprep.mubr.bf16.mxu0 0
        %1032 = vmatmul.mubr.bf16.gmra.mrb[0].mxu0 %v629
        %v1033 = vpop.f32.mrb[0].mxu0
        %v1034 = vadd.f32 0.0, %v1033
        %v1035 = vpop.f32.mrb[0].mxu0
        %v1036 = vadd.f32 0.0, %v1035
        %v1037 = vpop.f32.mrb[0].mxu0
        %v1038 = vadd.f32 0.0, %v1037
        %v1039 = vpop.f32.mrb[0].mxu0
        %v1040 = vadd.f32 0.0, %v1039
        %1041 = vmatprep.mubr.bf16.mxu0 0
        %1042 = vmatmul.mubr.bf16.gmra.mrb[0].mxu0 %v632
        %v1043 = vpop.f32.mrb[0].mxu0
        %v1044 = vadd.f32 0.0, %v1043
        %v1045 = vpop.f32.mrb[0].mxu0
        %v1046 = vadd.f32 0.0, %v1045
        %v1047 = vpop.f32.mrb[0].mxu0
        %v1048 = vadd.f32 0.0, %v1047
        %v1049 = vpop.f32.mrb[0].mxu0
        %v1050 = vadd.f32 0.0, %v1049
        %1051 = vmatprep.mubr.bf16.mxu0 0
        %1052 = vmatmul.mubr.bf16.gmra.mrb[0].mxu0 %v635
        %v1053 = vpop.f32.mrb[0].mxu0
        %v1054 = vadd.f32 0.0, %v1053
        %v1055 = vpop.f32.mrb[0].mxu0
        %v1056 = vadd.f32 0.0, %v1055
        %v1057 = vpop.f32.mrb[0].mxu0
        %v1058 = vadd.f32 0.0, %v1057
        %v1059 = vpop.f32.mrb[0].mxu0
        %v1060 = vadd.f32 0.0, %v1059
        %1061 = vmatprep.mubr.bf16.mxu0 0
        %1062 = vmatmul.mubr.bf16.gmra.mrb[0].mxu0 %v638
        %v1063 = vpop.f32.mrb[0].mxu0
        %v1064 = vadd.f32 0.0, %v1063
        %v1065 = vpop.f32.mrb[0].mxu0
        %v1066 = vadd.f32 0.0, %v1065
        %v1067 = vpop.f32.mrb[0].mxu0
        %v1068 = vadd.f32 0.0, %v1067
        %v1069 = vpop.f32.mrb[0].mxu0
        %v1070 = vadd.f32 0.0, %v1069
        %1071 = vmatprep.mubr.bf16.mxu0 0
        %1072 = vmatmul.mubr.bf16.gmra.mrb[0].mxu0 %v641
        %v1073 = vpop.f32.mrb[0].mxu0
        %v1074 = vadd.f32 0.0, %v1073
        %v1075 = vpop.f32.mrb[0].mxu0
        %v1076 = vadd.f32 0.0, %v1075
        %v1077 = vpop.f32.mrb[0].mxu0
        %v1078 = vadd.f32 0.0, %v1077
        %v1079 = vpop.f32.mrb[0].mxu0
        %v1080 = vadd.f32 0.0, %v1079
        %1081 = vmatprep.mubr.bf16.mxu0 0
        %1082 = vmatmul.mubr.bf16.gmra.mrb[0].mxu0 %v644
        %v1083 = vpop.f32.mrb[0].mxu0
        %v1084 = vadd.f32 0.0, %v1083
        %v1085 = vpop.f32.mrb[0].mxu0
        %v1086 = vadd.f32 0.0, %v1085
        %v1087 = vpop.f32.mrb[0].mxu0
        %v1088 = vadd.f32 0.0, %v1087
        %v1089 = vpop.f32.mrb[0].mxu0
        %v1090 = vadd.f32 0.0, %v1089
        %1091 = vmatprep.mubr.bf16.mxu0 0
        %1092 = vmatmul.mubr.bf16.gmra.mrb[0].mxu0 %v647
        %v1093 = vpop.f32.mrb[0].mxu0
        %v1094 = vadd.f32 0.0, %v1093
        %v1095 = vpop.f32.mrb[0].mxu0
        %v1096 = vadd.f32 0.0, %v1095
        %v1097 = vpop.f32.mrb[0].mxu0
        %v1098 = vadd.f32 0.0, %v1097
        %v1099 = vpop.f32.mrb[0].mxu0
        %v1100 = vadd.f32 0.0, %v1099
        %1101 = vmatprep.mubr.bf16.mxu0 0
        %1102 = vmatmul.mubr.bf16.gmra.mrb[0].mxu0 %v650
        %v1103 = vpop.f32.mrb[0].mxu0
        %v1104 = vadd.f32 0.0, %v1103
        %v1105 = vpop.f32.mrb[0].mxu0
        %v1106 = vadd.f32 0.0, %v1105
        %v1107 = vpop.f32.mrb[0].mxu0
        %v1108 = vadd.f32 0.0, %v1107
        %v1109 = vpop.f32.mrb[0].mxu0
        %v1110 = vadd.f32 0.0, %v1109
        %1111 = vmatprep.mubr.bf16.mxu0 0
        %1112 = vmatmul.mubr.bf16.gmra.mrb[0].mxu0 %v653
        %v1113 = vpop.f32.mrb[0].mxu0
        %v1114 = vadd.f32 0.0, %v1113
        %v1115 = vpop.f32.mrb[0].mxu0
        %v1116 = vadd.f32 0.0, %v1115
        %v1117 = vpop.f32.mrb[0].mxu0
        %v1118 = vadd.f32 0.0, %v1117
        %v1119 = vpop.f32.mrb[0].mxu0
        %v1120 = vadd.f32 0.0, %v1119
        %1121 = vmatprep.mubr.bf16.mxu0 0
        %1122 = vmatmul.mubr.bf16.gmra.mrb[0].mxu0 %v656
        %v1123 = vpop.f32.mrb[0].mxu0
        %v1124 = vadd.f32 0.0, %v1123
        %v1125 = vpop.f32.mrb[0].mxu0
        %v1126 = vadd.f32 0.0, %v1125
        %v1127 = vpop.f32.mrb[0].mxu0
        %v1128 = vadd.f32 0.0, %v1127
        %v1129 = vpop.f32.mrb[0].mxu0
        %v1130 = vadd.f32 0.0, %v1129
        %1131 = vmatprep.mubr.bf16.mxu0 0
        %1132 = vmatmul.mubr.bf16.gmra.mrb[0].mxu0 %v659
        %v1133 = vpop.f32.mrb[0].mxu0
        %v1134 = vadd.f32 0.0, %v1133
        %v1135 = vpop.f32.mrb[0].mxu0
        %v1136 = vadd.f32 0.0, %v1135
        %v1137 = vpop.f32.mrb[0].mxu0
        %v1138 = vadd.f32 0.0, %v1137
        %v1139 = vpop.f32.mrb[0].mxu0
        %v1140 = vadd.f32 0.0, %v1139
        %1141 = vdwg.mxu0
        %v1143 = vlaneseq
        %v1144 = vshrl.u32 %v1143, 7
        %v1145 = vsub.s32 0, %v1144
        %v1146 = vrot.slane %v419, %v1145
        %v1147 = vlaneseq
        %v1148 = vshrl.u32 %v1147, 7
        %v1149 = vsub.s32 1, %v1148
        %v1150 = vrot.slane %v419, %v1149
        %v1153 = vsub.f32 %v1146, %v744
        %v1154 = vsub.f32 %v1150, %v746
        %v1155 = vsub.f32 %v1146, %v748
        %v1156 = vsub.f32 %v1150, %v750
        %v1157 = vsub.f32 %v1146, %v754
        %v1158 = vsub.f32 %v1150, %v756
        %v1159 = vsub.f32 %v1146, %v758
        %v1160 = vsub.f32 %v1150, %v760
        %v1161 = vsub.f32 %v1146, %v764
        %v1162 = vsub.f32 %v1150, %v766
        %v1163 = vsub.f32 %v1146, %v768
        %v1164 = vsub.f32 %v1150, %v770
        %v1165 = vsub.f32 %v1146, %v774
        %v1166 = vsub.f32 %v1150, %v776
        %v1167 = vsub.f32 %v1146, %v778
        %v1168 = vsub.f32 %v1150, %v780
        %v1169 = vsub.f32 %v1146, %v784
        %v1170 = vsub.f32 %v1150, %v786
        %v1171 = vsub.f32 %v1146, %v788
        %v1172 = vsub.f32 %v1150, %v790
        %v1173 = vsub.f32 %v1146, %v794
        %v1174 = vsub.f32 %v1150, %v796
        %v1175 = vsub.f32 %v1146, %v798
        %v1176 = vsub.f32 %v1150, %v800
        %v1177 = vsub.f32 %v1146, %v804
        %v1178 = vsub.f32 %v1150, %v806
        %v1179 = vsub.f32 %v1146, %v808
        %v1180 = vsub.f32 %v1150, %v810
        %v1181 = vsub.f32 %v1146, %v814
        %v1182 = vsub.f32 %v1150, %v816
        %v1183 = vsub.f32 %v1146, %v818
        %v1184 = vsub.f32 %v1150, %v820
        %v1185 = vsub.f32 %v1146, %v824
        %v1186 = vsub.f32 %v1150, %v826
        %v1187 = vsub.f32 %v1146, %v828
        %v1188 = vsub.f32 %v1150, %v830
        %v1189 = vsub.f32 %v1146, %v834
        %v1190 = vsub.f32 %v1150, %v836
        %v1191 = vsub.f32 %v1146, %v838
        %v1192 = vsub.f32 %v1150, %v840
        %v1193 = vsub.f32 %v1146, %v844
        %v1194 = vsub.f32 %v1150, %v846
        %v1195 = vsub.f32 %v1146, %v848
        %v1196 = vsub.f32 %v1150, %v850
        %v1197 = vsub.f32 %v1146, %v854
        %v1198 = vsub.f32 %v1150, %v856
        %v1199 = vsub.f32 %v1146, %v858
        %v1200 = vsub.f32 %v1150, %v860
        %v1201 = vsub.f32 %v1146, %v864
        %v1202 = vsub.f32 %v1150, %v866
        %v1203 = vsub.f32 %v1146, %v868
        %v1204 = vsub.f32 %v1150, %v870
        %v1205 = vsub.f32 %v1146, %v874
        %v1206 = vsub.f32 %v1150, %v876
        %v1207 = vsub.f32 %v1146, %v878
        %v1208 = vsub.f32 %v1150, %v880
        %v1209 = vsub.f32 %v1146, %v884
        %v1210 = vsub.f32 %v1150, %v886
        %v1211 = vsub.f32 %v1146, %v888
        %v1212 = vsub.f32 %v1150, %v890
        %v1213 = vsub.f32 %v1146, %v894
        %v1214 = vsub.f32 %v1150, %v896
        %v1215 = vsub.f32 %v1146, %v898
        %v1216 = vsub.f32 %v1150, %v900
        %v1217 = vsub.f32 %v1146, %v904
        %v1218 = vsub.f32 %v1150, %v906
        %v1219 = vsub.f32 %v1146, %v908
        %v1220 = vsub.f32 %v1150, %v910
        %v1221 = vsub.f32 %v1146, %v914
        %v1222 = vsub.f32 %v1150, %v916
        %v1223 = vsub.f32 %v1146, %v918
        %v1224 = vsub.f32 %v1150, %v920
        %v1225 = vsub.f32 %v1146, %v924
        %v1226 = vsub.f32 %v1150, %v926
        %v1227 = vsub.f32 %v1146, %v928
        %v1228 = vsub.f32 %v1150, %v930
        %v1229 = vsub.f32 %v1146, %v934
        %v1230 = vsub.f32 %v1150, %v936
        %v1231 = vsub.f32 %v1146, %v938
        %v1232 = vsub.f32 %v1150, %v940
        %v1233 = vsub.f32 %v1146, %v944
        %v1234 = vsub.f32 %v1150, %v946
        %v1235 = vsub.f32 %v1146, %v948
        %v1236 = vsub.f32 %v1150, %v950
        %v1237 = vsub.f32 %v1146, %v954
        %v1238 = vsub.f32 %v1150, %v956
        %v1239 = vsub.f32 %v1146, %v958
        %v1240 = vsub.f32 %v1150, %v960
        %v1241 = vsub.f32 %v1146, %v964
        %v1242 = vsub.f32 %v1150, %v966
        %v1243 = vsub.f32 %v1146, %v968
        %v1244 = vsub.f32 %v1150, %v970
        %v1245 = vsub.f32 %v1146, %v974
        %v1246 = vsub.f32 %v1150, %v976
        %v1247 = vsub.f32 %v1146, %v978
        %v1248 = vsub.f32 %v1150, %v980
        %v1249 = vsub.f32 %v1146, %v984
        %v1250 = vsub.f32 %v1150, %v986
        %v1251 = vsub.f32 %v1146, %v988
        %v1252 = vsub.f32 %v1150, %v990
        %v1253 = vsub.f32 %v1146, %v994
        %v1254 = vsub.f32 %v1150, %v996
        %v1255 = vsub.f32 %v1146, %v998
        %v1256 = vsub.f32 %v1150, %v1000
        %v1257 = vsub.f32 %v1146, %v1004
        %v1258 = vsub.f32 %v1150, %v1006
        %v1259 = vsub.f32 %v1146, %v1008
        %v1260 = vsub.f32 %v1150, %v1010
        %v1261 = vsub.f32 %v1146, %v1014
        %v1262 = vsub.f32 %v1150, %v1016
        %v1263 = vsub.f32 %v1146, %v1018
        %v1264 = vsub.f32 %v1150, %v1020
        %v1265 = vsub.f32 %v1146, %v1024
        %v1266 = vsub.f32 %v1150, %v1026
        %v1267 = vsub.f32 %v1146, %v1028
        %v1268 = vsub.f32 %v1150, %v1030
        %v1269 = vsub.f32 %v1146, %v1034
        %v1270 = vsub.f32 %v1150, %v1036
        %v1271 = vsub.f32 %v1146, %v1038
        %v1272 = vsub.f32 %v1150, %v1040
        %v1273 = vsub.f32 %v1146, %v1044
        %v1274 = vsub.f32 %v1150, %v1046
        %v1275 = vsub.f32 %v1146, %v1048
        %v1276 = vsub.f32 %v1150, %v1050
        %v1277 = vsub.f32 %v1146, %v1054
        %v1278 = vsub.f32 %v1150, %v1056
        %v1279 = vsub.f32 %v1146, %v1058
        %v1280 = vsub.f32 %v1150, %v1060
        %v1281 = vsub.f32 %v1146, %v1064
        %v1282 = vsub.f32 %v1150, %v1066
        %v1283 = vsub.f32 %v1146, %v1068
        %v1284 = vsub.f32 %v1150, %v1070
        %v1285 = vsub.f32 %v1146, %v1074
        %v1286 = vsub.f32 %v1150, %v1076
        %v1287 = vsub.f32 %v1146, %v1078
        %v1288 = vsub.f32 %v1150, %v1080
        %v1289 = vsub.f32 %v1146, %v1084
        %v1290 = vsub.f32 %v1150, %v1086
        %v1291 = vsub.f32 %v1146, %v1088
        %v1292 = vsub.f32 %v1150, %v1090
        %v1293 = vsub.f32 %v1146, %v1094
        %v1294 = vsub.f32 %v1150, %v1096
        %v1295 = vsub.f32 %v1146, %v1098
        %v1296 = vsub.f32 %v1150, %v1100
        %v1297 = vsub.f32 %v1146, %v1104
        %v1298 = vsub.f32 %v1150, %v1106
        %v1299 = vsub.f32 %v1146, %v1108
        %v1300 = vsub.f32 %v1150, %v1110
        %v1301 = vsub.f32 %v1146, %v1114
        %v1302 = vsub.f32 %v1150, %v1116
        %v1303 = vsub.f32 %v1146, %v1118
        %v1304 = vsub.f32 %v1150, %v1120
        %v1305 = vsub.f32 %v1146, %v1124
        %v1306 = vsub.f32 %v1150, %v1126
        %v1307 = vsub.f32 %v1146, %v1128
        %v1308 = vsub.f32 %v1150, %v1130
        %v1309 = vsub.f32 %v1146, %v1134
        %v1310 = vsub.f32 %v1150, %v1136
        %v1311 = vsub.f32 %v1146, %v1138
        %v1312 = vsub.f32 %v1150, %v1140
        %v1313 = vmin.f32 %v1153, %v1154
        %1314 = vmin.xlane.f32.xlu0 %v1313
        %v1315 = vpop.xlane.xlu0 %1314
        %v1316 = vmin.f32 %v1155, %v1156
        %1317 = vmin.xlane.f32.xlu0 %v1316
        %v1318 = vpop.xlane.xlu0 %1317
        %v1319 = vmin.f32 %v1157, %v1158
        %1320 = vmin.xlane.f32.xlu0 %v1319
        %v1321 = vpop.xlane.xlu0 %1320
        %v1322 = vmin.f32 %v1159, %v1160
        %1323 = vmin.xlane.f32.xlu0 %v1322
        %v1324 = vpop.xlane.xlu0 %1323
        %v1325 = vmin.f32 %v1161, %v1162
        %1326 = vmin.xlane.f32.xlu0 %v1325
        %v1327 = vpop.xlane.xlu0 %1326
        %v1328 = vmin.f32 %v1163, %v1164
        %1329 = vmin.xlane.f32.xlu0 %v1328
        %v1330 = vpop.xlane.xlu0 %1329
        %v1331 = vmin.f32 %v1165, %v1166
        %1332 = vmin.xlane.f32.xlu0 %v1331
        %v1333 = vpop.xlane.xlu0 %1332
        %v1334 = vmin.f32 %v1167, %v1168
        %1335 = vmin.xlane.f32.xlu0 %v1334
        %v1336 = vpop.xlane.xlu0 %1335
        %v1337 = vmin.f32 %v1169, %v1170
        %1338 = vmin.xlane.f32.xlu0 %v1337
        %v1339 = vpop.xlane.xlu0 %1338
        %v1340 = vmin.f32 %v1171, %v1172
        %1341 = vmin.xlane.f32.xlu0 %v1340
        %v1342 = vpop.xlane.xlu0 %1341
        %v1343 = vmin.f32 %v1173, %v1174
        %1344 = vmin.xlane.f32.xlu0 %v1343
        %v1345 = vpop.xlane.xlu0 %1344
        %v1346 = vmin.f32 %v1175, %v1176
        %1347 = vmin.xlane.f32.xlu0 %v1346
        %v1348 = vpop.xlane.xlu0 %1347
        %v1349 = vmin.f32 %v1177, %v1178
        %1350 = vmin.xlane.f32.xlu0 %v1349
        %v1351 = vpop.xlane.xlu0 %1350
        %v1352 = vmin.f32 %v1179, %v1180
        %1353 = vmin.xlane.f32.xlu0 %v1352
        %v1354 = vpop.xlane.xlu0 %1353
        %v1355 = vmin.f32 %v1181, %v1182
        %1356 = vmin.xlane.f32.xlu0 %v1355
        %v1357 = vpop.xlane.xlu0 %1356
        %v1358 = vmin.f32 %v1183, %v1184
        %1359 = vmin.xlane.f32.xlu0 %v1358
        %v1360 = vpop.xlane.xlu0 %1359
        %v1361 = vmin.f32 %v1185, %v1186
        %1362 = vmin.xlane.f32.xlu0 %v1361
        %v1363 = vpop.xlane.xlu0 %1362
        %v1364 = vmin.f32 %v1187, %v1188
        %1365 = vmin.xlane.f32.xlu0 %v1364
        %v1366 = vpop.xlane.xlu0 %1365
        %v1367 = vmin.f32 %v1189, %v1190
        %1368 = vmin.xlane.f32.xlu0 %v1367
        %v1369 = vpop.xlane.xlu0 %1368
        %v1370 = vmin.f32 %v1191, %v1192
        %1371 = vmin.xlane.f32.xlu0 %v1370
        %v1372 = vpop.xlane.xlu0 %1371
        %v1373 = vmin.f32 %v1193, %v1194
        %1374 = vmin.xlane.f32.xlu0 %v1373
        %v1375 = vpop.xlane.xlu0 %1374
        %v1376 = vmin.f32 %v1195, %v1196
        %1377 = vmin.xlane.f32.xlu0 %v1376
        %v1378 = vpop.xlane.xlu0 %1377
        %v1379 = vmin.f32 %v1197, %v1198
        %1380 = vmin.xlane.f32.xlu0 %v1379
        %v1381 = vpop.xlane.xlu0 %1380
        %v1382 = vmin.f32 %v1199, %v1200
        %1383 = vmin.xlane.f32.xlu0 %v1382
        %v1384 = vpop.xlane.xlu0 %1383
        %v1385 = vmin.f32 %v1201, %v1202
        %1386 = vmin.xlane.f32.xlu0 %v1385
        %v1387 = vpop.xlane.xlu0 %1386
        %v1388 = vmin.f32 %v1203, %v1204
        %1389 = vmin.xlane.f32.xlu0 %v1388
        %v1390 = vpop.xlane.xlu0 %1389
        %v1391 = vmin.f32 %v1205, %v1206
        %1392 = vmin.xlane.f32.xlu0 %v1391
        %v1393 = vpop.xlane.xlu0 %1392
        %v1394 = vmin.f32 %v1207, %v1208
        %1395 = vmin.xlane.f32.xlu0 %v1394
        %v1396 = vpop.xlane.xlu0 %1395
        %v1397 = vmin.f32 %v1209, %v1210
        %1398 = vmin.xlane.f32.xlu0 %v1397
        %v1399 = vpop.xlane.xlu0 %1398
        %v1400 = vmin.f32 %v1211, %v1212
        %1401 = vmin.xlane.f32.xlu0 %v1400
        %v1402 = vpop.xlane.xlu0 %1401
        %v1403 = vmin.f32 %v1213, %v1214
        %1404 = vmin.xlane.f32.xlu0 %v1403
        %v1405 = vpop.xlane.xlu0 %1404
        %v1406 = vmin.f32 %v1215, %v1216
        %1407 = vmin.xlane.f32.xlu0 %v1406
        %v1408 = vpop.xlane.xlu0 %1407
        %v1409 = vmin.f32 %v1217, %v1218
        %1410 = vmin.xlane.f32.xlu0 %v1409
        %v1411 = vpop.xlane.xlu0 %1410
        %v1412 = vmin.f32 %v1219, %v1220
        %1413 = vmin.xlane.f32.xlu0 %v1412
        %v1414 = vpop.xlane.xlu0 %1413
        %v1415 = vmin.f32 %v1221, %v1222
        %1416 = vmin.xlane.f32.xlu0 %v1415
        %v1417 = vpop.xlane.xlu0 %1416
        %v1418 = vmin.f32 %v1223, %v1224
        %1419 = vmin.xlane.f32.xlu0 %v1418
        %v1420 = vpop.xlane.xlu0 %1419
        %v1421 = vmin.f32 %v1225, %v1226
        %1422 = vmin.xlane.f32.xlu0 %v1421
        %v1423 = vpop.xlane.xlu0 %1422
        %v1424 = vmin.f32 %v1227, %v1228
        %1425 = vmin.xlane.f32.xlu0 %v1424
        %v1426 = vpop.xlane.xlu0 %1425
        %v1427 = vmin.f32 %v1229, %v1230
        %1428 = vmin.xlane.f32.xlu0 %v1427
        %v1429 = vpop.xlane.xlu0 %1428
        %v1430 = vmin.f32 %v1231, %v1232
        %1431 = vmin.xlane.f32.xlu0 %v1430
        %v1432 = vpop.xlane.xlu0 %1431
        %v1433 = vmin.f32 %v1233, %v1234
        %1434 = vmin.xlane.f32.xlu0 %v1433
        %v1435 = vpop.xlane.xlu0 %1434
        %v1436 = vmin.f32 %v1235, %v1236
        %1437 = vmin.xlane.f32.xlu0 %v1436
        %v1438 = vpop.xlane.xlu0 %1437
        %v1439 = vmin.f32 %v1237, %v1238
        %1440 = vmin.xlane.f32.xlu0 %v1439
        %v1441 = vpop.xlane.xlu0 %1440
        %v1442 = vmin.f32 %v1239, %v1240
        %1443 = vmin.xlane.f32.xlu0 %v1442
        %v1444 = vpop.xlane.xlu0 %1443
        %v1445 = vmin.f32 %v1241, %v1242
        %1446 = vmin.xlane.f32.xlu0 %v1445
        %v1447 = vpop.xlane.xlu0 %1446
        %v1448 = vmin.f32 %v1243, %v1244
        %1449 = vmin.xlane.f32.xlu0 %v1448
        %v1450 = vpop.xlane.xlu0 %1449
        %v1451 = vmin.f32 %v1245, %v1246
        %1452 = vmin.xlane.f32.xlu0 %v1451
        %v1453 = vpop.xlane.xlu0 %1452
        %v1454 = vmin.f32 %v1247, %v1248
        %1455 = vmin.xlane.f32.xlu0 %v1454
        %v1456 = vpop.xlane.xlu0 %1455
        %v1457 = vmin.f32 %v1249, %v1250
        %1458 = vmin.xlane.f32.xlu0 %v1457
        %v1459 = vpop.xlane.xlu0 %1458
        %v1460 = vmin.f32 %v1251, %v1252
        %1461 = vmin.xlane.f32.xlu0 %v1460
        %v1462 = vpop.xlane.xlu0 %1461
        %v1463 = vmin.f32 %v1253, %v1254
        %1464 = vmin.xlane.f32.xlu0 %v1463
        %v1465 = vpop.xlane.xlu0 %1464
        %v1466 = vmin.f32 %v1255, %v1256
        %1467 = vmin.xlane.f32.xlu0 %v1466
        %v1468 = vpop.xlane.xlu0 %1467
        %v1469 = vmin.f32 %v1257, %v1258
        %1470 = vmin.xlane.f32.xlu0 %v1469
        %v1471 = vpop.xlane.xlu0 %1470
        %v1472 = vmin.f32 %v1259, %v1260
        %1473 = vmin.xlane.f32.xlu0 %v1472
        %v1474 = vpop.xlane.xlu0 %1473
        %v1475 = vmin.f32 %v1261, %v1262
        %1476 = vmin.xlane.f32.xlu0 %v1475
        %v1477 = vpop.xlane.xlu0 %1476
        %v1478 = vmin.f32 %v1263, %v1264
        %1479 = vmin.xlane.f32.xlu0 %v1478
        %v1480 = vpop.xlane.xlu0 %1479
        %v1481 = vmin.f32 %v1265, %v1266
        %1482 = vmin.xlane.f32.xlu0 %v1481
        %v1483 = vpop.xlane.xlu0 %1482
        %v1484 = vmin.f32 %v1267, %v1268
        %1485 = vmin.xlane.f32.xlu0 %v1484
        %v1486 = vpop.xlane.xlu0 %1485
        %v1487 = vmin.f32 %v1269, %v1270
        %1488 = vmin.xlane.f32.xlu0 %v1487
        %v1489 = vpop.xlane.xlu0 %1488
        %v1490 = vmin.f32 %v1271, %v1272
        %1491 = vmin.xlane.f32.xlu0 %v1490
        %v1492 = vpop.xlane.xlu0 %1491
        %v1493 = vmin.f32 %v1273, %v1274
        %1494 = vmin.xlane.f32.xlu0 %v1493
        %v1495 = vpop.xlane.xlu0 %1494
        %v1496 = vmin.f32 %v1275, %v1276
        %1497 = vmin.xlane.f32.xlu0 %v1496
        %v1498 = vpop.xlane.xlu0 %1497
        %v1499 = vmin.f32 %v1277, %v1278
        %1500 = vmin.xlane.f32.xlu0 %v1499
        %v1501 = vpop.xlane.xlu0 %1500
        %v1502 = vmin.f32 %v1279, %v1280
        %1503 = vmin.xlane.f32.xlu0 %v1502
        %v1504 = vpop.xlane.xlu0 %1503
        %v1505 = vmin.f32 %v1281, %v1282
        %1506 = vmin.xlane.f32.xlu0 %v1505
        %v1507 = vpop.xlane.xlu0 %1506
        %v1508 = vmin.f32 %v1283, %v1284
        %1509 = vmin.xlane.f32.xlu0 %v1508
        %v1510 = vpop.xlane.xlu0 %1509
        %v1511 = vmin.f32 %v1285, %v1286
        %1512 = vmin.xlane.f32.xlu0 %v1511
        %v1513 = vpop.xlane.xlu0 %1512
        %v1514 = vmin.f32 %v1287, %v1288
        %1515 = vmin.xlane.f32.xlu0 %v1514
        %v1516 = vpop.xlane.xlu0 %1515
        %v1517 = vmin.f32 %v1289, %v1290
        %1518 = vmin.xlane.f32.xlu0 %v1517
        %v1519 = vpop.xlane.xlu0 %1518
        %v1520 = vmin.f32 %v1291, %v1292
        %1521 = vmin.xlane.f32.xlu0 %v1520
        %v1522 = vpop.xlane.xlu0 %1521
        %v1523 = vmin.f32 %v1293, %v1294
        %1524 = vmin.xlane.f32.xlu0 %v1523
        %v1525 = vpop.xlane.xlu0 %1524
        %v1526 = vmin.f32 %v1295, %v1296
        %1527 = vmin.xlane.f32.xlu0 %v1526
        %v1528 = vpop.xlane.xlu0 %1527
        %v1529 = vmin.f32 %v1297, %v1298
        %1530 = vmin.xlane.f32.xlu0 %v1529
        %v1531 = vpop.xlane.xlu0 %1530
        %v1532 = vmin.f32 %v1299, %v1300
        %1533 = vmin.xlane.f32.xlu0 %v1532
        %v1534 = vpop.xlane.xlu0 %1533
        %v1535 = vmin.f32 %v1301, %v1302
        %1536 = vmin.xlane.f32.xlu0 %v1535
        %v1537 = vpop.xlane.xlu0 %1536
        %v1538 = vmin.f32 %v1303, %v1304
        %1539 = vmin.xlane.f32.xlu0 %v1538
        %v1540 = vpop.xlane.xlu0 %1539
        %v1541 = vmin.f32 %v1305, %v1306
        %1542 = vmin.xlane.f32.xlu0 %v1541
        %v1543 = vpop.xlane.xlu0 %1542
        %v1544 = vmin.f32 %v1307, %v1308
        %1545 = vmin.xlane.f32.xlu0 %v1544
        %v1546 = vpop.xlane.xlu0 %1545
        %v1547 = vmin.f32 %v1309, %v1310
        %1548 = vmin.xlane.f32.xlu0 %v1547
        %v1549 = vpop.xlane.xlu0 %1548
        %v1550 = vmin.f32 %v1311, %v1312
        %1551 = vmin.xlane.f32.xlu0 %v1550
        %v1552 = vpop.xlane.xlu0 %1551
        %v1553 = vlaneseq
        %v1554 = vand.u32 %v1553, 127
        %v1555 = vadd.s32 %v1554, 128
        %vm1556 = vcmp.le.f32.partialorder %v1153, %v1315
        %vm1557 = vcmp.le.f32.partialorder %v1154, %v1315
        %vm1558 = vcmp.le.f32.partialorder %v1155, %v1318
        %vm1559 = vcmp.le.f32.partialorder %v1156, %v1318
        %vm1560 = vcmp.le.f32.partialorder %v1157, %v1321
        %vm1561 = vcmp.le.f32.partialorder %v1158, %v1321
        %vm1562 = vcmp.le.f32.partialorder %v1159, %v1324
        %vm1563 = vcmp.le.f32.partialorder %v1160, %v1324
        %vm1564 = vcmp.le.f32.partialorder %v1161, %v1327
        %vm1565 = vcmp.le.f32.partialorder %v1162, %v1327
        %vm1566 = vcmp.le.f32.partialorder %v1163, %v1330
        %vm1567 = vcmp.le.f32.partialorder %v1164, %v1330
        %vm1568 = vcmp.le.f32.partialorder %v1165, %v1333
        %vm1569 = vcmp.le.f32.partialorder %v1166, %v1333
        %vm1570 = vcmp.le.f32.partialorder %v1167, %v1336
        %vm1571 = vcmp.le.f32.partialorder %v1168, %v1336
        %vm1572 = vcmp.le.f32.partialorder %v1169, %v1339
        %vm1573 = vcmp.le.f32.partialorder %v1170, %v1339
        %vm1574 = vcmp.le.f32.partialorder %v1171, %v1342
        %vm1575 = vcmp.le.f32.partialorder %v1172, %v1342
        %vm1576 = vcmp.le.f32.partialorder %v1173, %v1345
        %vm1577 = vcmp.le.f32.partialorder %v1174, %v1345
        %vm1578 = vcmp.le.f32.partialorder %v1175, %v1348
        %vm1579 = vcmp.le.f32.partialorder %v1176, %v1348
        %vm1580 = vcmp.le.f32.partialorder %v1177, %v1351
        %vm1581 = vcmp.le.f32.partialorder %v1178, %v1351
        %vm1582 = vcmp.le.f32.partialorder %v1179, %v1354
        %vm1583 = vcmp.le.f32.partialorder %v1180, %v1354
        %vm1584 = vcmp.le.f32.partialorder %v1181, %v1357
        %vm1585 = vcmp.le.f32.partialorder %v1182, %v1357
        %vm1586 = vcmp.le.f32.partialorder %v1183, %v1360
        %vm1587 = vcmp.le.f32.partialorder %v1184, %v1360
        %vm1588 = vcmp.le.f32.partialorder %v1185, %v1363
        %vm1589 = vcmp.le.f32.partialorder %v1186, %v1363
        %vm1590 = vcmp.le.f32.partialorder %v1187, %v1366
        %vm1591 = vcmp.le.f32.partialorder %v1188, %v1366
        %vm1592 = vcmp.le.f32.partialorder %v1189, %v1369
        %vm1593 = vcmp.le.f32.partialorder %v1190, %v1369
        %vm1594 = vcmp.le.f32.partialorder %v1191, %v1372
        %vm1595 = vcmp.le.f32.partialorder %v1192, %v1372
        %vm1596 = vcmp.le.f32.partialorder %v1193, %v1375
        %vm1597 = vcmp.le.f32.partialorder %v1194, %v1375
        %vm1598 = vcmp.le.f32.partialorder %v1195, %v1378
        %vm1599 = vcmp.le.f32.partialorder %v1196, %v1378
        %vm1600 = vcmp.le.f32.partialorder %v1197, %v1381
        %vm1601 = vcmp.le.f32.partialorder %v1198, %v1381
        %vm1602 = vcmp.le.f32.partialorder %v1199, %v1384
        %vm1603 = vcmp.le.f32.partialorder %v1200, %v1384
        %vm1604 = vcmp.le.f32.partialorder %v1201, %v1387
        %vm1605 = vcmp.le.f32.partialorder %v1202, %v1387
        %vm1606 = vcmp.le.f32.partialorder %v1203, %v1390
        %vm1607 = vcmp.le.f32.partialorder %v1204, %v1390
        %vm1608 = vcmp.le.f32.partialorder %v1205, %v1393
        %vm1609 = vcmp.le.f32.partialorder %v1206, %v1393
        %vm1610 = vcmp.le.f32.partialorder %v1207, %v1396
        %vm1611 = vcmp.le.f32.partialorder %v1208, %v1396
        %vm1612 = vcmp.le.f32.partialorder %v1209, %v1399
        %vm1613 = vcmp.le.f32.partialorder %v1210, %v1399
        %vm1614 = vcmp.le.f32.partialorder %v1211, %v1402
        %vm1615 = vcmp.le.f32.partialorder %v1212, %v1402
        %vm1616 = vcmp.le.f32.partialorder %v1213, %v1405
        %vm1617 = vcmp.le.f32.partialorder %v1214, %v1405
        %vm1618 = vcmp.le.f32.partialorder %v1215, %v1408
        %vm1619 = vcmp.le.f32.partialorder %v1216, %v1408
        %vm1620 = vcmp.le.f32.partialorder %v1217, %v1411
        %vm1621 = vcmp.le.f32.partialorder %v1218, %v1411
        %vm1622 = vcmp.le.f32.partialorder %v1219, %v1414
        %vm1623 = vcmp.le.f32.partialorder %v1220, %v1414
        %vm1624 = vcmp.le.f32.partialorder %v1221, %v1417
        %vm1625 = vcmp.le.f32.partialorder %v1222, %v1417
        %vm1626 = vcmp.le.f32.partialorder %v1223, %v1420
        %vm1627 = vcmp.le.f32.partialorder %v1224, %v1420
        %vm1628 = vcmp.le.f32.partialorder %v1225, %v1423
        %vm1629 = vcmp.le.f32.partialorder %v1226, %v1423
        %vm1630 = vcmp.le.f32.partialorder %v1227, %v1426
        %vm1631 = vcmp.le.f32.partialorder %v1228, %v1426
        %vm1632 = vcmp.le.f32.partialorder %v1229, %v1429
        %vm1633 = vcmp.le.f32.partialorder %v1230, %v1429
        %vm1634 = vcmp.le.f32.partialorder %v1231, %v1432
        %vm1635 = vcmp.le.f32.partialorder %v1232, %v1432
        %vm1636 = vcmp.le.f32.partialorder %v1233, %v1435
        %vm1637 = vcmp.le.f32.partialorder %v1234, %v1435
        %vm1638 = vcmp.le.f32.partialorder %v1235, %v1438
        %vm1639 = vcmp.le.f32.partialorder %v1236, %v1438
        %vm1640 = vcmp.le.f32.partialorder %v1237, %v1441
        %vm1641 = vcmp.le.f32.partialorder %v1238, %v1441
        %vm1642 = vcmp.le.f32.partialorder %v1239, %v1444
        %vm1643 = vcmp.le.f32.partialorder %v1240, %v1444
        %vm1644 = vcmp.le.f32.partialorder %v1241, %v1447
        %vm1645 = vcmp.le.f32.partialorder %v1242, %v1447
        %vm1646 = vcmp.le.f32.partialorder %v1243, %v1450
        %vm1647 = vcmp.le.f32.partialorder %v1244, %v1450
        %vm1648 = vcmp.le.f32.partialorder %v1245, %v1453
        %vm1649 = vcmp.le.f32.partialorder %v1246, %v1453
        %vm1650 = vcmp.le.f32.partialorder %v1247, %v1456
        %vm1651 = vcmp.le.f32.partialorder %v1248, %v1456
        %vm1652 = vcmp.le.f32.partialorder %v1249, %v1459
        %vm1653 = vcmp.le.f32.partialorder %v1250, %v1459
        %vm1654 = vcmp.le.f32.partialorder %v1251, %v1462
        %vm1655 = vcmp.le.f32.partialorder %v1252, %v1462
        %vm1656 = vcmp.le.f32.partialorder %v1253, %v1465
        %vm1657 = vcmp.le.f32.partialorder %v1254, %v1465
        %vm1658 = vcmp.le.f32.partialorder %v1255, %v1468
        %vm1659 = vcmp.le.f32.partialorder %v1256, %v1468
        %vm1660 = vcmp.le.f32.partialorder %v1257, %v1471
        %vm1661 = vcmp.le.f32.partialorder %v1258, %v1471
        %vm1662 = vcmp.le.f32.partialorder %v1259, %v1474
        %vm1663 = vcmp.le.f32.partialorder %v1260, %v1474
        %vm1664 = vcmp.le.f32.partialorder %v1261, %v1477
        %vm1665 = vcmp.le.f32.partialorder %v1262, %v1477
        %vm1666 = vcmp.le.f32.partialorder %v1263, %v1480
        %vm1667 = vcmp.le.f32.partialorder %v1264, %v1480
        %vm1668 = vcmp.le.f32.partialorder %v1265, %v1483
        %vm1669 = vcmp.le.f32.partialorder %v1266, %v1483
        %vm1670 = vcmp.le.f32.partialorder %v1267, %v1486
        %vm1671 = vcmp.le.f32.partialorder %v1268, %v1486
        %vm1672 = vcmp.le.f32.partialorder %v1269, %v1489
        %vm1673 = vcmp.le.f32.partialorder %v1270, %v1489
        %vm1674 = vcmp.le.f32.partialorder %v1271, %v1492
        %vm1675 = vcmp.le.f32.partialorder %v1272, %v1492
        %vm1676 = vcmp.le.f32.partialorder %v1273, %v1495
        %vm1677 = vcmp.le.f32.partialorder %v1274, %v1495
        %vm1678 = vcmp.le.f32.partialorder %v1275, %v1498
        %vm1679 = vcmp.le.f32.partialorder %v1276, %v1498
        %vm1680 = vcmp.le.f32.partialorder %v1277, %v1501
        %vm1681 = vcmp.le.f32.partialorder %v1278, %v1501
        %vm1682 = vcmp.le.f32.partialorder %v1279, %v1504
        %vm1683 = vcmp.le.f32.partialorder %v1280, %v1504
        %vm1684 = vcmp.le.f32.partialorder %v1281, %v1507
        %vm1685 = vcmp.le.f32.partialorder %v1282, %v1507
        %vm1686 = vcmp.le.f32.partialorder %v1283, %v1510
        %vm1687 = vcmp.le.f32.partialorder %v1284, %v1510
        %vm1688 = vcmp.le.f32.partialorder %v1285, %v1513
        %vm1689 = vcmp.le.f32.partialorder %v1286, %v1513
        %vm1690 = vcmp.le.f32.partialorder %v1287, %v1516
        %vm1691 = vcmp.le.f32.partialorder %v1288, %v1516
        %vm1692 = vcmp.le.f32.partialorder %v1289, %v1519
        %vm1693 = vcmp.le.f32.partialorder %v1290, %v1519
        %vm1694 = vcmp.le.f32.partialorder %v1291, %v1522
        %vm1695 = vcmp.le.f32.partialorder %v1292, %v1522
        %vm1696 = vcmp.le.f32.partialorder %v1293, %v1525
        %vm1697 = vcmp.le.f32.partialorder %v1294, %v1525
        %vm1698 = vcmp.le.f32.partialorder %v1295, %v1528
        %vm1699 = vcmp.le.f32.partialorder %v1296, %v1528
        %vm1700 = vcmp.le.f32.partialorder %v1297, %v1531
        %vm1701 = vcmp.le.f32.partialorder %v1298, %v1531
        %vm1702 = vcmp.le.f32.partialorder %v1299, %v1534
        %vm1703 = vcmp.le.f32.partialorder %v1300, %v1534
        %vm1704 = vcmp.le.f32.partialorder %v1301, %v1537
        %vm1705 = vcmp.le.f32.partialorder %v1302, %v1537
        %vm1706 = vcmp.le.f32.partialorder %v1303, %v1540
        %vm1707 = vcmp.le.f32.partialorder %v1304, %v1540
        %vm1708 = vcmp.le.f32.partialorder %v1305, %v1543
        %vm1709 = vcmp.le.f32.partialorder %v1306, %v1543
        %vm1710 = vcmp.le.f32.partialorder %v1307, %v1546
        %vm1711 = vcmp.le.f32.partialorder %v1308, %v1546
        %vm1712 = vcmp.le.f32.partialorder %v1309, %v1549
        %vm1713 = vcmp.le.f32.partialorder %v1310, %v1549
        %vm1714 = vcmp.le.f32.partialorder %v1311, %v1552
        %vm1715 = vcmp.le.f32.partialorder %v1312, %v1552
        %v1716 = vsel %vm1556, %v1554, 2147483647
        %v1717 = vsel %vm1557, %v1555, 2147483647
        %v1718 = vsel %vm1558, %v1554, 2147483647
        %v1719 = vsel %vm1559, %v1555, 2147483647
        %v1720 = vsel %vm1560, %v1554, 2147483647
        %v1721 = vsel %vm1561, %v1555, 2147483647
        %v1722 = vsel %vm1562, %v1554, 2147483647
        %v1723 = vsel %vm1563, %v1555, 2147483647
        %v1724 = vsel %vm1564, %v1554, 2147483647
        %v1725 = vsel %vm1565, %v1555, 2147483647
        %v1726 = vsel %vm1566, %v1554, 2147483647
        %v1727 = vsel %vm1567, %v1555, 2147483647
        %v1728 = vsel %vm1568, %v1554, 2147483647
        %v1729 = vsel %vm1569, %v1555, 2147483647
        %v1730 = vsel %vm1570, %v1554, 2147483647
        %v1731 = vsel %vm1571, %v1555, 2147483647
        %v1732 = vsel %vm1572, %v1554, 2147483647
        %v1733 = vsel %vm1573, %v1555, 2147483647
        %v1734 = vsel %vm1574, %v1554, 2147483647
        %v1735 = vsel %vm1575, %v1555, 2147483647
        %v1736 = vsel %vm1576, %v1554, 2147483647
        %v1737 = vsel %vm1577, %v1555, 2147483647
        %v1738 = vsel %vm1578, %v1554, 2147483647
        %v1739 = vsel %vm1579, %v1555, 2147483647
        %v1740 = vsel %vm1580, %v1554, 2147483647
        %v1741 = vsel %vm1581, %v1555, 2147483647
        %v1742 = vsel %vm1582, %v1554, 2147483647
        %v1743 = vsel %vm1583, %v1555, 2147483647
        %v1744 = vsel %vm1584, %v1554, 2147483647
        %v1745 = vsel %vm1585, %v1555, 2147483647
        %v1746 = vsel %vm1586, %v1554, 2147483647
        %v1747 = vsel %vm1587, %v1555, 2147483647
        %v1748 = vsel %vm1588, %v1554, 2147483647
        %v1749 = vsel %vm1589, %v1555, 2147483647
        %v1750 = vsel %vm1590, %v1554, 2147483647
        %v1751 = vsel %vm1591, %v1555, 2147483647
        %v1752 = vsel %vm1592, %v1554, 2147483647
        %v1753 = vsel %vm1593, %v1555, 2147483647
        %v1754 = vsel %vm1594, %v1554, 2147483647
        %v1755 = vsel %vm1595, %v1555, 2147483647
        %v1756 = vsel %vm1596, %v1554, 2147483647
        %v1757 = vsel %vm1597, %v1555, 2147483647
        %v1758 = vsel %vm1598, %v1554, 2147483647
        %v1759 = vsel %vm1599, %v1555, 2147483647
        %v1760 = vsel %vm1600, %v1554, 2147483647
        %v1761 = vsel %vm1601, %v1555, 2147483647
        %v1762 = vsel %vm1602, %v1554, 2147483647
        %v1763 = vsel %vm1603, %v1555, 2147483647
        %v1764 = vsel %vm1604, %v1554, 2147483647
        %v1765 = vsel %vm1605, %v1555, 2147483647
        %v1766 = vsel %vm1606, %v1554, 2147483647
        %v1767 = vsel %vm1607, %v1555, 2147483647
        %v1768 = vsel %vm1608, %v1554, 2147483647
        %v1769 = vsel %vm1609, %v1555, 2147483647
        %v1770 = vsel %vm1610, %v1554, 2147483647
        %v1771 = vsel %vm1611, %v1555, 2147483647
        %v1772 = vsel %vm1612, %v1554, 2147483647
        %v1773 = vsel %vm1613, %v1555, 2147483647
        %v1774 = vsel %vm1614, %v1554, 2147483647
        %v1775 = vsel %vm1615, %v1555, 2147483647
        %v1776 = vsel %vm1616, %v1554, 2147483647
        %v1777 = vsel %vm1617, %v1555, 2147483647
        %v1778 = vsel %vm1618, %v1554, 2147483647
        %v1779 = vsel %vm1619, %v1555, 2147483647
        %v1780 = vsel %vm1620, %v1554, 2147483647
        %v1781 = vsel %vm1621, %v1555, 2147483647
        %v1782 = vsel %vm1622, %v1554, 2147483647
        %v1783 = vsel %vm1623, %v1555, 2147483647
        %v1784 = vsel %vm1624, %v1554, 2147483647
        %v1785 = vsel %vm1625, %v1555, 2147483647
        %v1786 = vsel %vm1626, %v1554, 2147483647
        %v1787 = vsel %vm1627, %v1555, 2147483647
        %v1788 = vsel %vm1628, %v1554, 2147483647
        %v1789 = vsel %vm1629, %v1555, 2147483647
        %v1790 = vsel %vm1630, %v1554, 2147483647
        %v1791 = vsel %vm1631, %v1555, 2147483647
        %v1792 = vsel %vm1632, %v1554, 2147483647
        %v1793 = vsel %vm1633, %v1555, 2147483647
        %v1794 = vsel %vm1634, %v1554, 2147483647
        %v1795 = vsel %vm1635, %v1555, 2147483647
        %v1796 = vsel %vm1636, %v1554, 2147483647
        %v1797 = vsel %vm1637, %v1555, 2147483647
        %v1798 = vsel %vm1638, %v1554, 2147483647
        %v1799 = vsel %vm1639, %v1555, 2147483647
        %v1800 = vsel %vm1640, %v1554, 2147483647
        %v1801 = vsel %vm1641, %v1555, 2147483647
        %v1802 = vsel %vm1642, %v1554, 2147483647
        %v1803 = vsel %vm1643, %v1555, 2147483647
        %v1804 = vsel %vm1644, %v1554, 2147483647
        %v1805 = vsel %vm1645, %v1555, 2147483647
        %v1806 = vsel %vm1646, %v1554, 2147483647
        %v1807 = vsel %vm1647, %v1555, 2147483647
        %v1808 = vsel %vm1648, %v1554, 2147483647
        %v1809 = vsel %vm1649, %v1555, 2147483647
        %v1810 = vsel %vm1650, %v1554, 2147483647
        %v1811 = vsel %vm1651, %v1555, 2147483647
        %v1812 = vsel %vm1652, %v1554, 2147483647
        %v1813 = vsel %vm1653, %v1555, 2147483647
        %v1814 = vsel %vm1654, %v1554, 2147483647
        %v1815 = vsel %vm1655, %v1555, 2147483647
        %v1816 = vsel %vm1656, %v1554, 2147483647
        %v1817 = vsel %vm1657, %v1555, 2147483647
        %v1818 = vsel %vm1658, %v1554, 2147483647
        %v1819 = vsel %vm1659, %v1555, 2147483647
        %v1820 = vsel %vm1660, %v1554, 2147483647
        %v1821 = vsel %vm1661, %v1555, 2147483647
        %v1822 = vsel %vm1662, %v1554, 2147483647
        %v1823 = vsel %vm1663, %v1555, 2147483647
        %v1824 = vsel %vm1664, %v1554, 2147483647
        %v1825 = vsel %vm1665, %v1555, 2147483647
        %v1826 = vsel %vm1666, %v1554, 2147483647
        %v1827 = vsel %vm1667, %v1555, 2147483647
        %v1828 = vsel %vm1668, %v1554, 2147483647
        %v1829 = vsel %vm1669, %v1555, 2147483647
        %v1830 = vsel %vm1670, %v1554, 2147483647
        %v1831 = vsel %vm1671, %v1555, 2147483647
        %v1832 = vsel %vm1672, %v1554, 2147483647
        %v1833 = vsel %vm1673, %v1555, 2147483647
        %v1834 = vsel %vm1674, %v1554, 2147483647
        %v1835 = vsel %vm1675, %v1555, 2147483647
        %v1836 = vsel %vm1676, %v1554, 2147483647
        %v1837 = vsel %vm1677, %v1555, 2147483647
        %v1838 = vsel %vm1678, %v1554, 2147483647
        %v1839 = vsel %vm1679, %v1555, 2147483647
        %v1840 = vsel %vm1680, %v1554, 2147483647
        %v1841 = vsel %vm1681, %v1555, 2147483647
        %v1842 = vsel %vm1682, %v1554, 2147483647
        %v1843 = vsel %vm1683, %v1555, 2147483647
        %v1844 = vsel %vm1684, %v1554, 2147483647
        %v1845 = vsel %vm1685, %v1555, 2147483647
        %v1846 = vsel %vm1686, %v1554, 2147483647
        %v1847 = vsel %vm1687, %v1555, 2147483647
        %v1848 = vsel %vm1688, %v1554, 2147483647
        %v1849 = vsel %vm1689, %v1555, 2147483647
        %v1850 = vsel %vm1690, %v1554, 2147483647
        %v1851 = vsel %vm1691, %v1555, 2147483647
        %v1852 = vsel %vm1692, %v1554, 2147483647
        %v1853 = vsel %vm1693, %v1555, 2147483647
        %v1854 = vsel %vm1694, %v1554, 2147483647
        %v1855 = vsel %vm1695, %v1555, 2147483647
        %v1856 = vsel %vm1696, %v1554, 2147483647
        %v1857 = vsel %vm1697, %v1555, 2147483647
        %v1858 = vsel %vm1698, %v1554, 2147483647
        %v1859 = vsel %vm1699, %v1555, 2147483647
        %v1860 = vsel %vm1700, %v1554, 2147483647
        %v1861 = vsel %vm1701, %v1555, 2147483647
        %v1862 = vsel %vm1702, %v1554, 2147483647
        %v1863 = vsel %vm1703, %v1555, 2147483647
        %v1864 = vsel %vm1704, %v1554, 2147483647
        %v1865 = vsel %vm1705, %v1555, 2147483647
        %v1866 = vsel %vm1706, %v1554, 2147483647
        %v1867 = vsel %vm1707, %v1555, 2147483647
        %v1868 = vsel %vm1708, %v1554, 2147483647
        %v1869 = vsel %vm1709, %v1555, 2147483647
        %v1870 = vsel %vm1710, %v1554, 2147483647
        %v1871 = vsel %vm1711, %v1555, 2147483647
        %v1872 = vsel %vm1712, %v1554, 2147483647
        %v1873 = vsel %vm1713, %v1555, 2147483647
        %v1874 = vsel %vm1714, %v1554, 2147483647
        %v1875 = vsel %vm1715, %v1555, 2147483647
        %vm1876 = vcmp.lt.s32.totalorder %v1716, %v1717
        %v1877 = vsel %vm1876, %v1716, %v1717
        %v1878 = vand.u32 %v1877, 65535
        %v1879 = vshra.s32 %v1877, 16
        %v1880 = vcvt.s32.f32 %v1878
        %v1881 = vcvt.s32.f32 %v1879
        %1882 = vmin.xlane.f32.xlu0 %v1881
        %v1883 = vpop.xlane.xlu0 %1882
        %vm1884 = vcmp.eq.f32.partialorder %v1881, %v1883
        %v1885 = vsel %vm1884, %v1880, inf
        %1886 = vmin.xlane.f32.xlu0 %v1885
        %v1887 = vpop.xlane.xlu0 %1886
        %v1888 = vcvt.f32.s32 %v1887
        %v1889 = vcvt.f32.s32 %v1883
        %v1890 = vshll.u32 %v1889, 16
        %v1891 = vadd.s32 %v1890, %v1888
        %vm1892 = vcmp.lt.s32.totalorder %v1718, %v1719
        %v1893 = vsel %vm1892, %v1718, %v1719
        %v1894 = vand.u32 %v1893, 65535
        %v1895 = vshra.s32 %v1893, 16
        %v1896 = vcvt.s32.f32 %v1894
        %v1897 = vcvt.s32.f32 %v1895
        %1898 = vmin.xlane.f32.xlu0 %v1897
        %v1899 = vpop.xlane.xlu0 %1898
        %vm1900 = vcmp.eq.f32.partialorder %v1897, %v1899
        %v1901 = vsel %vm1900, %v1896, inf
        %1902 = vmin.xlane.f32.xlu0 %v1901
        %v1903 = vpop.xlane.xlu0 %1902
        %v1904 = vcvt.f32.s32 %v1903
        %v1905 = vcvt.f32.s32 %v1899
        %v1906 = vshll.u32 %v1905, 16
        %v1907 = vadd.s32 %v1906, %v1904
        %vm1908 = vcmp.lt.s32.totalorder %v1720, %v1721
        %v1909 = vsel %vm1908, %v1720, %v1721
        %v1910 = vand.u32 %v1909, 65535
        %v1911 = vshra.s32 %v1909, 16
        %v1912 = vcvt.s32.f32 %v1910
        %v1913 = vcvt.s32.f32 %v1911
        %1914 = vmin.xlane.f32.xlu0 %v1913
        %v1915 = vpop.xlane.xlu0 %1914
        %vm1916 = vcmp.eq.f32.partialorder %v1913, %v1915
        %v1917 = vsel %vm1916, %v1912, inf
        %1918 = vmin.xlane.f32.xlu0 %v1917
        %v1919 = vpop.xlane.xlu0 %1918
        %v1920 = vcvt.f32.s32 %v1919
        %v1921 = vcvt.f32.s32 %v1915
        %v1922 = vshll.u32 %v1921, 16
        %v1923 = vadd.s32 %v1922, %v1920
        %vm1924 = vcmp.lt.s32.totalorder %v1722, %v1723
        %v1925 = vsel %vm1924, %v1722, %v1723
        %v1926 = vand.u32 %v1925, 65535
        %v1927 = vshra.s32 %v1925, 16
        %v1928 = vcvt.s32.f32 %v1926
        %v1929 = vcvt.s32.f32 %v1927
        %1930 = vmin.xlane.f32.xlu0 %v1929
        %v1931 = vpop.xlane.xlu0 %1930
        %vm1932 = vcmp.eq.f32.partialorder %v1929, %v1931
        %v1933 = vsel %vm1932, %v1928, inf
        %1934 = vmin.xlane.f32.xlu0 %v1933
        %v1935 = vpop.xlane.xlu0 %1934
        %v1936 = vcvt.f32.s32 %v1935
        %v1937 = vcvt.f32.s32 %v1931
        %v1938 = vshll.u32 %v1937, 16
        %v1939 = vadd.s32 %v1938, %v1936
        %vm1940 = vcmp.lt.s32.totalorder %v1724, %v1725
        %v1941 = vsel %vm1940, %v1724, %v1725
        %v1942 = vand.u32 %v1941, 65535
        %v1943 = vshra.s32 %v1941, 16
        %v1944 = vcvt.s32.f32 %v1942
        %v1945 = vcvt.s32.f32 %v1943
        %1946 = vmin.xlane.f32.xlu0 %v1945
        %v1947 = vpop.xlane.xlu0 %1946
        %vm1948 = vcmp.eq.f32.partialorder %v1945, %v1947
        %v1949 = vsel %vm1948, %v1944, inf
        %1950 = vmin.xlane.f32.xlu0 %v1949
        %v1951 = vpop.xlane.xlu0 %1950
        %v1952 = vcvt.f32.s32 %v1951
        %v1953 = vcvt.f32.s32 %v1947
        %v1954 = vshll.u32 %v1953, 16
        %v1955 = vadd.s32 %v1954, %v1952
        %vm1956 = vcmp.lt.s32.totalorder %v1726, %v1727
        %v1957 = vsel %vm1956, %v1726, %v1727
        %v1958 = vand.u32 %v1957, 65535
        %v1959 = vshra.s32 %v1957, 16
        %v1960 = vcvt.s32.f32 %v1958
        %v1961 = vcvt.s32.f32 %v1959
        %1962 = vmin.xlane.f32.xlu0 %v1961
        %v1963 = vpop.xlane.xlu0 %1962
        %vm1964 = vcmp.eq.f32.partialorder %v1961, %v1963
        %v1965 = vsel %vm1964, %v1960, inf
        %1966 = vmin.xlane.f32.xlu0 %v1965
        %v1967 = vpop.xlane.xlu0 %1966
        %v1968 = vcvt.f32.s32 %v1967
        %v1969 = vcvt.f32.s32 %v1963
        %v1970 = vshll.u32 %v1969, 16
        %v1971 = vadd.s32 %v1970, %v1968
        %vm1972 = vcmp.lt.s32.totalorder %v1728, %v1729
        %v1973 = vsel %vm1972, %v1728, %v1729
        %v1974 = vand.u32 %v1973, 65535
        %v1975 = vshra.s32 %v1973, 16
        %v1976 = vcvt.s32.f32 %v1974
        %v1977 = vcvt.s32.f32 %v1975
        %1978 = vmin.xlane.f32.xlu0 %v1977
        %v1979 = vpop.xlane.xlu0 %1978
        %vm1980 = vcmp.eq.f32.partialorder %v1977, %v1979
        %v1981 = vsel %vm1980, %v1976, inf
        %1982 = vmin.xlane.f32.xlu0 %v1981
        %v1983 = vpop.xlane.xlu0 %1982
        %v1984 = vcvt.f32.s32 %v1983
        %v1985 = vcvt.f32.s32 %v1979
        %v1986 = vshll.u32 %v1985, 16
        %v1987 = vadd.s32 %v1986, %v1984
        %vm1988 = vcmp.lt.s32.totalorder %v1730, %v1731
        %v1989 = vsel %vm1988, %v1730, %v1731
        %v1990 = vand.u32 %v1989, 65535
        %v1991 = vshra.s32 %v1989, 16
        %v1992 = vcvt.s32.f32 %v1990
        %v1993 = vcvt.s32.f32 %v1991
        %1994 = vmin.xlane.f32.xlu0 %v1993
        %v1995 = vpop.xlane.xlu0 %1994
        %vm1996 = vcmp.eq.f32.partialorder %v1993, %v1995
        %v1997 = vsel %vm1996, %v1992, inf
        %1998 = vmin.xlane.f32.xlu0 %v1997
        %v1999 = vpop.xlane.xlu0 %1998
        %v2000 = vcvt.f32.s32 %v1999
        %v2001 = vcvt.f32.s32 %v1995
        %v2002 = vshll.u32 %v2001, 16
        %v2003 = vadd.s32 %v2002, %v2000
        %vm2004 = vcmp.lt.s32.totalorder %v1732, %v1733
        %v2005 = vsel %vm2004, %v1732, %v1733
        %v2006 = vand.u32 %v2005, 65535
        %v2007 = vshra.s32 %v2005, 16
        %v2008 = vcvt.s32.f32 %v2006
        %v2009 = vcvt.s32.f32 %v2007
        %2010 = vmin.xlane.f32.xlu0 %v2009
        %v2011 = vpop.xlane.xlu0 %2010
        %vm2012 = vcmp.eq.f32.partialorder %v2009, %v2011
        %v2013 = vsel %vm2012, %v2008, inf
        %2014 = vmin.xlane.f32.xlu0 %v2013
        %v2015 = vpop.xlane.xlu0 %2014
        %v2016 = vcvt.f32.s32 %v2015
        %v2017 = vcvt.f32.s32 %v2011
        %v2018 = vshll.u32 %v2017, 16
        %v2019 = vadd.s32 %v2018, %v2016
        %vm2020 = vcmp.lt.s32.totalorder %v1734, %v1735
        %v2021 = vsel %vm2020, %v1734, %v1735
        %v2022 = vand.u32 %v2021, 65535
        %v2023 = vshra.s32 %v2021, 16
        %v2024 = vcvt.s32.f32 %v2022
        %v2025 = vcvt.s32.f32 %v2023
        %2026 = vmin.xlane.f32.xlu0 %v2025
        %v2027 = vpop.xlane.xlu0 %2026
        %vm2028 = vcmp.eq.f32.partialorder %v2025, %v2027
        %v2029 = vsel %vm2028, %v2024, inf
        %2030 = vmin.xlane.f32.xlu0 %v2029
        %v2031 = vpop.xlane.xlu0 %2030
        %v2032 = vcvt.f32.s32 %v2031
        %v2033 = vcvt.f32.s32 %v2027
        %v2034 = vshll.u32 %v2033, 16
        %v2035 = vadd.s32 %v2034, %v2032
        %vm2036 = vcmp.lt.s32.totalorder %v1736, %v1737
        %v2037 = vsel %vm2036, %v1736, %v1737
        %v2038 = vand.u32 %v2037, 65535
        %v2039 = vshra.s32 %v2037, 16
        %v2040 = vcvt.s32.f32 %v2038
        %v2041 = vcvt.s32.f32 %v2039
        %2042 = vmin.xlane.f32.xlu0 %v2041
        %v2043 = vpop.xlane.xlu0 %2042
        %vm2044 = vcmp.eq.f32.partialorder %v2041, %v2043
        %v2045 = vsel %vm2044, %v2040, inf
        %2046 = vmin.xlane.f32.xlu0 %v2045
        %v2047 = vpop.xlane.xlu0 %2046
        %v2048 = vcvt.f32.s32 %v2047
        %v2049 = vcvt.f32.s32 %v2043
        %v2050 = vshll.u32 %v2049, 16
        %v2051 = vadd.s32 %v2050, %v2048
        %vm2052 = vcmp.lt.s32.totalorder %v1738, %v1739
        %v2053 = vsel %vm2052, %v1738, %v1739
        %v2054 = vand.u32 %v2053, 65535
        %v2055 = vshra.s32 %v2053, 16
        %v2056 = vcvt.s32.f32 %v2054
        %v2057 = vcvt.s32.f32 %v2055
        %2058 = vmin.xlane.f32.xlu0 %v2057
        %v2059 = vpop.xlane.xlu0 %2058
        %vm2060 = vcmp.eq.f32.partialorder %v2057, %v2059
        %v2061 = vsel %vm2060, %v2056, inf
        %2062 = vmin.xlane.f32.xlu0 %v2061
        %v2063 = vpop.xlane.xlu0 %2062
        %v2064 = vcvt.f32.s32 %v2063
        %v2065 = vcvt.f32.s32 %v2059
        %v2066 = vshll.u32 %v2065, 16
        %v2067 = vadd.s32 %v2066, %v2064
        %vm2068 = vcmp.lt.s32.totalorder %v1740, %v1741
        %v2069 = vsel %vm2068, %v1740, %v1741
        %v2070 = vand.u32 %v2069, 65535
        %v2071 = vshra.s32 %v2069, 16
        %v2072 = vcvt.s32.f32 %v2070
        %v2073 = vcvt.s32.f32 %v2071
        %2074 = vmin.xlane.f32.xlu0 %v2073
        %v2075 = vpop.xlane.xlu0 %2074
        %vm2076 = vcmp.eq.f32.partialorder %v2073, %v2075
        %v2077 = vsel %vm2076, %v2072, inf
        %2078 = vmin.xlane.f32.xlu0 %v2077
        %v2079 = vpop.xlane.xlu0 %2078
        %v2080 = vcvt.f32.s32 %v2079
        %v2081 = vcvt.f32.s32 %v2075
        %v2082 = vshll.u32 %v2081, 16
        %v2083 = vadd.s32 %v2082, %v2080
        %vm2084 = vcmp.lt.s32.totalorder %v1742, %v1743
        %v2085 = vsel %vm2084, %v1742, %v1743
        %v2086 = vand.u32 %v2085, 65535
        %v2087 = vshra.s32 %v2085, 16
        %v2088 = vcvt.s32.f32 %v2086
        %v2089 = vcvt.s32.f32 %v2087
        %2090 = vmin.xlane.f32.xlu0 %v2089
        %v2091 = vpop.xlane.xlu0 %2090
        %vm2092 = vcmp.eq.f32.partialorder %v2089, %v2091
        %v2093 = vsel %vm2092, %v2088, inf
        %2094 = vmin.xlane.f32.xlu0 %v2093
        %v2095 = vpop.xlane.xlu0 %2094
        %v2096 = vcvt.f32.s32 %v2095
        %v2097 = vcvt.f32.s32 %v2091
        %v2098 = vshll.u32 %v2097, 16
        %v2099 = vadd.s32 %v2098, %v2096
        %vm2100 = vcmp.lt.s32.totalorder %v1744, %v1745
        %v2101 = vsel %vm2100, %v1744, %v1745
        %v2102 = vand.u32 %v2101, 65535
        %v2103 = vshra.s32 %v2101, 16
        %v2104 = vcvt.s32.f32 %v2102
        %v2105 = vcvt.s32.f32 %v2103
        %2106 = vmin.xlane.f32.xlu0 %v2105
        %v2107 = vpop.xlane.xlu0 %2106
        %vm2108 = vcmp.eq.f32.partialorder %v2105, %v2107
        %v2109 = vsel %vm2108, %v2104, inf
        %2110 = vmin.xlane.f32.xlu0 %v2109
        %v2111 = vpop.xlane.xlu0 %2110
        %v2112 = vcvt.f32.s32 %v2111
        %v2113 = vcvt.f32.s32 %v2107
        %v2114 = vshll.u32 %v2113, 16
        %v2115 = vadd.s32 %v2114, %v2112
        %vm2116 = vcmp.lt.s32.totalorder %v1746, %v1747
        %v2117 = vsel %vm2116, %v1746, %v1747
        %v2118 = vand.u32 %v2117, 65535
        %v2119 = vshra.s32 %v2117, 16
        %v2120 = vcvt.s32.f32 %v2118
        %v2121 = vcvt.s32.f32 %v2119
        %2122 = vmin.xlane.f32.xlu0 %v2121
        %v2123 = vpop.xlane.xlu0 %2122
        %vm2124 = vcmp.eq.f32.partialorder %v2121, %v2123
        %v2125 = vsel %vm2124, %v2120, inf
        %2126 = vmin.xlane.f32.xlu0 %v2125
        %v2127 = vpop.xlane.xlu0 %2126
        %v2128 = vcvt.f32.s32 %v2127
        %v2129 = vcvt.f32.s32 %v2123
        %v2130 = vshll.u32 %v2129, 16
        %v2131 = vadd.s32 %v2130, %v2128
        %vm2132 = vcmp.lt.s32.totalorder %v1748, %v1749
        %v2133 = vsel %vm2132, %v1748, %v1749
        %v2134 = vand.u32 %v2133, 65535
        %v2135 = vshra.s32 %v2133, 16
        %v2136 = vcvt.s32.f32 %v2134
        %v2137 = vcvt.s32.f32 %v2135
        %2138 = vmin.xlane.f32.xlu0 %v2137
        %v2139 = vpop.xlane.xlu0 %2138
        %vm2140 = vcmp.eq.f32.partialorder %v2137, %v2139
        %v2141 = vsel %vm2140, %v2136, inf
        %2142 = vmin.xlane.f32.xlu0 %v2141
        %v2143 = vpop.xlane.xlu0 %2142
        %v2144 = vcvt.f32.s32 %v2143
        %v2145 = vcvt.f32.s32 %v2139
        %v2146 = vshll.u32 %v2145, 16
        %v2147 = vadd.s32 %v2146, %v2144
        %vm2148 = vcmp.lt.s32.totalorder %v1750, %v1751
        %v2149 = vsel %vm2148, %v1750, %v1751
        %v2150 = vand.u32 %v2149, 65535
        %v2151 = vshra.s32 %v2149, 16
        %v2152 = vcvt.s32.f32 %v2150
        %v2153 = vcvt.s32.f32 %v2151
        %2154 = vmin.xlane.f32.xlu0 %v2153
        %v2155 = vpop.xlane.xlu0 %2154
        %vm2156 = vcmp.eq.f32.partialorder %v2153, %v2155
        %v2157 = vsel %vm2156, %v2152, inf
        %2158 = vmin.xlane.f32.xlu0 %v2157
        %v2159 = vpop.xlane.xlu0 %2158
        %v2160 = vcvt.f32.s32 %v2159
        %v2161 = vcvt.f32.s32 %v2155
        %v2162 = vshll.u32 %v2161, 16
        %v2163 = vadd.s32 %v2162, %v2160
        %vm2164 = vcmp.lt.s32.totalorder %v1752, %v1753
        %v2165 = vsel %vm2164, %v1752, %v1753
        %v2166 = vand.u32 %v2165, 65535
        %v2167 = vshra.s32 %v2165, 16
        %v2168 = vcvt.s32.f32 %v2166
        %v2169 = vcvt.s32.f32 %v2167
        %2170 = vmin.xlane.f32.xlu0 %v2169
        %v2171 = vpop.xlane.xlu0 %2170
        %vm2172 = vcmp.eq.f32.partialorder %v2169, %v2171
        %v2173 = vsel %vm2172, %v2168, inf
        %2174 = vmin.xlane.f32.xlu0 %v2173
        %v2175 = vpop.xlane.xlu0 %2174
        %v2176 = vcvt.f32.s32 %v2175
        %v2177 = vcvt.f32.s32 %v2171
        %v2178 = vshll.u32 %v2177, 16
        %v2179 = vadd.s32 %v2178, %v2176
        %vm2180 = vcmp.lt.s32.totalorder %v1754, %v1755
        %v2181 = vsel %vm2180, %v1754, %v1755
        %v2182 = vand.u32 %v2181, 65535
        %v2183 = vshra.s32 %v2181, 16
        %v2184 = vcvt.s32.f32 %v2182
        %v2185 = vcvt.s32.f32 %v2183
        %2186 = vmin.xlane.f32.xlu0 %v2185
        %v2187 = vpop.xlane.xlu0 %2186
        %vm2188 = vcmp.eq.f32.partialorder %v2185, %v2187
        %v2189 = vsel %vm2188, %v2184, inf
        %2190 = vmin.xlane.f32.xlu0 %v2189
        %v2191 = vpop.xlane.xlu0 %2190
        %v2192 = vcvt.f32.s32 %v2191
        %v2193 = vcvt.f32.s32 %v2187
        %v2194 = vshll.u32 %v2193, 16
        %v2195 = vadd.s32 %v2194, %v2192
        %vm2196 = vcmp.lt.s32.totalorder %v1756, %v1757
        %v2197 = vsel %vm2196, %v1756, %v1757
        %v2198 = vand.u32 %v2197, 65535
        %v2199 = vshra.s32 %v2197, 16
        %v2200 = vcvt.s32.f32 %v2198
        %v2201 = vcvt.s32.f32 %v2199
        %2202 = vmin.xlane.f32.xlu0 %v2201
        %v2203 = vpop.xlane.xlu0 %2202
        %vm2204 = vcmp.eq.f32.partialorder %v2201, %v2203
        %v2205 = vsel %vm2204, %v2200, inf
        %2206 = vmin.xlane.f32.xlu0 %v2205
        %v2207 = vpop.xlane.xlu0 %2206
        %v2208 = vcvt.f32.s32 %v2207
        %v2209 = vcvt.f32.s32 %v2203
        %v2210 = vshll.u32 %v2209, 16
        %v2211 = vadd.s32 %v2210, %v2208
        %vm2212 = vcmp.lt.s32.totalorder %v1758, %v1759
        %v2213 = vsel %vm2212, %v1758, %v1759
        %v2214 = vand.u32 %v2213, 65535
        %v2215 = vshra.s32 %v2213, 16
        %v2216 = vcvt.s32.f32 %v2214
        %v2217 = vcvt.s32.f32 %v2215
        %2218 = vmin.xlane.f32.xlu0 %v2217
        %v2219 = vpop.xlane.xlu0 %2218
        %vm2220 = vcmp.eq.f32.partialorder %v2217, %v2219
        %v2221 = vsel %vm2220, %v2216, inf
        %2222 = vmin.xlane.f32.xlu0 %v2221
        %v2223 = vpop.xlane.xlu0 %2222
        %v2224 = vcvt.f32.s32 %v2223
        %v2225 = vcvt.f32.s32 %v2219
        %v2226 = vshll.u32 %v2225, 16
        %v2227 = vadd.s32 %v2226, %v2224
        %vm2228 = vcmp.lt.s32.totalorder %v1760, %v1761
        %v2229 = vsel %vm2228, %v1760, %v1761
        %v2230 = vand.u32 %v2229, 65535
        %v2231 = vshra.s32 %v2229, 16
        %v2232 = vcvt.s32.f32 %v2230
        %v2233 = vcvt.s32.f32 %v2231
        %2234 = vmin.xlane.f32.xlu0 %v2233
        %v2235 = vpop.xlane.xlu0 %2234
        %vm2236 = vcmp.eq.f32.partialorder %v2233, %v2235
        %v2237 = vsel %vm2236, %v2232, inf
        %2238 = vmin.xlane.f32.xlu0 %v2237
        %v2239 = vpop.xlane.xlu0 %2238
        %v2240 = vcvt.f32.s32 %v2239
        %v2241 = vcvt.f32.s32 %v2235
        %v2242 = vshll.u32 %v2241, 16
        %v2243 = vadd.s32 %v2242, %v2240
        %vm2244 = vcmp.lt.s32.totalorder %v1762, %v1763
        %v2245 = vsel %vm2244, %v1762, %v1763
        %v2246 = vand.u32 %v2245, 65535
        %v2247 = vshra.s32 %v2245, 16
        %v2248 = vcvt.s32.f32 %v2246
        %v2249 = vcvt.s32.f32 %v2247
        %2250 = vmin.xlane.f32.xlu0 %v2249
        %v2251 = vpop.xlane.xlu0 %2250
        %vm2252 = vcmp.eq.f32.partialorder %v2249, %v2251
        %v2253 = vsel %vm2252, %v2248, inf
        %2254 = vmin.xlane.f32.xlu0 %v2253
        %v2255 = vpop.xlane.xlu0 %2254
        %v2256 = vcvt.f32.s32 %v2255
        %v2257 = vcvt.f32.s32 %v2251
        %v2258 = vshll.u32 %v2257, 16
        %v2259 = vadd.s32 %v2258, %v2256
        %vm2260 = vcmp.lt.s32.totalorder %v1764, %v1765
        %v2261 = vsel %vm2260, %v1764, %v1765
        %v2262 = vand.u32 %v2261, 65535
        %v2263 = vshra.s32 %v2261, 16
        %v2264 = vcvt.s32.f32 %v2262
        %v2265 = vcvt.s32.f32 %v2263
        %2266 = vmin.xlane.f32.xlu0 %v2265
        %v2267 = vpop.xlane.xlu0 %2266
        %vm2268 = vcmp.eq.f32.partialorder %v2265, %v2267
        %v2269 = vsel %vm2268, %v2264, inf
        %2270 = vmin.xlane.f32.xlu0 %v2269
        %v2271 = vpop.xlane.xlu0 %2270
        %v2272 = vcvt.f32.s32 %v2271
        %v2273 = vcvt.f32.s32 %v2267
        %v2274 = vshll.u32 %v2273, 16
        %v2275 = vadd.s32 %v2274, %v2272
        %vm2276 = vcmp.lt.s32.totalorder %v1766, %v1767
        %v2277 = vsel %vm2276, %v1766, %v1767
        %v2278 = vand.u32 %v2277, 65535
        %v2279 = vshra.s32 %v2277, 16
        %v2280 = vcvt.s32.f32 %v2278
        %v2281 = vcvt.s32.f32 %v2279
        %2282 = vmin.xlane.f32.xlu0 %v2281
        %v2283 = vpop.xlane.xlu0 %2282
        %vm2284 = vcmp.eq.f32.partialorder %v2281, %v2283
        %v2285 = vsel %vm2284, %v2280, inf
        %2286 = vmin.xlane.f32.xlu0 %v2285
        %v2287 = vpop.xlane.xlu0 %2286
        %v2288 = vcvt.f32.s32 %v2287
        %v2289 = vcvt.f32.s32 %v2283
        %v2290 = vshll.u32 %v2289, 16
        %v2291 = vadd.s32 %v2290, %v2288
        %vm2292 = vcmp.lt.s32.totalorder %v1768, %v1769
        %v2293 = vsel %vm2292, %v1768, %v1769
        %v2294 = vand.u32 %v2293, 65535
        %v2295 = vshra.s32 %v2293, 16
        %v2296 = vcvt.s32.f32 %v2294
        %v2297 = vcvt.s32.f32 %v2295
        %2298 = vmin.xlane.f32.xlu0 %v2297
        %v2299 = vpop.xlane.xlu0 %2298
        %vm2300 = vcmp.eq.f32.partialorder %v2297, %v2299
        %v2301 = vsel %vm2300, %v2296, inf
        %2302 = vmin.xlane.f32.xlu0 %v2301
        %v2303 = vpop.xlane.xlu0 %2302
        %v2304 = vcvt.f32.s32 %v2303
        %v2305 = vcvt.f32.s32 %v2299
        %v2306 = vshll.u32 %v2305, 16
        %v2307 = vadd.s32 %v2306, %v2304
        %vm2308 = vcmp.lt.s32.totalorder %v1770, %v1771
        %v2309 = vsel %vm2308, %v1770, %v1771
        %v2310 = vand.u32 %v2309, 65535
        %v2311 = vshra.s32 %v2309, 16
        %v2312 = vcvt.s32.f32 %v2310
        %v2313 = vcvt.s32.f32 %v2311
        %2314 = vmin.xlane.f32.xlu0 %v2313
        %v2315 = vpop.xlane.xlu0 %2314
        %vm2316 = vcmp.eq.f32.partialorder %v2313, %v2315
        %v2317 = vsel %vm2316, %v2312, inf
        %2318 = vmin.xlane.f32.xlu0 %v2317
        %v2319 = vpop.xlane.xlu0 %2318
        %v2320 = vcvt.f32.s32 %v2319
        %v2321 = vcvt.f32.s32 %v2315
        %v2322 = vshll.u32 %v2321, 16
        %v2323 = vadd.s32 %v2322, %v2320
        %vm2324 = vcmp.lt.s32.totalorder %v1772, %v1773
        %v2325 = vsel %vm2324, %v1772, %v1773
        %v2326 = vand.u32 %v2325, 65535
        %v2327 = vshra.s32 %v2325, 16
        %v2328 = vcvt.s32.f32 %v2326
        %v2329 = vcvt.s32.f32 %v2327
        %2330 = vmin.xlane.f32.xlu0 %v2329
        %v2331 = vpop.xlane.xlu0 %2330
        %vm2332 = vcmp.eq.f32.partialorder %v2329, %v2331
        %v2333 = vsel %vm2332, %v2328, inf
        %2334 = vmin.xlane.f32.xlu0 %v2333
        %v2335 = vpop.xlane.xlu0 %2334
        %v2336 = vcvt.f32.s32 %v2335
        %v2337 = vcvt.f32.s32 %v2331
        %v2338 = vshll.u32 %v2337, 16
        %v2339 = vadd.s32 %v2338, %v2336
        %vm2340 = vcmp.lt.s32.totalorder %v1774, %v1775
        %v2341 = vsel %vm2340, %v1774, %v1775
        %v2342 = vand.u32 %v2341, 65535
        %v2343 = vshra.s32 %v2341, 16
        %v2344 = vcvt.s32.f32 %v2342
        %v2345 = vcvt.s32.f32 %v2343
        %2346 = vmin.xlane.f32.xlu0 %v2345
        %v2347 = vpop.xlane.xlu0 %2346
        %vm2348 = vcmp.eq.f32.partialorder %v2345, %v2347
        %v2349 = vsel %vm2348, %v2344, inf
        %2350 = vmin.xlane.f32.xlu0 %v2349
        %v2351 = vpop.xlane.xlu0 %2350
        %v2352 = vcvt.f32.s32 %v2351
        %v2353 = vcvt.f32.s32 %v2347
        %v2354 = vshll.u32 %v2353, 16
        %v2355 = vadd.s32 %v2354, %v2352
        %vm2356 = vcmp.lt.s32.totalorder %v1776, %v1777
        %v2357 = vsel %vm2356, %v1776, %v1777
        %v2358 = vand.u32 %v2357, 65535
        %v2359 = vshra.s32 %v2357, 16
        %v2360 = vcvt.s32.f32 %v2358
        %v2361 = vcvt.s32.f32 %v2359
        %2362 = vmin.xlane.f32.xlu0 %v2361
        %v2363 = vpop.xlane.xlu0 %2362
        %vm2364 = vcmp.eq.f32.partialorder %v2361, %v2363
        %v2365 = vsel %vm2364, %v2360, inf
        %2366 = vmin.xlane.f32.xlu0 %v2365
        %v2367 = vpop.xlane.xlu0 %2366
        %v2368 = vcvt.f32.s32 %v2367
        %v2369 = vcvt.f32.s32 %v2363
        %v2370 = vshll.u32 %v2369, 16
        %v2371 = vadd.s32 %v2370, %v2368
        %vm2372 = vcmp.lt.s32.totalorder %v1778, %v1779
        %v2373 = vsel %vm2372, %v1778, %v1779
        %v2374 = vand.u32 %v2373, 65535
        %v2375 = vshra.s32 %v2373, 16
        %v2376 = vcvt.s32.f32 %v2374
        %v2377 = vcvt.s32.f32 %v2375
        %2378 = vmin.xlane.f32.xlu0 %v2377
        %v2379 = vpop.xlane.xlu0 %2378
        %vm2380 = vcmp.eq.f32.partialorder %v2377, %v2379
        %v2381 = vsel %vm2380, %v2376, inf
        %2382 = vmin.xlane.f32.xlu0 %v2381
        %v2383 = vpop.xlane.xlu0 %2382
        %v2384 = vcvt.f32.s32 %v2383
        %v2385 = vcvt.f32.s32 %v2379
        %v2386 = vshll.u32 %v2385, 16
        %v2387 = vadd.s32 %v2386, %v2384
        %vm2388 = vcmp.lt.s32.totalorder %v1780, %v1781
        %v2389 = vsel %vm2388, %v1780, %v1781
        %v2390 = vand.u32 %v2389, 65535
        %v2391 = vshra.s32 %v2389, 16
        %v2392 = vcvt.s32.f32 %v2390
        %v2393 = vcvt.s32.f32 %v2391
        %2394 = vmin.xlane.f32.xlu0 %v2393
        %v2395 = vpop.xlane.xlu0 %2394
        %vm2396 = vcmp.eq.f32.partialorder %v2393, %v2395
        %v2397 = vsel %vm2396, %v2392, inf
        %2398 = vmin.xlane.f32.xlu0 %v2397
        %v2399 = vpop.xlane.xlu0 %2398
        %v2400 = vcvt.f32.s32 %v2399
        %v2401 = vcvt.f32.s32 %v2395
        %v2402 = vshll.u32 %v2401, 16
        %v2403 = vadd.s32 %v2402, %v2400
        %vm2404 = vcmp.lt.s32.totalorder %v1782, %v1783
        %v2405 = vsel %vm2404, %v1782, %v1783
        %v2406 = vand.u32 %v2405, 65535
        %v2407 = vshra.s32 %v2405, 16
        %v2408 = vcvt.s32.f32 %v2406
        %v2409 = vcvt.s32.f32 %v2407
        %2410 = vmin.xlane.f32.xlu0 %v2409
        %v2411 = vpop.xlane.xlu0 %2410
        %vm2412 = vcmp.eq.f32.partialorder %v2409, %v2411
        %v2413 = vsel %vm2412, %v2408, inf
        %2414 = vmin.xlane.f32.xlu0 %v2413
        %v2415 = vpop.xlane.xlu0 %2414
        %v2416 = vcvt.f32.s32 %v2415
        %v2417 = vcvt.f32.s32 %v2411
        %v2418 = vshll.u32 %v2417, 16
        %v2419 = vadd.s32 %v2418, %v2416
        %vm2420 = vcmp.lt.s32.totalorder %v1784, %v1785
        %v2421 = vsel %vm2420, %v1784, %v1785
        %v2422 = vand.u32 %v2421, 65535
        %v2423 = vshra.s32 %v2421, 16
        %v2424 = vcvt.s32.f32 %v2422
        %v2425 = vcvt.s32.f32 %v2423
        %2426 = vmin.xlane.f32.xlu0 %v2425
        %v2427 = vpop.xlane.xlu0 %2426
        %vm2428 = vcmp.eq.f32.partialorder %v2425, %v2427
        %v2429 = vsel %vm2428, %v2424, inf
        %2430 = vmin.xlane.f32.xlu0 %v2429
        %v2431 = vpop.xlane.xlu0 %2430
        %v2432 = vcvt.f32.s32 %v2431
        %v2433 = vcvt.f32.s32 %v2427
        %v2434 = vshll.u32 %v2433, 16
        %v2435 = vadd.s32 %v2434, %v2432
        %vm2436 = vcmp.lt.s32.totalorder %v1786, %v1787
        %v2437 = vsel %vm2436, %v1786, %v1787
        %v2438 = vand.u32 %v2437, 65535
        %v2439 = vshra.s32 %v2437, 16
        %v2440 = vcvt.s32.f32 %v2438
        %v2441 = vcvt.s32.f32 %v2439
        %2442 = vmin.xlane.f32.xlu0 %v2441
        %v2443 = vpop.xlane.xlu0 %2442
        %vm2444 = vcmp.eq.f32.partialorder %v2441, %v2443
        %v2445 = vsel %vm2444, %v2440, inf
        %2446 = vmin.xlane.f32.xlu0 %v2445
        %v2447 = vpop.xlane.xlu0 %2446
        %v2448 = vcvt.f32.s32 %v2447
        %v2449 = vcvt.f32.s32 %v2443
        %v2450 = vshll.u32 %v2449, 16
        %v2451 = vadd.s32 %v2450, %v2448
        %vm2452 = vcmp.lt.s32.totalorder %v1788, %v1789
        %v2453 = vsel %vm2452, %v1788, %v1789
        %v2454 = vand.u32 %v2453, 65535
        %v2455 = vshra.s32 %v2453, 16
        %v2456 = vcvt.s32.f32 %v2454
        %v2457 = vcvt.s32.f32 %v2455
        %2458 = vmin.xlane.f32.xlu0 %v2457
        %v2459 = vpop.xlane.xlu0 %2458
        %vm2460 = vcmp.eq.f32.partialorder %v2457, %v2459
        %v2461 = vsel %vm2460, %v2456, inf
        %2462 = vmin.xlane.f32.xlu0 %v2461
        %v2463 = vpop.xlane.xlu0 %2462
        %v2464 = vcvt.f32.s32 %v2463
        %v2465 = vcvt.f32.s32 %v2459
        %v2466 = vshll.u32 %v2465, 16
        %v2467 = vadd.s32 %v2466, %v2464
        %vm2468 = vcmp.lt.s32.totalorder %v1790, %v1791
        %v2469 = vsel %vm2468, %v1790, %v1791
        %v2470 = vand.u32 %v2469, 65535
        %v2471 = vshra.s32 %v2469, 16
        %v2472 = vcvt.s32.f32 %v2470
        %v2473 = vcvt.s32.f32 %v2471
        %2474 = vmin.xlane.f32.xlu0 %v2473
        %v2475 = vpop.xlane.xlu0 %2474
        %vm2476 = vcmp.eq.f32.partialorder %v2473, %v2475
        %v2477 = vsel %vm2476, %v2472, inf
        %2478 = vmin.xlane.f32.xlu0 %v2477
        %v2479 = vpop.xlane.xlu0 %2478
        %v2480 = vcvt.f32.s32 %v2479
        %v2481 = vcvt.f32.s32 %v2475
        %v2482 = vshll.u32 %v2481, 16
        %v2483 = vadd.s32 %v2482, %v2480
        %vm2484 = vcmp.lt.s32.totalorder %v1792, %v1793
        %v2485 = vsel %vm2484, %v1792, %v1793
        %v2486 = vand.u32 %v2485, 65535
        %v2487 = vshra.s32 %v2485, 16
        %v2488 = vcvt.s32.f32 %v2486
        %v2489 = vcvt.s32.f32 %v2487
        %2490 = vmin.xlane.f32.xlu0 %v2489
        %v2491 = vpop.xlane.xlu0 %2490
        %vm2492 = vcmp.eq.f32.partialorder %v2489, %v2491
        %v2493 = vsel %vm2492, %v2488, inf
        %2494 = vmin.xlane.f32.xlu0 %v2493
        %v2495 = vpop.xlane.xlu0 %2494
        %v2496 = vcvt.f32.s32 %v2495
        %v2497 = vcvt.f32.s32 %v2491
        %v2498 = vshll.u32 %v2497, 16
        %v2499 = vadd.s32 %v2498, %v2496
        %vm2500 = vcmp.lt.s32.totalorder %v1794, %v1795
        %v2501 = vsel %vm2500, %v1794, %v1795
        %v2502 = vand.u32 %v2501, 65535
        %v2503 = vshra.s32 %v2501, 16
        %v2504 = vcvt.s32.f32 %v2502
        %v2505 = vcvt.s32.f32 %v2503
        %2506 = vmin.xlane.f32.xlu0 %v2505
        %v2507 = vpop.xlane.xlu0 %2506
        %vm2508 = vcmp.eq.f32.partialorder %v2505, %v2507
        %v2509 = vsel %vm2508, %v2504, inf
        %2510 = vmin.xlane.f32.xlu0 %v2509
        %v2511 = vpop.xlane.xlu0 %2510
        %v2512 = vcvt.f32.s32 %v2511
        %v2513 = vcvt.f32.s32 %v2507
        %v2514 = vshll.u32 %v2513, 16
        %v2515 = vadd.s32 %v2514, %v2512
        %vm2516 = vcmp.lt.s32.totalorder %v1796, %v1797
        %v2517 = vsel %vm2516, %v1796, %v1797
        %v2518 = vand.u32 %v2517, 65535
        %v2519 = vshra.s32 %v2517, 16
        %v2520 = vcvt.s32.f32 %v2518
        %v2521 = vcvt.s32.f32 %v2519
        %2522 = vmin.xlane.f32.xlu0 %v2521
        %v2523 = vpop.xlane.xlu0 %2522
        %vm2524 = vcmp.eq.f32.partialorder %v2521, %v2523
        %v2525 = vsel %vm2524, %v2520, inf
        %2526 = vmin.xlane.f32.xlu0 %v2525
        %v2527 = vpop.xlane.xlu0 %2526
        %v2528 = vcvt.f32.s32 %v2527
        %v2529 = vcvt.f32.s32 %v2523
        %v2530 = vshll.u32 %v2529, 16
        %v2531 = vadd.s32 %v2530, %v2528
        %vm2532 = vcmp.lt.s32.totalorder %v1798, %v1799
        %v2533 = vsel %vm2532, %v1798, %v1799
        %v2534 = vand.u32 %v2533, 65535
        %v2535 = vshra.s32 %v2533, 16
        %v2536 = vcvt.s32.f32 %v2534
        %v2537 = vcvt.s32.f32 %v2535
        %2538 = vmin.xlane.f32.xlu0 %v2537
        %v2539 = vpop.xlane.xlu0 %2538
        %vm2540 = vcmp.eq.f32.partialorder %v2537, %v2539
        %v2541 = vsel %vm2540, %v2536, inf
        %2542 = vmin.xlane.f32.xlu0 %v2541
        %v2543 = vpop.xlane.xlu0 %2542
        %v2544 = vcvt.f32.s32 %v2543
        %v2545 = vcvt.f32.s32 %v2539
        %v2546 = vshll.u32 %v2545, 16
        %v2547 = vadd.s32 %v2546, %v2544
        %vm2548 = vcmp.lt.s32.totalorder %v1800, %v1801
        %v2549 = vsel %vm2548, %v1800, %v1801
        %v2550 = vand.u32 %v2549, 65535
        %v2551 = vshra.s32 %v2549, 16
        %v2552 = vcvt.s32.f32 %v2550
        %v2553 = vcvt.s32.f32 %v2551
        %2554 = vmin.xlane.f32.xlu0 %v2553
        %v2555 = vpop.xlane.xlu0 %2554
        %vm2556 = vcmp.eq.f32.partialorder %v2553, %v2555
        %v2557 = vsel %vm2556, %v2552, inf
        %2558 = vmin.xlane.f32.xlu0 %v2557
        %v2559 = vpop.xlane.xlu0 %2558
        %v2560 = vcvt.f32.s32 %v2559
        %v2561 = vcvt.f32.s32 %v2555
        %v2562 = vshll.u32 %v2561, 16
        %v2563 = vadd.s32 %v2562, %v2560
        %vm2564 = vcmp.lt.s32.totalorder %v1802, %v1803
        %v2565 = vsel %vm2564, %v1802, %v1803
        %v2566 = vand.u32 %v2565, 65535
        %v2567 = vshra.s32 %v2565, 16
        %v2568 = vcvt.s32.f32 %v2566
        %v2569 = vcvt.s32.f32 %v2567
        %2570 = vmin.xlane.f32.xlu0 %v2569
        %v2571 = vpop.xlane.xlu0 %2570
        %vm2572 = vcmp.eq.f32.partialorder %v2569, %v2571
        %v2573 = vsel %vm2572, %v2568, inf
        %2574 = vmin.xlane.f32.xlu0 %v2573
        %v2575 = vpop.xlane.xlu0 %2574
        %v2576 = vcvt.f32.s32 %v2575
        %v2577 = vcvt.f32.s32 %v2571
        %v2578 = vshll.u32 %v2577, 16
        %v2579 = vadd.s32 %v2578, %v2576
        %vm2580 = vcmp.lt.s32.totalorder %v1804, %v1805
        %v2581 = vsel %vm2580, %v1804, %v1805
        %v2582 = vand.u32 %v2581, 65535
        %v2583 = vshra.s32 %v2581, 16
        %v2584 = vcvt.s32.f32 %v2582
        %v2585 = vcvt.s32.f32 %v2583
        %2586 = vmin.xlane.f32.xlu0 %v2585
        %v2587 = vpop.xlane.xlu0 %2586
        %vm2588 = vcmp.eq.f32.partialorder %v2585, %v2587
        %v2589 = vsel %vm2588, %v2584, inf
        %2590 = vmin.xlane.f32.xlu0 %v2589
        %v2591 = vpop.xlane.xlu0 %2590
        %v2592 = vcvt.f32.s32 %v2591
        %v2593 = vcvt.f32.s32 %v2587
        %v2594 = vshll.u32 %v2593, 16
        %v2595 = vadd.s32 %v2594, %v2592
        %vm2596 = vcmp.lt.s32.totalorder %v1806, %v1807
        %v2597 = vsel %vm2596, %v1806, %v1807
        %v2598 = vand.u32 %v2597, 65535
        %v2599 = vshra.s32 %v2597, 16
        %v2600 = vcvt.s32.f32 %v2598
        %v2601 = vcvt.s32.f32 %v2599
        %2602 = vmin.xlane.f32.xlu0 %v2601
        %v2603 = vpop.xlane.xlu0 %2602
        %vm2604 = vcmp.eq.f32.partialorder %v2601, %v2603
        %v2605 = vsel %vm2604, %v2600, inf
        %2606 = vmin.xlane.f32.xlu0 %v2605
        %v2607 = vpop.xlane.xlu0 %2606
        %v2608 = vcvt.f32.s32 %v2607
        %v2609 = vcvt.f32.s32 %v2603
        %v2610 = vshll.u32 %v2609, 16
        %v2611 = vadd.s32 %v2610, %v2608
        %vm2612 = vcmp.lt.s32.totalorder %v1808, %v1809
        %v2613 = vsel %vm2612, %v1808, %v1809
        %v2614 = vand.u32 %v2613, 65535
        %v2615 = vshra.s32 %v2613, 16
        %v2616 = vcvt.s32.f32 %v2614
        %v2617 = vcvt.s32.f32 %v2615
        %2618 = vmin.xlane.f32.xlu0 %v2617
        %v2619 = vpop.xlane.xlu0 %2618
        %vm2620 = vcmp.eq.f32.partialorder %v2617, %v2619
        %v2621 = vsel %vm2620, %v2616, inf
        %2622 = vmin.xlane.f32.xlu0 %v2621
        %v2623 = vpop.xlane.xlu0 %2622
        %v2624 = vcvt.f32.s32 %v2623
        %v2625 = vcvt.f32.s32 %v2619
        %v2626 = vshll.u32 %v2625, 16
        %v2627 = vadd.s32 %v2626, %v2624
        %vm2628 = vcmp.lt.s32.totalorder %v1810, %v1811
        %v2629 = vsel %vm2628, %v1810, %v1811
        %v2630 = vand.u32 %v2629, 65535
        %v2631 = vshra.s32 %v2629, 16
        %v2632 = vcvt.s32.f32 %v2630
        %v2633 = vcvt.s32.f32 %v2631
        %2634 = vmin.xlane.f32.xlu0 %v2633
        %v2635 = vpop.xlane.xlu0 %2634
        %vm2636 = vcmp.eq.f32.partialorder %v2633, %v2635
        %v2637 = vsel %vm2636, %v2632, inf
        %2638 = vmin.xlane.f32.xlu0 %v2637
        %v2639 = vpop.xlane.xlu0 %2638
        %v2640 = vcvt.f32.s32 %v2639
        %v2641 = vcvt.f32.s32 %v2635
        %v2642 = vshll.u32 %v2641, 16
        %v2643 = vadd.s32 %v2642, %v2640
        %vm2644 = vcmp.lt.s32.totalorder %v1812, %v1813
        %v2645 = vsel %vm2644, %v1812, %v1813
        %v2646 = vand.u32 %v2645, 65535
        %v2647 = vshra.s32 %v2645, 16
        %v2648 = vcvt.s32.f32 %v2646
        %v2649 = vcvt.s32.f32 %v2647
        %2650 = vmin.xlane.f32.xlu0 %v2649
        %v2651 = vpop.xlane.xlu0 %2650
        %vm2652 = vcmp.eq.f32.partialorder %v2649, %v2651
        %v2653 = vsel %vm2652, %v2648, inf
        %2654 = vmin.xlane.f32.xlu0 %v2653
        %v2655 = vpop.xlane.xlu0 %2654
        %v2656 = vcvt.f32.s32 %v2655
        %v2657 = vcvt.f32.s32 %v2651
        %v2658 = vshll.u32 %v2657, 16
        %v2659 = vadd.s32 %v2658, %v2656
        %vm2660 = vcmp.lt.s32.totalorder %v1814, %v1815
        %v2661 = vsel %vm2660, %v1814, %v1815
        %v2662 = vand.u32 %v2661, 65535
        %v2663 = vshra.s32 %v2661, 16
        %v2664 = vcvt.s32.f32 %v2662
        %v2665 = vcvt.s32.f32 %v2663
        %2666 = vmin.xlane.f32.xlu0 %v2665
        %v2667 = vpop.xlane.xlu0 %2666
        %vm2668 = vcmp.eq.f32.partialorder %v2665, %v2667
        %v2669 = vsel %vm2668, %v2664, inf
        %2670 = vmin.xlane.f32.xlu0 %v2669
        %v2671 = vpop.xlane.xlu0 %2670
        %v2672 = vcvt.f32.s32 %v2671
        %v2673 = vcvt.f32.s32 %v2667
        %v2674 = vshll.u32 %v2673, 16
        %v2675 = vadd.s32 %v2674, %v2672
        %vm2676 = vcmp.lt.s32.totalorder %v1816, %v1817
        %v2677 = vsel %vm2676, %v1816, %v1817
        %v2678 = vand.u32 %v2677, 65535
        %v2679 = vshra.s32 %v2677, 16
        %v2680 = vcvt.s32.f32 %v2678
        %v2681 = vcvt.s32.f32 %v2679
        %2682 = vmin.xlane.f32.xlu0 %v2681
        %v2683 = vpop.xlane.xlu0 %2682
        %vm2684 = vcmp.eq.f32.partialorder %v2681, %v2683
        %v2685 = vsel %vm2684, %v2680, inf
        %2686 = vmin.xlane.f32.xlu0 %v2685
        %v2687 = vpop.xlane.xlu0 %2686
        %v2688 = vcvt.f32.s32 %v2687
        %v2689 = vcvt.f32.s32 %v2683
        %v2690 = vshll.u32 %v2689, 16
        %v2691 = vadd.s32 %v2690, %v2688
        %vm2692 = vcmp.lt.s32.totalorder %v1818, %v1819
        %v2693 = vsel %vm2692, %v1818, %v1819
        %v2694 = vand.u32 %v2693, 65535
        %v2695 = vshra.s32 %v2693, 16
        %v2696 = vcvt.s32.f32 %v2694
        %v2697 = vcvt.s32.f32 %v2695
        %2698 = vmin.xlane.f32.xlu0 %v2697
        %v2699 = vpop.xlane.xlu0 %2698
        %vm2700 = vcmp.eq.f32.partialorder %v2697, %v2699
        %v2701 = vsel %vm2700, %v2696, inf
        %2702 = vmin.xlane.f32.xlu0 %v2701
        %v2703 = vpop.xlane.xlu0 %2702
        %v2704 = vcvt.f32.s32 %v2703
        %v2705 = vcvt.f32.s32 %v2699
        %v2706 = vshll.u32 %v2705, 16
        %v2707 = vadd.s32 %v2706, %v2704
        %vm2708 = vcmp.lt.s32.totalorder %v1820, %v1821
        %v2709 = vsel %vm2708, %v1820, %v1821
        %v2710 = vand.u32 %v2709, 65535
        %v2711 = vshra.s32 %v2709, 16
        %v2712 = vcvt.s32.f32 %v2710
        %v2713 = vcvt.s32.f32 %v2711
        %2714 = vmin.xlane.f32.xlu0 %v2713
        %v2715 = vpop.xlane.xlu0 %2714
        %vm2716 = vcmp.eq.f32.partialorder %v2713, %v2715
        %v2717 = vsel %vm2716, %v2712, inf
        %2718 = vmin.xlane.f32.xlu0 %v2717
        %v2719 = vpop.xlane.xlu0 %2718
        %v2720 = vcvt.f32.s32 %v2719
        %v2721 = vcvt.f32.s32 %v2715
        %v2722 = vshll.u32 %v2721, 16
        %v2723 = vadd.s32 %v2722, %v2720
        %vm2724 = vcmp.lt.s32.totalorder %v1822, %v1823
        %v2725 = vsel %vm2724, %v1822, %v1823
        %v2726 = vand.u32 %v2725, 65535
        %v2727 = vshra.s32 %v2725, 16
        %v2728 = vcvt.s32.f32 %v2726
        %v2729 = vcvt.s32.f32 %v2727
        %2730 = vmin.xlane.f32.xlu0 %v2729
        %v2731 = vpop.xlane.xlu0 %2730
        %vm2732 = vcmp.eq.f32.partialorder %v2729, %v2731
        %v2733 = vsel %vm2732, %v2728, inf
        %2734 = vmin.xlane.f32.xlu0 %v2733
        %v2735 = vpop.xlane.xlu0 %2734
        %v2736 = vcvt.f32.s32 %v2735
        %v2737 = vcvt.f32.s32 %v2731
        %v2738 = vshll.u32 %v2737, 16
        %v2739 = vadd.s32 %v2738, %v2736
        %vm2740 = vcmp.lt.s32.totalorder %v1824, %v1825
        %v2741 = vsel %vm2740, %v1824, %v1825
        %v2742 = vand.u32 %v2741, 65535
        %v2743 = vshra.s32 %v2741, 16
        %v2744 = vcvt.s32.f32 %v2742
        %v2745 = vcvt.s32.f32 %v2743
        %2746 = vmin.xlane.f32.xlu0 %v2745
        %v2747 = vpop.xlane.xlu0 %2746
        %vm2748 = vcmp.eq.f32.partialorder %v2745, %v2747
        %v2749 = vsel %vm2748, %v2744, inf
        %2750 = vmin.xlane.f32.xlu0 %v2749
        %v2751 = vpop.xlane.xlu0 %2750
        %v2752 = vcvt.f32.s32 %v2751
        %v2753 = vcvt.f32.s32 %v2747
        %v2754 = vshll.u32 %v2753, 16
        %v2755 = vadd.s32 %v2754, %v2752
        %vm2756 = vcmp.lt.s32.totalorder %v1826, %v1827
        %v2757 = vsel %vm2756, %v1826, %v1827
        %v2758 = vand.u32 %v2757, 65535
        %v2759 = vshra.s32 %v2757, 16
        %v2760 = vcvt.s32.f32 %v2758
        %v2761 = vcvt.s32.f32 %v2759
        %2762 = vmin.xlane.f32.xlu0 %v2761
        %v2763 = vpop.xlane.xlu0 %2762
        %vm2764 = vcmp.eq.f32.partialorder %v2761, %v2763
        %v2765 = vsel %vm2764, %v2760, inf
        %2766 = vmin.xlane.f32.xlu0 %v2765
        %v2767 = vpop.xlane.xlu0 %2766
        %v2768 = vcvt.f32.s32 %v2767
        %v2769 = vcvt.f32.s32 %v2763
        %v2770 = vshll.u32 %v2769, 16
        %v2771 = vadd.s32 %v2770, %v2768
        %vm2772 = vcmp.lt.s32.totalorder %v1828, %v1829
        %v2773 = vsel %vm2772, %v1828, %v1829
        %v2774 = vand.u32 %v2773, 65535
        %v2775 = vshra.s32 %v2773, 16
        %v2776 = vcvt.s32.f32 %v2774
        %v2777 = vcvt.s32.f32 %v2775
        %2778 = vmin.xlane.f32.xlu0 %v2777
        %v2779 = vpop.xlane.xlu0 %2778
        %vm2780 = vcmp.eq.f32.partialorder %v2777, %v2779
        %v2781 = vsel %vm2780, %v2776, inf
        %2782 = vmin.xlane.f32.xlu0 %v2781
        %v2783 = vpop.xlane.xlu0 %2782
        %v2784 = vcvt.f32.s32 %v2783
        %v2785 = vcvt.f32.s32 %v2779
        %v2786 = vshll.u32 %v2785, 16
        %v2787 = vadd.s32 %v2786, %v2784
        %vm2788 = vcmp.lt.s32.totalorder %v1830, %v1831
        %v2789 = vsel %vm2788, %v1830, %v1831
        %v2790 = vand.u32 %v2789, 65535
        %v2791 = vshra.s32 %v2789, 16
        %v2792 = vcvt.s32.f32 %v2790
        %v2793 = vcvt.s32.f32 %v2791
        %2794 = vmin.xlane.f32.xlu0 %v2793
        %v2795 = vpop.xlane.xlu0 %2794
        %vm2796 = vcmp.eq.f32.partialorder %v2793, %v2795
        %v2797 = vsel %vm2796, %v2792, inf
        %2798 = vmin.xlane.f32.xlu0 %v2797
        %v2799 = vpop.xlane.xlu0 %2798
        %v2800 = vcvt.f32.s32 %v2799
        %v2801 = vcvt.f32.s32 %v2795
        %v2802 = vshll.u32 %v2801, 16
        %v2803 = vadd.s32 %v2802, %v2800
        %vm2804 = vcmp.lt.s32.totalorder %v1832, %v1833
        %v2805 = vsel %vm2804, %v1832, %v1833
        %v2806 = vand.u32 %v2805, 65535
        %v2807 = vshra.s32 %v2805, 16
        %v2808 = vcvt.s32.f32 %v2806
        %v2809 = vcvt.s32.f32 %v2807
        %2810 = vmin.xlane.f32.xlu0 %v2809
        %v2811 = vpop.xlane.xlu0 %2810
        %vm2812 = vcmp.eq.f32.partialorder %v2809, %v2811
        %v2813 = vsel %vm2812, %v2808, inf
        %2814 = vmin.xlane.f32.xlu0 %v2813
        %v2815 = vpop.xlane.xlu0 %2814
        %v2816 = vcvt.f32.s32 %v2815
        %v2817 = vcvt.f32.s32 %v2811
        %v2818 = vshll.u32 %v2817, 16
        %v2819 = vadd.s32 %v2818, %v2816
        %vm2820 = vcmp.lt.s32.totalorder %v1834, %v1835
        %v2821 = vsel %vm2820, %v1834, %v1835
        %v2822 = vand.u32 %v2821, 65535
        %v2823 = vshra.s32 %v2821, 16
        %v2824 = vcvt.s32.f32 %v2822
        %v2825 = vcvt.s32.f32 %v2823
        %2826 = vmin.xlane.f32.xlu0 %v2825
        %v2827 = vpop.xlane.xlu0 %2826
        %vm2828 = vcmp.eq.f32.partialorder %v2825, %v2827
        %v2829 = vsel %vm2828, %v2824, inf
        %2830 = vmin.xlane.f32.xlu0 %v2829
        %v2831 = vpop.xlane.xlu0 %2830
        %v2832 = vcvt.f32.s32 %v2831
        %v2833 = vcvt.f32.s32 %v2827
        %v2834 = vshll.u32 %v2833, 16
        %v2835 = vadd.s32 %v2834, %v2832
        %vm2836 = vcmp.lt.s32.totalorder %v1836, %v1837
        %v2837 = vsel %vm2836, %v1836, %v1837
        %v2838 = vand.u32 %v2837, 65535
        %v2839 = vshra.s32 %v2837, 16
        %v2840 = vcvt.s32.f32 %v2838
        %v2841 = vcvt.s32.f32 %v2839
        %2842 = vmin.xlane.f32.xlu0 %v2841
        %v2843 = vpop.xlane.xlu0 %2842
        %vm2844 = vcmp.eq.f32.partialorder %v2841, %v2843
        %v2845 = vsel %vm2844, %v2840, inf
        %2846 = vmin.xlane.f32.xlu0 %v2845
        %v2847 = vpop.xlane.xlu0 %2846
        %v2848 = vcvt.f32.s32 %v2847
        %v2849 = vcvt.f32.s32 %v2843
        %v2850 = vshll.u32 %v2849, 16
        %v2851 = vadd.s32 %v2850, %v2848
        %vm2852 = vcmp.lt.s32.totalorder %v1838, %v1839
        %v2853 = vsel %vm2852, %v1838, %v1839
        %v2854 = vand.u32 %v2853, 65535
        %v2855 = vshra.s32 %v2853, 16
        %v2856 = vcvt.s32.f32 %v2854
        %v2857 = vcvt.s32.f32 %v2855
        %2858 = vmin.xlane.f32.xlu0 %v2857
        %v2859 = vpop.xlane.xlu0 %2858
        %vm2860 = vcmp.eq.f32.partialorder %v2857, %v2859
        %v2861 = vsel %vm2860, %v2856, inf
        %2862 = vmin.xlane.f32.xlu0 %v2861
        %v2863 = vpop.xlane.xlu0 %2862
        %v2864 = vcvt.f32.s32 %v2863
        %v2865 = vcvt.f32.s32 %v2859
        %v2866 = vshll.u32 %v2865, 16
        %v2867 = vadd.s32 %v2866, %v2864
        %vm2868 = vcmp.lt.s32.totalorder %v1840, %v1841
        %v2869 = vsel %vm2868, %v1840, %v1841
        %v2870 = vand.u32 %v2869, 65535
        %v2871 = vshra.s32 %v2869, 16
        %v2872 = vcvt.s32.f32 %v2870
        %v2873 = vcvt.s32.f32 %v2871
        %2874 = vmin.xlane.f32.xlu0 %v2873
        %v2875 = vpop.xlane.xlu0 %2874
        %vm2876 = vcmp.eq.f32.partialorder %v2873, %v2875
        %v2877 = vsel %vm2876, %v2872, inf
        %2878 = vmin.xlane.f32.xlu0 %v2877
        %v2879 = vpop.xlane.xlu0 %2878
        %v2880 = vcvt.f32.s32 %v2879
        %v2881 = vcvt.f32.s32 %v2875
        %v2882 = vshll.u32 %v2881, 16
        %v2883 = vadd.s32 %v2882, %v2880
        %vm2884 = vcmp.lt.s32.totalorder %v1842, %v1843
        %v2885 = vsel %vm2884, %v1842, %v1843
        %v2886 = vand.u32 %v2885, 65535
        %v2887 = vshra.s32 %v2885, 16
        %v2888 = vcvt.s32.f32 %v2886
        %v2889 = vcvt.s32.f32 %v2887
        %2890 = vmin.xlane.f32.xlu0 %v2889
        %v2891 = vpop.xlane.xlu0 %2890
        %vm2892 = vcmp.eq.f32.partialorder %v2889, %v2891
        %v2893 = vsel %vm2892, %v2888, inf
        %2894 = vmin.xlane.f32.xlu0 %v2893
        %v2895 = vpop.xlane.xlu0 %2894
        %v2896 = vcvt.f32.s32 %v2895
        %v2897 = vcvt.f32.s32 %v2891
        %v2898 = vshll.u32 %v2897, 16
        %v2899 = vadd.s32 %v2898, %v2896
        %vm2900 = vcmp.lt.s32.totalorder %v1844, %v1845
        %v2901 = vsel %vm2900, %v1844, %v1845
        %v2902 = vand.u32 %v2901, 65535
        %v2903 = vshra.s32 %v2901, 16
        %v2904 = vcvt.s32.f32 %v2902
        %v2905 = vcvt.s32.f32 %v2903
        %2906 = vmin.xlane.f32.xlu0 %v2905
        %v2907 = vpop.xlane.xlu0 %2906
        %vm2908 = vcmp.eq.f32.partialorder %v2905, %v2907
        %v2909 = vsel %vm2908, %v2904, inf
        %2910 = vmin.xlane.f32.xlu0 %v2909
        %v2911 = vpop.xlane.xlu0 %2910
        %v2912 = vcvt.f32.s32 %v2911
        %v2913 = vcvt.f32.s32 %v2907
        %v2914 = vshll.u32 %v2913, 16
        %v2915 = vadd.s32 %v2914, %v2912
        %vm2916 = vcmp.lt.s32.totalorder %v1846, %v1847
        %v2917 = vsel %vm2916, %v1846, %v1847
        %v2918 = vand.u32 %v2917, 65535
        %v2919 = vshra.s32 %v2917, 16
        %v2920 = vcvt.s32.f32 %v2918
        %v2921 = vcvt.s32.f32 %v2919
        %2922 = vmin.xlane.f32.xlu0 %v2921
        %v2923 = vpop.xlane.xlu0 %2922
        %vm2924 = vcmp.eq.f32.partialorder %v2921, %v2923
        %v2925 = vsel %vm2924, %v2920, inf
        %2926 = vmin.xlane.f32.xlu0 %v2925
        %v2927 = vpop.xlane.xlu0 %2926
        %v2928 = vcvt.f32.s32 %v2927
        %v2929 = vcvt.f32.s32 %v2923
        %v2930 = vshll.u32 %v2929, 16
        %v2931 = vadd.s32 %v2930, %v2928
        %vm2932 = vcmp.lt.s32.totalorder %v1848, %v1849
        %v2933 = vsel %vm2932, %v1848, %v1849
        %v2934 = vand.u32 %v2933, 65535
        %v2935 = vshra.s32 %v2933, 16
        %v2936 = vcvt.s32.f32 %v2934
        %v2937 = vcvt.s32.f32 %v2935
        %2938 = vmin.xlane.f32.xlu0 %v2937
        %v2939 = vpop.xlane.xlu0 %2938
        %vm2940 = vcmp.eq.f32.partialorder %v2937, %v2939
        %v2941 = vsel %vm2940, %v2936, inf
        %2942 = vmin.xlane.f32.xlu0 %v2941
        %v2943 = vpop.xlane.xlu0 %2942
        %v2944 = vcvt.f32.s32 %v2943
        %v2945 = vcvt.f32.s32 %v2939
        %v2946 = vshll.u32 %v2945, 16
        %v2947 = vadd.s32 %v2946, %v2944
        %vm2948 = vcmp.lt.s32.totalorder %v1850, %v1851
        %v2949 = vsel %vm2948, %v1850, %v1851
        %v2950 = vand.u32 %v2949, 65535
        %v2951 = vshra.s32 %v2949, 16
        %v2952 = vcvt.s32.f32 %v2950
        %v2953 = vcvt.s32.f32 %v2951
        %2954 = vmin.xlane.f32.xlu0 %v2953
        %v2955 = vpop.xlane.xlu0 %2954
        %vm2956 = vcmp.eq.f32.partialorder %v2953, %v2955
        %v2957 = vsel %vm2956, %v2952, inf
        %2958 = vmin.xlane.f32.xlu0 %v2957
        %v2959 = vpop.xlane.xlu0 %2958
        %v2960 = vcvt.f32.s32 %v2959
        %v2961 = vcvt.f32.s32 %v2955
        %v2962 = vshll.u32 %v2961, 16
        %v2963 = vadd.s32 %v2962, %v2960
        %vm2964 = vcmp.lt.s32.totalorder %v1852, %v1853
        %v2965 = vsel %vm2964, %v1852, %v1853
        %v2966 = vand.u32 %v2965, 65535
        %v2967 = vshra.s32 %v2965, 16
        %v2968 = vcvt.s32.f32 %v2966
        %v2969 = vcvt.s32.f32 %v2967
        %2970 = vmin.xlane.f32.xlu0 %v2969
        %v2971 = vpop.xlane.xlu0 %2970
        %vm2972 = vcmp.eq.f32.partialorder %v2969, %v2971
        %v2973 = vsel %vm2972, %v2968, inf
        %2974 = vmin.xlane.f32.xlu0 %v2973
        %v2975 = vpop.xlane.xlu0 %2974
        %v2976 = vcvt.f32.s32 %v2975
        %v2977 = vcvt.f32.s32 %v2971
        %v2978 = vshll.u32 %v2977, 16
        %v2979 = vadd.s32 %v2978, %v2976
        %vm2980 = vcmp.lt.s32.totalorder %v1854, %v1855
        %v2981 = vsel %vm2980, %v1854, %v1855
        %v2982 = vand.u32 %v2981, 65535
        %v2983 = vshra.s32 %v2981, 16
        %v2984 = vcvt.s32.f32 %v2982
        %v2985 = vcvt.s32.f32 %v2983
        %2986 = vmin.xlane.f32.xlu0 %v2985
        %v2987 = vpop.xlane.xlu0 %2986
        %vm2988 = vcmp.eq.f32.partialorder %v2985, %v2987
        %v2989 = vsel %vm2988, %v2984, inf
        %2990 = vmin.xlane.f32.xlu0 %v2989
        %v2991 = vpop.xlane.xlu0 %2990
        %v2992 = vcvt.f32.s32 %v2991
        %v2993 = vcvt.f32.s32 %v2987
        %v2994 = vshll.u32 %v2993, 16
        %v2995 = vadd.s32 %v2994, %v2992
        %vm2996 = vcmp.lt.s32.totalorder %v1856, %v1857
        %v2997 = vsel %vm2996, %v1856, %v1857
        %v2998 = vand.u32 %v2997, 65535
        %v2999 = vshra.s32 %v2997, 16
        %v3000 = vcvt.s32.f32 %v2998
        %v3001 = vcvt.s32.f32 %v2999
        %3002 = vmin.xlane.f32.xlu0 %v3001
        %v3003 = vpop.xlane.xlu0 %3002
        %vm3004 = vcmp.eq.f32.partialorder %v3001, %v3003
        %v3005 = vsel %vm3004, %v3000, inf
        %3006 = vmin.xlane.f32.xlu0 %v3005
        %v3007 = vpop.xlane.xlu0 %3006
        %v3008 = vcvt.f32.s32 %v3007
        %v3009 = vcvt.f32.s32 %v3003
        %v3010 = vshll.u32 %v3009, 16
        %v3011 = vadd.s32 %v3010, %v3008
        %vm3012 = vcmp.lt.s32.totalorder %v1858, %v1859
        %v3013 = vsel %vm3012, %v1858, %v1859
        %v3014 = vand.u32 %v3013, 65535
        %v3015 = vshra.s32 %v3013, 16
        %v3016 = vcvt.s32.f32 %v3014
        %v3017 = vcvt.s32.f32 %v3015
        %3018 = vmin.xlane.f32.xlu0 %v3017
        %v3019 = vpop.xlane.xlu0 %3018
        %vm3020 = vcmp.eq.f32.partialorder %v3017, %v3019
        %v3021 = vsel %vm3020, %v3016, inf
        %3022 = vmin.xlane.f32.xlu0 %v3021
        %v3023 = vpop.xlane.xlu0 %3022
        %v3024 = vcvt.f32.s32 %v3023
        %v3025 = vcvt.f32.s32 %v3019
        %v3026 = vshll.u32 %v3025, 16
        %v3027 = vadd.s32 %v3026, %v3024
        %vm3028 = vcmp.lt.s32.totalorder %v1860, %v1861
        %v3029 = vsel %vm3028, %v1860, %v1861
        %v3030 = vand.u32 %v3029, 65535
        %v3031 = vshra.s32 %v3029, 16
        %v3032 = vcvt.s32.f32 %v3030
        %v3033 = vcvt.s32.f32 %v3031
        %3034 = vmin.xlane.f32.xlu0 %v3033
        %v3035 = vpop.xlane.xlu0 %3034
        %vm3036 = vcmp.eq.f32.partialorder %v3033, %v3035
        %v3037 = vsel %vm3036, %v3032, inf
        %3038 = vmin.xlane.f32.xlu0 %v3037
        %v3039 = vpop.xlane.xlu0 %3038
        %v3040 = vcvt.f32.s32 %v3039
        %v3041 = vcvt.f32.s32 %v3035
        %v3042 = vshll.u32 %v3041, 16
        %v3043 = vadd.s32 %v3042, %v3040
        %vm3044 = vcmp.lt.s32.totalorder %v1862, %v1863
        %v3045 = vsel %vm3044, %v1862, %v1863
        %v3046 = vand.u32 %v3045, 65535
        %v3047 = vshra.s32 %v3045, 16
        %v3048 = vcvt.s32.f32 %v3046
        %v3049 = vcvt.s32.f32 %v3047
        %3050 = vmin.xlane.f32.xlu0 %v3049
        %v3051 = vpop.xlane.xlu0 %3050
        %vm3052 = vcmp.eq.f32.partialorder %v3049, %v3051
        %v3053 = vsel %vm3052, %v3048, inf
        %3054 = vmin.xlane.f32.xlu0 %v3053
        %v3055 = vpop.xlane.xlu0 %3054
        %v3056 = vcvt.f32.s32 %v3055
        %v3057 = vcvt.f32.s32 %v3051
        %v3058 = vshll.u32 %v3057, 16
        %v3059 = vadd.s32 %v3058, %v3056
        %vm3060 = vcmp.lt.s32.totalorder %v1864, %v1865
        %v3061 = vsel %vm3060, %v1864, %v1865
        %v3062 = vand.u32 %v3061, 65535
        %v3063 = vshra.s32 %v3061, 16
        %v3064 = vcvt.s32.f32 %v3062
        %v3065 = vcvt.s32.f32 %v3063
        %3066 = vmin.xlane.f32.xlu0 %v3065
        %v3067 = vpop.xlane.xlu0 %3066
        %vm3068 = vcmp.eq.f32.partialorder %v3065, %v3067
        %v3069 = vsel %vm3068, %v3064, inf
        %3070 = vmin.xlane.f32.xlu0 %v3069
        %v3071 = vpop.xlane.xlu0 %3070
        %v3072 = vcvt.f32.s32 %v3071
        %v3073 = vcvt.f32.s32 %v3067
        %v3074 = vshll.u32 %v3073, 16
        %v3075 = vadd.s32 %v3074, %v3072
        %vm3076 = vcmp.lt.s32.totalorder %v1866, %v1867
        %v3077 = vsel %vm3076, %v1866, %v1867
        %v3078 = vand.u32 %v3077, 65535
        %v3079 = vshra.s32 %v3077, 16
        %v3080 = vcvt.s32.f32 %v3078
        %v3081 = vcvt.s32.f32 %v3079
        %3082 = vmin.xlane.f32.xlu0 %v3081
        %v3083 = vpop.xlane.xlu0 %3082
        %vm3084 = vcmp.eq.f32.partialorder %v3081, %v3083
        %v3085 = vsel %vm3084, %v3080, inf
        %3086 = vmin.xlane.f32.xlu0 %v3085
        %v3087 = vpop.xlane.xlu0 %3086
        %v3088 = vcvt.f32.s32 %v3087
        %v3089 = vcvt.f32.s32 %v3083
        %v3090 = vshll.u32 %v3089, 16
        %v3091 = vadd.s32 %v3090, %v3088
        %vm3092 = vcmp.lt.s32.totalorder %v1868, %v1869
        %v3093 = vsel %vm3092, %v1868, %v1869
        %v3094 = vand.u32 %v3093, 65535
        %v3095 = vshra.s32 %v3093, 16
        %v3096 = vcvt.s32.f32 %v3094
        %v3097 = vcvt.s32.f32 %v3095
        %3098 = vmin.xlane.f32.xlu0 %v3097
        %v3099 = vpop.xlane.xlu0 %3098
        %vm3100 = vcmp.eq.f32.partialorder %v3097, %v3099
        %v3101 = vsel %vm3100, %v3096, inf
        %3102 = vmin.xlane.f32.xlu0 %v3101
        %v3103 = vpop.xlane.xlu0 %3102
        %v3104 = vcvt.f32.s32 %v3103
        %v3105 = vcvt.f32.s32 %v3099
        %v3106 = vshll.u32 %v3105, 16
        %v3107 = vadd.s32 %v3106, %v3104
        %vm3108 = vcmp.lt.s32.totalorder %v1870, %v1871
        %v3109 = vsel %vm3108, %v1870, %v1871
        %v3110 = vand.u32 %v3109, 65535
        %v3111 = vshra.s32 %v3109, 16
        %v3112 = vcvt.s32.f32 %v3110
        %v3113 = vcvt.s32.f32 %v3111
        %3114 = vmin.xlane.f32.xlu0 %v3113
        %v3115 = vpop.xlane.xlu0 %3114
        %vm3116 = vcmp.eq.f32.partialorder %v3113, %v3115
        %v3117 = vsel %vm3116, %v3112, inf
        %3118 = vmin.xlane.f32.xlu0 %v3117
        %v3119 = vpop.xlane.xlu0 %3118
        %v3120 = vcvt.f32.s32 %v3119
        %v3121 = vcvt.f32.s32 %v3115
        %v3122 = vshll.u32 %v3121, 16
        %v3123 = vadd.s32 %v3122, %v3120
        %vm3124 = vcmp.lt.s32.totalorder %v1872, %v1873
        %v3125 = vsel %vm3124, %v1872, %v1873
        %v3126 = vand.u32 %v3125, 65535
        %v3127 = vshra.s32 %v3125, 16
        %v3128 = vcvt.s32.f32 %v3126
        %v3129 = vcvt.s32.f32 %v3127
        %3130 = vmin.xlane.f32.xlu0 %v3129
        %v3131 = vpop.xlane.xlu0 %3130
        %vm3132 = vcmp.eq.f32.partialorder %v3129, %v3131
        %v3133 = vsel %vm3132, %v3128, inf
        %3134 = vmin.xlane.f32.xlu0 %v3133
        %v3135 = vpop.xlane.xlu0 %3134
        %v3136 = vcvt.f32.s32 %v3135
        %v3137 = vcvt.f32.s32 %v3131
        %v3138 = vshll.u32 %v3137, 16
        %v3139 = vadd.s32 %v3138, %v3136
        %vm3140 = vcmp.lt.s32.totalorder %v1874, %v1875
        %v3141 = vsel %vm3140, %v1874, %v1875
        %v3142 = vand.u32 %v3141, 65535
        %v3143 = vshra.s32 %v3141, 16
        %v3144 = vcvt.s32.f32 %v3142
        %v3145 = vcvt.s32.f32 %v3143
        %3146 = vmin.xlane.f32.xlu0 %v3145
        %v3147 = vpop.xlane.xlu0 %3146
        %vm3148 = vcmp.eq.f32.partialorder %v3145, %v3147
        %v3149 = vsel %vm3148, %v3144, inf
        %3150 = vmin.xlane.f32.xlu0 %v3149
        %v3151 = vpop.xlane.xlu0 %3150
        %v3152 = vcvt.f32.s32 %v3151
        %v3153 = vcvt.f32.s32 %v3147
        %v3154 = vshll.u32 %v3153, 16
        %v3155 = vadd.s32 %v3154, %v3152
        %vm3156 = vcmp.eq.s32.totalorder %v1554, %v1891
        %vm3157 = vcmp.eq.s32.totalorder %v1555, %v1891
        %vm3158 = vcmp.eq.s32.totalorder %v1554, %v1907
        %vm3159 = vcmp.eq.s32.totalorder %v1555, %v1907
        %vm3160 = vcmp.eq.s32.totalorder %v1554, %v1923
        %vm3161 = vcmp.eq.s32.totalorder %v1555, %v1923
        %vm3162 = vcmp.eq.s32.totalorder %v1554, %v1939
        %vm3163 = vcmp.eq.s32.totalorder %v1555, %v1939
        %vm3164 = vcmp.eq.s32.totalorder %v1554, %v1955
        %vm3165 = vcmp.eq.s32.totalorder %v1555, %v1955
        %vm3166 = vcmp.eq.s32.totalorder %v1554, %v1971
        %vm3167 = vcmp.eq.s32.totalorder %v1555, %v1971
        %vm3168 = vcmp.eq.s32.totalorder %v1554, %v1987
        %vm3169 = vcmp.eq.s32.totalorder %v1555, %v1987
        %vm3170 = vcmp.eq.s32.totalorder %v1554, %v2003
        %vm3171 = vcmp.eq.s32.totalorder %v1555, %v2003
        %vm3172 = vcmp.eq.s32.totalorder %v1554, %v2019
        %vm3173 = vcmp.eq.s32.totalorder %v1555, %v2019
        %vm3174 = vcmp.eq.s32.totalorder %v1554, %v2035
        %vm3175 = vcmp.eq.s32.totalorder %v1555, %v2035
        %vm3176 = vcmp.eq.s32.totalorder %v1554, %v2051
        %vm3177 = vcmp.eq.s32.totalorder %v1555, %v2051
        %vm3178 = vcmp.eq.s32.totalorder %v1554, %v2067
        %vm3179 = vcmp.eq.s32.totalorder %v1555, %v2067
        %vm3180 = vcmp.eq.s32.totalorder %v1554, %v2083
        %vm3181 = vcmp.eq.s32.totalorder %v1555, %v2083
        %vm3182 = vcmp.eq.s32.totalorder %v1554, %v2099
        %vm3183 = vcmp.eq.s32.totalorder %v1555, %v2099
        %vm3184 = vcmp.eq.s32.totalorder %v1554, %v2115
        %vm3185 = vcmp.eq.s32.totalorder %v1555, %v2115
        %vm3186 = vcmp.eq.s32.totalorder %v1554, %v2131
        %vm3187 = vcmp.eq.s32.totalorder %v1555, %v2131
        %vm3188 = vcmp.eq.s32.totalorder %v1554, %v2147
        %vm3189 = vcmp.eq.s32.totalorder %v1555, %v2147
        %vm3190 = vcmp.eq.s32.totalorder %v1554, %v2163
        %vm3191 = vcmp.eq.s32.totalorder %v1555, %v2163
        %vm3192 = vcmp.eq.s32.totalorder %v1554, %v2179
        %vm3193 = vcmp.eq.s32.totalorder %v1555, %v2179
        %vm3194 = vcmp.eq.s32.totalorder %v1554, %v2195
        %vm3195 = vcmp.eq.s32.totalorder %v1555, %v2195
        %vm3196 = vcmp.eq.s32.totalorder %v1554, %v2211
        %vm3197 = vcmp.eq.s32.totalorder %v1555, %v2211
        %vm3198 = vcmp.eq.s32.totalorder %v1554, %v2227
        %vm3199 = vcmp.eq.s32.totalorder %v1555, %v2227
        %vm3200 = vcmp.eq.s32.totalorder %v1554, %v2243
        %vm3201 = vcmp.eq.s32.totalorder %v1555, %v2243
        %vm3202 = vcmp.eq.s32.totalorder %v1554, %v2259
        %vm3203 = vcmp.eq.s32.totalorder %v1555, %v2259
        %vm3204 = vcmp.eq.s32.totalorder %v1554, %v2275
        %vm3205 = vcmp.eq.s32.totalorder %v1555, %v2275
        %vm3206 = vcmp.eq.s32.totalorder %v1554, %v2291
        %vm3207 = vcmp.eq.s32.totalorder %v1555, %v2291
        %vm3208 = vcmp.eq.s32.totalorder %v1554, %v2307
        %vm3209 = vcmp.eq.s32.totalorder %v1555, %v2307
        %vm3210 = vcmp.eq.s32.totalorder %v1554, %v2323
        %vm3211 = vcmp.eq.s32.totalorder %v1555, %v2323
        %vm3212 = vcmp.eq.s32.totalorder %v1554, %v2339
        %vm3213 = vcmp.eq.s32.totalorder %v1555, %v2339
        %vm3214 = vcmp.eq.s32.totalorder %v1554, %v2355
        %vm3215 = vcmp.eq.s32.totalorder %v1555, %v2355
        %vm3216 = vcmp.eq.s32.totalorder %v1554, %v2371
        %vm3217 = vcmp.eq.s32.totalorder %v1555, %v2371
        %vm3218 = vcmp.eq.s32.totalorder %v1554, %v2387
        %vm3219 = vcmp.eq.s32.totalorder %v1555, %v2387
        %vm3220 = vcmp.eq.s32.totalorder %v1554, %v2403
        %vm3221 = vcmp.eq.s32.totalorder %v1555, %v2403
        %vm3222 = vcmp.eq.s32.totalorder %v1554, %v2419
        %vm3223 = vcmp.eq.s32.totalorder %v1555, %v2419
        %vm3224 = vcmp.eq.s32.totalorder %v1554, %v2435
        %vm3225 = vcmp.eq.s32.totalorder %v1555, %v2435
        %vm3226 = vcmp.eq.s32.totalorder %v1554, %v2451
        %vm3227 = vcmp.eq.s32.totalorder %v1555, %v2451
        %vm3228 = vcmp.eq.s32.totalorder %v1554, %v2467
        %vm3229 = vcmp.eq.s32.totalorder %v1555, %v2467
        %vm3230 = vcmp.eq.s32.totalorder %v1554, %v2483
        %vm3231 = vcmp.eq.s32.totalorder %v1555, %v2483
        %vm3232 = vcmp.eq.s32.totalorder %v1554, %v2499
        %vm3233 = vcmp.eq.s32.totalorder %v1555, %v2499
        %vm3234 = vcmp.eq.s32.totalorder %v1554, %v2515
        %vm3235 = vcmp.eq.s32.totalorder %v1555, %v2515
        %vm3236 = vcmp.eq.s32.totalorder %v1554, %v2531
        %vm3237 = vcmp.eq.s32.totalorder %v1555, %v2531
        %vm3238 = vcmp.eq.s32.totalorder %v1554, %v2547
        %vm3239 = vcmp.eq.s32.totalorder %v1555, %v2547
        %vm3240 = vcmp.eq.s32.totalorder %v1554, %v2563
        %vm3241 = vcmp.eq.s32.totalorder %v1555, %v2563
        %vm3242 = vcmp.eq.s32.totalorder %v1554, %v2579
        %vm3243 = vcmp.eq.s32.totalorder %v1555, %v2579
        %vm3244 = vcmp.eq.s32.totalorder %v1554, %v2595
        %vm3245 = vcmp.eq.s32.totalorder %v1555, %v2595
        %vm3246 = vcmp.eq.s32.totalorder %v1554, %v2611
        %vm3247 = vcmp.eq.s32.totalorder %v1555, %v2611
        %vm3248 = vcmp.eq.s32.totalorder %v1554, %v2627
        %vm3249 = vcmp.eq.s32.totalorder %v1555, %v2627
        %vm3250 = vcmp.eq.s32.totalorder %v1554, %v2643
        %vm3251 = vcmp.eq.s32.totalorder %v1555, %v2643
        %vm3252 = vcmp.eq.s32.totalorder %v1554, %v2659
        %vm3253 = vcmp.eq.s32.totalorder %v1555, %v2659
        %vm3254 = vcmp.eq.s32.totalorder %v1554, %v2675
        %vm3255 = vcmp.eq.s32.totalorder %v1555, %v2675
        %vm3256 = vcmp.eq.s32.totalorder %v1554, %v2691
        %vm3257 = vcmp.eq.s32.totalorder %v1555, %v2691
        %vm3258 = vcmp.eq.s32.totalorder %v1554, %v2707
        %vm3259 = vcmp.eq.s32.totalorder %v1555, %v2707
        %vm3260 = vcmp.eq.s32.totalorder %v1554, %v2723
        %vm3261 = vcmp.eq.s32.totalorder %v1555, %v2723
        %vm3262 = vcmp.eq.s32.totalorder %v1554, %v2739
        %vm3263 = vcmp.eq.s32.totalorder %v1555, %v2739
        %vm3264 = vcmp.eq.s32.totalorder %v1554, %v2755
        %vm3265 = vcmp.eq.s32.totalorder %v1555, %v2755
        %vm3266 = vcmp.eq.s32.totalorder %v1554, %v2771
        %vm3267 = vcmp.eq.s32.totalorder %v1555, %v2771
        %vm3268 = vcmp.eq.s32.totalorder %v1554, %v2787
        %vm3269 = vcmp.eq.s32.totalorder %v1555, %v2787
        %vm3270 = vcmp.eq.s32.totalorder %v1554, %v2803
        %vm3271 = vcmp.eq.s32.totalorder %v1555, %v2803
        %vm3272 = vcmp.eq.s32.totalorder %v1554, %v2819
        %vm3273 = vcmp.eq.s32.totalorder %v1555, %v2819
        %vm3274 = vcmp.eq.s32.totalorder %v1554, %v2835
        %vm3275 = vcmp.eq.s32.totalorder %v1555, %v2835
        %vm3276 = vcmp.eq.s32.totalorder %v1554, %v2851
        %vm3277 = vcmp.eq.s32.totalorder %v1555, %v2851
        %vm3278 = vcmp.eq.s32.totalorder %v1554, %v2867
        %vm3279 = vcmp.eq.s32.totalorder %v1555, %v2867
        %vm3280 = vcmp.eq.s32.totalorder %v1554, %v2883
        %vm3281 = vcmp.eq.s32.totalorder %v1555, %v2883
        %vm3282 = vcmp.eq.s32.totalorder %v1554, %v2899
        %vm3283 = vcmp.eq.s32.totalorder %v1555, %v2899
        %vm3284 = vcmp.eq.s32.totalorder %v1554, %v2915
        %vm3285 = vcmp.eq.s32.totalorder %v1555, %v2915
        %vm3286 = vcmp.eq.s32.totalorder %v1554, %v2931
        %vm3287 = vcmp.eq.s32.totalorder %v1555, %v2931
        %vm3288 = vcmp.eq.s32.totalorder %v1554, %v2947
        %vm3289 = vcmp.eq.s32.totalorder %v1555, %v2947
        %vm3290 = vcmp.eq.s32.totalorder %v1554, %v2963
        %vm3291 = vcmp.eq.s32.totalorder %v1555, %v2963
        %vm3292 = vcmp.eq.s32.totalorder %v1554, %v2979
        %vm3293 = vcmp.eq.s32.totalorder %v1555, %v2979
        %vm3294 = vcmp.eq.s32.totalorder %v1554, %v2995
        %vm3295 = vcmp.eq.s32.totalorder %v1555, %v2995
        %vm3296 = vcmp.eq.s32.totalorder %v1554, %v3011
        %vm3297 = vcmp.eq.s32.totalorder %v1555, %v3011
        %vm3298 = vcmp.eq.s32.totalorder %v1554, %v3027
        %vm3299 = vcmp.eq.s32.totalorder %v1555, %v3027
        %vm3300 = vcmp.eq.s32.totalorder %v1554, %v3043
        %vm3301 = vcmp.eq.s32.totalorder %v1555, %v3043
        %vm3302 = vcmp.eq.s32.totalorder %v1554, %v3059
        %vm3303 = vcmp.eq.s32.totalorder %v1555, %v3059
        %vm3304 = vcmp.eq.s32.totalorder %v1554, %v3075
        %vm3305 = vcmp.eq.s32.totalorder %v1555, %v3075
        %vm3306 = vcmp.eq.s32.totalorder %v1554, %v3091
        %vm3307 = vcmp.eq.s32.totalorder %v1555, %v3091
        %vm3308 = vcmp.eq.s32.totalorder %v1554, %v3107
        %vm3309 = vcmp.eq.s32.totalorder %v1555, %v3107
        %vm3310 = vcmp.eq.s32.totalorder %v1554, %v3123
        %vm3311 = vcmp.eq.s32.totalorder %v1555, %v3123
        %vm3312 = vcmp.eq.s32.totalorder %v1554, %v3139
        %vm3313 = vcmp.eq.s32.totalorder %v1555, %v3139
        %vm3314 = vcmp.eq.s32.totalorder %v1554, %v3155
        %vm3315 = vcmp.eq.s32.totalorder %v1555, %v3155
        %v3316 = vsel %vm3156, 1, 0
        %v3317 = vsel %vm3157, 1, 0
        %v3318 = vsel %vm3158, 1, 0
        %v3319 = vsel %vm3159, 1, 0
        %v3320 = vsel %vm3160, 1, 0
        %v3321 = vsel %vm3161, 1, 0
        %v3322 = vsel %vm3162, 1, 0
        %v3323 = vsel %vm3163, 1, 0
        %v3324 = vsel %vm3164, 1, 0
        %v3325 = vsel %vm3165, 1, 0
        %v3326 = vsel %vm3166, 1, 0
        %v3327 = vsel %vm3167, 1, 0
        %v3328 = vsel %vm3168, 1, 0
        %v3329 = vsel %vm3169, 1, 0
        %v3330 = vsel %vm3170, 1, 0
        %v3331 = vsel %vm3171, 1, 0
        %v3332 = vsel %vm3172, 1, 0
        %v3333 = vsel %vm3173, 1, 0
        %v3334 = vsel %vm3174, 1, 0
        %v3335 = vsel %vm3175, 1, 0
        %v3336 = vsel %vm3176, 1, 0
        %v3337 = vsel %vm3177, 1, 0
        %v3338 = vsel %vm3178, 1, 0
        %v3339 = vsel %vm3179, 1, 0
        %v3340 = vsel %vm3180, 1, 0
        %v3341 = vsel %vm3181, 1, 0
        %v3342 = vsel %vm3182, 1, 0
        %v3343 = vsel %vm3183, 1, 0
        %v3344 = vsel %vm3184, 1, 0
        %v3345 = vsel %vm3185, 1, 0
        %v3346 = vsel %vm3186, 1, 0
        %v3347 = vsel %vm3187, 1, 0
        %v3348 = vsel %vm3188, 1, 0
        %v3349 = vsel %vm3189, 1, 0
        %v3350 = vsel %vm3190, 1, 0
        %v3351 = vsel %vm3191, 1, 0
        %v3352 = vsel %vm3192, 1, 0
        %v3353 = vsel %vm3193, 1, 0
        %v3354 = vsel %vm3194, 1, 0
        %v3355 = vsel %vm3195, 1, 0
        %v3356 = vsel %vm3196, 1, 0
        %v3357 = vsel %vm3197, 1, 0
        %v3358 = vsel %vm3198, 1, 0
        %v3359 = vsel %vm3199, 1, 0
        %v3360 = vsel %vm3200, 1, 0
        %v3361 = vsel %vm3201, 1, 0
        %v3362 = vsel %vm3202, 1, 0
        %v3363 = vsel %vm3203, 1, 0
        %v3364 = vsel %vm3204, 1, 0
        %v3365 = vsel %vm3205, 1, 0
        %v3366 = vsel %vm3206, 1, 0
        %v3367 = vsel %vm3207, 1, 0
        %v3368 = vsel %vm3208, 1, 0
        %v3369 = vsel %vm3209, 1, 0
        %v3370 = vsel %vm3210, 1, 0
        %v3371 = vsel %vm3211, 1, 0
        %v3372 = vsel %vm3212, 1, 0
        %v3373 = vsel %vm3213, 1, 0
        %v3374 = vsel %vm3214, 1, 0
        %v3375 = vsel %vm3215, 1, 0
        %v3376 = vsel %vm3216, 1, 0
        %v3377 = vsel %vm3217, 1, 0
        %v3378 = vsel %vm3218, 1, 0
        %v3379 = vsel %vm3219, 1, 0
        %v3380 = vsel %vm3220, 1, 0
        %v3381 = vsel %vm3221, 1, 0
        %v3382 = vsel %vm3222, 1, 0
        %v3383 = vsel %vm3223, 1, 0
        %v3384 = vsel %vm3224, 1, 0
        %v3385 = vsel %vm3225, 1, 0
        %v3386 = vsel %vm3226, 1, 0
        %v3387 = vsel %vm3227, 1, 0
        %v3388 = vsel %vm3228, 1, 0
        %v3389 = vsel %vm3229, 1, 0
        %v3390 = vsel %vm3230, 1, 0
        %v3391 = vsel %vm3231, 1, 0
        %v3392 = vsel %vm3232, 1, 0
        %v3393 = vsel %vm3233, 1, 0
        %v3394 = vsel %vm3234, 1, 0
        %v3395 = vsel %vm3235, 1, 0
        %v3396 = vsel %vm3236, 1, 0
        %v3397 = vsel %vm3237, 1, 0
        %v3398 = vsel %vm3238, 1, 0
        %v3399 = vsel %vm3239, 1, 0
        %v3400 = vsel %vm3240, 1, 0
        %v3401 = vsel %vm3241, 1, 0
        %v3402 = vsel %vm3242, 1, 0
        %v3403 = vsel %vm3243, 1, 0
        %v3404 = vsel %vm3244, 1, 0
        %v3405 = vsel %vm3245, 1, 0
        %v3406 = vsel %vm3246, 1, 0
        %v3407 = vsel %vm3247, 1, 0
        %v3408 = vsel %vm3248, 1, 0
        %v3409 = vsel %vm3249, 1, 0
        %v3410 = vsel %vm3250, 1, 0
        %v3411 = vsel %vm3251, 1, 0
        %v3412 = vsel %vm3252, 1, 0
        %v3413 = vsel %vm3253, 1, 0
        %v3414 = vsel %vm3254, 1, 0
        %v3415 = vsel %vm3255, 1, 0
        %v3416 = vsel %vm3256, 1, 0
        %v3417 = vsel %vm3257, 1, 0
        %v3418 = vsel %vm3258, 1, 0
        %v3419 = vsel %vm3259, 1, 0
        %v3420 = vsel %vm3260, 1, 0
        %v3421 = vsel %vm3261, 1, 0
        %v3422 = vsel %vm3262, 1, 0
        %v3423 = vsel %vm3263, 1, 0
        %v3424 = vsel %vm3264, 1, 0
        %v3425 = vsel %vm3265, 1, 0
        %v3426 = vsel %vm3266, 1, 0
        %v3427 = vsel %vm3267, 1, 0
        %v3428 = vsel %vm3268, 1, 0
        %v3429 = vsel %vm3269, 1, 0
        %v3430 = vsel %vm3270, 1, 0
        %v3431 = vsel %vm3271, 1, 0
        %v3432 = vsel %vm3272, 1, 0
        %v3433 = vsel %vm3273, 1, 0
        %v3434 = vsel %vm3274, 1, 0
        %v3435 = vsel %vm3275, 1, 0
        %v3436 = vsel %vm3276, 1, 0
        %v3437 = vsel %vm3277, 1, 0
        %v3438 = vsel %vm3278, 1, 0
        %v3439 = vsel %vm3279, 1, 0
        %v3440 = vsel %vm3280, 1, 0
        %v3441 = vsel %vm3281, 1, 0
        %v3442 = vsel %vm3282, 1, 0
        %v3443 = vsel %vm3283, 1, 0
        %v3444 = vsel %vm3284, 1, 0
        %v3445 = vsel %vm3285, 1, 0
        %v3446 = vsel %vm3286, 1, 0
        %v3447 = vsel %vm3287, 1, 0
        %v3448 = vsel %vm3288, 1, 0
        %v3449 = vsel %vm3289, 1, 0
        %v3450 = vsel %vm3290, 1, 0
        %v3451 = vsel %vm3291, 1, 0
        %v3452 = vsel %vm3292, 1, 0
        %v3453 = vsel %vm3293, 1, 0
        %v3454 = vsel %vm3294, 1, 0
        %v3455 = vsel %vm3295, 1, 0
        %v3456 = vsel %vm3296, 1, 0
        %v3457 = vsel %vm3297, 1, 0
        %v3458 = vsel %vm3298, 1, 0
        %v3459 = vsel %vm3299, 1, 0
        %v3460 = vsel %vm3300, 1, 0
        %v3461 = vsel %vm3301, 1, 0
        %v3462 = vsel %vm3302, 1, 0
        %v3463 = vsel %vm3303, 1, 0
        %v3464 = vsel %vm3304, 1, 0
        %v3465 = vsel %vm3305, 1, 0
        %v3466 = vsel %vm3306, 1, 0
        %v3467 = vsel %vm3307, 1, 0
        %v3468 = vsel %vm3308, 1, 0
        %v3469 = vsel %vm3309, 1, 0
        %v3470 = vsel %vm3310, 1, 0
        %v3471 = vsel %vm3311, 1, 0
        %v3472 = vsel %vm3312, 1, 0
        %v3473 = vsel %vm3313, 1, 0
        %v3474 = vsel %vm3314, 1, 0
        %v3475 = vsel %vm3315, 1, 0
        %v3476 = vcvt.s32.f32 %v3316
        %v3477 = vcvt.s32.f32 %v3317
        %v3478 = vcvt.s32.f32 %v3318
        %v3479 = vcvt.s32.f32 %v3319
        %v3480 = vcvt.s32.f32 %v3320
        %v3481 = vcvt.s32.f32 %v3321
        %v3482 = vcvt.s32.f32 %v3322
        %v3483 = vcvt.s32.f32 %v3323
        %v3484 = vcvt.s32.f32 %v3324
        %v3485 = vcvt.s32.f32 %v3325
        %v3486 = vcvt.s32.f32 %v3326
        %v3487 = vcvt.s32.f32 %v3327
        %v3488 = vcvt.s32.f32 %v3328
        %v3489 = vcvt.s32.f32 %v3329
        %v3490 = vcvt.s32.f32 %v3330
        %v3491 = vcvt.s32.f32 %v3331
        %v3492 = vcvt.s32.f32 %v3332
        %v3493 = vcvt.s32.f32 %v3333
        %v3494 = vcvt.s32.f32 %v3334
        %v3495 = vcvt.s32.f32 %v3335
        %v3496 = vcvt.s32.f32 %v3336
        %v3497 = vcvt.s32.f32 %v3337
        %v3498 = vcvt.s32.f32 %v3338
        %v3499 = vcvt.s32.f32 %v3339
        %v3500 = vcvt.s32.f32 %v3340
        %v3501 = vcvt.s32.f32 %v3341
        %v3502 = vcvt.s32.f32 %v3342
        %v3503 = vcvt.s32.f32 %v3343
        %v3504 = vcvt.s32.f32 %v3344
        %v3505 = vcvt.s32.f32 %v3345
        %v3506 = vcvt.s32.f32 %v3346
        %v3507 = vcvt.s32.f32 %v3347
        %v3508 = vcvt.s32.f32 %v3348
        %v3509 = vcvt.s32.f32 %v3349
        %v3510 = vcvt.s32.f32 %v3350
        %v3511 = vcvt.s32.f32 %v3351
        %v3512 = vcvt.s32.f32 %v3352
        %v3513 = vcvt.s32.f32 %v3353
        %v3514 = vcvt.s32.f32 %v3354
        %v3515 = vcvt.s32.f32 %v3355
        %v3516 = vcvt.s32.f32 %v3356
        %v3517 = vcvt.s32.f32 %v3357
        %v3518 = vcvt.s32.f32 %v3358
        %v3519 = vcvt.s32.f32 %v3359
        %v3520 = vcvt.s32.f32 %v3360
        %v3521 = vcvt.s32.f32 %v3361
        %v3522 = vcvt.s32.f32 %v3362
        %v3523 = vcvt.s32.f32 %v3363
        %v3524 = vcvt.s32.f32 %v3364
        %v3525 = vcvt.s32.f32 %v3365
        %v3526 = vcvt.s32.f32 %v3366
        %v3527 = vcvt.s32.f32 %v3367
        %v3528 = vcvt.s32.f32 %v3368
        %v3529 = vcvt.s32.f32 %v3369
        %v3530 = vcvt.s32.f32 %v3370
        %v3531 = vcvt.s32.f32 %v3371
        %v3532 = vcvt.s32.f32 %v3372
        %v3533 = vcvt.s32.f32 %v3373
        %v3534 = vcvt.s32.f32 %v3374
        %v3535 = vcvt.s32.f32 %v3375
        %v3536 = vcvt.s32.f32 %v3376
        %v3537 = vcvt.s32.f32 %v3377
        %v3538 = vcvt.s32.f32 %v3378
        %v3539 = vcvt.s32.f32 %v3379
        %v3540 = vcvt.s32.f32 %v3380
        %v3541 = vcvt.s32.f32 %v3381
        %v3542 = vcvt.s32.f32 %v3382
        %v3543 = vcvt.s32.f32 %v3383
        %v3544 = vcvt.s32.f32 %v3384
        %v3545 = vcvt.s32.f32 %v3385
        %v3546 = vcvt.s32.f32 %v3386
        %v3547 = vcvt.s32.f32 %v3387
        %v3548 = vcvt.s32.f32 %v3388
        %v3549 = vcvt.s32.f32 %v3389
        %v3550 = vcvt.s32.f32 %v3390
        %v3551 = vcvt.s32.f32 %v3391
        %v3552 = vcvt.s32.f32 %v3392
        %v3553 = vcvt.s32.f32 %v3393
        %v3554 = vcvt.s32.f32 %v3394
        %v3555 = vcvt.s32.f32 %v3395
        %v3556 = vcvt.s32.f32 %v3396
        %v3557 = vcvt.s32.f32 %v3397
        %v3558 = vcvt.s32.f32 %v3398
        %v3559 = vcvt.s32.f32 %v3399
        %v3560 = vcvt.s32.f32 %v3400
        %v3561 = vcvt.s32.f32 %v3401
        %v3562 = vcvt.s32.f32 %v3402
        %v3563 = vcvt.s32.f32 %v3403
        %v3564 = vcvt.s32.f32 %v3404
        %v3565 = vcvt.s32.f32 %v3405
        %v3566 = vcvt.s32.f32 %v3406
        %v3567 = vcvt.s32.f32 %v3407
        %v3568 = vcvt.s32.f32 %v3408
        %v3569 = vcvt.s32.f32 %v3409
        %v3570 = vcvt.s32.f32 %v3410
        %v3571 = vcvt.s32.f32 %v3411
        %v3572 = vcvt.s32.f32 %v3412
        %v3573 = vcvt.s32.f32 %v3413
        %v3574 = vcvt.s32.f32 %v3414
        %v3575 = vcvt.s32.f32 %v3415
        %v3576 = vcvt.s32.f32 %v3416
        %v3577 = vcvt.s32.f32 %v3417
        %v3578 = vcvt.s32.f32 %v3418
        %v3579 = vcvt.s32.f32 %v3419
        %v3580 = vcvt.s32.f32 %v3420
        %v3581 = vcvt.s32.f32 %v3421
        %v3582 = vcvt.s32.f32 %v3422
        %v3583 = vcvt.s32.f32 %v3423
        %v3584 = vcvt.s32.f32 %v3424
        %v3585 = vcvt.s32.f32 %v3425
        %v3586 = vcvt.s32.f32 %v3426
        %v3587 = vcvt.s32.f32 %v3427
        %v3588 = vcvt.s32.f32 %v3428
        %v3589 = vcvt.s32.f32 %v3429
        %v3590 = vcvt.s32.f32 %v3430
        %v3591 = vcvt.s32.f32 %v3431
        %v3592 = vcvt.s32.f32 %v3432
        %v3593 = vcvt.s32.f32 %v3433
        %v3594 = vcvt.s32.f32 %v3434
        %v3595 = vcvt.s32.f32 %v3435
        %v3596 = vcvt.s32.f32 %v3436
        %v3597 = vcvt.s32.f32 %v3437
        %v3598 = vcvt.s32.f32 %v3438
        %v3599 = vcvt.s32.f32 %v3439
        %v3600 = vcvt.s32.f32 %v3440
        %v3601 = vcvt.s32.f32 %v3441
        %v3602 = vcvt.s32.f32 %v3442
        %v3603 = vcvt.s32.f32 %v3443
        %v3604 = vcvt.s32.f32 %v3444
        %v3605 = vcvt.s32.f32 %v3445
        %v3606 = vcvt.s32.f32 %v3446
        %v3607 = vcvt.s32.f32 %v3447
        %v3608 = vcvt.s32.f32 %v3448
        %v3609 = vcvt.s32.f32 %v3449
        %v3610 = vcvt.s32.f32 %v3450
        %v3611 = vcvt.s32.f32 %v3451
        %v3612 = vcvt.s32.f32 %v3452
        %v3613 = vcvt.s32.f32 %v3453
        %v3614 = vcvt.s32.f32 %v3454
        %v3615 = vcvt.s32.f32 %v3455
        %v3616 = vcvt.s32.f32 %v3456
        %v3617 = vcvt.s32.f32 %v3457
        %v3618 = vcvt.s32.f32 %v3458
        %v3619 = vcvt.s32.f32 %v3459
        %v3620 = vcvt.s32.f32 %v3460
        %v3621 = vcvt.s32.f32 %v3461
        %v3622 = vcvt.s32.f32 %v3462
        %v3623 = vcvt.s32.f32 %v3463
        %v3624 = vcvt.s32.f32 %v3464
        %v3625 = vcvt.s32.f32 %v3465
        %v3626 = vcvt.s32.f32 %v3466
        %v3627 = vcvt.s32.f32 %v3467
        %v3628 = vcvt.s32.f32 %v3468
        %v3629 = vcvt.s32.f32 %v3469
        %v3630 = vcvt.s32.f32 %v3470
        %v3631 = vcvt.s32.f32 %v3471
        %v3632 = vcvt.s32.f32 %v3472
        %v3633 = vcvt.s32.f32 %v3473
        %v3634 = vcvt.s32.f32 %v3474
        %v3635 = vcvt.s32.f32 %v3475
        %3636 = vmatprep.subr.mxu0 0.0
        %3637 = vmatpush1.msra.mxu0 %v355
        %3638 = vmatprep.subr.mxu0 0.0
        %3639 = vmatpush1.msra.mxu0 %v356
        %3640 = vmatprep.subr.mxu0 0.0
        %3641 = vmatpush1.msra.mxu0 %v357
        %3642 = vmatprep.subr.mxu0 0.0
        %3643 = vmatpush1.msra.mxu0 %v358
        %3644 = vmatprep.subr.mxu0 0.0
        %3645 = vmatpush1.msra.mxu0 %v359
        %3646 = vmatprep.subr.mxu0 0.0
        %3647 = vmatpush1.msra.mxu0 %v360
        %3648 = vmatprep.subr.mxu0 0.0
        %3649 = vmatpush1.msra.mxu0 %v361
        %3650 = vmatprep.subr.mxu0 0.0
        %3651 = vmatpush1.msra.mxu0 %v362
        %3652 = vmatprep.subr.mxu0 0.0
        %3653 = vmatpush1.msra.mxu0 %v363
        %3654 = vmatprep.subr.mxu0 0.0
        %3655 = vmatpush1.msra.mxu0 %v364
        %3656 = vmatprep.subr.mxu0 0.0
        %3657 = vmatpush1.msra.mxu0 %v365
        %3658 = vmatprep.subr.mxu0 0.0
        %3659 = vmatpush1.msra.mxu0 %v366
        %3660 = vmatprep.subr.mxu0 0.0
        %3661 = vmatpush1.msra.mxu0 %v367
        %3662 = vmatprep.subr.mxu0 0.0
        %3663 = vmatpush1.msra.mxu0 %v368
        %3664 = vmatprep.subr.mxu0 0.0
        %3665 = vmatpush1.msra.mxu0 %v369
        %3666 = vmatprep.subr.mxu0 0.0
        %3667 = vmatpush1.msra.mxu0 %v370
        %3668 = vmatprep.subr.mxu0 0.0
        %3669 = vmatpush1.msra.mxu0 %v371
        %3670 = vmatprep.subr.mxu0 0.0
        %3671 = vmatpush1.msra.mxu0 %v372
        %3672 = vmatprep.subr.mxu0 0.0
        %3673 = vmatpush1.msra.mxu0 %v373
        %3674 = vmatprep.subr.mxu0 0.0
        %3675 = vmatpush1.msra.mxu0 %v374
        %3676 = vmatprep.subr.mxu0 0.0
        %3677 = vmatpush1.msra.mxu0 %v375
        %3678 = vmatprep.subr.mxu0 0.0
        %3679 = vmatpush1.msra.mxu0 %v376
        %3680 = vmatprep.subr.mxu0 0.0
        %3681 = vmatpush1.msra.mxu0 %v377
        %3682 = vmatprep.subr.mxu0 0.0
        %3683 = vmatpush1.msra.mxu0 %v378
        %3684 = vmatprep.subr.mxu0 0.0
        %3685 = vmatpush1.msra.mxu0 %v379
        %3686 = vmatprep.subr.mxu0 0.0
        %3687 = vmatpush1.msra.mxu0 %v380
        %3688 = vmatprep.subr.mxu0 0.0
        %3689 = vmatpush1.msra.mxu0 %v381
        %3690 = vmatprep.subr.mxu0 0.0
        %3691 = vmatpush1.msra.mxu0 %v382
        %3692 = vmatprep.subr.mxu0 0.0
        %3693 = vmatpush1.msra.mxu0 %v383
        %3694 = vmatprep.subr.mxu0 0.0
        %3695 = vmatpush1.msra.mxu0 %v384
        %3696 = vmatprep.subr.mxu0 0.0
        %3697 = vmatpush1.msra.mxu0 %v385
        %3698 = vmatprep.subr.mxu0 0.0
        %3699 = vmatpush1.msra.mxu0 %v386
        %3700 = vmatprep.mubr.f32.mxu0 %v3477
        %3701 = vmatmul.mubr.f32.gmra.mrb[0].mxu0 %v3476
        %v3702 = vpop.f32.mrb[0].mxu0
        %v3703 = vadd.f32 0.0, %v3702
        %v3704 = vpop.f32.mrb[0].mxu0
        %3705 = vmatprep.mubr.f32.mxu0 %v3479
        %3706 = vmatmul.mubr.f32.gmra.mrb[0].mxu0 %v3478
        %v3707 = vpop.f32.mrb[0].mxu0
        %v3708 = vadd.f32 0.0, %v3707
        %v3709 = vpop.f32.mrb[0].mxu0
        %3710 = vmatprep.mubr.f32.mxu0 %v3481
        %3711 = vmatmul.mubr.f32.gmra.mrb[0].mxu0 %v3480
        %v3712 = vpop.f32.mrb[0].mxu0
        %v3713 = vadd.f32 0.0, %v3712
        %v3714 = vpop.f32.mrb[0].mxu0
        %3715 = vmatprep.mubr.f32.mxu0 %v3483
        %3716 = vmatmul.mubr.f32.gmra.mrb[0].mxu0 %v3482
        %v3717 = vpop.f32.mrb[0].mxu0
        %v3718 = vadd.f32 0.0, %v3717
        %v3719 = vpop.f32.mrb[0].mxu0
        %3720 = vmatprep.mubr.f32.mxu0 %v3485
        %3721 = vmatmul.mubr.f32.gmra.mrb[0].mxu0 %v3484
        %v3722 = vpop.f32.mrb[0].mxu0
        %v3723 = vadd.f32 0.0, %v3722
        %v3724 = vpop.f32.mrb[0].mxu0
        %3725 = vmatprep.mubr.f32.mxu0 %v3487
        %3726 = vmatmul.mubr.f32.gmra.mrb[0].mxu0 %v3486
        %v3727 = vpop.f32.mrb[0].mxu0
        %v3728 = vadd.f32 0.0, %v3727
        %v3729 = vpop.f32.mrb[0].mxu0
        %3730 = vmatprep.mubr.f32.mxu0 %v3489
        %3731 = vmatmul.mubr.f32.gmra.mrb[0].mxu0 %v3488
        %v3732 = vpop.f32.mrb[0].mxu0
        %v3733 = vadd.f32 0.0, %v3732
        %v3734 = vpop.f32.mrb[0].mxu0
        %3735 = vmatprep.mubr.f32.mxu0 %v3491
        %3736 = vmatmul.mubr.f32.gmra.mrb[0].mxu0 %v3490
        %v3737 = vpop.f32.mrb[0].mxu0
        %v3738 = vadd.f32 0.0, %v3737
        %v3739 = vpop.f32.mrb[0].mxu0
        %3740 = vmatprep.mubr.f32.mxu0 %v3493
        %3741 = vmatmul.mubr.f32.gmra.mrb[0].mxu0 %v3492
        %v3742 = vpop.f32.mrb[0].mxu0
        %v3743 = vadd.f32 0.0, %v3742
        %v3744 = vpop.f32.mrb[0].mxu0
        %3745 = vmatprep.mubr.f32.mxu0 %v3495
        %3746 = vmatmul.mubr.f32.gmra.mrb[0].mxu0 %v3494
        %v3747 = vpop.f32.mrb[0].mxu0
        %v3748 = vadd.f32 0.0, %v3747
        %v3749 = vpop.f32.mrb[0].mxu0
        %3750 = vmatprep.mubr.f32.mxu0 %v3497
        %3751 = vmatmul.mubr.f32.gmra.mrb[0].mxu0 %v3496
        %v3752 = vpop.f32.mrb[0].mxu0
        %v3753 = vadd.f32 0.0, %v3752
        %v3754 = vpop.f32.mrb[0].mxu0
        %3755 = vmatprep.mubr.f32.mxu0 %v3499
        %3756 = vmatmul.mubr.f32.gmra.mrb[0].mxu0 %v3498
        %v3757 = vpop.f32.mrb[0].mxu0
        %v3758 = vadd.f32 0.0, %v3757
        %v3759 = vpop.f32.mrb[0].mxu0
        %3760 = vmatprep.mubr.f32.mxu0 %v3501
        %3761 = vmatmul.mubr.f32.gmra.mrb[0].mxu0 %v3500
        %v3762 = vpop.f32.mrb[0].mxu0
        %v3763 = vadd.f32 0.0, %v3762
        %v3764 = vpop.f32.mrb[0].mxu0
        %3765 = vmatprep.mubr.f32.mxu0 %v3503
        %3766 = vmatmul.mubr.f32.gmra.mrb[0].mxu0 %v3502
        %v3767 = vpop.f32.mrb[0].mxu0
        %v3768 = vadd.f32 0.0, %v3767
        %v3769 = vpop.f32.mrb[0].mxu0
        %3770 = vmatprep.mubr.f32.mxu0 %v3505
        %3771 = vmatmul.mubr.f32.gmra.mrb[0].mxu0 %v3504
        %v3772 = vpop.f32.mrb[0].mxu0
        %v3773 = vadd.f32 0.0, %v3772
        %v3774 = vpop.f32.mrb[0].mxu0
        %3775 = vmatprep.mubr.f32.mxu0 %v3507
        %3776 = vmatmul.mubr.f32.gmra.mrb[0].mxu0 %v3506
        %v3777 = vpop.f32.mrb[0].mxu0
        %v3778 = vadd.f32 0.0, %v3777
        %v3779 = vpop.f32.mrb[0].mxu0
        %3780 = vmatprep.mubr.f32.mxu0 %v3509
        %3781 = vmatmul.mubr.f32.gmra.mrb[0].mxu0 %v3508
        %v3782 = vpop.f32.mrb[0].mxu0
        %v3783 = vadd.f32 0.0, %v3782
        %v3784 = vpop.f32.mrb[0].mxu0
        %3785 = vmatprep.mubr.f32.mxu0 %v3511
        %3786 = vmatmul.mubr.f32.gmra.mrb[0].mxu0 %v3510
        %v3787 = vpop.f32.mrb[0].mxu0
        %v3788 = vadd.f32 0.0, %v3787
        %v3789 = vpop.f32.mrb[0].mxu0
        %3790 = vmatprep.mubr.f32.mxu0 %v3513
        %3791 = vmatmul.mubr.f32.gmra.mrb[0].mxu0 %v3512
        %v3792 = vpop.f32.mrb[0].mxu0
        %v3793 = vadd.f32 0.0, %v3792
        %v3794 = vpop.f32.mrb[0].mxu0
        %3795 = vmatprep.mubr.f32.mxu0 %v3515
        %3796 = vmatmul.mubr.f32.gmra.mrb[0].mxu0 %v3514
        %v3797 = vpop.f32.mrb[0].mxu0
        %v3798 = vadd.f32 0.0, %v3797
        %v3799 = vpop.f32.mrb[0].mxu0
        %3800 = vmatprep.mubr.f32.mxu0 %v3517
        %3801 = vmatmul.mubr.f32.gmra.mrb[0].mxu0 %v3516
        %v3802 = vpop.f32.mrb[0].mxu0
        %v3803 = vadd.f32 0.0, %v3802
        %v3804 = vpop.f32.mrb[0].mxu0
        %3805 = vmatprep.mubr.f32.mxu0 %v3519
        %3806 = vmatmul.mubr.f32.gmra.mrb[0].mxu0 %v3518
        %v3807 = vpop.f32.mrb[0].mxu0
        %v3808 = vadd.f32 0.0, %v3807
        %v3809 = vpop.f32.mrb[0].mxu0
        %3810 = vmatprep.mubr.f32.mxu0 %v3521
        %3811 = vmatmul.mubr.f32.gmra.mrb[0].mxu0 %v3520
        %v3812 = vpop.f32.mrb[0].mxu0
        %v3813 = vadd.f32 0.0, %v3812
        %v3814 = vpop.f32.mrb[0].mxu0
        %3815 = vmatprep.mubr.f32.mxu0 %v3523
        %3816 = vmatmul.mubr.f32.gmra.mrb[0].mxu0 %v3522
        %v3817 = vpop.f32.mrb[0].mxu0
        %v3818 = vadd.f32 0.0, %v3817
        %v3819 = vpop.f32.mrb[0].mxu0
        %3820 = vmatprep.mubr.f32.mxu0 %v3525
        %3821 = vmatmul.mubr.f32.gmra.mrb[0].mxu0 %v3524
        %v3822 = vpop.f32.mrb[0].mxu0
        %v3823 = vadd.f32 0.0, %v3822
        %v3824 = vpop.f32.mrb[0].mxu0
        %3825 = vmatprep.mubr.f32.mxu0 %v3527
        %3826 = vmatmul.mubr.f32.gmra.mrb[0].mxu0 %v3526
        %v3827 = vpop.f32.mrb[0].mxu0
        %v3828 = vadd.f32 0.0, %v3827
        %v3829 = vpop.f32.mrb[0].mxu0
        %3830 = vmatprep.mubr.f32.mxu0 %v3529
        %3831 = vmatmul.mubr.f32.gmra.mrb[0].mxu0 %v3528
        %v3832 = vpop.f32.mrb[0].mxu0
        %v3833 = vadd.f32 0.0, %v3832
        %v3834 = vpop.f32.mrb[0].mxu0
        %3835 = vmatprep.mubr.f32.mxu0 %v3531
        %3836 = vmatmul.mubr.f32.gmra.mrb[0].mxu0 %v3530
        %v3837 = vpop.f32.mrb[0].mxu0
        %v3838 = vadd.f32 0.0, %v3837
        %v3839 = vpop.f32.mrb[0].mxu0
        %3840 = vmatprep.mubr.f32.mxu0 %v3533
        %3841 = vmatmul.mubr.f32.gmra.mrb[0].mxu0 %v3532
        %v3842 = vpop.f32.mrb[0].mxu0
        %v3843 = vadd.f32 0.0, %v3842
        %v3844 = vpop.f32.mrb[0].mxu0
        %3845 = vmatprep.mubr.f32.mxu0 %v3535
        %3846 = vmatmul.mubr.f32.gmra.mrb[0].mxu0 %v3534
        %v3847 = vpop.f32.mrb[0].mxu0
        %v3848 = vadd.f32 0.0, %v3847
        %v3849 = vpop.f32.mrb[0].mxu0
        %3850 = vmatprep.mubr.f32.mxu0 %v3537
        %3851 = vmatmul.mubr.f32.gmra.mrb[0].mxu0 %v3536
        %v3852 = vpop.f32.mrb[0].mxu0
        %v3853 = vadd.f32 0.0, %v3852
        %v3854 = vpop.f32.mrb[0].mxu0
        %3855 = vmatprep.mubr.f32.mxu0 %v3539
        %3856 = vmatmul.mubr.f32.gmra.mrb[0].mxu0 %v3538
        %v3857 = vpop.f32.mrb[0].mxu0
        %v3858 = vadd.f32 0.0, %v3857
        %v3859 = vpop.f32.mrb[0].mxu0
        %3860 = vmatprep.mubr.f32.mxu0 %v3541
        %3861 = vmatmul.mubr.f32.gmra.mrb[0].mxu0 %v3540
        %v3862 = vpop.f32.mrb[0].mxu0
        %v3863 = vadd.f32 0.0, %v3862
        %v3864 = vpop.f32.mrb[0].mxu0
        %3865 = vmatprep.mubr.f32.mxu0 %v3543
        %3866 = vmatmul.mubr.f32.gmra.mrb[0].mxu0 %v3542
        %v3867 = vpop.f32.mrb[0].mxu0
        %v3868 = vadd.f32 0.0, %v3867
        %v3869 = vpop.f32.mrb[0].mxu0
        %3870 = vmatprep.mubr.f32.mxu0 %v3545
        %3871 = vmatmul.mubr.f32.gmra.mrb[0].mxu0 %v3544
        %v3872 = vpop.f32.mrb[0].mxu0
        %v3873 = vadd.f32 0.0, %v3872
        %v3874 = vpop.f32.mrb[0].mxu0
        %3875 = vmatprep.mubr.f32.mxu0 %v3547
        %3876 = vmatmul.mubr.f32.gmra.mrb[0].mxu0 %v3546
        %v3877 = vpop.f32.mrb[0].mxu0
        %v3878 = vadd.f32 0.0, %v3877
        %v3879 = vpop.f32.mrb[0].mxu0
        %3880 = vmatprep.mubr.f32.mxu0 %v3549
        %3881 = vmatmul.mubr.f32.gmra.mrb[0].mxu0 %v3548
        %v3882 = vpop.f32.mrb[0].mxu0
        %v3883 = vadd.f32 0.0, %v3882
        %v3884 = vpop.f32.mrb[0].mxu0
        %3885 = vmatprep.mubr.f32.mxu0 %v3551
        %3886 = vmatmul.mubr.f32.gmra.mrb[0].mxu0 %v3550
        %v3887 = vpop.f32.mrb[0].mxu0
        %v3888 = vadd.f32 0.0, %v3887
        %v3889 = vpop.f32.mrb[0].mxu0
        %3890 = vmatprep.mubr.f32.mxu0 %v3553
        %3891 = vmatmul.mubr.f32.gmra.mrb[0].mxu0 %v3552
        %v3892 = vpop.f32.mrb[0].mxu0
        %v3893 = vadd.f32 0.0, %v3892
        %v3894 = vpop.f32.mrb[0].mxu0
        %3895 = vmatprep.mubr.f32.mxu0 %v3555
        %3896 = vmatmul.mubr.f32.gmra.mrb[0].mxu0 %v3554
        %v3897 = vpop.f32.mrb[0].mxu0
        %v3898 = vadd.f32 0.0, %v3897
        %v3899 = vpop.f32.mrb[0].mxu0
        %3900 = vmatprep.mubr.f32.mxu0 %v3557
        %3901 = vmatmul.mubr.f32.gmra.mrb[0].mxu0 %v3556
        %v3902 = vpop.f32.mrb[0].mxu0
        %v3903 = vadd.f32 0.0, %v3902
        %v3904 = vpop.f32.mrb[0].mxu0
        %3905 = vmatprep.mubr.f32.mxu0 %v3559
        %3906 = vmatmul.mubr.f32.gmra.mrb[0].mxu0 %v3558
        %v3907 = vpop.f32.mrb[0].mxu0
        %v3908 = vadd.f32 0.0, %v3907
        %v3909 = vpop.f32.mrb[0].mxu0
        %3910 = vmatprep.mubr.f32.mxu0 %v3561
        %3911 = vmatmul.mubr.f32.gmra.mrb[0].mxu0 %v3560
        %v3912 = vpop.f32.mrb[0].mxu0
        %v3913 = vadd.f32 0.0, %v3912
        %v3914 = vpop.f32.mrb[0].mxu0
        %3915 = vmatprep.mubr.f32.mxu0 %v3563
        %3916 = vmatmul.mubr.f32.gmra.mrb[0].mxu0 %v3562
        %v3917 = vpop.f32.mrb[0].mxu0
        %v3918 = vadd.f32 0.0, %v3917
        %v3919 = vpop.f32.mrb[0].mxu0
        %3920 = vmatprep.mubr.f32.mxu0 %v3565
        %3921 = vmatmul.mubr.f32.gmra.mrb[0].mxu0 %v3564
        %v3922 = vpop.f32.mrb[0].mxu0
        %v3923 = vadd.f32 0.0, %v3922
        %v3924 = vpop.f32.mrb[0].mxu0
        %3925 = vmatprep.mubr.f32.mxu0 %v3567
        %3926 = vmatmul.mubr.f32.gmra.mrb[0].mxu0 %v3566
        %v3927 = vpop.f32.mrb[0].mxu0
        %v3928 = vadd.f32 0.0, %v3927
        %v3929 = vpop.f32.mrb[0].mxu0
        %3930 = vmatprep.mubr.f32.mxu0 %v3569
        %3931 = vmatmul.mubr.f32.gmra.mrb[0].mxu0 %v3568
        %v3932 = vpop.f32.mrb[0].mxu0
        %v3933 = vadd.f32 0.0, %v3932
        %v3934 = vpop.f32.mrb[0].mxu0
        %3935 = vmatprep.mubr.f32.mxu0 %v3571
        %3936 = vmatmul.mubr.f32.gmra.mrb[0].mxu0 %v3570
        %v3937 = vpop.f32.mrb[0].mxu0
        %v3938 = vadd.f32 0.0, %v3937
        %v3939 = vpop.f32.mrb[0].mxu0
        %3940 = vmatprep.mubr.f32.mxu0 %v3573
        %3941 = vmatmul.mubr.f32.gmra.mrb[0].mxu0 %v3572
        %v3942 = vpop.f32.mrb[0].mxu0
        %v3943 = vadd.f32 0.0, %v3942
        %v3944 = vpop.f32.mrb[0].mxu0
        %3945 = vmatprep.mubr.f32.mxu0 %v3575
        %3946 = vmatmul.mubr.f32.gmra.mrb[0].mxu0 %v3574
        %v3947 = vpop.f32.mrb[0].mxu0
        %v3948 = vadd.f32 0.0, %v3947
        %v3949 = vpop.f32.mrb[0].mxu0
        %3950 = vmatprep.mubr.f32.mxu0 %v3577
        %3951 = vmatmul.mubr.f32.gmra.mrb[0].mxu0 %v3576
        %v3952 = vpop.f32.mrb[0].mxu0
        %v3953 = vadd.f32 0.0, %v3952
        %v3954 = vpop.f32.mrb[0].mxu0
        %3955 = vmatprep.mubr.f32.mxu0 %v3579
        %3956 = vmatmul.mubr.f32.gmra.mrb[0].mxu0 %v3578
        %v3957 = vpop.f32.mrb[0].mxu0
        %v3958 = vadd.f32 0.0, %v3957
        %v3959 = vpop.f32.mrb[0].mxu0
        %3960 = vmatprep.mubr.f32.mxu0 %v3581
        %3961 = vmatmul.mubr.f32.gmra.mrb[0].mxu0 %v3580
        %v3962 = vpop.f32.mrb[0].mxu0
        %v3963 = vadd.f32 0.0, %v3962
        %v3964 = vpop.f32.mrb[0].mxu0
        %3965 = vmatprep.mubr.f32.mxu0 %v3583
        %3966 = vmatmul.mubr.f32.gmra.mrb[0].mxu0 %v3582
        %v3967 = vpop.f32.mrb[0].mxu0
        %v3968 = vadd.f32 0.0, %v3967
        %v3969 = vpop.f32.mrb[0].mxu0
        %3970 = vmatprep.mubr.f32.mxu0 %v3585
        %3971 = vmatmul.mubr.f32.gmra.mrb[0].mxu0 %v3584
        %v3972 = vpop.f32.mrb[0].mxu0
        %v3973 = vadd.f32 0.0, %v3972
        %v3974 = vpop.f32.mrb[0].mxu0
        %3975 = vmatprep.mubr.f32.mxu0 %v3587
        %3976 = vmatmul.mubr.f32.gmra.mrb[0].mxu0 %v3586
        %v3977 = vpop.f32.mrb[0].mxu0
        %v3978 = vadd.f32 0.0, %v3977
        %v3979 = vpop.f32.mrb[0].mxu0
        %3980 = vmatprep.mubr.f32.mxu0 %v3589
        %3981 = vmatmul.mubr.f32.gmra.mrb[0].mxu0 %v3588
        %v3982 = vpop.f32.mrb[0].mxu0
        %v3983 = vadd.f32 0.0, %v3982
        %v3984 = vpop.f32.mrb[0].mxu0
        %3985 = vmatprep.mubr.f32.mxu0 %v3591
        %3986 = vmatmul.mubr.f32.gmra.mrb[0].mxu0 %v3590
        %v3987 = vpop.f32.mrb[0].mxu0
        %v3988 = vadd.f32 0.0, %v3987
        %v3989 = vpop.f32.mrb[0].mxu0
        %3990 = vmatprep.mubr.f32.mxu0 %v3593
        %3991 = vmatmul.mubr.f32.gmra.mrb[0].mxu0 %v3592
        %v3992 = vpop.f32.mrb[0].mxu0
        %v3993 = vadd.f32 0.0, %v3992
        %v3994 = vpop.f32.mrb[0].mxu0
        %3995 = vmatprep.mubr.f32.mxu0 %v3595
        %3996 = vmatmul.mubr.f32.gmra.mrb[0].mxu0 %v3594
        %v3997 = vpop.f32.mrb[0].mxu0
        %v3998 = vadd.f32 0.0, %v3997
        %v3999 = vpop.f32.mrb[0].mxu0
        %4000 = vmatprep.mubr.f32.mxu0 %v3597
        %4001 = vmatmul.mubr.f32.gmra.mrb[0].mxu0 %v3596
        %v4002 = vpop.f32.mrb[0].mxu0
        %v4003 = vadd.f32 0.0, %v4002
        %v4004 = vpop.f32.mrb[0].mxu0
        %4005 = vmatprep.mubr.f32.mxu0 %v3599
        %4006 = vmatmul.mubr.f32.gmra.mrb[0].mxu0 %v3598
        %v4007 = vpop.f32.mrb[0].mxu0
        %v4008 = vadd.f32 0.0, %v4007
        %v4009 = vpop.f32.mrb[0].mxu0
        %4010 = vmatprep.mubr.f32.mxu0 %v3601
        %4011 = vmatmul.mubr.f32.gmra.mrb[0].mxu0 %v3600
        %v4012 = vpop.f32.mrb[0].mxu0
        %v4013 = vadd.f32 0.0, %v4012
        %v4014 = vpop.f32.mrb[0].mxu0
        %4015 = vmatprep.mubr.f32.mxu0 %v3603
        %4016 = vmatmul.mubr.f32.gmra.mrb[0].mxu0 %v3602
        %v4017 = vpop.f32.mrb[0].mxu0
        %v4018 = vadd.f32 0.0, %v4017
        %v4019 = vpop.f32.mrb[0].mxu0
        %4020 = vmatprep.mubr.f32.mxu0 %v3605
        %4021 = vmatmul.mubr.f32.gmra.mrb[0].mxu0 %v3604
        %v4022 = vpop.f32.mrb[0].mxu0
        %v4023 = vadd.f32 0.0, %v4022
        %v4024 = vpop.f32.mrb[0].mxu0
        %4025 = vmatprep.mubr.f32.mxu0 %v3607
        %4026 = vmatmul.mubr.f32.gmra.mrb[0].mxu0 %v3606
        %v4027 = vpop.f32.mrb[0].mxu0
        %v4028 = vadd.f32 0.0, %v4027
        %v4029 = vpop.f32.mrb[0].mxu0
        %4030 = vmatprep.mubr.f32.mxu0 %v3609
        %4031 = vmatmul.mubr.f32.gmra.mrb[0].mxu0 %v3608
        %v4032 = vpop.f32.mrb[0].mxu0
        %v4033 = vadd.f32 0.0, %v4032
        %v4034 = vpop.f32.mrb[0].mxu0
        %4035 = vmatprep.mubr.f32.mxu0 %v3611
        %4036 = vmatmul.mubr.f32.gmra.mrb[0].mxu0 %v3610
        %v4037 = vpop.f32.mrb[0].mxu0
        %v4038 = vadd.f32 0.0, %v4037
        %v4039 = vpop.f32.mrb[0].mxu0
        %4040 = vmatprep.mubr.f32.mxu0 %v3613
        %4041 = vmatmul.mubr.f32.gmra.mrb[0].mxu0 %v3612
        %v4042 = vpop.f32.mrb[0].mxu0
        %v4043 = vadd.f32 0.0, %v4042
        %v4044 = vpop.f32.mrb[0].mxu0
        %4045 = vmatprep.mubr.f32.mxu0 %v3615
        %4046 = vmatmul.mubr.f32.gmra.mrb[0].mxu0 %v3614
        %v4047 = vpop.f32.mrb[0].mxu0
        %v4048 = vadd.f32 0.0, %v4047
        %v4049 = vpop.f32.mrb[0].mxu0
        %4050 = vmatprep.mubr.f32.mxu0 %v3617
        %4051 = vmatmul.mubr.f32.gmra.mrb[0].mxu0 %v3616
        %v4052 = vpop.f32.mrb[0].mxu0
        %v4053 = vadd.f32 0.0, %v4052
        %v4054 = vpop.f32.mrb[0].mxu0
        %4055 = vmatprep.mubr.f32.mxu0 %v3619
        %4056 = vmatmul.mubr.f32.gmra.mrb[0].mxu0 %v3618
        %v4057 = vpop.f32.mrb[0].mxu0
        %v4058 = vadd.f32 0.0, %v4057
        %v4059 = vpop.f32.mrb[0].mxu0
        %4060 = vmatprep.mubr.f32.mxu0 %v3621
        %4061 = vmatmul.mubr.f32.gmra.mrb[0].mxu0 %v3620
        %v4062 = vpop.f32.mrb[0].mxu0
        %v4063 = vadd.f32 0.0, %v4062
        %v4064 = vpop.f32.mrb[0].mxu0
        %4065 = vmatprep.mubr.f32.mxu0 %v3623
        %4066 = vmatmul.mubr.f32.gmra.mrb[0].mxu0 %v3622
        %v4067 = vpop.f32.mrb[0].mxu0
        %v4068 = vadd.f32 0.0, %v4067
        %v4069 = vpop.f32.mrb[0].mxu0
        %4070 = vmatprep.mubr.f32.mxu0 %v3625
        %4071 = vmatmul.mubr.f32.gmra.mrb[0].mxu0 %v3624
        %v4072 = vpop.f32.mrb[0].mxu0
        %v4073 = vadd.f32 0.0, %v4072
        %v4074 = vpop.f32.mrb[0].mxu0
        %4075 = vmatprep.mubr.f32.mxu0 %v3627
        %4076 = vmatmul.mubr.f32.gmra.mrb[0].mxu0 %v3626
        %v4077 = vpop.f32.mrb[0].mxu0
        %v4078 = vadd.f32 0.0, %v4077
        %v4079 = vpop.f32.mrb[0].mxu0
        %4080 = vmatprep.mubr.f32.mxu0 %v3629
        %4081 = vmatmul.mubr.f32.gmra.mrb[0].mxu0 %v3628
        %v4082 = vpop.f32.mrb[0].mxu0
        %v4083 = vadd.f32 0.0, %v4082
        %v4084 = vpop.f32.mrb[0].mxu0
        %4085 = vmatprep.mubr.f32.mxu0 %v3631
        %4086 = vmatmul.mubr.f32.gmra.mrb[0].mxu0 %v3630
        %v4087 = vpop.f32.mrb[0].mxu0
        %v4088 = vadd.f32 0.0, %v4087
        %v4089 = vpop.f32.mrb[0].mxu0
        %4090 = vmatprep.mubr.f32.mxu0 %v3633
        %4091 = vmatmul.mubr.f32.gmra.mrb[0].mxu0 %v3632
        %v4092 = vpop.f32.mrb[0].mxu0
        %v4093 = vadd.f32 0.0, %v4092
        %v4094 = vpop.f32.mrb[0].mxu0
        %4095 = vmatprep.mubr.f32.mxu0 %v3635
        %4096 = vmatmul.mubr.f32.gmra.mrb[0].mxu0 %v3634
        %v4097 = vpop.f32.mrb[0].mxu0
        %v4098 = vadd.f32 0.0, %v4097
        %v4099 = vpop.f32.mrb[0].mxu0
        %4100 = vdwg.mxu0
        %v4101 = vcvt.s32.f32 %v1554
        %v4102 = vcvt.s32.f32 %v1555
        %4103 = vmatprep.subr.mxu0 %v3477
        %4104 = vmatpush1.xpose.msra.mxu0 %v3476
        %4105 = vmatprep.subr.mxu0 %v3479
        %4106 = vmatpush1.xpose.msra.mxu0 %v3478
        %4107 = vmatprep.subr.mxu0 %v3481
        %4108 = vmatpush1.xpose.msra.mxu0 %v3480
        %4109 = vmatprep.subr.mxu0 %v3483
        %4110 = vmatpush1.xpose.msra.mxu0 %v3482
        %4111 = vmatprep.subr.mxu0 %v3485
        %4112 = vmatpush1.xpose.msra.mxu0 %v3484
        %4113 = vmatprep.subr.mxu0 %v3487
        %4114 = vmatpush1.xpose.msra.mxu0 %v3486
        %4115 = vmatprep.subr.mxu0 %v3489
        %4116 = vmatpush1.xpose.msra.mxu0 %v3488
        %4117 = vmatprep.subr.mxu0 %v3491
        %4118 = vmatpush1.xpose.msra.mxu0 %v3490
        %4119 = vmatprep.subr.mxu0 %v3493
        %4120 = vmatpush1.xpose.msra.mxu0 %v3492
        %4121 = vmatprep.subr.mxu0 %v3495
        %4122 = vmatpush1.xpose.msra.mxu0 %v3494
        %4123 = vmatprep.subr.mxu0 %v3497
        %4124 = vmatpush1.xpose.msra.mxu0 %v3496
        %4125 = vmatprep.subr.mxu0 %v3499
        %4126 = vmatpush1.xpose.msra.mxu0 %v3498
        %4127 = vmatprep.subr.mxu0 %v3501
        %4128 = vmatpush1.xpose.msra.mxu0 %v3500
        %4129 = vmatprep.subr.mxu0 %v3503
        %4130 = vmatpush1.xpose.msra.mxu0 %v3502
        %4131 = vmatprep.subr.mxu0 %v3505
        %4132 = vmatpush1.xpose.msra.mxu0 %v3504
        %4133 = vmatprep.subr.mxu0 %v3507
        %4134 = vmatpush1.xpose.msra.mxu0 %v3506
        %4135 = vmatprep.subr.mxu0 %v3509
        %4136 = vmatpush1.xpose.msra.mxu0 %v3508
        %4137 = vmatprep.subr.mxu0 %v3511
        %4138 = vmatpush1.xpose.msra.mxu0 %v3510
        %4139 = vmatprep.subr.mxu0 %v3513
        %4140 = vmatpush1.xpose.msra.mxu0 %v3512
        %4141 = vmatprep.subr.mxu0 %v3515
        %4142 = vmatpush1.xpose.msra.mxu0 %v3514
        %4143 = vmatprep.subr.mxu0 %v3517
        %4144 = vmatpush1.xpose.msra.mxu0 %v3516
        %4145 = vmatprep.subr.mxu0 %v3519
        %4146 = vmatpush1.xpose.msra.mxu0 %v3518
        %4147 = vmatprep.subr.mxu0 %v3521
        %4148 = vmatpush1.xpose.msra.mxu0 %v3520
        %4149 = vmatprep.subr.mxu0 %v3523
        %4150 = vmatpush1.xpose.msra.mxu0 %v3522
        %4151 = vmatprep.subr.mxu0 %v3525
        %4152 = vmatpush1.xpose.msra.mxu0 %v3524
        %4153 = vmatprep.subr.mxu0 %v3527
        %4154 = vmatpush1.xpose.msra.mxu0 %v3526
        %4155 = vmatprep.subr.mxu0 %v3529
        %4156 = vmatpush1.xpose.msra.mxu0 %v3528
        %4157 = vmatprep.subr.mxu0 %v3531
        %4158 = vmatpush1.xpose.msra.mxu0 %v3530
        %4159 = vmatprep.subr.mxu0 %v3533
        %4160 = vmatpush1.xpose.msra.mxu0 %v3532
        %4161 = vmatprep.subr.mxu0 %v3535
        %4162 = vmatpush1.xpose.msra.mxu0 %v3534
        %4163 = vmatprep.subr.mxu0 %v3537
        %4164 = vmatpush1.xpose.msra.mxu0 %v3536
        %4165 = vmatprep.subr.mxu0 %v3539
        %4166 = vmatpush1.xpose.msra.mxu0 %v3538
        %4167 = vmatprep.mubr.f32.mxu0 %v4102
        %4168 = vmatmul.mubr.f32.gmra.mrb[0].mxu0 %v4101
        %v4169 = vpop.f32.mrb[0].mxu0
        %v4170 = vadd.f32 0.5, %v4169
        %v4171 = vpop.f32.mrb[0].mxu0
        %v4172 = vadd.f32 0.5, %v4171
        %4173 = vdwg.mxu0
        %4174 = vmatprep.subr.mxu0 %v3541
        %4175 = vmatpush1.xpose.msra.mxu0 %v3540
        %4176 = vmatprep.subr.mxu0 %v3543
        %4177 = vmatpush1.xpose.msra.mxu0 %v3542
        %4178 = vmatprep.subr.mxu0 %v3545
        %4179 = vmatpush1.xpose.msra.mxu0 %v3544
        %4180 = vmatprep.subr.mxu0 %v3547
        %4181 = vmatpush1.xpose.msra.mxu0 %v3546
        %4182 = vmatprep.subr.mxu0 %v3549
        %4183 = vmatpush1.xpose.msra.mxu0 %v3548
        %4184 = vmatprep.subr.mxu0 %v3551
        %4185 = vmatpush1.xpose.msra.mxu0 %v3550
        %4186 = vmatprep.subr.mxu0 %v3553
        %4187 = vmatpush1.xpose.msra.mxu0 %v3552
        %4188 = vmatprep.subr.mxu0 %v3555
        %4189 = vmatpush1.xpose.msra.mxu0 %v3554
        %4190 = vmatprep.subr.mxu0 %v3557
        %4191 = vmatpush1.xpose.msra.mxu0 %v3556
        %4192 = vmatprep.subr.mxu0 %v3559
        %4193 = vmatpush1.xpose.msra.mxu0 %v3558
        %4194 = vmatprep.subr.mxu0 %v3561
        %4195 = vmatpush1.xpose.msra.mxu0 %v3560
        %4196 = vmatprep.subr.mxu0 %v3563
        %4197 = vmatpush1.xpose.msra.mxu0 %v3562
        %4198 = vmatprep.subr.mxu0 %v3565
        %4199 = vmatpush1.xpose.msra.mxu0 %v3564
        %4200 = vmatprep.subr.mxu0 %v3567
        %4201 = vmatpush1.xpose.msra.mxu0 %v3566
        %4202 = vmatprep.subr.mxu0 %v3569
        %4203 = vmatpush1.xpose.msra.mxu0 %v3568
        %4204 = vmatprep.subr.mxu0 %v3571
        %4205 = vmatpush1.xpose.msra.mxu0 %v3570
        %4206 = vmatprep.subr.mxu0 %v3573
        %4207 = vmatpush1.xpose.msra.mxu0 %v3572
        %4208 = vmatprep.subr.mxu0 %v3575
        %4209 = vmatpush1.xpose.msra.mxu0 %v3574
        %4210 = vmatprep.subr.mxu0 %v3577
        %4211 = vmatpush1.xpose.msra.mxu0 %v3576
        %4212 = vmatprep.subr.mxu0 %v3579
        %4213 = vmatpush1.xpose.msra.mxu0 %v3578
        %4214 = vmatprep.subr.mxu0 %v3581
        %4215 = vmatpush1.xpose.msra.mxu0 %v3580
        %4216 = vmatprep.subr.mxu0 %v3583
        %4217 = vmatpush1.xpose.msra.mxu0 %v3582
        %4218 = vmatprep.subr.mxu0 %v3585
        %4219 = vmatpush1.xpose.msra.mxu0 %v3584
        %4220 = vmatprep.subr.mxu0 %v3587
        %4221 = vmatpush1.xpose.msra.mxu0 %v3586
        %4222 = vmatprep.subr.mxu0 %v3589
        %4223 = vmatpush1.xpose.msra.mxu0 %v3588
        %4224 = vmatprep.subr.mxu0 %v3591
        %4225 = vmatpush1.xpose.msra.mxu0 %v3590
        %4226 = vmatprep.subr.mxu0 %v3593
        %4227 = vmatpush1.xpose.msra.mxu0 %v3592
        %4228 = vmatprep.subr.mxu0 %v3595
        %4229 = vmatpush1.xpose.msra.mxu0 %v3594
        %4230 = vmatprep.subr.mxu0 %v3597
        %4231 = vmatpush1.xpose.msra.mxu0 %v3596
        %4232 = vmatprep.subr.mxu0 %v3599
        %4233 = vmatpush1.xpose.msra.mxu0 %v3598
        %4234 = vmatprep.subr.mxu0 %v3601
        %4235 = vmatpush1.xpose.msra.mxu0 %v3600
        %4236 = vmatprep.subr.mxu0 %v3603
        %4237 = vmatpush1.xpose.msra.mxu0 %v3602
        %4238 = vmatprep.mubr.f32.mxu0 %v4102
        %4239 = vmatmul.mubr.f32.gmra.mrb[0].mxu0 %v4101
        %v4240 = vpop.f32.mrb[0].mxu0
        %v4241 = vadd.f32 0.5, %v4240
        %v4242 = vpop.f32.mrb[0].mxu0
        %v4243 = vadd.f32 0.5, %v4242
        %4244 = vdwg.mxu0
        %4245 = vmatprep.subr.mxu0 %v3605
        %4246 = vmatpush1.xpose.msra.mxu0 %v3604
        %4247 = vmatprep.subr.mxu0 %v3607
        %4248 = vmatpush1.xpose.msra.mxu0 %v3606
        %4249 = vmatprep.subr.mxu0 %v3609
        %4250 = vmatpush1.xpose.msra.mxu0 %v3608
        %4251 = vmatprep.subr.mxu0 %v3611
        %4252 = vmatpush1.xpose.msra.mxu0 %v3610
        %4253 = vmatprep.subr.mxu0 %v3613
        %4254 = vmatpush1.xpose.msra.mxu0 %v3612
        %4255 = vmatprep.subr.mxu0 %v3615
        %4256 = vmatpush1.xpose.msra.mxu0 %v3614
        %4257 = vmatprep.subr.mxu0 %v3617
        %4258 = vmatpush1.xpose.msra.mxu0 %v3616
        %4259 = vmatprep.subr.mxu0 %v3619
        %4260 = vmatpush1.xpose.msra.mxu0 %v3618
        %4261 = vmatprep.subr.mxu0 %v3621
        %4262 = vmatpush1.xpose.msra.mxu0 %v3620
        %4263 = vmatprep.subr.mxu0 %v3623
        %4264 = vmatpush1.xpose.msra.mxu0 %v3622
        %4265 = vmatprep.subr.mxu0 %v3625
        %4266 = vmatpush1.xpose.msra.mxu0 %v3624
        %4267 = vmatprep.subr.mxu0 %v3627
        %4268 = vmatpush1.xpose.msra.mxu0 %v3626
        %4269 = vmatprep.subr.mxu0 %v3629
        %4270 = vmatpush1.xpose.msra.mxu0 %v3628
        %4271 = vmatprep.subr.mxu0 %v3631
        %4272 = vmatpush1.xpose.msra.mxu0 %v3630
        %4273 = vmatprep.subr.mxu0 %v3633
        %4274 = vmatpush1.xpose.msra.mxu0 %v3632
        %4275 = vmatprep.subr.mxu0 %v3635
        %4276 = vmatpush1.xpose.msra.mxu0 %v3634
        %4277 = vmatprep.subr.mxu0 0.0
        %4278 = vmatpush1.xpose.msra.mxu0 0.0
        %4279 = vmatprep.subr.mxu0 0.0
        %4280 = vmatpush1.xpose.msra.mxu0 0.0
        %4281 = vmatprep.subr.mxu0 0.0
        %4282 = vmatpush1.xpose.msra.mxu0 0.0
        %4283 = vmatprep.subr.mxu0 0.0
        %4284 = vmatpush1.xpose.msra.mxu0 0.0
        %4285 = vmatprep.subr.mxu0 0.0
        %4286 = vmatpush1.xpose.msra.mxu0 0.0
        %4287 = vmatprep.subr.mxu0 0.0
        %4288 = vmatpush1.xpose.msra.mxu0 0.0
        %4289 = vmatprep.subr.mxu0 0.0
        %4290 = vmatpush1.xpose.msra.mxu0 0.0
        %4291 = vmatprep.subr.mxu0 0.0
        %4292 = vmatpush1.xpose.msra.mxu0 0.0
        %4293 = vmatprep.subr.mxu0 0.0
        %4294 = vmatpush1.xpose.msra.mxu0 0.0
        %4295 = vmatprep.subr.mxu0 0.0
        %4296 = vmatpush1.xpose.msra.mxu0 0.0
        %4297 = vmatprep.subr.mxu0 0.0
        %4298 = vmatpush1.xpose.msra.mxu0 0.0
        %4299 = vmatprep.subr.mxu0 0.0
        %4300 = vmatpush1.xpose.msra.mxu0 0.0
        %4301 = vmatprep.subr.mxu0 0.0
        %4302 = vmatpush1.xpose.msra.mxu0 0.0
        %4303 = vmatprep.subr.mxu0 0.0
        %4304 = vmatpush1.xpose.msra.mxu0 0.0
        %4305 = vmatprep.subr.mxu0 0.0
        %4306 = vmatpush1.xpose.msra.mxu0 0.0
        %4307 = vmatprep.subr.mxu0 0.0
        %4308 = vmatpush1.xpose.msra.mxu0 0.0
        %4309 = vmatprep.mubr.f32.mxu0 %v4102
        %4310 = vmatmul.mubr.f32.gmra.mrb[0].mxu0 %v4101
        %v4311 = vpop.f32.mrb[0].mxu0
        %v4312 = vadd.f32 0.5, %v4311
        %v4313 = vpop.f32.mrb[0].mxu0
        %4314 = vdwg.mxu0
        %v4315 = vcvt.f32.s32.to.zero.pseudo %v4170
        %v4316 = vcvt.f32.s32.to.zero.pseudo %v4172
        %v4317 = vcvt.f32.s32.to.zero.pseudo %v4241
        %v4318 = vcvt.f32.s32.to.zero.pseudo %v4243
        %v4319 = vcvt.f32.s32.to.zero.pseudo %v4312
        %v4320 = vcombine.low %v4315, %v4316
        %v4321 = vcombine.low %v4317, %v4318
        %v4323 = vunpack.c.l.s4 1966171168
        %v4324 = vunpack.c.0.s8 %v4323
        %v4325 = vlaneseq
        %v4326 = vshrl.u32 %v4325, 7
        %v4327 = vsub.s32 %v4324, %v4326
        %v4328 = vrot.slane %v4320, %v4327
        %v4330 = vunpack.c.l.s4 1966171168
        %v4331 = vunpack.c.0.s8 %v4330
        %v4332 = vlaneseq
        %v4333 = vshrl.u32 %v4332, 7
        %v4334 = vsub.s32 %v4331, %v4333
        %v4335 = vrot.slane %v4321, %v4334
        %v4337 = vunpack.c.l.s4 1966171168
        %v4338 = vunpack.c.0.s8 %v4337
        %v4339 = vlaneseq
        %v4340 = vshrl.u32 %v4339, 7
        %v4341 = vsub.s32 %v4338, %v4340
        %v4342 = vrot.slane %v4319, %v4341
        %v4343 = vcombine.low %v4328, %v4335
        %v4345 = vunpack.c.l.s4 1966171168
        %v4346 = vunpack.c.0.s8 %v4345
        %v4347 = vlaneseq
        %v4348 = vshrl.u32 %v4347, 7
        %v4349 = vsub.s32 %v4346, %v4348
        %v4350 = vrot.slane %v4343, %v4349
        %v4352 = vunpack.c.l.s4 1966171168
        %v4353 = vunpack.c.0.s8 %v4352
        %v4354 = vlaneseq
        %v4355 = vshrl.u32 %v4354, 7
        %v4356 = vsub.s32 %v4353, %v4355
        %v4357 = vrot.slane %v4342, %v4356
        %v4358 = vcombine.low %v4350, %v4357
        %v4359 = vlaneseq
        %vm4360 = vcmp.ge.s32.totalorder %v4359, 0
        %vm4361 = vcmp.lt.s32.totalorder %v4359, 640
        %vm4362 = vmand %vm4360, %vm4361
        %4363 = vst.msk [vmem:[%s253] sm:$0x1f] %vm4362, %v4358
        %v4364 = vmul.f32 %v275, %v275
        %v4365 = vmul.f32 %v276, %v276
        %v4366 = vmul.f32 %v277, %v277
        %v4367 = vmul.f32 %v278, %v278
        %v4368 = vmul.f32 %v279, %v279
        %v4369 = vmul.f32 %v280, %v280
        %v4370 = vmul.f32 %v281, %v281
        %v4371 = vmul.f32 %v282, %v282
        %v4372 = vmul.f32 %v283, %v283
        %v4373 = vmul.f32 %v284, %v284
        %v4374 = vmul.f32 %v285, %v285
        %v4375 = vmul.f32 %v286, %v286
        %v4376 = vmul.f32 %v287, %v287
        %v4377 = vmul.f32 %v288, %v288
        %v4378 = vmul.f32 %v289, %v289
        %v4379 = vmul.f32 %v290, %v290
        %v4380 = vmul.f32 %v291, %v291
        %v4381 = vmul.f32 %v292, %v292
        %v4382 = vmul.f32 %v293, %v293
        %v4383 = vmul.f32 %v294, %v294
        %v4384 = vmul.f32 %v295, %v295
        %v4385 = vmul.f32 %v296, %v296
        %v4386 = vmul.f32 %v297, %v297
        %v4387 = vmul.f32 %v298, %v298
        %v4388 = vmul.f32 %v299, %v299
        %v4389 = vmul.f32 %v300, %v300
        %v4390 = vmul.f32 %v301, %v301
        %v4391 = vmul.f32 %v302, %v302
        %v4392 = vmul.f32 %v303, %v303
        %v4393 = vmul.f32 %v304, %v304
        %v4394 = vmul.f32 %v305, %v305
        %v4395 = vmul.f32 %v306, %v306
        %v4396 = vmul.f32 %v307, %v307
        %v4397 = vmul.f32 %v308, %v308
        %v4398 = vmul.f32 %v309, %v309
        %v4399 = vmul.f32 %v310, %v310
        %v4400 = vmul.f32 %v311, %v311
        %v4401 = vmul.f32 %v312, %v312
        %v4402 = vmul.f32 %v313, %v313
        %v4403 = vmul.f32 %v314, %v314
        %v4404 = vmul.f32 %v315, %v315
        %v4405 = vmul.f32 %v316, %v316
        %v4406 = vmul.f32 %v317, %v317
        %v4407 = vmul.f32 %v318, %v318
        %v4408 = vmul.f32 %v319, %v319
        %v4409 = vmul.f32 %v320, %v320
        %v4410 = vmul.f32 %v321, %v321
        %v4411 = vmul.f32 %v322, %v322
        %v4412 = vmul.f32 %v323, %v323
        %v4413 = vmul.f32 %v324, %v324
        %v4414 = vmul.f32 %v325, %v325
        %v4415 = vmul.f32 %v326, %v326
        %v4416 = vmul.f32 %v327, %v327
        %v4417 = vmul.f32 %v328, %v328
        %v4418 = vmul.f32 %v329, %v329
        %v4419 = vmul.f32 %v330, %v330
        %v4420 = vmul.f32 %v331, %v331
        %v4421 = vmul.f32 %v332, %v332
        %v4422 = vmul.f32 %v333, %v333
        %v4423 = vmul.f32 %v334, %v334
        %v4424 = vmul.f32 %v335, %v335
        %v4425 = vmul.f32 %v336, %v336
        %v4426 = vmul.f32 %v337, %v337
        %v4427 = vmul.f32 %v338, %v338
        %v4428 = vmul.f32 %v339, %v339
        %v4429 = vmul.f32 %v340, %v340
        %v4430 = vmul.f32 %v341, %v341
        %v4431 = vmul.f32 %v342, %v342
        %v4432 = vmul.f32 %v343, %v343
        %v4433 = vmul.f32 %v344, %v344
        %v4434 = vmul.f32 %v345, %v345
        %v4435 = vmul.f32 %v346, %v346
        %v4436 = vmul.f32 %v347, %v347
        %v4437 = vmul.f32 %v348, %v348
        %v4438 = vmul.f32 %v349, %v349
        %v4439 = vmul.f32 %v350, %v350
        %v4440 = vmul.f32 %v351, %v351
        %v4441 = vmul.f32 %v352, %v352
        %v4442 = vmul.f32 %v353, %v353
        %v4443 = vmul.f32 %v354, %v354
        %v4444 = vsel %vm540, %v4364, 0.0
        %4445 = vadd.xlane.f32.xlu0 %v4444
        %v4446 = vpop.xlane.xlu0 %4445
        %v4447 = vsel %vm540, %v4365, 0.0
        %4448 = vadd.xlane.f32.xlu0 %v4447
        %v4449 = vpop.xlane.xlu0 %4448
        %v4450 = vsel %vm540, %v4366, 0.0
        %4451 = vadd.xlane.f32.xlu0 %v4450
        %v4452 = vpop.xlane.xlu0 %4451
        %v4453 = vsel %vm540, %v4367, 0.0
        %4454 = vadd.xlane.f32.xlu0 %v4453
        %v4455 = vpop.xlane.xlu0 %4454
        %v4456 = vsel %vm540, %v4368, 0.0
        %4457 = vadd.xlane.f32.xlu0 %v4456
        %v4458 = vpop.xlane.xlu0 %4457
        %v4459 = vsel %vm540, %v4369, 0.0
        %4460 = vadd.xlane.f32.xlu0 %v4459
        %v4461 = vpop.xlane.xlu0 %4460
        %v4462 = vsel %vm540, %v4370, 0.0
        %4463 = vadd.xlane.f32.xlu0 %v4462
        %v4464 = vpop.xlane.xlu0 %4463
        %v4465 = vsel %vm540, %v4371, 0.0
        %4466 = vadd.xlane.f32.xlu0 %v4465
        %v4467 = vpop.xlane.xlu0 %4466
        %v4468 = vsel %vm540, %v4372, 0.0
        %4469 = vadd.xlane.f32.xlu0 %v4468
        %v4470 = vpop.xlane.xlu0 %4469
        %v4471 = vsel %vm540, %v4373, 0.0
        %4472 = vadd.xlane.f32.xlu0 %v4471
        %v4473 = vpop.xlane.xlu0 %4472
        %v4474 = vsel %vm540, %v4374, 0.0
        %4475 = vadd.xlane.f32.xlu0 %v4474
        %v4476 = vpop.xlane.xlu0 %4475
        %v4477 = vsel %vm540, %v4375, 0.0
        %4478 = vadd.xlane.f32.xlu0 %v4477
        %v4479 = vpop.xlane.xlu0 %4478
        %v4480 = vsel %vm540, %v4376, 0.0
        %4481 = vadd.xlane.f32.xlu0 %v4480
        %v4482 = vpop.xlane.xlu0 %4481
        %v4483 = vsel %vm540, %v4377, 0.0
        %4484 = vadd.xlane.f32.xlu0 %v4483
        %v4485 = vpop.xlane.xlu0 %4484
        %v4486 = vsel %vm540, %v4378, 0.0
        %4487 = vadd.xlane.f32.xlu0 %v4486
        %v4488 = vpop.xlane.xlu0 %4487
        %v4489 = vsel %vm540, %v4379, 0.0
        %4490 = vadd.xlane.f32.xlu0 %v4489
        %v4491 = vpop.xlane.xlu0 %4490
        %v4492 = vsel %vm540, %v4380, 0.0
        %4493 = vadd.xlane.f32.xlu0 %v4492
        %v4494 = vpop.xlane.xlu0 %4493
        %v4495 = vsel %vm540, %v4381, 0.0
        %4496 = vadd.xlane.f32.xlu0 %v4495
        %v4497 = vpop.xlane.xlu0 %4496
        %v4498 = vsel %vm540, %v4382, 0.0
        %4499 = vadd.xlane.f32.xlu0 %v4498
        %v4500 = vpop.xlane.xlu0 %4499
        %v4501 = vsel %vm540, %v4383, 0.0
        %4502 = vadd.xlane.f32.xlu0 %v4501
        %v4503 = vpop.xlane.xlu0 %4502
        %v4504 = vsel %vm540, %v4384, 0.0
        %4505 = vadd.xlane.f32.xlu0 %v4504
        %v4506 = vpop.xlane.xlu0 %4505
        %v4507 = vsel %vm540, %v4385, 0.0
        %4508 = vadd.xlane.f32.xlu0 %v4507
        %v4509 = vpop.xlane.xlu0 %4508
        %v4510 = vsel %vm540, %v4386, 0.0
        %4511 = vadd.xlane.f32.xlu0 %v4510
        %v4512 = vpop.xlane.xlu0 %4511
        %v4513 = vsel %vm540, %v4387, 0.0
        %4514 = vadd.xlane.f32.xlu0 %v4513
        %v4515 = vpop.xlane.xlu0 %4514
        %v4516 = vsel %vm540, %v4388, 0.0
        %4517 = vadd.xlane.f32.xlu0 %v4516
        %v4518 = vpop.xlane.xlu0 %4517
        %v4519 = vsel %vm540, %v4389, 0.0
        %4520 = vadd.xlane.f32.xlu0 %v4519
        %v4521 = vpop.xlane.xlu0 %4520
        %v4522 = vsel %vm540, %v4390, 0.0
        %4523 = vadd.xlane.f32.xlu0 %v4522
        %v4524 = vpop.xlane.xlu0 %4523
        %v4525 = vsel %vm540, %v4391, 0.0
        %4526 = vadd.xlane.f32.xlu0 %v4525
        %v4527 = vpop.xlane.xlu0 %4526
        %v4528 = vsel %vm540, %v4392, 0.0
        %4529 = vadd.xlane.f32.xlu0 %v4528
        %v4530 = vpop.xlane.xlu0 %4529
        %v4531 = vsel %vm540, %v4393, 0.0
        %4532 = vadd.xlane.f32.xlu0 %v4531
        %v4533 = vpop.xlane.xlu0 %4532
        %v4534 = vsel %vm540, %v4394, 0.0
        %4535 = vadd.xlane.f32.xlu0 %v4534
        %v4536 = vpop.xlane.xlu0 %4535
        %v4537 = vsel %vm540, %v4395, 0.0
        %4538 = vadd.xlane.f32.xlu0 %v4537
        %v4539 = vpop.xlane.xlu0 %4538
        %v4540 = vsel %vm540, %v4396, 0.0
        %4541 = vadd.xlane.f32.xlu0 %v4540
        %v4542 = vpop.xlane.xlu0 %4541
        %v4543 = vsel %vm540, %v4397, 0.0
        %4544 = vadd.xlane.f32.xlu0 %v4543
        %v4545 = vpop.xlane.xlu0 %4544
        %v4546 = vsel %vm540, %v4398, 0.0
        %4547 = vadd.xlane.f32.xlu0 %v4546
        %v4548 = vpop.xlane.xlu0 %4547
        %v4549 = vsel %vm540, %v4399, 0.0
        %4550 = vadd.xlane.f32.xlu0 %v4549
        %v4551 = vpop.xlane.xlu0 %4550
        %v4552 = vsel %vm540, %v4400, 0.0
        %4553 = vadd.xlane.f32.xlu0 %v4552
        %v4554 = vpop.xlane.xlu0 %4553
        %v4555 = vsel %vm540, %v4401, 0.0
        %4556 = vadd.xlane.f32.xlu0 %v4555
        %v4557 = vpop.xlane.xlu0 %4556
        %v4558 = vsel %vm540, %v4402, 0.0
        %4559 = vadd.xlane.f32.xlu0 %v4558
        %v4560 = vpop.xlane.xlu0 %4559
        %v4561 = vsel %vm540, %v4403, 0.0
        %4562 = vadd.xlane.f32.xlu0 %v4561
        %v4563 = vpop.xlane.xlu0 %4562
        %v4564 = vsel %vm540, %v4404, 0.0
        %4565 = vadd.xlane.f32.xlu0 %v4564
        %v4566 = vpop.xlane.xlu0 %4565
        %v4567 = vsel %vm540, %v4405, 0.0
        %4568 = vadd.xlane.f32.xlu0 %v4567
        %v4569 = vpop.xlane.xlu0 %4568
        %v4570 = vsel %vm540, %v4406, 0.0
        %4571 = vadd.xlane.f32.xlu0 %v4570
        %v4572 = vpop.xlane.xlu0 %4571
        %v4573 = vsel %vm540, %v4407, 0.0
        %4574 = vadd.xlane.f32.xlu0 %v4573
        %v4575 = vpop.xlane.xlu0 %4574
        %v4576 = vsel %vm540, %v4408, 0.0
        %4577 = vadd.xlane.f32.xlu0 %v4576
        %v4578 = vpop.xlane.xlu0 %4577
        %v4579 = vsel %vm540, %v4409, 0.0
        %4580 = vadd.xlane.f32.xlu0 %v4579
        %v4581 = vpop.xlane.xlu0 %4580
        %v4582 = vsel %vm540, %v4410, 0.0
        %4583 = vadd.xlane.f32.xlu0 %v4582
        %v4584 = vpop.xlane.xlu0 %4583
        %v4585 = vsel %vm540, %v4411, 0.0
        %4586 = vadd.xlane.f32.xlu0 %v4585
        %v4587 = vpop.xlane.xlu0 %4586
        %v4588 = vsel %vm540, %v4412, 0.0
        %4589 = vadd.xlane.f32.xlu0 %v4588
        %v4590 = vpop.xlane.xlu0 %4589
        %v4591 = vsel %vm540, %v4413, 0.0
        %4592 = vadd.xlane.f32.xlu0 %v4591
        %v4593 = vpop.xlane.xlu0 %4592
        %v4594 = vsel %vm540, %v4414, 0.0
        %4595 = vadd.xlane.f32.xlu0 %v4594
        %v4596 = vpop.xlane.xlu0 %4595
        %v4597 = vsel %vm540, %v4415, 0.0
        %4598 = vadd.xlane.f32.xlu0 %v4597
        %v4599 = vpop.xlane.xlu0 %4598
        %v4600 = vsel %vm540, %v4416, 0.0
        %4601 = vadd.xlane.f32.xlu0 %v4600
        %v4602 = vpop.xlane.xlu0 %4601
        %v4603 = vsel %vm540, %v4417, 0.0
        %4604 = vadd.xlane.f32.xlu0 %v4603
        %v4605 = vpop.xlane.xlu0 %4604
        %v4606 = vsel %vm540, %v4418, 0.0
        %4607 = vadd.xlane.f32.xlu0 %v4606
        %v4608 = vpop.xlane.xlu0 %4607
        %v4609 = vsel %vm540, %v4419, 0.0
        %4610 = vadd.xlane.f32.xlu0 %v4609
        %v4611 = vpop.xlane.xlu0 %4610
        %v4612 = vsel %vm540, %v4420, 0.0
        %4613 = vadd.xlane.f32.xlu0 %v4612
        %v4614 = vpop.xlane.xlu0 %4613
        %v4615 = vsel %vm540, %v4421, 0.0
        %4616 = vadd.xlane.f32.xlu0 %v4615
        %v4617 = vpop.xlane.xlu0 %4616
        %v4618 = vsel %vm540, %v4422, 0.0
        %4619 = vadd.xlane.f32.xlu0 %v4618
        %v4620 = vpop.xlane.xlu0 %4619
        %v4621 = vsel %vm540, %v4423, 0.0
        %4622 = vadd.xlane.f32.xlu0 %v4621
        %v4623 = vpop.xlane.xlu0 %4622
        %v4624 = vsel %vm540, %v4424, 0.0
        %4625 = vadd.xlane.f32.xlu0 %v4624
        %v4626 = vpop.xlane.xlu0 %4625
        %v4627 = vsel %vm540, %v4425, 0.0
        %4628 = vadd.xlane.f32.xlu0 %v4627
        %v4629 = vpop.xlane.xlu0 %4628
        %v4630 = vsel %vm540, %v4426, 0.0
        %4631 = vadd.xlane.f32.xlu0 %v4630
        %v4632 = vpop.xlane.xlu0 %4631
        %v4633 = vsel %vm540, %v4427, 0.0
        %4634 = vadd.xlane.f32.xlu0 %v4633
        %v4635 = vpop.xlane.xlu0 %4634
        %v4636 = vsel %vm540, %v4428, 0.0
        %4637 = vadd.xlane.f32.xlu0 %v4636
        %v4638 = vpop.xlane.xlu0 %4637
        %v4639 = vsel %vm540, %v4429, 0.0
        %4640 = vadd.xlane.f32.xlu0 %v4639
        %v4641 = vpop.xlane.xlu0 %4640
        %v4642 = vsel %vm540, %v4430, 0.0
        %4643 = vadd.xlane.f32.xlu0 %v4642
        %v4644 = vpop.xlane.xlu0 %4643
        %v4645 = vsel %vm540, %v4431, 0.0
        %4646 = vadd.xlane.f32.xlu0 %v4645
        %v4647 = vpop.xlane.xlu0 %4646
        %v4648 = vsel %vm540, %v4432, 0.0
        %4649 = vadd.xlane.f32.xlu0 %v4648
        %v4650 = vpop.xlane.xlu0 %4649
        %v4651 = vsel %vm540, %v4433, 0.0
        %4652 = vadd.xlane.f32.xlu0 %v4651
        %v4653 = vpop.xlane.xlu0 %4652
        %v4654 = vsel %vm540, %v4434, 0.0
        %4655 = vadd.xlane.f32.xlu0 %v4654
        %v4656 = vpop.xlane.xlu0 %4655
        %v4657 = vsel %vm540, %v4435, 0.0
        %4658 = vadd.xlane.f32.xlu0 %v4657
        %v4659 = vpop.xlane.xlu0 %4658
        %v4660 = vsel %vm540, %v4436, 0.0
        %4661 = vadd.xlane.f32.xlu0 %v4660
        %v4662 = vpop.xlane.xlu0 %4661
        %v4663 = vsel %vm540, %v4437, 0.0
        %4664 = vadd.xlane.f32.xlu0 %v4663
        %v4665 = vpop.xlane.xlu0 %4664
        %v4666 = vsel %vm540, %v4438, 0.0
        %4667 = vadd.xlane.f32.xlu0 %v4666
        %v4668 = vpop.xlane.xlu0 %4667
        %v4669 = vsel %vm540, %v4439, 0.0
        %4670 = vadd.xlane.f32.xlu0 %v4669
        %v4671 = vpop.xlane.xlu0 %4670
        %v4672 = vsel %vm540, %v4440, 0.0
        %4673 = vadd.xlane.f32.xlu0 %v4672
        %v4674 = vpop.xlane.xlu0 %4673
        %v4675 = vsel %vm540, %v4441, 0.0
        %4676 = vadd.xlane.f32.xlu0 %v4675
        %v4677 = vpop.xlane.xlu0 %4676
        %v4678 = vsel %vm540, %v4442, 0.0
        %4679 = vadd.xlane.f32.xlu0 %v4678
        %v4680 = vpop.xlane.xlu0 %4679
        %v4681 = vsel %vm540, %v4443, 0.0
        %4682 = vadd.xlane.f32.xlu0 %v4681
        %v4683 = vpop.xlane.xlu0 %4682
        %v4684 = vmul.f32 %v3703, %v3703
        %v4685 = vmul.f32 %v3708, %v3708
        %v4686 = vmul.f32 %v3713, %v3713
        %v4687 = vmul.f32 %v3718, %v3718
        %v4688 = vmul.f32 %v3723, %v3723
        %v4689 = vmul.f32 %v3728, %v3728
        %v4690 = vmul.f32 %v3733, %v3733
        %v4691 = vmul.f32 %v3738, %v3738
        %v4692 = vmul.f32 %v3743, %v3743
        %v4693 = vmul.f32 %v3748, %v3748
        %v4694 = vmul.f32 %v3753, %v3753
        %v4695 = vmul.f32 %v3758, %v3758
        %v4696 = vmul.f32 %v3763, %v3763
        %v4697 = vmul.f32 %v3768, %v3768
        %v4698 = vmul.f32 %v3773, %v3773
        %v4699 = vmul.f32 %v3778, %v3778
        %v4700 = vmul.f32 %v3783, %v3783
        %v4701 = vmul.f32 %v3788, %v3788
        %v4702 = vmul.f32 %v3793, %v3793
        %v4703 = vmul.f32 %v3798, %v3798
        %v4704 = vmul.f32 %v3803, %v3803
        %v4705 = vmul.f32 %v3808, %v3808
        %v4706 = vmul.f32 %v3813, %v3813
        %v4707 = vmul.f32 %v3818, %v3818
        %v4708 = vmul.f32 %v3823, %v3823
        %v4709 = vmul.f32 %v3828, %v3828
        %v4710 = vmul.f32 %v3833, %v3833
        %v4711 = vmul.f32 %v3838, %v3838
        %v4712 = vmul.f32 %v3843, %v3843
        %v4713 = vmul.f32 %v3848, %v3848
        %v4714 = vmul.f32 %v3853, %v3853
        %v4715 = vmul.f32 %v3858, %v3858
        %v4716 = vmul.f32 %v3863, %v3863
        %v4717 = vmul.f32 %v3868, %v3868
        %v4718 = vmul.f32 %v3873, %v3873
        %v4719 = vmul.f32 %v3878, %v3878
        %v4720 = vmul.f32 %v3883, %v3883
        %v4721 = vmul.f32 %v3888, %v3888
        %v4722 = vmul.f32 %v3893, %v3893
        %v4723 = vmul.f32 %v3898, %v3898
        %v4724 = vmul.f32 %v3903, %v3903
        %v4725 = vmul.f32 %v3908, %v3908
        %v4726 = vmul.f32 %v3913, %v3913
        %v4727 = vmul.f32 %v3918, %v3918
        %v4728 = vmul.f32 %v3923, %v3923
        %v4729 = vmul.f32 %v3928, %v3928
        %v4730 = vmul.f32 %v3933, %v3933
        %v4731 = vmul.f32 %v3938, %v3938
        %v4732 = vmul.f32 %v3943, %v3943
        %v4733 = vmul.f32 %v3948, %v3948
        %v4734 = vmul.f32 %v3953, %v3953
        %v4735 = vmul.f32 %v3958, %v3958
        %v4736 = vmul.f32 %v3963, %v3963
        %v4737 = vmul.f32 %v3968, %v3968
        %v4738 = vmul.f32 %v3973, %v3973
        %v4739 = vmul.f32 %v3978, %v3978
        %v4740 = vmul.f32 %v3983, %v3983
        %v4741 = vmul.f32 %v3988, %v3988
        %v4742 = vmul.f32 %v3993, %v3993
        %v4743 = vmul.f32 %v3998, %v3998
        %v4744 = vmul.f32 %v4003, %v4003
        %v4745 = vmul.f32 %v4008, %v4008
        %v4746 = vmul.f32 %v4013, %v4013
        %v4747 = vmul.f32 %v4018, %v4018
        %v4748 = vmul.f32 %v4023, %v4023
        %v4749 = vmul.f32 %v4028, %v4028
        %v4750 = vmul.f32 %v4033, %v4033
        %v4751 = vmul.f32 %v4038, %v4038
        %v4752 = vmul.f32 %v4043, %v4043
        %v4753 = vmul.f32 %v4048, %v4048
        %v4754 = vmul.f32 %v4053, %v4053
        %v4755 = vmul.f32 %v4058, %v4058
        %v4756 = vmul.f32 %v4063, %v4063
        %v4757 = vmul.f32 %v4068, %v4068
        %v4758 = vmul.f32 %v4073, %v4073
        %v4759 = vmul.f32 %v4078, %v4078
        %v4760 = vmul.f32 %v4083, %v4083
        %v4761 = vmul.f32 %v4088, %v4088
        %v4762 = vmul.f32 %v4093, %v4093
        %v4763 = vmul.f32 %v4098, %v4098
        %v4764 = vsel %vm540, %v4684, 0.0
        %4765 = vadd.xlane.f32.xlu0 %v4764
        %v4766 = vpop.xlane.xlu0 %4765
        %v4767 = vsel %vm540, %v4685, 0.0
        %4768 = vadd.xlane.f32.xlu0 %v4767
        %v4769 = vpop.xlane.xlu0 %4768
        %v4770 = vsel %vm540, %v4686, 0.0
        %4771 = vadd.xlane.f32.xlu0 %v4770
        %v4772 = vpop.xlane.xlu0 %4771
        %v4773 = vsel %vm540, %v4687, 0.0
        %4774 = vadd.xlane.f32.xlu0 %v4773
        %v4775 = vpop.xlane.xlu0 %4774
        %v4776 = vsel %vm540, %v4688, 0.0
        %4777 = vadd.xlane.f32.xlu0 %v4776
        %v4778 = vpop.xlane.xlu0 %4777
        %v4779 = vsel %vm540, %v4689, 0.0
        %4780 = vadd.xlane.f32.xlu0 %v4779
        %v4781 = vpop.xlane.xlu0 %4780
        %v4782 = vsel %vm540, %v4690, 0.0
        %4783 = vadd.xlane.f32.xlu0 %v4782
        %v4784 = vpop.xlane.xlu0 %4783
        %v4785 = vsel %vm540, %v4691, 0.0
        %4786 = vadd.xlane.f32.xlu0 %v4785
        %v4787 = vpop.xlane.xlu0 %4786
        %v4788 = vsel %vm540, %v4692, 0.0
        %4789 = vadd.xlane.f32.xlu0 %v4788
        %v4790 = vpop.xlane.xlu0 %4789
        %v4791 = vsel %vm540, %v4693, 0.0
        %4792 = vadd.xlane.f32.xlu0 %v4791
        %v4793 = vpop.xlane.xlu0 %4792
        %v4794 = vsel %vm540, %v4694, 0.0
        %4795 = vadd.xlane.f32.xlu0 %v4794
        %v4796 = vpop.xlane.xlu0 %4795
        %v4797 = vsel %vm540, %v4695, 0.0
        %4798 = vadd.xlane.f32.xlu0 %v4797
        %v4799 = vpop.xlane.xlu0 %4798
        %v4800 = vsel %vm540, %v4696, 0.0
        %4801 = vadd.xlane.f32.xlu0 %v4800
        %v4802 = vpop.xlane.xlu0 %4801
        %v4803 = vsel %vm540, %v4697, 0.0
        %4804 = vadd.xlane.f32.xlu0 %v4803
        %v4805 = vpop.xlane.xlu0 %4804
        %v4806 = vsel %vm540, %v4698, 0.0
        %4807 = vadd.xlane.f32.xlu0 %v4806
        %v4808 = vpop.xlane.xlu0 %4807
        %v4809 = vsel %vm540, %v4699, 0.0
        %4810 = vadd.xlane.f32.xlu0 %v4809
        %v4811 = vpop.xlane.xlu0 %4810
        %v4812 = vsel %vm540, %v4700, 0.0
        %4813 = vadd.xlane.f32.xlu0 %v4812
        %v4814 = vpop.xlane.xlu0 %4813
        %v4815 = vsel %vm540, %v4701, 0.0
        %4816 = vadd.xlane.f32.xlu0 %v4815
        %v4817 = vpop.xlane.xlu0 %4816
        %v4818 = vsel %vm540, %v4702, 0.0
        %4819 = vadd.xlane.f32.xlu0 %v4818
        %v4820 = vpop.xlane.xlu0 %4819
        %v4821 = vsel %vm540, %v4703, 0.0
        %4822 = vadd.xlane.f32.xlu0 %v4821
        %v4823 = vpop.xlane.xlu0 %4822
        %v4824 = vsel %vm540, %v4704, 0.0
        %4825 = vadd.xlane.f32.xlu0 %v4824
        %v4826 = vpop.xlane.xlu0 %4825
        %v4827 = vsel %vm540, %v4705, 0.0
        %4828 = vadd.xlane.f32.xlu0 %v4827
        %v4829 = vpop.xlane.xlu0 %4828
        %v4830 = vsel %vm540, %v4706, 0.0
        %4831 = vadd.xlane.f32.xlu0 %v4830
        %v4832 = vpop.xlane.xlu0 %4831
        %v4833 = vsel %vm540, %v4707, 0.0
        %4834 = vadd.xlane.f32.xlu0 %v4833
        %v4835 = vpop.xlane.xlu0 %4834
        %v4836 = vsel %vm540, %v4708, 0.0
        %4837 = vadd.xlane.f32.xlu0 %v4836
        %v4838 = vpop.xlane.xlu0 %4837
        %v4839 = vsel %vm540, %v4709, 0.0
        %4840 = vadd.xlane.f32.xlu0 %v4839
        %v4841 = vpop.xlane.xlu0 %4840
        %v4842 = vsel %vm540, %v4710, 0.0
        %4843 = vadd.xlane.f32.xlu0 %v4842
        %v4844 = vpop.xlane.xlu0 %4843
        %v4845 = vsel %vm540, %v4711, 0.0
        %4846 = vadd.xlane.f32.xlu0 %v4845
        %v4847 = vpop.xlane.xlu0 %4846
        %v4848 = vsel %vm540, %v4712, 0.0
        %4849 = vadd.xlane.f32.xlu0 %v4848
        %v4850 = vpop.xlane.xlu0 %4849
        %v4851 = vsel %vm540, %v4713, 0.0
        %4852 = vadd.xlane.f32.xlu0 %v4851
        %v4853 = vpop.xlane.xlu0 %4852
        %v4854 = vsel %vm540, %v4714, 0.0
        %4855 = vadd.xlane.f32.xlu0 %v4854
        %v4856 = vpop.xlane.xlu0 %4855
        %v4857 = vsel %vm540, %v4715, 0.0
        %4858 = vadd.xlane.f32.xlu0 %v4857
        %v4859 = vpop.xlane.xlu0 %4858
        %v4860 = vsel %vm540, %v4716, 0.0
        %4861 = vadd.xlane.f32.xlu0 %v4860
        %v4862 = vpop.xlane.xlu0 %4861
        %v4863 = vsel %vm540, %v4717, 0.0
        %4864 = vadd.xlane.f32.xlu0 %v4863
        %v4865 = vpop.xlane.xlu0 %4864
        %v4866 = vsel %vm540, %v4718, 0.0
        %4867 = vadd.xlane.f32.xlu0 %v4866
        %v4868 = vpop.xlane.xlu0 %4867
        %v4869 = vsel %vm540, %v4719, 0.0
        %4870 = vadd.xlane.f32.xlu0 %v4869
        %v4871 = vpop.xlane.xlu0 %4870
        %v4872 = vsel %vm540, %v4720, 0.0
        %4873 = vadd.xlane.f32.xlu0 %v4872
        %v4874 = vpop.xlane.xlu0 %4873
        %v4875 = vsel %vm540, %v4721, 0.0
        %4876 = vadd.xlane.f32.xlu0 %v4875
        %v4877 = vpop.xlane.xlu0 %4876
        %v4878 = vsel %vm540, %v4722, 0.0
        %4879 = vadd.xlane.f32.xlu0 %v4878
        %v4880 = vpop.xlane.xlu0 %4879
        %v4881 = vsel %vm540, %v4723, 0.0
        %4882 = vadd.xlane.f32.xlu0 %v4881
        %v4883 = vpop.xlane.xlu0 %4882
        %v4884 = vsel %vm540, %v4724, 0.0
        %4885 = vadd.xlane.f32.xlu0 %v4884
        %v4886 = vpop.xlane.xlu0 %4885
        %v4887 = vsel %vm540, %v4725, 0.0
        %4888 = vadd.xlane.f32.xlu0 %v4887
        %v4889 = vpop.xlane.xlu0 %4888
        %v4890 = vsel %vm540, %v4726, 0.0
        %4891 = vadd.xlane.f32.xlu0 %v4890
        %v4892 = vpop.xlane.xlu0 %4891
        %v4893 = vsel %vm540, %v4727, 0.0
        %4894 = vadd.xlane.f32.xlu0 %v4893
        %v4895 = vpop.xlane.xlu0 %4894
        %v4896 = vsel %vm540, %v4728, 0.0
        %4897 = vadd.xlane.f32.xlu0 %v4896
        %v4898 = vpop.xlane.xlu0 %4897
        %v4899 = vsel %vm540, %v4729, 0.0
        %4900 = vadd.xlane.f32.xlu0 %v4899
        %v4901 = vpop.xlane.xlu0 %4900
        %v4902 = vsel %vm540, %v4730, 0.0
        %4903 = vadd.xlane.f32.xlu0 %v4902
        %v4904 = vpop.xlane.xlu0 %4903
        %v4905 = vsel %vm540, %v4731, 0.0
        %4906 = vadd.xlane.f32.xlu0 %v4905
        %v4907 = vpop.xlane.xlu0 %4906
        %v4908 = vsel %vm540, %v4732, 0.0
        %4909 = vadd.xlane.f32.xlu0 %v4908
        %v4910 = vpop.xlane.xlu0 %4909
        %v4911 = vsel %vm540, %v4733, 0.0
        %4912 = vadd.xlane.f32.xlu0 %v4911
        %v4913 = vpop.xlane.xlu0 %4912
        %v4914 = vsel %vm540, %v4734, 0.0
        %4915 = vadd.xlane.f32.xlu0 %v4914
        %v4916 = vpop.xlane.xlu0 %4915
        %v4917 = vsel %vm540, %v4735, 0.0
        %4918 = vadd.xlane.f32.xlu0 %v4917
        %v4919 = vpop.xlane.xlu0 %4918
        %v4920 = vsel %vm540, %v4736, 0.0
        %4921 = vadd.xlane.f32.xlu0 %v4920
        %v4922 = vpop.xlane.xlu0 %4921
        %v4923 = vsel %vm540, %v4737, 0.0
        %4924 = vadd.xlane.f32.xlu0 %v4923
        %v4925 = vpop.xlane.xlu0 %4924
        %v4926 = vsel %vm540, %v4738, 0.0
        %4927 = vadd.xlane.f32.xlu0 %v4926
        %v4928 = vpop.xlane.xlu0 %4927
        %v4929 = vsel %vm540, %v4739, 0.0
        %4930 = vadd.xlane.f32.xlu0 %v4929
        %v4931 = vpop.xlane.xlu0 %4930
        %v4932 = vsel %vm540, %v4740, 0.0
        %4933 = vadd.xlane.f32.xlu0 %v4932
        %v4934 = vpop.xlane.xlu0 %4933
        %v4935 = vsel %vm540, %v4741, 0.0
        %4936 = vadd.xlane.f32.xlu0 %v4935
        %v4937 = vpop.xlane.xlu0 %4936
        %v4938 = vsel %vm540, %v4742, 0.0
        %4939 = vadd.xlane.f32.xlu0 %v4938
        %v4940 = vpop.xlane.xlu0 %4939
        %v4941 = vsel %vm540, %v4743, 0.0
        %4942 = vadd.xlane.f32.xlu0 %v4941
        %v4943 = vpop.xlane.xlu0 %4942
        %v4944 = vsel %vm540, %v4744, 0.0
        %4945 = vadd.xlane.f32.xlu0 %v4944
        %v4946 = vpop.xlane.xlu0 %4945
        %v4947 = vsel %vm540, %v4745, 0.0
        %4948 = vadd.xlane.f32.xlu0 %v4947
        %v4949 = vpop.xlane.xlu0 %4948
        %v4950 = vsel %vm540, %v4746, 0.0
        %4951 = vadd.xlane.f32.xlu0 %v4950
        %v4952 = vpop.xlane.xlu0 %4951
        %v4953 = vsel %vm540, %v4747, 0.0
        %4954 = vadd.xlane.f32.xlu0 %v4953
        %v4955 = vpop.xlane.xlu0 %4954
        %v4956 = vsel %vm540, %v4748, 0.0
        %4957 = vadd.xlane.f32.xlu0 %v4956
        %v4958 = vpop.xlane.xlu0 %4957
        %v4959 = vsel %vm540, %v4749, 0.0
        %4960 = vadd.xlane.f32.xlu0 %v4959
        %v4961 = vpop.xlane.xlu0 %4960
        %v4962 = vsel %vm540, %v4750, 0.0
        %4963 = vadd.xlane.f32.xlu0 %v4962
        %v4964 = vpop.xlane.xlu0 %4963
        %v4965 = vsel %vm540, %v4751, 0.0
        %4966 = vadd.xlane.f32.xlu0 %v4965
        %v4967 = vpop.xlane.xlu0 %4966
        %v4968 = vsel %vm540, %v4752, 0.0
        %4969 = vadd.xlane.f32.xlu0 %v4968
        %v4970 = vpop.xlane.xlu0 %4969
        %v4971 = vsel %vm540, %v4753, 0.0
        %4972 = vadd.xlane.f32.xlu0 %v4971
        %v4973 = vpop.xlane.xlu0 %4972
        %v4974 = vsel %vm540, %v4754, 0.0
        %4975 = vadd.xlane.f32.xlu0 %v4974
        %v4976 = vpop.xlane.xlu0 %4975
        %v4977 = vsel %vm540, %v4755, 0.0
        %4978 = vadd.xlane.f32.xlu0 %v4977
        %v4979 = vpop.xlane.xlu0 %4978
        %v4980 = vsel %vm540, %v4756, 0.0
        %4981 = vadd.xlane.f32.xlu0 %v4980
        %v4982 = vpop.xlane.xlu0 %4981
        %v4983 = vsel %vm540, %v4757, 0.0
        %4984 = vadd.xlane.f32.xlu0 %v4983
        %v4985 = vpop.xlane.xlu0 %4984
        %v4986 = vsel %vm540, %v4758, 0.0
        %4987 = vadd.xlane.f32.xlu0 %v4986
        %v4988 = vpop.xlane.xlu0 %4987
        %v4989 = vsel %vm540, %v4759, 0.0
        %4990 = vadd.xlane.f32.xlu0 %v4989
        %v4991 = vpop.xlane.xlu0 %4990
        %v4992 = vsel %vm540, %v4760, 0.0
        %4993 = vadd.xlane.f32.xlu0 %v4992
        %v4994 = vpop.xlane.xlu0 %4993
        %v4995 = vsel %vm540, %v4761, 0.0
        %4996 = vadd.xlane.f32.xlu0 %v4995
        %v4997 = vpop.xlane.xlu0 %4996
        %v4998 = vsel %vm540, %v4762, 0.0
        %4999 = vadd.xlane.f32.xlu0 %v4998
        %v5000 = vpop.xlane.xlu0 %4999
        %v5001 = vsel %vm540, %v4763, 0.0
        %5002 = vadd.xlane.f32.xlu0 %v5001
        %v5003 = vpop.xlane.xlu0 %5002
        %v5004 = vmul.f32 %v275, %v3703
        %v5005 = vmul.f32 %v276, %v3708
        %v5006 = vmul.f32 %v277, %v3713
        %v5007 = vmul.f32 %v278, %v3718
        %v5008 = vmul.f32 %v279, %v3723
        %v5009 = vmul.f32 %v280, %v3728
        %v5010 = vmul.f32 %v281, %v3733
        %v5011 = vmul.f32 %v282, %v3738
        %v5012 = vmul.f32 %v283, %v3743
        %v5013 = vmul.f32 %v284, %v3748
        %v5014 = vmul.f32 %v285, %v3753
        %v5015 = vmul.f32 %v286, %v3758
        %v5016 = vmul.f32 %v287, %v3763
        %v5017 = vmul.f32 %v288, %v3768
        %v5018 = vmul.f32 %v289, %v3773
        %v5019 = vmul.f32 %v290, %v3778
        %v5020 = vmul.f32 %v291, %v3783
        %v5021 = vmul.f32 %v292, %v3788
        %v5022 = vmul.f32 %v293, %v3793
        %v5023 = vmul.f32 %v294, %v3798
        %v5024 = vmul.f32 %v295, %v3803
        %v5025 = vmul.f32 %v296, %v3808
        %v5026 = vmul.f32 %v297, %v3813
        %v5027 = vmul.f32 %v298, %v3818
        %v5028 = vmul.f32 %v299, %v3823
        %v5029 = vmul.f32 %v300, %v3828
        %v5030 = vmul.f32 %v301, %v3833
        %v5031 = vmul.f32 %v302, %v3838
        %v5032 = vmul.f32 %v303, %v3843
        %v5033 = vmul.f32 %v304, %v3848
        %v5034 = vmul.f32 %v305, %v3853
        %v5035 = vmul.f32 %v306, %v3858
        %v5036 = vmul.f32 %v307, %v3863
        %v5037 = vmul.f32 %v308, %v3868
        %v5038 = vmul.f32 %v309, %v3873
        %v5039 = vmul.f32 %v310, %v3878
        %v5040 = vmul.f32 %v311, %v3883
        %v5041 = vmul.f32 %v312, %v3888
        %v5042 = vmul.f32 %v313, %v3893
        %v5043 = vmul.f32 %v314, %v3898
        %v5044 = vmul.f32 %v315, %v3903
        %v5045 = vmul.f32 %v316, %v3908
        %v5046 = vmul.f32 %v317, %v3913
        %v5047 = vmul.f32 %v318, %v3918
        %v5048 = vmul.f32 %v319, %v3923
        %v5049 = vmul.f32 %v320, %v3928
        %v5050 = vmul.f32 %v321, %v3933
        %v5051 = vmul.f32 %v322, %v3938
        %v5052 = vmul.f32 %v323, %v3943
        %v5053 = vmul.f32 %v324, %v3948
        %v5054 = vmul.f32 %v325, %v3953
        %v5055 = vmul.f32 %v326, %v3958
        %v5056 = vmul.f32 %v327, %v3963
        %v5057 = vmul.f32 %v328, %v3968
        %v5058 = vmul.f32 %v329, %v3973
        %v5059 = vmul.f32 %v330, %v3978
        %v5060 = vmul.f32 %v331, %v3983
        %v5061 = vmul.f32 %v332, %v3988
        %v5062 = vmul.f32 %v333, %v3993
        %v5063 = vmul.f32 %v334, %v3998
        %v5064 = vmul.f32 %v335, %v4003
        %v5065 = vmul.f32 %v336, %v4008
        %v5066 = vmul.f32 %v337, %v4013
        %v5067 = vmul.f32 %v338, %v4018
        %v5068 = vmul.f32 %v339, %v4023
        %v5069 = vmul.f32 %v340, %v4028
        %v5070 = vmul.f32 %v341, %v4033
        %v5071 = vmul.f32 %v342, %v4038
        %v5072 = vmul.f32 %v343, %v4043
        %v5073 = vmul.f32 %v344, %v4048
        %v5074 = vmul.f32 %v345, %v4053
        %v5075 = vmul.f32 %v346, %v4058
        %v5076 = vmul.f32 %v347, %v4063
        %v5077 = vmul.f32 %v348, %v4068
        %v5078 = vmul.f32 %v349, %v4073
        %v5079 = vmul.f32 %v350, %v4078
        %v5080 = vmul.f32 %v351, %v4083
        %v5081 = vmul.f32 %v352, %v4088
        %v5082 = vmul.f32 %v353, %v4093
        %v5083 = vmul.f32 %v354, %v4098
        %v5084 = vsel %vm540, %v5004, 0.0
        %5085 = vadd.xlane.f32.xlu0 %v5084
        %v5086 = vpop.xlane.xlu0 %5085
        %v5087 = vsel %vm540, %v5005, 0.0
        %5088 = vadd.xlane.f32.xlu0 %v5087
        %v5089 = vpop.xlane.xlu0 %5088
        %v5090 = vsel %vm540, %v5006, 0.0
        %5091 = vadd.xlane.f32.xlu0 %v5090
        %v5092 = vpop.xlane.xlu0 %5091
        %v5093 = vsel %vm540, %v5007, 0.0
        %5094 = vadd.xlane.f32.xlu0 %v5093
        %v5095 = vpop.xlane.xlu0 %5094
        %v5096 = vsel %vm540, %v5008, 0.0
        %5097 = vadd.xlane.f32.xlu0 %v5096
        %v5098 = vpop.xlane.xlu0 %5097
        %v5099 = vsel %vm540, %v5009, 0.0
        %5100 = vadd.xlane.f32.xlu0 %v5099
        %v5101 = vpop.xlane.xlu0 %5100
        %v5102 = vsel %vm540, %v5010, 0.0
        %5103 = vadd.xlane.f32.xlu0 %v5102
        %v5104 = vpop.xlane.xlu0 %5103
        %v5105 = vsel %vm540, %v5011, 0.0
        %5106 = vadd.xlane.f32.xlu0 %v5105
        %v5107 = vpop.xlane.xlu0 %5106
        %v5108 = vsel %vm540, %v5012, 0.0
        %5109 = vadd.xlane.f32.xlu0 %v5108
        %v5110 = vpop.xlane.xlu0 %5109
        %v5111 = vsel %vm540, %v5013, 0.0
        %5112 = vadd.xlane.f32.xlu0 %v5111
        %v5113 = vpop.xlane.xlu0 %5112
        %v5114 = vsel %vm540, %v5014, 0.0
        %5115 = vadd.xlane.f32.xlu0 %v5114
        %v5116 = vpop.xlane.xlu0 %5115
        %v5117 = vsel %vm540, %v5015, 0.0
        %5118 = vadd.xlane.f32.xlu0 %v5117
        %v5119 = vpop.xlane.xlu0 %5118
        %v5120 = vsel %vm540, %v5016, 0.0
        %5121 = vadd.xlane.f32.xlu0 %v5120
        %v5122 = vpop.xlane.xlu0 %5121
        %v5123 = vsel %vm540, %v5017, 0.0
        %5124 = vadd.xlane.f32.xlu0 %v5123
        %v5125 = vpop.xlane.xlu0 %5124
        %v5126 = vsel %vm540, %v5018, 0.0
        %5127 = vadd.xlane.f32.xlu0 %v5126
        %v5128 = vpop.xlane.xlu0 %5127
        %v5129 = vsel %vm540, %v5019, 0.0
        %5130 = vadd.xlane.f32.xlu0 %v5129
        %v5131 = vpop.xlane.xlu0 %5130
        %v5132 = vsel %vm540, %v5020, 0.0
        %5133 = vadd.xlane.f32.xlu0 %v5132
        %v5134 = vpop.xlane.xlu0 %5133
        %v5135 = vsel %vm540, %v5021, 0.0
        %5136 = vadd.xlane.f32.xlu0 %v5135
        %v5137 = vpop.xlane.xlu0 %5136
        %v5138 = vsel %vm540, %v5022, 0.0
        %5139 = vadd.xlane.f32.xlu0 %v5138
        %v5140 = vpop.xlane.xlu0 %5139
        %v5141 = vsel %vm540, %v5023, 0.0
        %5142 = vadd.xlane.f32.xlu0 %v5141
        %v5143 = vpop.xlane.xlu0 %5142
        %v5144 = vsel %vm540, %v5024, 0.0
        %5145 = vadd.xlane.f32.xlu0 %v5144
        %v5146 = vpop.xlane.xlu0 %5145
        %v5147 = vsel %vm540, %v5025, 0.0
        %5148 = vadd.xlane.f32.xlu0 %v5147
        %v5149 = vpop.xlane.xlu0 %5148
        %v5150 = vsel %vm540, %v5026, 0.0
        %5151 = vadd.xlane.f32.xlu0 %v5150
        %v5152 = vpop.xlane.xlu0 %5151
        %v5153 = vsel %vm540, %v5027, 0.0
        %5154 = vadd.xlane.f32.xlu0 %v5153
        %v5155 = vpop.xlane.xlu0 %5154
        %v5156 = vsel %vm540, %v5028, 0.0
        %5157 = vadd.xlane.f32.xlu0 %v5156
        %v5158 = vpop.xlane.xlu0 %5157
        %v5159 = vsel %vm540, %v5029, 0.0
        %5160 = vadd.xlane.f32.xlu0 %v5159
        %v5161 = vpop.xlane.xlu0 %5160
        %v5162 = vsel %vm540, %v5030, 0.0
        %5163 = vadd.xlane.f32.xlu0 %v5162
        %v5164 = vpop.xlane.xlu0 %5163
        %v5165 = vsel %vm540, %v5031, 0.0
        %5166 = vadd.xlane.f32.xlu0 %v5165
        %v5167 = vpop.xlane.xlu0 %5166
        %v5168 = vsel %vm540, %v5032, 0.0
        %5169 = vadd.xlane.f32.xlu0 %v5168
        %v5170 = vpop.xlane.xlu0 %5169
        %v5171 = vsel %vm540, %v5033, 0.0
        %5172 = vadd.xlane.f32.xlu0 %v5171
        %v5173 = vpop.xlane.xlu0 %5172
        %v5174 = vsel %vm540, %v5034, 0.0
        %5175 = vadd.xlane.f32.xlu0 %v5174
        %v5176 = vpop.xlane.xlu0 %5175
        %v5177 = vsel %vm540, %v5035, 0.0
        %5178 = vadd.xlane.f32.xlu0 %v5177
        %v5179 = vpop.xlane.xlu0 %5178
        %v5180 = vsel %vm540, %v5036, 0.0
        %5181 = vadd.xlane.f32.xlu0 %v5180
        %v5182 = vpop.xlane.xlu0 %5181
        %v5183 = vsel %vm540, %v5037, 0.0
        %5184 = vadd.xlane.f32.xlu0 %v5183
        %v5185 = vpop.xlane.xlu0 %5184
        %v5186 = vsel %vm540, %v5038, 0.0
        %5187 = vadd.xlane.f32.xlu0 %v5186
        %v5188 = vpop.xlane.xlu0 %5187
        %v5189 = vsel %vm540, %v5039, 0.0
        %5190 = vadd.xlane.f32.xlu0 %v5189
        %v5191 = vpop.xlane.xlu0 %5190
        %v5192 = vsel %vm540, %v5040, 0.0
        %5193 = vadd.xlane.f32.xlu0 %v5192
        %v5194 = vpop.xlane.xlu0 %5193
        %v5195 = vsel %vm540, %v5041, 0.0
        %5196 = vadd.xlane.f32.xlu0 %v5195
        %v5197 = vpop.xlane.xlu0 %5196
        %v5198 = vsel %vm540, %v5042, 0.0
        %5199 = vadd.xlane.f32.xlu0 %v5198
        %v5200 = vpop.xlane.xlu0 %5199
        %v5201 = vsel %vm540, %v5043, 0.0
        %5202 = vadd.xlane.f32.xlu0 %v5201
        %v5203 = vpop.xlane.xlu0 %5202
        %v5204 = vsel %vm540, %v5044, 0.0
        %5205 = vadd.xlane.f32.xlu0 %v5204
        %v5206 = vpop.xlane.xlu0 %5205
        %v5207 = vsel %vm540, %v5045, 0.0
        %5208 = vadd.xlane.f32.xlu0 %v5207
        %v5209 = vpop.xlane.xlu0 %5208
        %v5210 = vsel %vm540, %v5046, 0.0
        %5211 = vadd.xlane.f32.xlu0 %v5210
        %v5212 = vpop.xlane.xlu0 %5211
        %v5213 = vsel %vm540, %v5047, 0.0
        %5214 = vadd.xlane.f32.xlu0 %v5213
        %v5215 = vpop.xlane.xlu0 %5214
        %v5216 = vsel %vm540, %v5048, 0.0
        %5217 = vadd.xlane.f32.xlu0 %v5216
        %v5218 = vpop.xlane.xlu0 %5217
        %v5219 = vsel %vm540, %v5049, 0.0
        %5220 = vadd.xlane.f32.xlu0 %v5219
        %v5221 = vpop.xlane.xlu0 %5220
        %v5222 = vsel %vm540, %v5050, 0.0
        %5223 = vadd.xlane.f32.xlu0 %v5222
        %v5224 = vpop.xlane.xlu0 %5223
        %v5225 = vsel %vm540, %v5051, 0.0
        %5226 = vadd.xlane.f32.xlu0 %v5225
        %v5227 = vpop.xlane.xlu0 %5226
        %v5228 = vsel %vm540, %v5052, 0.0
        %5229 = vadd.xlane.f32.xlu0 %v5228
        %v5230 = vpop.xlane.xlu0 %5229
        %v5231 = vsel %vm540, %v5053, 0.0
        %5232 = vadd.xlane.f32.xlu0 %v5231
        %v5233 = vpop.xlane.xlu0 %5232
        %v5234 = vsel %vm540, %v5054, 0.0
        %5235 = vadd.xlane.f32.xlu0 %v5234
        %v5236 = vpop.xlane.xlu0 %5235
        %v5237 = vsel %vm540, %v5055, 0.0
        %5238 = vadd.xlane.f32.xlu0 %v5237
        %v5239 = vpop.xlane.xlu0 %5238
        %v5240 = vsel %vm540, %v5056, 0.0
        %5241 = vadd.xlane.f32.xlu0 %v5240
        %v5242 = vpop.xlane.xlu0 %5241
        %v5243 = vsel %vm540, %v5057, 0.0
        %5244 = vadd.xlane.f32.xlu0 %v5243
        %v5245 = vpop.xlane.xlu0 %5244
        %v5246 = vsel %vm540, %v5058, 0.0
        %5247 = vadd.xlane.f32.xlu0 %v5246
        %v5248 = vpop.xlane.xlu0 %5247
        %v5249 = vsel %vm540, %v5059, 0.0
        %5250 = vadd.xlane.f32.xlu0 %v5249
        %v5251 = vpop.xlane.xlu0 %5250
        %v5252 = vsel %vm540, %v5060, 0.0
        %5253 = vadd.xlane.f32.xlu0 %v5252
        %v5254 = vpop.xlane.xlu0 %5253
        %v5255 = vsel %vm540, %v5061, 0.0
        %5256 = vadd.xlane.f32.xlu0 %v5255
        %v5257 = vpop.xlane.xlu0 %5256
        %v5258 = vsel %vm540, %v5062, 0.0
        %5259 = vadd.xlane.f32.xlu0 %v5258
        %v5260 = vpop.xlane.xlu0 %5259
        %v5261 = vsel %vm540, %v5063, 0.0
        %5262 = vadd.xlane.f32.xlu0 %v5261
        %v5263 = vpop.xlane.xlu0 %5262
        %v5264 = vsel %vm540, %v5064, 0.0
        %5265 = vadd.xlane.f32.xlu0 %v5264
        %v5266 = vpop.xlane.xlu0 %5265
        %v5267 = vsel %vm540, %v5065, 0.0
        %5268 = vadd.xlane.f32.xlu0 %v5267
        %v5269 = vpop.xlane.xlu0 %5268
        %v5270 = vsel %vm540, %v5066, 0.0
        %5271 = vadd.xlane.f32.xlu0 %v5270
        %v5272 = vpop.xlane.xlu0 %5271
        %v5273 = vsel %vm540, %v5067, 0.0
        %5274 = vadd.xlane.f32.xlu0 %v5273
        %v5275 = vpop.xlane.xlu0 %5274
        %v5276 = vsel %vm540, %v5068, 0.0
        %5277 = vadd.xlane.f32.xlu0 %v5276
        %v5278 = vpop.xlane.xlu0 %5277
        %v5279 = vsel %vm540, %v5069, 0.0
        %5280 = vadd.xlane.f32.xlu0 %v5279
        %v5281 = vpop.xlane.xlu0 %5280
        %v5282 = vsel %vm540, %v5070, 0.0
        %5283 = vadd.xlane.f32.xlu0 %v5282
        %v5284 = vpop.xlane.xlu0 %5283
        %v5285 = vsel %vm540, %v5071, 0.0
        %5286 = vadd.xlane.f32.xlu0 %v5285
        %v5287 = vpop.xlane.xlu0 %5286
        %v5288 = vsel %vm540, %v5072, 0.0
        %5289 = vadd.xlane.f32.xlu0 %v5288
        %v5290 = vpop.xlane.xlu0 %5289
        %v5291 = vsel %vm540, %v5073, 0.0
        %5292 = vadd.xlane.f32.xlu0 %v5291
        %v5293 = vpop.xlane.xlu0 %5292
        %v5294 = vsel %vm540, %v5074, 0.0
        %5295 = vadd.xlane.f32.xlu0 %v5294
        %v5296 = vpop.xlane.xlu0 %5295
        %v5297 = vsel %vm540, %v5075, 0.0
        %5298 = vadd.xlane.f32.xlu0 %v5297
        %v5299 = vpop.xlane.xlu0 %5298
        %v5300 = vsel %vm540, %v5076, 0.0
        %5301 = vadd.xlane.f32.xlu0 %v5300
        %v5302 = vpop.xlane.xlu0 %5301
        %v5303 = vsel %vm540, %v5077, 0.0
        %5304 = vadd.xlane.f32.xlu0 %v5303
        %v5305 = vpop.xlane.xlu0 %5304
        %v5306 = vsel %vm540, %v5078, 0.0
        %5307 = vadd.xlane.f32.xlu0 %v5306
        %v5308 = vpop.xlane.xlu0 %5307
        %v5309 = vsel %vm540, %v5079, 0.0
        %5310 = vadd.xlane.f32.xlu0 %v5309
        %v5311 = vpop.xlane.xlu0 %5310
        %v5312 = vsel %vm540, %v5080, 0.0
        %5313 = vadd.xlane.f32.xlu0 %v5312
        %v5314 = vpop.xlane.xlu0 %5313
        %v5315 = vsel %vm540, %v5081, 0.0
        %5316 = vadd.xlane.f32.xlu0 %v5315
        %v5317 = vpop.xlane.xlu0 %5316
        %v5318 = vsel %vm540, %v5082, 0.0
        %5319 = vadd.xlane.f32.xlu0 %v5318
        %v5320 = vpop.xlane.xlu0 %5319
        %v5321 = vsel %vm540, %v5083, 0.0
        %5322 = vadd.xlane.f32.xlu0 %v5321
        %v5323 = vpop.xlane.xlu0 %5322
        %v5324 = vadd.f32 %v4446, %v4766
        %v5325 = vadd.f32 %v4449, %v4769
        %v5326 = vadd.f32 %v4452, %v4772
        %v5327 = vadd.f32 %v4455, %v4775
        %v5328 = vadd.f32 %v4458, %v4778
        %v5329 = vadd.f32 %v4461, %v4781
        %v5330 = vadd.f32 %v4464, %v4784
        %v5331 = vadd.f32 %v4467, %v4787
        %v5332 = vadd.f32 %v4470, %v4790
        %v5333 = vadd.f32 %v4473, %v4793
        %v5334 = vadd.f32 %v4476, %v4796
        %v5335 = vadd.f32 %v4479, %v4799
        %v5336 = vadd.f32 %v4482, %v4802
        %v5337 = vadd.f32 %v4485, %v4805
        %v5338 = vadd.f32 %v4488, %v4808
        %v5339 = vadd.f32 %v4491, %v4811
        %v5340 = vadd.f32 %v4494, %v4814
        %v5341 = vadd.f32 %v4497, %v4817
        %v5342 = vadd.f32 %v4500, %v4820
        %v5343 = vadd.f32 %v4503, %v4823
        %v5344 = vadd.f32 %v4506, %v4826
        %v5345 = vadd.f32 %v4509, %v4829
        %v5346 = vadd.f32 %v4512, %v4832
        %v5347 = vadd.f32 %v4515, %v4835
        %v5348 = vadd.f32 %v4518, %v4838
        %v5349 = vadd.f32 %v4521, %v4841
        %v5350 = vadd.f32 %v4524, %v4844
        %v5351 = vadd.f32 %v4527, %v4847
        %v5352 = vadd.f32 %v4530, %v4850
        %v5353 = vadd.f32 %v4533, %v4853
        %v5354 = vadd.f32 %v4536, %v4856
        %v5355 = vadd.f32 %v4539, %v4859
        %v5356 = vadd.f32 %v4542, %v4862
        %v5357 = vadd.f32 %v4545, %v4865
        %v5358 = vadd.f32 %v4548, %v4868
        %v5359 = vadd.f32 %v4551, %v4871
        %v5360 = vadd.f32 %v4554, %v4874
        %v5361 = vadd.f32 %v4557, %v4877
        %v5362 = vadd.f32 %v4560, %v4880
        %v5363 = vadd.f32 %v4563, %v4883
        %v5364 = vadd.f32 %v4566, %v4886
        %v5365 = vadd.f32 %v4569, %v4889
        %v5366 = vadd.f32 %v4572, %v4892
        %v5367 = vadd.f32 %v4575, %v4895
        %v5368 = vadd.f32 %v4578, %v4898
        %v5369 = vadd.f32 %v4581, %v4901
        %v5370 = vadd.f32 %v4584, %v4904
        %v5371 = vadd.f32 %v4587, %v4907
        %v5372 = vadd.f32 %v4590, %v4910
        %v5373 = vadd.f32 %v4593, %v4913
        %v5374 = vadd.f32 %v4596, %v4916
        %v5375 = vadd.f32 %v4599, %v4919
        %v5376 = vadd.f32 %v4602, %v4922
        %v5377 = vadd.f32 %v4605, %v4925
        %v5378 = vadd.f32 %v4608, %v4928
        %v5379 = vadd.f32 %v4611, %v4931
        %v5380 = vadd.f32 %v4614, %v4934
        %v5381 = vadd.f32 %v4617, %v4937
        %v5382 = vadd.f32 %v4620, %v4940
        %v5383 = vadd.f32 %v4623, %v4943
        %v5384 = vadd.f32 %v4626, %v4946
        %v5385 = vadd.f32 %v4629, %v4949
        %v5386 = vadd.f32 %v4632, %v4952
        %v5387 = vadd.f32 %v4635, %v4955
        %v5388 = vadd.f32 %v4638, %v4958
        %v5389 = vadd.f32 %v4641, %v4961
        %v5390 = vadd.f32 %v4644, %v4964
        %v5391 = vadd.f32 %v4647, %v4967
        %v5392 = vadd.f32 %v4650, %v4970
        %v5393 = vadd.f32 %v4653, %v4973
        %v5394 = vadd.f32 %v4656, %v4976
        %v5395 = vadd.f32 %v4659, %v4979
        %v5396 = vadd.f32 %v4662, %v4982
        %v5397 = vadd.f32 %v4665, %v4985
        %v5398 = vadd.f32 %v4668, %v4988
        %v5399 = vadd.f32 %v4671, %v4991
        %v5400 = vadd.f32 %v4674, %v4994
        %v5401 = vadd.f32 %v4677, %v4997
        %v5402 = vadd.f32 %v4680, %v5000
        %v5403 = vadd.f32 %v4683, %v5003
        %v5404 = vmul.f32 %v5086, 2.0
        %v5405 = vmul.f32 %v5089, 2.0
        %v5406 = vmul.f32 %v5092, 2.0
        %v5407 = vmul.f32 %v5095, 2.0
        %v5408 = vmul.f32 %v5098, 2.0
        %v5409 = vmul.f32 %v5101, 2.0
        %v5410 = vmul.f32 %v5104, 2.0
        %v5411 = vmul.f32 %v5107, 2.0
        %v5412 = vmul.f32 %v5110, 2.0
        %v5413 = vmul.f32 %v5113, 2.0
        %v5414 = vmul.f32 %v5116, 2.0
        %v5415 = vmul.f32 %v5119, 2.0
        %v5416 = vmul.f32 %v5122, 2.0
        %v5417 = vmul.f32 %v5125, 2.0
        %v5418 = vmul.f32 %v5128, 2.0
        %v5419 = vmul.f32 %v5131, 2.0
        %v5420 = vmul.f32 %v5134, 2.0
        %v5421 = vmul.f32 %v5137, 2.0
        %v5422 = vmul.f32 %v5140, 2.0
        %v5423 = vmul.f32 %v5143, 2.0
        %v5424 = vmul.f32 %v5146, 2.0
        %v5425 = vmul.f32 %v5149, 2.0
        %v5426 = vmul.f32 %v5152, 2.0
        %v5427 = vmul.f32 %v5155, 2.0
        %v5428 = vmul.f32 %v5158, 2.0
        %v5429 = vmul.f32 %v5161, 2.0
        %v5430 = vmul.f32 %v5164, 2.0
        %v5431 = vmul.f32 %v5167, 2.0
        %v5432 = vmul.f32 %v5170, 2.0
        %v5433 = vmul.f32 %v5173, 2.0
        %v5434 = vmul.f32 %v5176, 2.0
        %v5435 = vmul.f32 %v5179, 2.0
        %v5436 = vmul.f32 %v5182, 2.0
        %v5437 = vmul.f32 %v5185, 2.0
        %v5438 = vmul.f32 %v5188, 2.0
        %v5439 = vmul.f32 %v5191, 2.0
        %v5440 = vmul.f32 %v5194, 2.0
        %v5441 = vmul.f32 %v5197, 2.0
        %v5442 = vmul.f32 %v5200, 2.0
        %v5443 = vmul.f32 %v5203, 2.0
        %v5444 = vmul.f32 %v5206, 2.0
        %v5445 = vmul.f32 %v5209, 2.0
        %v5446 = vmul.f32 %v5212, 2.0
        %v5447 = vmul.f32 %v5215, 2.0
        %v5448 = vmul.f32 %v5218, 2.0
        %v5449 = vmul.f32 %v5221, 2.0
        %v5450 = vmul.f32 %v5224, 2.0
        %v5451 = vmul.f32 %v5227, 2.0
        %v5452 = vmul.f32 %v5230, 2.0
        %v5453 = vmul.f32 %v5233, 2.0
        %v5454 = vmul.f32 %v5236, 2.0
        %v5455 = vmul.f32 %v5239, 2.0
        %v5456 = vmul.f32 %v5242, 2.0
        %v5457 = vmul.f32 %v5245, 2.0
        %v5458 = vmul.f32 %v5248, 2.0
        %v5459 = vmul.f32 %v5251, 2.0
        %v5460 = vmul.f32 %v5254, 2.0
        %v5461 = vmul.f32 %v5257, 2.0
        %v5462 = vmul.f32 %v5260, 2.0
        %v5463 = vmul.f32 %v5263, 2.0
        %v5464 = vmul.f32 %v5266, 2.0
        %v5465 = vmul.f32 %v5269, 2.0
        %v5466 = vmul.f32 %v5272, 2.0
        %v5467 = vmul.f32 %v5275, 2.0
        %v5468 = vmul.f32 %v5278, 2.0
        %v5469 = vmul.f32 %v5281, 2.0
        %v5470 = vmul.f32 %v5284, 2.0
        %v5471 = vmul.f32 %v5287, 2.0
        %v5472 = vmul.f32 %v5290, 2.0
        %v5473 = vmul.f32 %v5293, 2.0
        %v5474 = vmul.f32 %v5296, 2.0
        %v5475 = vmul.f32 %v5299, 2.0
        %v5476 = vmul.f32 %v5302, 2.0
        %v5477 = vmul.f32 %v5305, 2.0
        %v5478 = vmul.f32 %v5308, 2.0
        %v5479 = vmul.f32 %v5311, 2.0
        %v5480 = vmul.f32 %v5314, 2.0
        %v5481 = vmul.f32 %v5317, 2.0
        %v5482 = vmul.f32 %v5320, 2.0
        %v5483 = vmul.f32 %v5323, 2.0
        %v5484 = vsub.f32 %v5324, %v5404
        %v5485 = vsub.f32 %v5325, %v5405
        %v5486 = vsub.f32 %v5326, %v5406
        %v5487 = vsub.f32 %v5327, %v5407
        %v5488 = vsub.f32 %v5328, %v5408
        %v5489 = vsub.f32 %v5329, %v5409
        %v5490 = vsub.f32 %v5330, %v5410
        %v5491 = vsub.f32 %v5331, %v5411
        %v5492 = vsub.f32 %v5332, %v5412
        %v5493 = vsub.f32 %v5333, %v5413
        %v5494 = vsub.f32 %v5334, %v5414
        %v5495 = vsub.f32 %v5335, %v5415
        %v5496 = vsub.f32 %v5336, %v5416
        %v5497 = vsub.f32 %v5337, %v5417
        %v5498 = vsub.f32 %v5338, %v5418
        %v5499 = vsub.f32 %v5339, %v5419
        %v5500 = vsub.f32 %v5340, %v5420
        %v5501 = vsub.f32 %v5341, %v5421
        %v5502 = vsub.f32 %v5342, %v5422
        %v5503 = vsub.f32 %v5343, %v5423
        %v5504 = vsub.f32 %v5344, %v5424
        %v5505 = vsub.f32 %v5345, %v5425
        %v5506 = vsub.f32 %v5346, %v5426
        %v5507 = vsub.f32 %v5347, %v5427
        %v5508 = vsub.f32 %v5348, %v5428
        %v5509 = vsub.f32 %v5349, %v5429
        %v5510 = vsub.f32 %v5350, %v5430
        %v5511 = vsub.f32 %v5351, %v5431
        %v5512 = vsub.f32 %v5352, %v5432
        %v5513 = vsub.f32 %v5353, %v5433
        %v5514 = vsub.f32 %v5354, %v5434
        %v5515 = vsub.f32 %v5355, %v5435
        %v5516 = vsub.f32 %v5356, %v5436
        %v5517 = vsub.f32 %v5357, %v5437
        %v5518 = vsub.f32 %v5358, %v5438
        %v5519 = vsub.f32 %v5359, %v5439
        %v5520 = vsub.f32 %v5360, %v5440
        %v5521 = vsub.f32 %v5361, %v5441
        %v5522 = vsub.f32 %v5362, %v5442
        %v5523 = vsub.f32 %v5363, %v5443
        %v5524 = vsub.f32 %v5364, %v5444
        %v5525 = vsub.f32 %v5365, %v5445
        %v5526 = vsub.f32 %v5366, %v5446
        %v5527 = vsub.f32 %v5367, %v5447
        %v5528 = vsub.f32 %v5368, %v5448
        %v5529 = vsub.f32 %v5369, %v5449
        %v5530 = vsub.f32 %v5370, %v5450
        %v5531 = vsub.f32 %v5371, %v5451
        %v5532 = vsub.f32 %v5372, %v5452
        %v5533 = vsub.f32 %v5373, %v5453
        %v5534 = vsub.f32 %v5374, %v5454
        %v5535 = vsub.f32 %v5375, %v5455
        %v5536 = vsub.f32 %v5376, %v5456
        %v5537 = vsub.f32 %v5377, %v5457
        %v5538 = vsub.f32 %v5378, %v5458
        %v5539 = vsub.f32 %v5379, %v5459
        %v5540 = vsub.f32 %v5380, %v5460
        %v5541 = vsub.f32 %v5381, %v5461
        %v5542 = vsub.f32 %v5382, %v5462
        %v5543 = vsub.f32 %v5383, %v5463
        %v5544 = vsub.f32 %v5384, %v5464
        %v5545 = vsub.f32 %v5385, %v5465
        %v5546 = vsub.f32 %v5386, %v5466
        %v5547 = vsub.f32 %v5387, %v5467
        %v5548 = vsub.f32 %v5388, %v5468
        %v5549 = vsub.f32 %v5389, %v5469
        %v5550 = vsub.f32 %v5390, %v5470
        %v5551 = vsub.f32 %v5391, %v5471
        %v5552 = vsub.f32 %v5392, %v5472
        %v5553 = vsub.f32 %v5393, %v5473
        %v5554 = vsub.f32 %v5394, %v5474
        %v5555 = vsub.f32 %v5395, %v5475
        %v5556 = vsub.f32 %v5396, %v5476
        %v5557 = vsub.f32 %v5397, %v5477
        %v5558 = vsub.f32 %v5398, %v5478
        %v5559 = vsub.f32 %v5399, %v5479
        %v5560 = vsub.f32 %v5400, %v5480
        %v5561 = vsub.f32 %v5401, %v5481
        %v5562 = vsub.f32 %v5402, %v5482
        %v5563 = vsub.f32 %v5403, %v5483
        %s5564 = smul.u32 %s21, 640
        %v5565 = vlaneseq
        %v5566 = vshrl.u32 %v5565, 7
        %v5567 = vadd.s32 %v5566, 8
        %v5568 = vadd.s32 %v5566, 16
        %v5569 = vadd.s32 %v5566, 24
        %v5570 = vadd.s32 %v5566, 32
        %v5571 = vadd.s32 %v5566, 40
        %v5572 = vadd.s32 %v5566, 48
        %v5573 = vadd.s32 %v5566, 56
        %v5574 = vadd.s32 %v5566, 64
        %v5575 = vadd.s32 %v5566, 72
        %v5576 = vadd.s32 %v5566, 80
        %v5577 = vadd.s32 %v5566, 88
        %v5578 = vadd.s32 %v5566, 96
        %v5579 = vadd.s32 %v5566, 104
        %v5580 = vadd.s32 %v5566, 112
        %v5581 = vadd.s32 %v5566, 120
        %v5582 = vadd.s32 %v5566, 128
        %v5583 = vadd.s32 %v5566, 136
        %v5584 = vadd.s32 %v5566, 144
        %v5585 = vadd.s32 %v5566, 152
        %v5586 = vadd.s32 %v5566, 160
        %v5587 = vadd.s32 %v5566, 168
        %v5588 = vadd.s32 %v5566, 176
        %v5589 = vadd.s32 %v5566, 184
        %v5590 = vadd.s32 %v5566, 192
        %v5591 = vadd.s32 %v5566, 200
        %v5592 = vadd.s32 %v5566, 208
        %v5593 = vadd.s32 %v5566, 216
        %v5594 = vadd.s32 %v5566, 224
        %v5595 = vadd.s32 %v5566, 232
        %v5596 = vadd.s32 %v5566, 240
        %v5597 = vadd.s32 %v5566, 248
        %v5598 = vadd.s32 %v5566, 256
        %v5599 = vadd.s32 %v5566, 264
        %v5600 = vadd.s32 %v5566, 272
        %v5601 = vadd.s32 %v5566, 280
        %v5602 = vadd.s32 %v5566, 288
        %v5603 = vadd.s32 %v5566, 296
        %v5604 = vadd.s32 %v5566, 304
        %v5605 = vadd.s32 %v5566, 312
        %v5606 = vadd.s32 %v5566, 320
        %v5607 = vadd.s32 %v5566, 328
        %v5608 = vadd.s32 %v5566, 336
        %v5609 = vadd.s32 %v5566, 344
        %v5610 = vadd.s32 %v5566, 352
        %v5611 = vadd.s32 %v5566, 360
        %v5612 = vadd.s32 %v5566, 368
        %v5613 = vadd.s32 %v5566, 376
        %v5614 = vadd.s32 %v5566, 384
        %v5615 = vadd.s32 %v5566, 392
        %v5616 = vadd.s32 %v5566, 400
        %v5617 = vadd.s32 %v5566, 408
        %v5618 = vadd.s32 %v5566, 416
        %v5619 = vadd.s32 %v5566, 424
        %v5620 = vadd.s32 %v5566, 432
        %v5621 = vadd.s32 %v5566, 440
        %v5622 = vadd.s32 %v5566, 448
        %v5623 = vadd.s32 %v5566, 456
        %v5624 = vadd.s32 %v5566, 464
        %v5625 = vadd.s32 %v5566, 472
        %v5626 = vadd.s32 %v5566, 480
        %v5627 = vadd.s32 %v5566, 488
        %v5628 = vadd.s32 %v5566, 496
        %v5629 = vadd.s32 %v5566, 504
        %v5630 = vadd.s32 %v5566, 512
        %v5631 = vadd.s32 %v5566, 520
        %v5632 = vadd.s32 %v5566, 528
        %v5633 = vadd.s32 %v5566, 536
        %v5634 = vadd.s32 %v5566, 544
        %v5635 = vadd.s32 %v5566, 552
        %v5636 = vadd.s32 %v5566, 560
        %v5637 = vadd.s32 %v5566, 568
        %v5638 = vadd.s32 %v5566, 576
        %v5639 = vadd.s32 %v5566, 584
        %v5640 = vadd.s32 %v5566, 592
        %v5641 = vadd.s32 %v5566, 600
        %v5642 = vadd.s32 %v5566, 608
        %v5643 = vadd.s32 %v5566, 616
        %v5644 = vadd.s32 %v5566, 624
        %v5645 = vadd.s32 %v5566, 632
        %v5646 = vstv %s5564
        %v5647 = vadd.s32 %v5646, %v5566
        %v5648 = vadd.s32 %v5646, %v5567
        %v5649 = vadd.s32 %v5646, %v5568
        %v5650 = vadd.s32 %v5646, %v5569
        %v5651 = vadd.s32 %v5646, %v5570
        %v5652 = vadd.s32 %v5646, %v5571
        %v5653 = vadd.s32 %v5646, %v5572
        %v5654 = vadd.s32 %v5646, %v5573
        %v5655 = vadd.s32 %v5646, %v5574
        %v5656 = vadd.s32 %v5646, %v5575
        %v5657 = vadd.s32 %v5646, %v5576
        %v5658 = vadd.s32 %v5646, %v5577
        %v5659 = vadd.s32 %v5646, %v5578
        %v5660 = vadd.s32 %v5646, %v5579
        %v5661 = vadd.s32 %v5646, %v5580
        %v5662 = vadd.s32 %v5646, %v5581
        %v5663 = vadd.s32 %v5646, %v5582
        %v5664 = vadd.s32 %v5646, %v5583
        %v5665 = vadd.s32 %v5646, %v5584
        %v5666 = vadd.s32 %v5646, %v5585
        %v5667 = vadd.s32 %v5646, %v5586
        %v5668 = vadd.s32 %v5646, %v5587
        %v5669 = vadd.s32 %v5646, %v5588
        %v5670 = vadd.s32 %v5646, %v5589
        %v5671 = vadd.s32 %v5646, %v5590
        %v5672 = vadd.s32 %v5646, %v5591
        %v5673 = vadd.s32 %v5646, %v5592
        %v5674 = vadd.s32 %v5646, %v5593
        %v5675 = vadd.s32 %v5646, %v5594
        %v5676 = vadd.s32 %v5646, %v5595
        %v5677 = vadd.s32 %v5646, %v5596
        %v5678 = vadd.s32 %v5646, %v5597
        %v5679 = vadd.s32 %v5646, %v5598
        %v5680 = vadd.s32 %v5646, %v5599
        %v5681 = vadd.s32 %v5646, %v5600
        %v5682 = vadd.s32 %v5646, %v5601
        %v5683 = vadd.s32 %v5646, %v5602
        %v5684 = vadd.s32 %v5646, %v5603
        %v5685 = vadd.s32 %v5646, %v5604
        %v5686 = vadd.s32 %v5646, %v5605
        %v5687 = vadd.s32 %v5646, %v5606
        %v5688 = vadd.s32 %v5646, %v5607
        %v5689 = vadd.s32 %v5646, %v5608
        %v5690 = vadd.s32 %v5646, %v5609
        %v5691 = vadd.s32 %v5646, %v5610
        %v5692 = vadd.s32 %v5646, %v5611
        %v5693 = vadd.s32 %v5646, %v5612
        %v5694 = vadd.s32 %v5646, %v5613
        %v5695 = vadd.s32 %v5646, %v5614
        %v5696 = vadd.s32 %v5646, %v5615
        %v5697 = vadd.s32 %v5646, %v5616
        %v5698 = vadd.s32 %v5646, %v5617
        %v5699 = vadd.s32 %v5646, %v5618
        %v5700 = vadd.s32 %v5646, %v5619
        %v5701 = vadd.s32 %v5646, %v5620
        %v5702 = vadd.s32 %v5646, %v5621
        %v5703 = vadd.s32 %v5646, %v5622
        %v5704 = vadd.s32 %v5646, %v5623
        %v5705 = vadd.s32 %v5646, %v5624
        %v5706 = vadd.s32 %v5646, %v5625
        %v5707 = vadd.s32 %v5646, %v5626
        %v5708 = vadd.s32 %v5646, %v5627
        %v5709 = vadd.s32 %v5646, %v5628
        %v5710 = vadd.s32 %v5646, %v5629
        %v5711 = vadd.s32 %v5646, %v5630
        %v5712 = vadd.s32 %v5646, %v5631
        %v5713 = vadd.s32 %v5646, %v5632
        %v5714 = vadd.s32 %v5646, %v5633
        %v5715 = vadd.s32 %v5646, %v5634
        %v5716 = vadd.s32 %v5646, %v5635
        %v5717 = vadd.s32 %v5646, %v5636
        %v5718 = vadd.s32 %v5646, %v5637
        %v5719 = vadd.s32 %v5646, %v5638
        %v5720 = vadd.s32 %v5646, %v5639
        %v5721 = vadd.s32 %v5646, %v5640
        %v5722 = vadd.s32 %v5646, %v5641
        %v5723 = vadd.s32 %v5646, %v5642
        %v5724 = vadd.s32 %v5646, %v5643
        %v5725 = vadd.s32 %v5646, %v5644
        %v5726 = vadd.s32 %v5646, %v5645
        %vm5727 = vcmp.lt.s32.totalorder %v5647, 1200
        %vm5728 = vcmp.lt.s32.totalorder %v5648, 1200
        %vm5729 = vcmp.lt.s32.totalorder %v5649, 1200
        %vm5730 = vcmp.lt.s32.totalorder %v5650, 1200
        %vm5731 = vcmp.lt.s32.totalorder %v5651, 1200
        %vm5732 = vcmp.lt.s32.totalorder %v5652, 1200
        %vm5733 = vcmp.lt.s32.totalorder %v5653, 1200
        %vm5734 = vcmp.lt.s32.totalorder %v5654, 1200
        %vm5735 = vcmp.lt.s32.totalorder %v5655, 1200
        %vm5736 = vcmp.lt.s32.totalorder %v5656, 1200
        %vm5737 = vcmp.lt.s32.totalorder %v5657, 1200
        %vm5738 = vcmp.lt.s32.totalorder %v5658, 1200
        %vm5739 = vcmp.lt.s32.totalorder %v5659, 1200
        %vm5740 = vcmp.lt.s32.totalorder %v5660, 1200
        %vm5741 = vcmp.lt.s32.totalorder %v5661, 1200
        %vm5742 = vcmp.lt.s32.totalorder %v5662, 1200
        %vm5743 = vcmp.lt.s32.totalorder %v5663, 1200
        %vm5744 = vcmp.lt.s32.totalorder %v5664, 1200
        %vm5745 = vcmp.lt.s32.totalorder %v5665, 1200
        %vm5746 = vcmp.lt.s32.totalorder %v5666, 1200
        %vm5747 = vcmp.lt.s32.totalorder %v5667, 1200
        %vm5748 = vcmp.lt.s32.totalorder %v5668, 1200
        %vm5749 = vcmp.lt.s32.totalorder %v5669, 1200
        %vm5750 = vcmp.lt.s32.totalorder %v5670, 1200
        %vm5751 = vcmp.lt.s32.totalorder %v5671, 1200
        %vm5752 = vcmp.lt.s32.totalorder %v5672, 1200
        %vm5753 = vcmp.lt.s32.totalorder %v5673, 1200
        %vm5754 = vcmp.lt.s32.totalorder %v5674, 1200
        %vm5755 = vcmp.lt.s32.totalorder %v5675, 1200
        %vm5756 = vcmp.lt.s32.totalorder %v5676, 1200
        %vm5757 = vcmp.lt.s32.totalorder %v5677, 1200
        %vm5758 = vcmp.lt.s32.totalorder %v5678, 1200
        %vm5759 = vcmp.lt.s32.totalorder %v5679, 1200
        %vm5760 = vcmp.lt.s32.totalorder %v5680, 1200
        %vm5761 = vcmp.lt.s32.totalorder %v5681, 1200
        %vm5762 = vcmp.lt.s32.totalorder %v5682, 1200
        %vm5763 = vcmp.lt.s32.totalorder %v5683, 1200
        %vm5764 = vcmp.lt.s32.totalorder %v5684, 1200
        %vm5765 = vcmp.lt.s32.totalorder %v5685, 1200
        %vm5766 = vcmp.lt.s32.totalorder %v5686, 1200
        %vm5767 = vcmp.lt.s32.totalorder %v5687, 1200
        %vm5768 = vcmp.lt.s32.totalorder %v5688, 1200
        %vm5769 = vcmp.lt.s32.totalorder %v5689, 1200
        %vm5770 = vcmp.lt.s32.totalorder %v5690, 1200
        %vm5771 = vcmp.lt.s32.totalorder %v5691, 1200
        %vm5772 = vcmp.lt.s32.totalorder %v5692, 1200
        %vm5773 = vcmp.lt.s32.totalorder %v5693, 1200
        %vm5774 = vcmp.lt.s32.totalorder %v5694, 1200
        %vm5775 = vcmp.lt.s32.totalorder %v5695, 1200
        %vm5776 = vcmp.lt.s32.totalorder %v5696, 1200
        %vm5777 = vcmp.lt.s32.totalorder %v5697, 1200
        %vm5778 = vcmp.lt.s32.totalorder %v5698, 1200
        %vm5779 = vcmp.lt.s32.totalorder %v5699, 1200
        %vm5780 = vcmp.lt.s32.totalorder %v5700, 1200
        %vm5781 = vcmp.lt.s32.totalorder %v5701, 1200
        %vm5782 = vcmp.lt.s32.totalorder %v5702, 1200
        %vm5783 = vcmp.lt.s32.totalorder %v5703, 1200
        %vm5784 = vcmp.lt.s32.totalorder %v5704, 1200
        %vm5785 = vcmp.lt.s32.totalorder %v5705, 1200
        %vm5786 = vcmp.lt.s32.totalorder %v5706, 1200
        %vm5787 = vcmp.lt.s32.totalorder %v5707, 1200
        %vm5788 = vcmp.lt.s32.totalorder %v5708, 1200
        %vm5789 = vcmp.lt.s32.totalorder %v5709, 1200
        %vm5790 = vcmp.lt.s32.totalorder %v5710, 1200
        %vm5791 = vcmp.lt.s32.totalorder %v5711, 1200
        %vm5792 = vcmp.lt.s32.totalorder %v5712, 1200
        %vm5793 = vcmp.lt.s32.totalorder %v5713, 1200
        %vm5794 = vcmp.lt.s32.totalorder %v5714, 1200
        %vm5795 = vcmp.lt.s32.totalorder %v5715, 1200
        %vm5796 = vcmp.lt.s32.totalorder %v5716, 1200
        %vm5797 = vcmp.lt.s32.totalorder %v5717, 1200
        %vm5798 = vcmp.lt.s32.totalorder %v5718, 1200
        %vm5799 = vcmp.lt.s32.totalorder %v5719, 1200
        %vm5800 = vcmp.lt.s32.totalorder %v5720, 1200
        %vm5801 = vcmp.lt.s32.totalorder %v5721, 1200
        %vm5802 = vcmp.lt.s32.totalorder %v5722, 1200
        %vm5803 = vcmp.lt.s32.totalorder %v5723, 1200
        %vm5804 = vcmp.lt.s32.totalorder %v5724, 1200
        %vm5805 = vcmp.lt.s32.totalorder %v5725, 1200
        %vm5806 = vcmp.lt.s32.totalorder %v5726, 1200
        %v5807 = vsel %vm5727, %v5484, 0.0
        %v5808 = vsel %vm5728, %v5485, 0.0
        %v5809 = vsel %vm5729, %v5486, 0.0
        %v5810 = vsel %vm5730, %v5487, 0.0
        %v5811 = vsel %vm5731, %v5488, 0.0
        %v5812 = vsel %vm5732, %v5489, 0.0
        %v5813 = vsel %vm5733, %v5490, 0.0
        %v5814 = vsel %vm5734, %v5491, 0.0
        %v5815 = vsel %vm5735, %v5492, 0.0
        %v5816 = vsel %vm5736, %v5493, 0.0
        %v5817 = vsel %vm5737, %v5494, 0.0
        %v5818 = vsel %vm5738, %v5495, 0.0
        %v5819 = vsel %vm5739, %v5496, 0.0
        %v5820 = vsel %vm5740, %v5497, 0.0
        %v5821 = vsel %vm5741, %v5498, 0.0
        %v5822 = vsel %vm5742, %v5499, 0.0
        %v5823 = vsel %vm5743, %v5500, 0.0
        %v5824 = vsel %vm5744, %v5501, 0.0
        %v5825 = vsel %vm5745, %v5502, 0.0
        %v5826 = vsel %vm5746, %v5503, 0.0
        %v5827 = vsel %vm5747, %v5504, 0.0
        %v5828 = vsel %vm5748, %v5505, 0.0
        %v5829 = vsel %vm5749, %v5506, 0.0
        %v5830 = vsel %vm5750, %v5507, 0.0
        %v5831 = vsel %vm5751, %v5508, 0.0
        %v5832 = vsel %vm5752, %v5509, 0.0
        %v5833 = vsel %vm5753, %v5510, 0.0
        %v5834 = vsel %vm5754, %v5511, 0.0
        %v5835 = vsel %vm5755, %v5512, 0.0
        %v5836 = vsel %vm5756, %v5513, 0.0
        %v5837 = vsel %vm5757, %v5514, 0.0
        %v5838 = vsel %vm5758, %v5515, 0.0
        %v5839 = vsel %vm5759, %v5516, 0.0
        %v5840 = vsel %vm5760, %v5517, 0.0
        %v5841 = vsel %vm5761, %v5518, 0.0
        %v5842 = vsel %vm5762, %v5519, 0.0
        %v5843 = vsel %vm5763, %v5520, 0.0
        %v5844 = vsel %vm5764, %v5521, 0.0
        %v5845 = vsel %vm5765, %v5522, 0.0
        %v5846 = vsel %vm5766, %v5523, 0.0
        %v5847 = vsel %vm5767, %v5524, 0.0
        %v5848 = vsel %vm5768, %v5525, 0.0
        %v5849 = vsel %vm5769, %v5526, 0.0
        %v5850 = vsel %vm5770, %v5527, 0.0
        %v5851 = vsel %vm5771, %v5528, 0.0
        %v5852 = vsel %vm5772, %v5529, 0.0
        %v5853 = vsel %vm5773, %v5530, 0.0
        %v5854 = vsel %vm5774, %v5531, 0.0
        %v5855 = vsel %vm5775, %v5532, 0.0
        %v5856 = vsel %vm5776, %v5533, 0.0
        %v5857 = vsel %vm5777, %v5534, 0.0
        %v5858 = vsel %vm5778, %v5535, 0.0
        %v5859 = vsel %vm5779, %v5536, 0.0
        %v5860 = vsel %vm5780, %v5537, 0.0
        %v5861 = vsel %vm5781, %v5538, 0.0
        %v5862 = vsel %vm5782, %v5539, 0.0
        %v5863 = vsel %vm5783, %v5540, 0.0
        %v5864 = vsel %vm5784, %v5541, 0.0
        %v5865 = vsel %vm5785, %v5542, 0.0
        %v5866 = vsel %vm5786, %v5543, 0.0
        %v5867 = vsel %vm5787, %v5544, 0.0
        %v5868 = vsel %vm5788, %v5545, 0.0
        %v5869 = vsel %vm5789, %v5546, 0.0
        %v5870 = vsel %vm5790, %v5547, 0.0
        %v5871 = vsel %vm5791, %v5548, 0.0
        %v5872 = vsel %vm5792, %v5549, 0.0
        %v5873 = vsel %vm5793, %v5550, 0.0
        %v5874 = vsel %vm5794, %v5551, 0.0
        %v5875 = vsel %vm5795, %v5552, 0.0
        %v5876 = vsel %vm5796, %v5553, 0.0
        %v5877 = vsel %vm5797, %v5554, 0.0
        %v5878 = vsel %vm5798, %v5555, 0.0
        %v5879 = vsel %vm5799, %v5556, 0.0
        %v5880 = vsel %vm5800, %v5557, 0.0
        %v5881 = vsel %vm5801, %v5558, 0.0
        %v5882 = vsel %vm5802, %v5559, 0.0
        %v5883 = vsel %vm5803, %v5560, 0.0
        %v5884 = vsel %vm5804, %v5561, 0.0
        %v5885 = vsel %vm5805, %v5562, 0.0
        %v5886 = vsel %vm5806, %v5563, 0.0
        %v5887 = vadd.f32 %v5807, %v5808
        %v5888 = vadd.f32 %v5887, %v5809
        %v5889 = vadd.f32 %v5888, %v5810
        %v5890 = vadd.f32 %v5889, %v5811
        %v5891 = vadd.f32 %v5890, %v5812
        %v5892 = vadd.f32 %v5891, %v5813
        %v5893 = vadd.f32 %v5892, %v5814
        %v5894 = vadd.f32 %v5893, %v5815
        %v5895 = vadd.f32 %v5894, %v5816
        %v5896 = vadd.f32 %v5895, %v5817
        %v5897 = vadd.f32 %v5896, %v5818
        %v5898 = vadd.f32 %v5897, %v5819
        %v5899 = vadd.f32 %v5898, %v5820
        %v5900 = vadd.f32 %v5899, %v5821
        %v5901 = vadd.f32 %v5900, %v5822
        %v5902 = vadd.f32 %v5901, %v5823
        %v5903 = vadd.f32 %v5902, %v5824
        %v5904 = vadd.f32 %v5903, %v5825
        %v5905 = vadd.f32 %v5904, %v5826
        %v5906 = vadd.f32 %v5905, %v5827
        %v5907 = vadd.f32 %v5906, %v5828
        %v5908 = vadd.f32 %v5907, %v5829
        %v5909 = vadd.f32 %v5908, %v5830
        %v5910 = vadd.f32 %v5909, %v5831
        %v5911 = vadd.f32 %v5910, %v5832
        %v5912 = vadd.f32 %v5911, %v5833
        %v5913 = vadd.f32 %v5912, %v5834
        %v5914 = vadd.f32 %v5913, %v5835
        %v5915 = vadd.f32 %v5914, %v5836
        %v5916 = vadd.f32 %v5915, %v5837
        %v5917 = vadd.f32 %v5916, %v5838
        %v5918 = vadd.f32 %v5917, %v5839
        %v5919 = vadd.f32 %v5918, %v5840
        %v5920 = vadd.f32 %v5919, %v5841
        %v5921 = vadd.f32 %v5920, %v5842
        %v5922 = vadd.f32 %v5921, %v5843
        %v5923 = vadd.f32 %v5922, %v5844
        %v5924 = vadd.f32 %v5923, %v5845
        %v5925 = vadd.f32 %v5924, %v5846
        %v5926 = vadd.f32 %v5925, %v5847
        %v5927 = vadd.f32 %v5926, %v5848
        %v5928 = vadd.f32 %v5927, %v5849
        %v5929 = vadd.f32 %v5928, %v5850
        %v5930 = vadd.f32 %v5929, %v5851
        %v5931 = vadd.f32 %v5930, %v5852
        %v5932 = vadd.f32 %v5931, %v5853
        %v5933 = vadd.f32 %v5932, %v5854
        %v5934 = vadd.f32 %v5933, %v5855
        %v5935 = vadd.f32 %v5934, %v5856
        %v5936 = vadd.f32 %v5935, %v5857
        %v5937 = vadd.f32 %v5936, %v5858
        %v5938 = vadd.f32 %v5937, %v5859
        %v5939 = vadd.f32 %v5938, %v5860
        %v5940 = vadd.f32 %v5939, %v5861
        %v5941 = vadd.f32 %v5940, %v5862
        %v5942 = vadd.f32 %v5941, %v5863
        %v5943 = vadd.f32 %v5942, %v5864
        %v5944 = vadd.f32 %v5943, %v5865
        %v5945 = vadd.f32 %v5944, %v5866
        %v5946 = vadd.f32 %v5945, %v5867
        %v5947 = vadd.f32 %v5946, %v5868
        %v5948 = vadd.f32 %v5947, %v5869
        %v5949 = vadd.f32 %v5948, %v5870
        %v5950 = vadd.f32 %v5949, %v5871
        %v5951 = vadd.f32 %v5950, %v5872
        %v5952 = vadd.f32 %v5951, %v5873
        %v5953 = vadd.f32 %v5952, %v5874
        %v5954 = vadd.f32 %v5953, %v5875
        %v5955 = vadd.f32 %v5954, %v5876
        %v5956 = vadd.f32 %v5955, %v5877
        %v5957 = vadd.f32 %v5956, %v5878
        %v5958 = vadd.f32 %v5957, %v5879
        %v5959 = vadd.f32 %v5958, %v5880
        %v5960 = vadd.f32 %v5959, %v5881
        %v5961 = vadd.f32 %v5960, %v5882
        %v5962 = vadd.f32 %v5961, %v5883
        %v5963 = vadd.f32 %v5962, %v5884
        %v5964 = vadd.f32 %v5963, %v5885
        %v5965 = vadd.f32 %v5964, %v5886
        %v5966 = vrot.slane %v5965, 4
        %v5967 = vadd.f32 %v5965, %v5966
        %v5968 = vrot.slane %v5967, 2
        %v5969 = vadd.f32 %v5967, %v5968
        %v5970 = vrot.slane %v5969, 1
        %v5971 = vadd.f32 %v5969, %v5970
        %vm5972 = vcmask 0
        %5973 = vst.msk [vmem:[%s273] sm:$0x1] %vm5972, %v5971
        %v5974 = vrsqrt.pop %v4446
        %v5975 = vrsqrt.pop %v4449
        %v5976 = vrsqrt.pop %v4452
        %v5977 = vrsqrt.pop %v4455
        %v5978 = vrsqrt.pop %v4458
        %v5979 = vrsqrt.pop %v4461
        %v5980 = vrsqrt.pop %v4464
        %v5981 = vrsqrt.pop %v4467
        %v5982 = vrsqrt.pop %v4470
        %v5983 = vrsqrt.pop %v4473
        %v5984 = vrsqrt.pop %v4476
        %v5985 = vrsqrt.pop %v4479
        %v5986 = vrsqrt.pop %v4482
        %v5987 = vrsqrt.pop %v4485
        %v5988 = vrsqrt.pop %v4488
        %v5989 = vrsqrt.pop %v4491
        %v5990 = vrsqrt.pop %v4494
        %v5991 = vrsqrt.pop %v4497
        %v5992 = vrsqrt.pop %v4500
        %v5993 = vrsqrt.pop %v4503
        %v5994 = vrsqrt.pop %v4506
        %v5995 = vrsqrt.pop %v4509
        %v5996 = vrsqrt.pop %v4512
        %v5997 = vrsqrt.pop %v4515
        %v5998 = vrsqrt.pop %v4518
        %v5999 = vrsqrt.pop %v4521
        %v6000 = vrsqrt.pop %v4524
        %v6001 = vrsqrt.pop %v4527
        %v6002 = vrsqrt.pop %v4530
        %v6003 = vrsqrt.pop %v4533
        %v6004 = vrsqrt.pop %v4536
        %v6005 = vrsqrt.pop %v4539
        %v6006 = vrsqrt.pop %v4542
        %v6007 = vrsqrt.pop %v4545
        %v6008 = vrsqrt.pop %v4548
        %v6009 = vrsqrt.pop %v4551
        %v6010 = vrsqrt.pop %v4554
        %v6011 = vrsqrt.pop %v4557
        %v6012 = vrsqrt.pop %v4560
        %v6013 = vrsqrt.pop %v4563
        %v6014 = vrsqrt.pop %v4566
        %v6015 = vrsqrt.pop %v4569
        %v6016 = vrsqrt.pop %v4572
        %v6017 = vrsqrt.pop %v4575
        %v6018 = vrsqrt.pop %v4578
        %v6019 = vrsqrt.pop %v4581
        %v6020 = vrsqrt.pop %v4584
        %v6021 = vrsqrt.pop %v4587
        %v6022 = vrsqrt.pop %v4590
        %v6023 = vrsqrt.pop %v4593
        %v6024 = vrsqrt.pop %v4596
        %v6025 = vrsqrt.pop %v4599
        %v6026 = vrsqrt.pop %v4602
        %v6027 = vrsqrt.pop %v4605
        %v6028 = vrsqrt.pop %v4608
        %v6029 = vrsqrt.pop %v4611
        %v6030 = vrsqrt.pop %v4614
        %v6031 = vrsqrt.pop %v4617
        %v6032 = vrsqrt.pop %v4620
        %v6033 = vrsqrt.pop %v4623
        %v6034 = vrsqrt.pop %v4626
        %v6035 = vrsqrt.pop %v4629
        %v6036 = vrsqrt.pop %v4632
        %v6037 = vrsqrt.pop %v4635
        %v6038 = vrsqrt.pop %v4638
        %v6039 = vrsqrt.pop %v4641
        %v6040 = vrsqrt.pop %v4644
        %v6041 = vrsqrt.pop %v4647
        %v6042 = vrsqrt.pop %v4650
        %v6043 = vrsqrt.pop %v4653
        %v6044 = vrsqrt.pop %v4656
        %v6045 = vrsqrt.pop %v4659
        %v6046 = vrsqrt.pop %v4662
        %v6047 = vrsqrt.pop %v4665
        %v6048 = vrsqrt.pop %v4668
        %v6049 = vrsqrt.pop %v4671
        %v6050 = vrsqrt.pop %v4674
        %v6051 = vrsqrt.pop %v4677
        %v6052 = vrsqrt.pop %v4680
        %v6053 = vrsqrt.pop %v4683
        %v6054 = vmin.f32 %v5974, 1000000.0
        %v6055 = vmin.f32 %v5975, 1000000.0
        %v6056 = vmin.f32 %v5976, 1000000.0
        %v6057 = vmin.f32 %v5977, 1000000.0
        %v6058 = vmin.f32 %v5978, 1000000.0
        %v6059 = vmin.f32 %v5979, 1000000.0
        %v6060 = vmin.f32 %v5980, 1000000.0
        %v6061 = vmin.f32 %v5981, 1000000.0
        %v6062 = vmin.f32 %v5982, 1000000.0
        %v6063 = vmin.f32 %v5983, 1000000.0
        %v6064 = vmin.f32 %v5984, 1000000.0
        %v6065 = vmin.f32 %v5985, 1000000.0
        %v6066 = vmin.f32 %v5986, 1000000.0
        %v6067 = vmin.f32 %v5987, 1000000.0
        %v6068 = vmin.f32 %v5988, 1000000.0
        %v6069 = vmin.f32 %v5989, 1000000.0
        %v6070 = vmin.f32 %v5990, 1000000.0
        %v6071 = vmin.f32 %v5991, 1000000.0
        %v6072 = vmin.f32 %v5992, 1000000.0
        %v6073 = vmin.f32 %v5993, 1000000.0
        %v6074 = vmin.f32 %v5994, 1000000.0
        %v6075 = vmin.f32 %v5995, 1000000.0
        %v6076 = vmin.f32 %v5996, 1000000.0
        %v6077 = vmin.f32 %v5997, 1000000.0
        %v6078 = vmin.f32 %v5998, 1000000.0
        %v6079 = vmin.f32 %v5999, 1000000.0
        %v6080 = vmin.f32 %v6000, 1000000.0
        %v6081 = vmin.f32 %v6001, 1000000.0
        %v6082 = vmin.f32 %v6002, 1000000.0
        %v6083 = vmin.f32 %v6003, 1000000.0
        %v6084 = vmin.f32 %v6004, 1000000.0
        %v6085 = vmin.f32 %v6005, 1000000.0
        %v6086 = vmin.f32 %v6006, 1000000.0
        %v6087 = vmin.f32 %v6007, 1000000.0
        %v6088 = vmin.f32 %v6008, 1000000.0
        %v6089 = vmin.f32 %v6009, 1000000.0
        %v6090 = vmin.f32 %v6010, 1000000.0
        %v6091 = vmin.f32 %v6011, 1000000.0
        %v6092 = vmin.f32 %v6012, 1000000.0
        %v6093 = vmin.f32 %v6013, 1000000.0
        %v6094 = vmin.f32 %v6014, 1000000.0
        %v6095 = vmin.f32 %v6015, 1000000.0
        %v6096 = vmin.f32 %v6016, 1000000.0
        %v6097 = vmin.f32 %v6017, 1000000.0
        %v6098 = vmin.f32 %v6018, 1000000.0
        %v6099 = vmin.f32 %v6019, 1000000.0
        %v6100 = vmin.f32 %v6020, 1000000.0
        %v6101 = vmin.f32 %v6021, 1000000.0
        %v6102 = vmin.f32 %v6022, 1000000.0
        %v6103 = vmin.f32 %v6023, 1000000.0
        %v6104 = vmin.f32 %v6024, 1000000.0
        %v6105 = vmin.f32 %v6025, 1000000.0
        %v6106 = vmin.f32 %v6026, 1000000.0
        %v6107 = vmin.f32 %v6027, 1000000.0
        %v6108 = vmin.f32 %v6028, 1000000.0
        %v6109 = vmin.f32 %v6029, 1000000.0
        %v6110 = vmin.f32 %v6030, 1000000.0
        %v6111 = vmin.f32 %v6031, 1000000.0
        %v6112 = vmin.f32 %v6032, 1000000.0
        %v6113 = vmin.f32 %v6033, 1000000.0
        %v6114 = vmin.f32 %v6034, 1000000.0
        %v6115 = vmin.f32 %v6035, 1000000.0
        %v6116 = vmin.f32 %v6036, 1000000.0
        %v6117 = vmin.f32 %v6037, 1000000.0
        %v6118 = vmin.f32 %v6038, 1000000.0
        %v6119 = vmin.f32 %v6039, 1000000.0
        %v6120 = vmin.f32 %v6040, 1000000.0
        %v6121 = vmin.f32 %v6041, 1000000.0
        %v6122 = vmin.f32 %v6042, 1000000.0
        %v6123 = vmin.f32 %v6043, 1000000.0
        %v6124 = vmin.f32 %v6044, 1000000.0
        %v6125 = vmin.f32 %v6045, 1000000.0
        %v6126 = vmin.f32 %v6046, 1000000.0
        %v6127 = vmin.f32 %v6047, 1000000.0
        %v6128 = vmin.f32 %v6048, 1000000.0
        %v6129 = vmin.f32 %v6049, 1000000.0
        %v6130 = vmin.f32 %v6050, 1000000.0
        %v6131 = vmin.f32 %v6051, 1000000.0
        %v6132 = vmin.f32 %v6052, 1000000.0
        %v6133 = vmin.f32 %v6053, 1000000.0
        %v6134 = vrsqrt.pop %v4766
        %v6135 = vrsqrt.pop %v4769
        %v6136 = vrsqrt.pop %v4772
        %v6137 = vrsqrt.pop %v4775
        %v6138 = vrsqrt.pop %v4778
        %v6139 = vrsqrt.pop %v4781
        %v6140 = vrsqrt.pop %v4784
        %v6141 = vrsqrt.pop %v4787
        %v6142 = vrsqrt.pop %v4790
        %v6143 = vrsqrt.pop %v4793
        %v6144 = vrsqrt.pop %v4796
        %v6145 = vrsqrt.pop %v4799
        %v6146 = vrsqrt.pop %v4802
        %v6147 = vrsqrt.pop %v4805
        %v6148 = vrsqrt.pop %v4808
        %v6149 = vrsqrt.pop %v4811
        %v6150 = vrsqrt.pop %v4814
        %v6151 = vrsqrt.pop %v4817
        %v6152 = vrsqrt.pop %v4820
        %v6153 = vrsqrt.pop %v4823
        %v6154 = vrsqrt.pop %v4826
        %v6155 = vrsqrt.pop %v4829
        %v6156 = vrsqrt.pop %v4832
        %v6157 = vrsqrt.pop %v4835
        %v6158 = vrsqrt.pop %v4838
        %v6159 = vrsqrt.pop %v4841
        %v6160 = vrsqrt.pop %v4844
        %v6161 = vrsqrt.pop %v4847
        %v6162 = vrsqrt.pop %v4850
        %v6163 = vrsqrt.pop %v4853
        %v6164 = vrsqrt.pop %v4856
        %v6165 = vrsqrt.pop %v4859
        %v6166 = vrsqrt.pop %v4862
        %v6167 = vrsqrt.pop %v4865
        %v6168 = vrsqrt.pop %v4868
        %v6169 = vrsqrt.pop %v4871
        %v6170 = vrsqrt.pop %v4874
        %v6171 = vrsqrt.pop %v4877
        %v6172 = vrsqrt.pop %v4880
        %v6173 = vrsqrt.pop %v4883
        %v6174 = vrsqrt.pop %v4886
        %v6175 = vrsqrt.pop %v4889
        %v6176 = vrsqrt.pop %v4892
        %v6177 = vrsqrt.pop %v4895
        %v6178 = vrsqrt.pop %v4898
        %v6179 = vrsqrt.pop %v4901
        %v6180 = vrsqrt.pop %v4904
        %v6181 = vrsqrt.pop %v4907
        %v6182 = vrsqrt.pop %v4910
        %v6183 = vrsqrt.pop %v4913
        %v6184 = vrsqrt.pop %v4916
        %v6185 = vrsqrt.pop %v4919
        %v6186 = vrsqrt.pop %v4922
        %v6187 = vrsqrt.pop %v4925
        %v6188 = vrsqrt.pop %v4928
        %v6189 = vrsqrt.pop %v4931
        %v6190 = vrsqrt.pop %v4934
        %v6191 = vrsqrt.pop %v4937
        %v6192 = vrsqrt.pop %v4940
        %v6193 = vrsqrt.pop %v4943
        %v6194 = vrsqrt.pop %v4946
        %v6195 = vrsqrt.pop %v4949
        %v6196 = vrsqrt.pop %v4952
        %v6197 = vrsqrt.pop %v4955
        %v6198 = vrsqrt.pop %v4958
        %v6199 = vrsqrt.pop %v4961
        %v6200 = vrsqrt.pop %v4964
        %v6201 = vrsqrt.pop %v4967
        %v6202 = vrsqrt.pop %v4970
        %v6203 = vrsqrt.pop %v4973
        %v6204 = vrsqrt.pop %v4976
        %v6205 = vrsqrt.pop %v4979
        %v6206 = vrsqrt.pop %v4982
        %v6207 = vrsqrt.pop %v4985
        %v6208 = vrsqrt.pop %v4988
        %v6209 = vrsqrt.pop %v4991
        %v6210 = vrsqrt.pop %v4994
        %v6211 = vrsqrt.pop %v4997
        %v6212 = vrsqrt.pop %v5000
        %v6213 = vrsqrt.pop %v5003
        %v6214 = vmin.f32 %v6134, 1000000.0
        %v6215 = vmin.f32 %v6135, 1000000.0
        %v6216 = vmin.f32 %v6136, 1000000.0
        %v6217 = vmin.f32 %v6137, 1000000.0
        %v6218 = vmin.f32 %v6138, 1000000.0
        %v6219 = vmin.f32 %v6139, 1000000.0
        %v6220 = vmin.f32 %v6140, 1000000.0
        %v6221 = vmin.f32 %v6141, 1000000.0
        %v6222 = vmin.f32 %v6142, 1000000.0
        %v6223 = vmin.f32 %v6143, 1000000.0
        %v6224 = vmin.f32 %v6144, 1000000.0
        %v6225 = vmin.f32 %v6145, 1000000.0
        %v6226 = vmin.f32 %v6146, 1000000.0
        %v6227 = vmin.f32 %v6147, 1000000.0
        %v6228 = vmin.f32 %v6148, 1000000.0
        %v6229 = vmin.f32 %v6149, 1000000.0
        %v6230 = vmin.f32 %v6150, 1000000.0
        %v6231 = vmin.f32 %v6151, 1000000.0
        %v6232 = vmin.f32 %v6152, 1000000.0
        %v6233 = vmin.f32 %v6153, 1000000.0
        %v6234 = vmin.f32 %v6154, 1000000.0
        %v6235 = vmin.f32 %v6155, 1000000.0
        %v6236 = vmin.f32 %v6156, 1000000.0
        %v6237 = vmin.f32 %v6157, 1000000.0
        %v6238 = vmin.f32 %v6158, 1000000.0
        %v6239 = vmin.f32 %v6159, 1000000.0
        %v6240 = vmin.f32 %v6160, 1000000.0
        %v6241 = vmin.f32 %v6161, 1000000.0
        %v6242 = vmin.f32 %v6162, 1000000.0
        %v6243 = vmin.f32 %v6163, 1000000.0
        %v6244 = vmin.f32 %v6164, 1000000.0
        %v6245 = vmin.f32 %v6165, 1000000.0
        %v6246 = vmin.f32 %v6166, 1000000.0
        %v6247 = vmin.f32 %v6167, 1000000.0
        %v6248 = vmin.f32 %v6168, 1000000.0
        %v6249 = vmin.f32 %v6169, 1000000.0
        %v6250 = vmin.f32 %v6170, 1000000.0
        %v6251 = vmin.f32 %v6171, 1000000.0
        %v6252 = vmin.f32 %v6172, 1000000.0
        %v6253 = vmin.f32 %v6173, 1000000.0
        %v6254 = vmin.f32 %v6174, 1000000.0
        %v6255 = vmin.f32 %v6175, 1000000.0
        %v6256 = vmin.f32 %v6176, 1000000.0
        %v6257 = vmin.f32 %v6177, 1000000.0
        %v6258 = vmin.f32 %v6178, 1000000.0
        %v6259 = vmin.f32 %v6179, 1000000.0
        %v6260 = vmin.f32 %v6180, 1000000.0
        %v6261 = vmin.f32 %v6181, 1000000.0
        %v6262 = vmin.f32 %v6182, 1000000.0
        %v6263 = vmin.f32 %v6183, 1000000.0
        %v6264 = vmin.f32 %v6184, 1000000.0
        %v6265 = vmin.f32 %v6185, 1000000.0
        %v6266 = vmin.f32 %v6186, 1000000.0
        %v6267 = vmin.f32 %v6187, 1000000.0
        %v6268 = vmin.f32 %v6188, 1000000.0
        %v6269 = vmin.f32 %v6189, 1000000.0
        %v6270 = vmin.f32 %v6190, 1000000.0
        %v6271 = vmin.f32 %v6191, 1000000.0
        %v6272 = vmin.f32 %v6192, 1000000.0
        %v6273 = vmin.f32 %v6193, 1000000.0
        %v6274 = vmin.f32 %v6194, 1000000.0
        %v6275 = vmin.f32 %v6195, 1000000.0
        %v6276 = vmin.f32 %v6196, 1000000.0
        %v6277 = vmin.f32 %v6197, 1000000.0
        %v6278 = vmin.f32 %v6198, 1000000.0
        %v6279 = vmin.f32 %v6199, 1000000.0
        %v6280 = vmin.f32 %v6200, 1000000.0
        %v6281 = vmin.f32 %v6201, 1000000.0
        %v6282 = vmin.f32 %v6202, 1000000.0
        %v6283 = vmin.f32 %v6203, 1000000.0
        %v6284 = vmin.f32 %v6204, 1000000.0
        %v6285 = vmin.f32 %v6205, 1000000.0
        %v6286 = vmin.f32 %v6206, 1000000.0
        %v6287 = vmin.f32 %v6207, 1000000.0
        %v6288 = vmin.f32 %v6208, 1000000.0
        %v6289 = vmin.f32 %v6209, 1000000.0
        %v6290 = vmin.f32 %v6210, 1000000.0
        %v6291 = vmin.f32 %v6211, 1000000.0
        %v6292 = vmin.f32 %v6212, 1000000.0
        %v6293 = vmin.f32 %v6213, 1000000.0
        %v6294 = vmul.f32 %v4446, %v6054
        %v6295 = vmul.f32 %v4449, %v6055
        %v6296 = vmul.f32 %v4452, %v6056
        %v6297 = vmul.f32 %v4455, %v6057
        %v6298 = vmul.f32 %v4458, %v6058
        %v6299 = vmul.f32 %v4461, %v6059
        %v6300 = vmul.f32 %v4464, %v6060
        %v6301 = vmul.f32 %v4467, %v6061
        %v6302 = vmul.f32 %v4470, %v6062
        %v6303 = vmul.f32 %v4473, %v6063
        %v6304 = vmul.f32 %v4476, %v6064
        %v6305 = vmul.f32 %v4479, %v6065
        %v6306 = vmul.f32 %v4482, %v6066
        %v6307 = vmul.f32 %v4485, %v6067
        %v6308 = vmul.f32 %v4488, %v6068
        %v6309 = vmul.f32 %v4491, %v6069
        %v6310 = vmul.f32 %v4494, %v6070
        %v6311 = vmul.f32 %v4497, %v6071
        %v6312 = vmul.f32 %v4500, %v6072
        %v6313 = vmul.f32 %v4503, %v6073
        %v6314 = vmul.f32 %v4506, %v6074
        %v6315 = vmul.f32 %v4509, %v6075
        %v6316 = vmul.f32 %v4512, %v6076
        %v6317 = vmul.f32 %v4515, %v6077
        %v6318 = vmul.f32 %v4518, %v6078
        %v6319 = vmul.f32 %v4521, %v6079
        %v6320 = vmul.f32 %v4524, %v6080
        %v6321 = vmul.f32 %v4527, %v6081
        %v6322 = vmul.f32 %v4530, %v6082
        %v6323 = vmul.f32 %v4533, %v6083
        %v6324 = vmul.f32 %v4536, %v6084
        %v6325 = vmul.f32 %v4539, %v6085
        %v6326 = vmul.f32 %v4542, %v6086
        %v6327 = vmul.f32 %v4545, %v6087
        %v6328 = vmul.f32 %v4548, %v6088
        %v6329 = vmul.f32 %v4551, %v6089
        %v6330 = vmul.f32 %v4554, %v6090
        %v6331 = vmul.f32 %v4557, %v6091
        %v6332 = vmul.f32 %v4560, %v6092
        %v6333 = vmul.f32 %v4563, %v6093
        %v6334 = vmul.f32 %v4566, %v6094
        %v6335 = vmul.f32 %v4569, %v6095
        %v6336 = vmul.f32 %v4572, %v6096
        %v6337 = vmul.f32 %v4575, %v6097
        %v6338 = vmul.f32 %v4578, %v6098
        %v6339 = vmul.f32 %v4581, %v6099
        %v6340 = vmul.f32 %v4584, %v6100
        %v6341 = vmul.f32 %v4587, %v6101
        %v6342 = vmul.f32 %v4590, %v6102
        %v6343 = vmul.f32 %v4593, %v6103
        %v6344 = vmul.f32 %v4596, %v6104
        %v6345 = vmul.f32 %v4599, %v6105
        %v6346 = vmul.f32 %v4602, %v6106
        %v6347 = vmul.f32 %v4605, %v6107
        %v6348 = vmul.f32 %v4608, %v6108
        %v6349 = vmul.f32 %v4611, %v6109
        %v6350 = vmul.f32 %v4614, %v6110
        %v6351 = vmul.f32 %v4617, %v6111
        %v6352 = vmul.f32 %v4620, %v6112
        %v6353 = vmul.f32 %v4623, %v6113
        %v6354 = vmul.f32 %v4626, %v6114
        %v6355 = vmul.f32 %v4629, %v6115
        %v6356 = vmul.f32 %v4632, %v6116
        %v6357 = vmul.f32 %v4635, %v6117
        %v6358 = vmul.f32 %v4638, %v6118
        %v6359 = vmul.f32 %v4641, %v6119
        %v6360 = vmul.f32 %v4644, %v6120
        %v6361 = vmul.f32 %v4647, %v6121
        %v6362 = vmul.f32 %v4650, %v6122
        %v6363 = vmul.f32 %v4653, %v6123
        %v6364 = vmul.f32 %v4656, %v6124
        %v6365 = vmul.f32 %v4659, %v6125
        %v6366 = vmul.f32 %v4662, %v6126
        %v6367 = vmul.f32 %v4665, %v6127
        %v6368 = vmul.f32 %v4668, %v6128
        %v6369 = vmul.f32 %v4671, %v6129
        %v6370 = vmul.f32 %v4674, %v6130
        %v6371 = vmul.f32 %v4677, %v6131
        %v6372 = vmul.f32 %v4680, %v6132
        %v6373 = vmul.f32 %v4683, %v6133
        %v6374 = vmul.f32 %v6294, %v6054
        %v6375 = vmul.f32 %v6295, %v6055
        %v6376 = vmul.f32 %v6296, %v6056
        %v6377 = vmul.f32 %v6297, %v6057
        %v6378 = vmul.f32 %v6298, %v6058
        %v6379 = vmul.f32 %v6299, %v6059
        %v6380 = vmul.f32 %v6300, %v6060
        %v6381 = vmul.f32 %v6301, %v6061
        %v6382 = vmul.f32 %v6302, %v6062
        %v6383 = vmul.f32 %v6303, %v6063
        %v6384 = vmul.f32 %v6304, %v6064
        %v6385 = vmul.f32 %v6305, %v6065
        %v6386 = vmul.f32 %v6306, %v6066
        %v6387 = vmul.f32 %v6307, %v6067
        %v6388 = vmul.f32 %v6308, %v6068
        %v6389 = vmul.f32 %v6309, %v6069
        %v6390 = vmul.f32 %v6310, %v6070
        %v6391 = vmul.f32 %v6311, %v6071
        %v6392 = vmul.f32 %v6312, %v6072
        %v6393 = vmul.f32 %v6313, %v6073
        %v6394 = vmul.f32 %v6314, %v6074
        %v6395 = vmul.f32 %v6315, %v6075
        %v6396 = vmul.f32 %v6316, %v6076
        %v6397 = vmul.f32 %v6317, %v6077
        %v6398 = vmul.f32 %v6318, %v6078
        %v6399 = vmul.f32 %v6319, %v6079
        %v6400 = vmul.f32 %v6320, %v6080
        %v6401 = vmul.f32 %v6321, %v6081
        %v6402 = vmul.f32 %v6322, %v6082
        %v6403 = vmul.f32 %v6323, %v6083
        %v6404 = vmul.f32 %v6324, %v6084
        %v6405 = vmul.f32 %v6325, %v6085
        %v6406 = vmul.f32 %v6326, %v6086
        %v6407 = vmul.f32 %v6327, %v6087
        %v6408 = vmul.f32 %v6328, %v6088
        %v6409 = vmul.f32 %v6329, %v6089
        %v6410 = vmul.f32 %v6330, %v6090
        %v6411 = vmul.f32 %v6331, %v6091
        %v6412 = vmul.f32 %v6332, %v6092
        %v6413 = vmul.f32 %v6333, %v6093
        %v6414 = vmul.f32 %v6334, %v6094
        %v6415 = vmul.f32 %v6335, %v6095
        %v6416 = vmul.f32 %v6336, %v6096
        %v6417 = vmul.f32 %v6337, %v6097
        %v6418 = vmul.f32 %v6338, %v6098
        %v6419 = vmul.f32 %v6339, %v6099
        %v6420 = vmul.f32 %v6340, %v6100
        %v6421 = vmul.f32 %v6341, %v6101
        %v6422 = vmul.f32 %v6342, %v6102
        %v6423 = vmul.f32 %v6343, %v6103
        %v6424 = vmul.f32 %v6344, %v6104
        %v6425 = vmul.f32 %v6345, %v6105
        %v6426 = vmul.f32 %v6346, %v6106
        %v6427 = vmul.f32 %v6347, %v6107
        %v6428 = vmul.f32 %v6348, %v6108
        %v6429 = vmul.f32 %v6349, %v6109
        %v6430 = vmul.f32 %v6350, %v6110
        %v6431 = vmul.f32 %v6351, %v6111
        %v6432 = vmul.f32 %v6352, %v6112
        %v6433 = vmul.f32 %v6353, %v6113
        %v6434 = vmul.f32 %v6354, %v6114
        %v6435 = vmul.f32 %v6355, %v6115
        %v6436 = vmul.f32 %v6356, %v6116
        %v6437 = vmul.f32 %v6357, %v6117
        %v6438 = vmul.f32 %v6358, %v6118
        %v6439 = vmul.f32 %v6359, %v6119
        %v6440 = vmul.f32 %v6360, %v6120
        %v6441 = vmul.f32 %v6361, %v6121
        %v6442 = vmul.f32 %v6362, %v6122
        %v6443 = vmul.f32 %v6363, %v6123
        %v6444 = vmul.f32 %v6364, %v6124
        %v6445 = vmul.f32 %v6365, %v6125
        %v6446 = vmul.f32 %v6366, %v6126
        %v6447 = vmul.f32 %v6367, %v6127
        %v6448 = vmul.f32 %v6368, %v6128
        %v6449 = vmul.f32 %v6369, %v6129
        %v6450 = vmul.f32 %v6370, %v6130
        %v6451 = vmul.f32 %v6371, %v6131
        %v6452 = vmul.f32 %v6372, %v6132
        %v6453 = vmul.f32 %v6373, %v6133
        %v6454 = vmul.f32 %v4766, %v6214
        %v6455 = vmul.f32 %v4769, %v6215
        %v6456 = vmul.f32 %v4772, %v6216
        %v6457 = vmul.f32 %v4775, %v6217
        %v6458 = vmul.f32 %v4778, %v6218
        %v6459 = vmul.f32 %v4781, %v6219
        %v6460 = vmul.f32 %v4784, %v6220
        %v6461 = vmul.f32 %v4787, %v6221
        %v6462 = vmul.f32 %v4790, %v6222
        %v6463 = vmul.f32 %v4793, %v6223
        %v6464 = vmul.f32 %v4796, %v6224
        %v6465 = vmul.f32 %v4799, %v6225
        %v6466 = vmul.f32 %v4802, %v6226
        %v6467 = vmul.f32 %v4805, %v6227
        %v6468 = vmul.f32 %v4808, %v6228
        %v6469 = vmul.f32 %v4811, %v6229
        %v6470 = vmul.f32 %v4814, %v6230
        %v6471 = vmul.f32 %v4817, %v6231
        %v6472 = vmul.f32 %v4820, %v6232
        %v6473 = vmul.f32 %v4823, %v6233
        %v6474 = vmul.f32 %v4826, %v6234
        %v6475 = vmul.f32 %v4829, %v6235
        %v6476 = vmul.f32 %v4832, %v6236
        %v6477 = vmul.f32 %v4835, %v6237
        %v6478 = vmul.f32 %v4838, %v6238
        %v6479 = vmul.f32 %v4841, %v6239
        %v6480 = vmul.f32 %v4844, %v6240
        %v6481 = vmul.f32 %v4847, %v6241
        %v6482 = vmul.f32 %v4850, %v6242
        %v6483 = vmul.f32 %v4853, %v6243
        %v6484 = vmul.f32 %v4856, %v6244
        %v6485 = vmul.f32 %v4859, %v6245
        %v6486 = vmul.f32 %v4862, %v6246
        %v6487 = vmul.f32 %v4865, %v6247
        %v6488 = vmul.f32 %v4868, %v6248
        %v6489 = vmul.f32 %v4871, %v6249
        %v6490 = vmul.f32 %v4874, %v6250
        %v6491 = vmul.f32 %v4877, %v6251
        %v6492 = vmul.f32 %v4880, %v6252
        %v6493 = vmul.f32 %v4883, %v6253
        %v6494 = vmul.f32 %v4886, %v6254
        %v6495 = vmul.f32 %v4889, %v6255
        %v6496 = vmul.f32 %v4892, %v6256
        %v6497 = vmul.f32 %v4895, %v6257
        %v6498 = vmul.f32 %v4898, %v6258
        %v6499 = vmul.f32 %v4901, %v6259
        %v6500 = vmul.f32 %v4904, %v6260
        %v6501 = vmul.f32 %v4907, %v6261
        %v6502 = vmul.f32 %v4910, %v6262
        %v6503 = vmul.f32 %v4913, %v6263
        %v6504 = vmul.f32 %v4916, %v6264
        %v6505 = vmul.f32 %v4919, %v6265
        %v6506 = vmul.f32 %v4922, %v6266
        %v6507 = vmul.f32 %v4925, %v6267
        %v6508 = vmul.f32 %v4928, %v6268
        %v6509 = vmul.f32 %v4931, %v6269
        %v6510 = vmul.f32 %v4934, %v6270
        %v6511 = vmul.f32 %v4937, %v6271
        %v6512 = vmul.f32 %v4940, %v6272
        %v6513 = vmul.f32 %v4943, %v6273
        %v6514 = vmul.f32 %v4946, %v6274
        %v6515 = vmul.f32 %v4949, %v6275
        %v6516 = vmul.f32 %v4952, %v6276
        %v6517 = vmul.f32 %v4955, %v6277
        %v6518 = vmul.f32 %v4958, %v6278
        %v6519 = vmul.f32 %v4961, %v6279
        %v6520 = vmul.f32 %v4964, %v6280
        %v6521 = vmul.f32 %v4967, %v6281
        %v6522 = vmul.f32 %v4970, %v6282
        %v6523 = vmul.f32 %v4973, %v6283
        %v6524 = vmul.f32 %v4976, %v6284
        %v6525 = vmul.f32 %v4979, %v6285
        %v6526 = vmul.f32 %v4982, %v6286
        %v6527 = vmul.f32 %v4985, %v6287
        %v6528 = vmul.f32 %v4988, %v6288
        %v6529 = vmul.f32 %v4991, %v6289
        %v6530 = vmul.f32 %v4994, %v6290
        %v6531 = vmul.f32 %v4997, %v6291
        %v6532 = vmul.f32 %v5000, %v6292
        %v6533 = vmul.f32 %v5003, %v6293
        %v6534 = vmul.f32 %v6454, %v6214
        %v6535 = vmul.f32 %v6455, %v6215
        %v6536 = vmul.f32 %v6456, %v6216
        %v6537 = vmul.f32 %v6457, %v6217
        %v6538 = vmul.f32 %v6458, %v6218
        %v6539 = vmul.f32 %v6459, %v6219
        %v6540 = vmul.f32 %v6460, %v6220
        %v6541 = vmul.f32 %v6461, %v6221
        %v6542 = vmul.f32 %v6462, %v6222
        %v6543 = vmul.f32 %v6463, %v6223
        %v6544 = vmul.f32 %v6464, %v6224
        %v6545 = vmul.f32 %v6465, %v6225
        %v6546 = vmul.f32 %v6466, %v6226
        %v6547 = vmul.f32 %v6467, %v6227
        %v6548 = vmul.f32 %v6468, %v6228
        %v6549 = vmul.f32 %v6469, %v6229
        %v6550 = vmul.f32 %v6470, %v6230
        %v6551 = vmul.f32 %v6471, %v6231
        %v6552 = vmul.f32 %v6472, %v6232
        %v6553 = vmul.f32 %v6473, %v6233
        %v6554 = vmul.f32 %v6474, %v6234
        %v6555 = vmul.f32 %v6475, %v6235
        %v6556 = vmul.f32 %v6476, %v6236
        %v6557 = vmul.f32 %v6477, %v6237
        %v6558 = vmul.f32 %v6478, %v6238
        %v6559 = vmul.f32 %v6479, %v6239
        %v6560 = vmul.f32 %v6480, %v6240
        %v6561 = vmul.f32 %v6481, %v6241
        %v6562 = vmul.f32 %v6482, %v6242
        %v6563 = vmul.f32 %v6483, %v6243
        %v6564 = vmul.f32 %v6484, %v6244
        %v6565 = vmul.f32 %v6485, %v6245
        %v6566 = vmul.f32 %v6486, %v6246
        %v6567 = vmul.f32 %v6487, %v6247
        %v6568 = vmul.f32 %v6488, %v6248
        %v6569 = vmul.f32 %v6489, %v6249
        %v6570 = vmul.f32 %v6490, %v6250
        %v6571 = vmul.f32 %v6491, %v6251
        %v6572 = vmul.f32 %v6492, %v6252
        %v6573 = vmul.f32 %v6493, %v6253
        %v6574 = vmul.f32 %v6494, %v6254
        %v6575 = vmul.f32 %v6495, %v6255
        %v6576 = vmul.f32 %v6496, %v6256
        %v6577 = vmul.f32 %v6497, %v6257
        %v6578 = vmul.f32 %v6498, %v6258
        %v6579 = vmul.f32 %v6499, %v6259
        %v6580 = vmul.f32 %v6500, %v6260
        %v6581 = vmul.f32 %v6501, %v6261
        %v6582 = vmul.f32 %v6502, %v6262
        %v6583 = vmul.f32 %v6503, %v6263
        %v6584 = vmul.f32 %v6504, %v6264
        %v6585 = vmul.f32 %v6505, %v6265
        %v6586 = vmul.f32 %v6506, %v6266
        %v6587 = vmul.f32 %v6507, %v6267
        %v6588 = vmul.f32 %v6508, %v6268
        %v6589 = vmul.f32 %v6509, %v6269
        %v6590 = vmul.f32 %v6510, %v6270
        %v6591 = vmul.f32 %v6511, %v6271
        %v6592 = vmul.f32 %v6512, %v6272
        %v6593 = vmul.f32 %v6513, %v6273
        %v6594 = vmul.f32 %v6514, %v6274
        %v6595 = vmul.f32 %v6515, %v6275
        %v6596 = vmul.f32 %v6516, %v6276
        %v6597 = vmul.f32 %v6517, %v6277
        %v6598 = vmul.f32 %v6518, %v6278
        %v6599 = vmul.f32 %v6519, %v6279
        %v6600 = vmul.f32 %v6520, %v6280
        %v6601 = vmul.f32 %v6521, %v6281
        %v6602 = vmul.f32 %v6522, %v6282
        %v6603 = vmul.f32 %v6523, %v6283
        %v6604 = vmul.f32 %v6524, %v6284
        %v6605 = vmul.f32 %v6525, %v6285
        %v6606 = vmul.f32 %v6526, %v6286
        %v6607 = vmul.f32 %v6527, %v6287
        %v6608 = vmul.f32 %v6528, %v6288
        %v6609 = vmul.f32 %v6529, %v6289
        %v6610 = vmul.f32 %v6530, %v6290
        %v6611 = vmul.f32 %v6531, %v6291
        %v6612 = vmul.f32 %v6532, %v6292
        %v6613 = vmul.f32 %v6533, %v6293
        %v6614 = vadd.f32 %v6374, %v6534
        %v6615 = vadd.f32 %v6375, %v6535
        %v6616 = vadd.f32 %v6376, %v6536
        %v6617 = vadd.f32 %v6377, %v6537
        %v6618 = vadd.f32 %v6378, %v6538
        %v6619 = vadd.f32 %v6379, %v6539
        %v6620 = vadd.f32 %v6380, %v6540
        %v6621 = vadd.f32 %v6381, %v6541
        %v6622 = vadd.f32 %v6382, %v6542
        %v6623 = vadd.f32 %v6383, %v6543
        %v6624 = vadd.f32 %v6384, %v6544
        %v6625 = vadd.f32 %v6385, %v6545
        %v6626 = vadd.f32 %v6386, %v6546
        %v6627 = vadd.f32 %v6387, %v6547
        %v6628 = vadd.f32 %v6388, %v6548
        %v6629 = vadd.f32 %v6389, %v6549
        %v6630 = vadd.f32 %v6390, %v6550
        %v6631 = vadd.f32 %v6391, %v6551
        %v6632 = vadd.f32 %v6392, %v6552
        %v6633 = vadd.f32 %v6393, %v6553
        %v6634 = vadd.f32 %v6394, %v6554
        %v6635 = vadd.f32 %v6395, %v6555
        %v6636 = vadd.f32 %v6396, %v6556
        %v6637 = vadd.f32 %v6397, %v6557
        %v6638 = vadd.f32 %v6398, %v6558
        %v6639 = vadd.f32 %v6399, %v6559
        %v6640 = vadd.f32 %v6400, %v6560
        %v6641 = vadd.f32 %v6401, %v6561
        %v6642 = vadd.f32 %v6402, %v6562
        %v6643 = vadd.f32 %v6403, %v6563
        %v6644 = vadd.f32 %v6404, %v6564
        %v6645 = vadd.f32 %v6405, %v6565
        %v6646 = vadd.f32 %v6406, %v6566
        %v6647 = vadd.f32 %v6407, %v6567
        %v6648 = vadd.f32 %v6408, %v6568
        %v6649 = vadd.f32 %v6409, %v6569
        %v6650 = vadd.f32 %v6410, %v6570
        %v6651 = vadd.f32 %v6411, %v6571
        %v6652 = vadd.f32 %v6412, %v6572
        %v6653 = vadd.f32 %v6413, %v6573
        %v6654 = vadd.f32 %v6414, %v6574
        %v6655 = vadd.f32 %v6415, %v6575
        %v6656 = vadd.f32 %v6416, %v6576
        %v6657 = vadd.f32 %v6417, %v6577
        %v6658 = vadd.f32 %v6418, %v6578
        %v6659 = vadd.f32 %v6419, %v6579
        %v6660 = vadd.f32 %v6420, %v6580
        %v6661 = vadd.f32 %v6421, %v6581
        %v6662 = vadd.f32 %v6422, %v6582
        %v6663 = vadd.f32 %v6423, %v6583
        %v6664 = vadd.f32 %v6424, %v6584
        %v6665 = vadd.f32 %v6425, %v6585
        %v6666 = vadd.f32 %v6426, %v6586
        %v6667 = vadd.f32 %v6427, %v6587
        %v6668 = vadd.f32 %v6428, %v6588
        %v6669 = vadd.f32 %v6429, %v6589
        %v6670 = vadd.f32 %v6430, %v6590
        %v6671 = vadd.f32 %v6431, %v6591
        %v6672 = vadd.f32 %v6432, %v6592
        %v6673 = vadd.f32 %v6433, %v6593
        %v6674 = vadd.f32 %v6434, %v6594
        %v6675 = vadd.f32 %v6435, %v6595
        %v6676 = vadd.f32 %v6436, %v6596
        %v6677 = vadd.f32 %v6437, %v6597
        %v6678 = vadd.f32 %v6438, %v6598
        %v6679 = vadd.f32 %v6439, %v6599
        %v6680 = vadd.f32 %v6440, %v6600
        %v6681 = vadd.f32 %v6441, %v6601
        %v6682 = vadd.f32 %v6442, %v6602
        %v6683 = vadd.f32 %v6443, %v6603
        %v6684 = vadd.f32 %v6444, %v6604
        %v6685 = vadd.f32 %v6445, %v6605
        %v6686 = vadd.f32 %v6446, %v6606
        %v6687 = vadd.f32 %v6447, %v6607
        %v6688 = vadd.f32 %v6448, %v6608
        %v6689 = vadd.f32 %v6449, %v6609
        %v6690 = vadd.f32 %v6450, %v6610
        %v6691 = vadd.f32 %v6451, %v6611
        %v6692 = vadd.f32 %v6452, %v6612
        %v6693 = vadd.f32 %v6453, %v6613
        %v6694 = vmul.f32 %v6054, %v6214
        %v6695 = vmul.f32 %v6055, %v6215
        %v6696 = vmul.f32 %v6056, %v6216
        %v6697 = vmul.f32 %v6057, %v6217
        %v6698 = vmul.f32 %v6058, %v6218
        %v6699 = vmul.f32 %v6059, %v6219
        %v6700 = vmul.f32 %v6060, %v6220
        %v6701 = vmul.f32 %v6061, %v6221
        %v6702 = vmul.f32 %v6062, %v6222
        %v6703 = vmul.f32 %v6063, %v6223
        %v6704 = vmul.f32 %v6064, %v6224
        %v6705 = vmul.f32 %v6065, %v6225
        %v6706 = vmul.f32 %v6066, %v6226
        %v6707 = vmul.f32 %v6067, %v6227
        %v6708 = vmul.f32 %v6068, %v6228
        %v6709 = vmul.f32 %v6069, %v6229
        %v6710 = vmul.f32 %v6070, %v6230
        %v6711 = vmul.f32 %v6071, %v6231
        %v6712 = vmul.f32 %v6072, %v6232
        %v6713 = vmul.f32 %v6073, %v6233
        %v6714 = vmul.f32 %v6074, %v6234
        %v6715 = vmul.f32 %v6075, %v6235
        %v6716 = vmul.f32 %v6076, %v6236
        %v6717 = vmul.f32 %v6077, %v6237
        %v6718 = vmul.f32 %v6078, %v6238
        %v6719 = vmul.f32 %v6079, %v6239
        %v6720 = vmul.f32 %v6080, %v6240
        %v6721 = vmul.f32 %v6081, %v6241
        %v6722 = vmul.f32 %v6082, %v6242
        %v6723 = vmul.f32 %v6083, %v6243
        %v6724 = vmul.f32 %v6084, %v6244
        %v6725 = vmul.f32 %v6085, %v6245
        %v6726 = vmul.f32 %v6086, %v6246
        %v6727 = vmul.f32 %v6087, %v6247
        %v6728 = vmul.f32 %v6088, %v6248
        %v6729 = vmul.f32 %v6089, %v6249
        %v6730 = vmul.f32 %v6090, %v6250
        %v6731 = vmul.f32 %v6091, %v6251
        %v6732 = vmul.f32 %v6092, %v6252
        %v6733 = vmul.f32 %v6093, %v6253
        %v6734 = vmul.f32 %v6094, %v6254
        %v6735 = vmul.f32 %v6095, %v6255
        %v6736 = vmul.f32 %v6096, %v6256
        %v6737 = vmul.f32 %v6097, %v6257
        %v6738 = vmul.f32 %v6098, %v6258
        %v6739 = vmul.f32 %v6099, %v6259
        %v6740 = vmul.f32 %v6100, %v6260
        %v6741 = vmul.f32 %v6101, %v6261
        %v6742 = vmul.f32 %v6102, %v6262
        %v6743 = vmul.f32 %v6103, %v6263
        %v6744 = vmul.f32 %v6104, %v6264
        %v6745 = vmul.f32 %v6105, %v6265
        %v6746 = vmul.f32 %v6106, %v6266
        %v6747 = vmul.f32 %v6107, %v6267
        %v6748 = vmul.f32 %v6108, %v6268
        %v6749 = vmul.f32 %v6109, %v6269
        %v6750 = vmul.f32 %v6110, %v6270
        %v6751 = vmul.f32 %v6111, %v6271
        %v6752 = vmul.f32 %v6112, %v6272
        %v6753 = vmul.f32 %v6113, %v6273
        %v6754 = vmul.f32 %v6114, %v6274
        %v6755 = vmul.f32 %v6115, %v6275
        %v6756 = vmul.f32 %v6116, %v6276
        %v6757 = vmul.f32 %v6117, %v6277
        %v6758 = vmul.f32 %v6118, %v6278
        %v6759 = vmul.f32 %v6119, %v6279
        %v6760 = vmul.f32 %v6120, %v6280
        %v6761 = vmul.f32 %v6121, %v6281
        %v6762 = vmul.f32 %v6122, %v6282
        %v6763 = vmul.f32 %v6123, %v6283
        %v6764 = vmul.f32 %v6124, %v6284
        %v6765 = vmul.f32 %v6125, %v6285
        %v6766 = vmul.f32 %v6126, %v6286
        %v6767 = vmul.f32 %v6127, %v6287
        %v6768 = vmul.f32 %v6128, %v6288
        %v6769 = vmul.f32 %v6129, %v6289
        %v6770 = vmul.f32 %v6130, %v6290
        %v6771 = vmul.f32 %v6131, %v6291
        %v6772 = vmul.f32 %v6132, %v6292
        %v6773 = vmul.f32 %v6133, %v6293
        %v6774 = vmul.f32 %v5404, %v6694
        %v6775 = vmul.f32 %v5405, %v6695
        %v6776 = vmul.f32 %v5406, %v6696
        %v6777 = vmul.f32 %v5407, %v6697
        %v6778 = vmul.f32 %v5408, %v6698
        %v6779 = vmul.f32 %v5409, %v6699
        %v6780 = vmul.f32 %v5410, %v6700
        %v6781 = vmul.f32 %v5411, %v6701
        %v6782 = vmul.f32 %v5412, %v6702
        %v6783 = vmul.f32 %v5413, %v6703
        %v6784 = vmul.f32 %v5414, %v6704
        %v6785 = vmul.f32 %v5415, %v6705
        %v6786 = vmul.f32 %v5416, %v6706
        %v6787 = vmul.f32 %v5417, %v6707
        %v6788 = vmul.f32 %v5418, %v6708
        %v6789 = vmul.f32 %v5419, %v6709
        %v6790 = vmul.f32 %v5420, %v6710
        %v6791 = vmul.f32 %v5421, %v6711
        %v6792 = vmul.f32 %v5422, %v6712
        %v6793 = vmul.f32 %v5423, %v6713
        %v6794 = vmul.f32 %v5424, %v6714
        %v6795 = vmul.f32 %v5425, %v6715
        %v6796 = vmul.f32 %v5426, %v6716
        %v6797 = vmul.f32 %v5427, %v6717
        %v6798 = vmul.f32 %v5428, %v6718
        %v6799 = vmul.f32 %v5429, %v6719
        %v6800 = vmul.f32 %v5430, %v6720
        %v6801 = vmul.f32 %v5431, %v6721
        %v6802 = vmul.f32 %v5432, %v6722
        %v6803 = vmul.f32 %v5433, %v6723
        %v6804 = vmul.f32 %v5434, %v6724
        %v6805 = vmul.f32 %v5435, %v6725
        %v6806 = vmul.f32 %v5436, %v6726
        %v6807 = vmul.f32 %v5437, %v6727
        %v6808 = vmul.f32 %v5438, %v6728
        %v6809 = vmul.f32 %v5439, %v6729
        %v6810 = vmul.f32 %v5440, %v6730
        %v6811 = vmul.f32 %v5441, %v6731
        %v6812 = vmul.f32 %v5442, %v6732
        %v6813 = vmul.f32 %v5443, %v6733
        %v6814 = vmul.f32 %v5444, %v6734
        %v6815 = vmul.f32 %v5445, %v6735
        %v6816 = vmul.f32 %v5446, %v6736
        %v6817 = vmul.f32 %v5447, %v6737
        %v6818 = vmul.f32 %v5448, %v6738
        %v6819 = vmul.f32 %v5449, %v6739
        %v6820 = vmul.f32 %v5450, %v6740
        %v6821 = vmul.f32 %v5451, %v6741
        %v6822 = vmul.f32 %v5452, %v6742
        %v6823 = vmul.f32 %v5453, %v6743
        %v6824 = vmul.f32 %v5454, %v6744
        %v6825 = vmul.f32 %v5455, %v6745
        %v6826 = vmul.f32 %v5456, %v6746
        %v6827 = vmul.f32 %v5457, %v6747
        %v6828 = vmul.f32 %v5458, %v6748
        %v6829 = vmul.f32 %v5459, %v6749
        %v6830 = vmul.f32 %v5460, %v6750
        %v6831 = vmul.f32 %v5461, %v6751
        %v6832 = vmul.f32 %v5462, %v6752
        %v6833 = vmul.f32 %v5463, %v6753
        %v6834 = vmul.f32 %v5464, %v6754
        %v6835 = vmul.f32 %v5465, %v6755
        %v6836 = vmul.f32 %v5466, %v6756
        %v6837 = vmul.f32 %v5467, %v6757
        %v6838 = vmul.f32 %v5468, %v6758
        %v6839 = vmul.f32 %v5469, %v6759
        %v6840 = vmul.f32 %v5470, %v6760
        %v6841 = vmul.f32 %v5471, %v6761
        %v6842 = vmul.f32 %v5472, %v6762
        %v6843 = vmul.f32 %v5473, %v6763
        %v6844 = vmul.f32 %v5474, %v6764
        %v6845 = vmul.f32 %v5475, %v6765
        %v6846 = vmul.f32 %v5476, %v6766
        %v6847 = vmul.f32 %v5477, %v6767
        %v6848 = vmul.f32 %v5478, %v6768
        %v6849 = vmul.f32 %v5479, %v6769
        %v6850 = vmul.f32 %v5480, %v6770
        %v6851 = vmul.f32 %v5481, %v6771
        %v6852 = vmul.f32 %v5482, %v6772
        %v6853 = vmul.f32 %v5483, %v6773
        %v6854 = vadd.f32 %v6614, %v6774
        %v6855 = vadd.f32 %v6615, %v6775
        %v6856 = vadd.f32 %v6616, %v6776
        %v6857 = vadd.f32 %v6617, %v6777
        %v6858 = vadd.f32 %v6618, %v6778
        %v6859 = vadd.f32 %v6619, %v6779
        %v6860 = vadd.f32 %v6620, %v6780
        %v6861 = vadd.f32 %v6621, %v6781
        %v6862 = vadd.f32 %v6622, %v6782
        %v6863 = vadd.f32 %v6623, %v6783
        %v6864 = vadd.f32 %v6624, %v6784
        %v6865 = vadd.f32 %v6625, %v6785
        %v6866 = vadd.f32 %v6626, %v6786
        %v6867 = vadd.f32 %v6627, %v6787
        %v6868 = vadd.f32 %v6628, %v6788
        %v6869 = vadd.f32 %v6629, %v6789
        %v6870 = vadd.f32 %v6630, %v6790
        %v6871 = vadd.f32 %v6631, %v6791
        %v6872 = vadd.f32 %v6632, %v6792
        %v6873 = vadd.f32 %v6633, %v6793
        %v6874 = vadd.f32 %v6634, %v6794
        %v6875 = vadd.f32 %v6635, %v6795
        %v6876 = vadd.f32 %v6636, %v6796
        %v6877 = vadd.f32 %v6637, %v6797
        %v6878 = vadd.f32 %v6638, %v6798
        %v6879 = vadd.f32 %v6639, %v6799
        %v6880 = vadd.f32 %v6640, %v6800
        %v6881 = vadd.f32 %v6641, %v6801
        %v6882 = vadd.f32 %v6642, %v6802
        %v6883 = vadd.f32 %v6643, %v6803
        %v6884 = vadd.f32 %v6644, %v6804
        %v6885 = vadd.f32 %v6645, %v6805
        %v6886 = vadd.f32 %v6646, %v6806
        %v6887 = vadd.f32 %v6647, %v6807
        %v6888 = vadd.f32 %v6648, %v6808
        %v6889 = vadd.f32 %v6649, %v6809
        %v6890 = vadd.f32 %v6650, %v6810
        %v6891 = vadd.f32 %v6651, %v6811
        %v6892 = vadd.f32 %v6652, %v6812
        %v6893 = vadd.f32 %v6653, %v6813
        %v6894 = vadd.f32 %v6654, %v6814
        %v6895 = vadd.f32 %v6655, %v6815
        %v6896 = vadd.f32 %v6656, %v6816
        %v6897 = vadd.f32 %v6657, %v6817
        %v6898 = vadd.f32 %v6658, %v6818
        %v6899 = vadd.f32 %v6659, %v6819
        %v6900 = vadd.f32 %v6660, %v6820
        %v6901 = vadd.f32 %v6661, %v6821
        %v6902 = vadd.f32 %v6662, %v6822
        %v6903 = vadd.f32 %v6663, %v6823
        %v6904 = vadd.f32 %v6664, %v6824
        %v6905 = vadd.f32 %v6665, %v6825
        %v6906 = vadd.f32 %v6666, %v6826
        %v6907 = vadd.f32 %v6667, %v6827
        %v6908 = vadd.f32 %v6668, %v6828
        %v6909 = vadd.f32 %v6669, %v6829
        %v6910 = vadd.f32 %v6670, %v6830
        %v6911 = vadd.f32 %v6671, %v6831
        %v6912 = vadd.f32 %v6672, %v6832
        %v6913 = vadd.f32 %v6673, %v6833
        %v6914 = vadd.f32 %v6674, %v6834
        %v6915 = vadd.f32 %v6675, %v6835
        %v6916 = vadd.f32 %v6676, %v6836
        %v6917 = vadd.f32 %v6677, %v6837
        %v6918 = vadd.f32 %v6678, %v6838
        %v6919 = vadd.f32 %v6679, %v6839
        %v6920 = vadd.f32 %v6680, %v6840
        %v6921 = vadd.f32 %v6681, %v6841
        %v6922 = vadd.f32 %v6682, %v6842
        %v6923 = vadd.f32 %v6683, %v6843
        %v6924 = vadd.f32 %v6684, %v6844
        %v6925 = vadd.f32 %v6685, %v6845
        %v6926 = vadd.f32 %v6686, %v6846
        %v6927 = vadd.f32 %v6687, %v6847
        %v6928 = vadd.f32 %v6688, %v6848
        %v6929 = vadd.f32 %v6689, %v6849
        %v6930 = vadd.f32 %v6690, %v6850
        %v6931 = vadd.f32 %v6691, %v6851
        %v6932 = vadd.f32 %v6692, %v6852
        %v6933 = vadd.f32 %v6693, %v6853
        %v6934 = vrsqrt.pop %v6854
        %v6935 = vrsqrt.pop %v6855
        %v6936 = vrsqrt.pop %v6856
        %v6937 = vrsqrt.pop %v6857
        %v6938 = vrsqrt.pop %v6858
        %v6939 = vrsqrt.pop %v6859
        %v6940 = vrsqrt.pop %v6860
        %v6941 = vrsqrt.pop %v6861
        %v6942 = vrsqrt.pop %v6862
        %v6943 = vrsqrt.pop %v6863
        %v6944 = vrsqrt.pop %v6864
        %v6945 = vrsqrt.pop %v6865
        %v6946 = vrsqrt.pop %v6866
        %v6947 = vrsqrt.pop %v6867
        %v6948 = vrsqrt.pop %v6868
        %v6949 = vrsqrt.pop %v6869
        %v6950 = vrsqrt.pop %v6870
        %v6951 = vrsqrt.pop %v6871
        %v6952 = vrsqrt.pop %v6872
        %v6953 = vrsqrt.pop %v6873
        %v6954 = vrsqrt.pop %v6874
        %v6955 = vrsqrt.pop %v6875
        %v6956 = vrsqrt.pop %v6876
        %v6957 = vrsqrt.pop %v6877
        %v6958 = vrsqrt.pop %v6878
        %v6959 = vrsqrt.pop %v6879
        %v6960 = vrsqrt.pop %v6880
        %v6961 = vrsqrt.pop %v6881
        %v6962 = vrsqrt.pop %v6882
        %v6963 = vrsqrt.pop %v6883
        %v6964 = vrsqrt.pop %v6884
        %v6965 = vrsqrt.pop %v6885
        %v6966 = vrsqrt.pop %v6886
        %v6967 = vrsqrt.pop %v6887
        %v6968 = vrsqrt.pop %v6888
        %v6969 = vrsqrt.pop %v6889
        %v6970 = vrsqrt.pop %v6890
        %v6971 = vrsqrt.pop %v6891
        %v6972 = vrsqrt.pop %v6892
        %v6973 = vrsqrt.pop %v6893
        %v6974 = vrsqrt.pop %v6894
        %v6975 = vrsqrt.pop %v6895
        %v6976 = vrsqrt.pop %v6896
        %v6977 = vrsqrt.pop %v6897
        %v6978 = vrsqrt.pop %v6898
        %v6979 = vrsqrt.pop %v6899
        %v6980 = vrsqrt.pop %v6900
        %v6981 = vrsqrt.pop %v6901
        %v6982 = vrsqrt.pop %v6902
        %v6983 = vrsqrt.pop %v6903
        %v6984 = vrsqrt.pop %v6904
        %v6985 = vrsqrt.pop %v6905
        %v6986 = vrsqrt.pop %v6906
        %v6987 = vrsqrt.pop %v6907
        %v6988 = vrsqrt.pop %v6908
        %v6989 = vrsqrt.pop %v6909
        %v6990 = vrsqrt.pop %v6910
        %v6991 = vrsqrt.pop %v6911
        %v6992 = vrsqrt.pop %v6912
        %v6993 = vrsqrt.pop %v6913
        %v6994 = vrsqrt.pop %v6914
        %v6995 = vrsqrt.pop %v6915
        %v6996 = vrsqrt.pop %v6916
        %v6997 = vrsqrt.pop %v6917
        %v6998 = vrsqrt.pop %v6918
        %v6999 = vrsqrt.pop %v6919
        %v7000 = vrsqrt.pop %v6920
        %v7001 = vrsqrt.pop %v6921
        %v7002 = vrsqrt.pop %v6922
        %v7003 = vrsqrt.pop %v6923
        %v7004 = vrsqrt.pop %v6924
        %v7005 = vrsqrt.pop %v6925
        %v7006 = vrsqrt.pop %v6926
        %v7007 = vrsqrt.pop %v6927
        %v7008 = vrsqrt.pop %v6928
        %v7009 = vrsqrt.pop %v6929
        %v7010 = vrsqrt.pop %v6930
        %v7011 = vrsqrt.pop %v6931
        %v7012 = vrsqrt.pop %v6932
        %v7013 = vrsqrt.pop %v6933
        %v7014 = vmin.f32 %v6934, 1e+12
        %v7015 = vmin.f32 %v6935, 1e+12
        %v7016 = vmin.f32 %v6936, 1e+12
        %v7017 = vmin.f32 %v6937, 1e+12
        %v7018 = vmin.f32 %v6938, 1e+12
        %v7019 = vmin.f32 %v6939, 1e+12
        %v7020 = vmin.f32 %v6940, 1e+12
        %v7021 = vmin.f32 %v6941, 1e+12
        %v7022 = vmin.f32 %v6942, 1e+12
        %v7023 = vmin.f32 %v6943, 1e+12
        %v7024 = vmin.f32 %v6944, 1e+12
        %v7025 = vmin.f32 %v6945, 1e+12
        %v7026 = vmin.f32 %v6946, 1e+12
        %v7027 = vmin.f32 %v6947, 1e+12
        %v7028 = vmin.f32 %v6948, 1e+12
        %v7029 = vmin.f32 %v6949, 1e+12
        %v7030 = vmin.f32 %v6950, 1e+12
        %v7031 = vmin.f32 %v6951, 1e+12
        %v7032 = vmin.f32 %v6952, 1e+12
        %v7033 = vmin.f32 %v6953, 1e+12
        %v7034 = vmin.f32 %v6954, 1e+12
        %v7035 = vmin.f32 %v6955, 1e+12
        %v7036 = vmin.f32 %v6956, 1e+12
        %v7037 = vmin.f32 %v6957, 1e+12
        %v7038 = vmin.f32 %v6958, 1e+12
        %v7039 = vmin.f32 %v6959, 1e+12
        %v7040 = vmin.f32 %v6960, 1e+12
        %v7041 = vmin.f32 %v6961, 1e+12
        %v7042 = vmin.f32 %v6962, 1e+12
        %v7043 = vmin.f32 %v6963, 1e+12
        %v7044 = vmin.f32 %v6964, 1e+12
        %v7045 = vmin.f32 %v6965, 1e+12
        %v7046 = vmin.f32 %v6966, 1e+12
        %v7047 = vmin.f32 %v6967, 1e+12
        %v7048 = vmin.f32 %v6968, 1e+12
        %v7049 = vmin.f32 %v6969, 1e+12
        %v7050 = vmin.f32 %v6970, 1e+12
        %v7051 = vmin.f32 %v6971, 1e+12
        %v7052 = vmin.f32 %v6972, 1e+12
        %v7053 = vmin.f32 %v6973, 1e+12
        %v7054 = vmin.f32 %v6974, 1e+12
        %v7055 = vmin.f32 %v6975, 1e+12
        %v7056 = vmin.f32 %v6976, 1e+12
        %v7057 = vmin.f32 %v6977, 1e+12
        %v7058 = vmin.f32 %v6978, 1e+12
        %v7059 = vmin.f32 %v6979, 1e+12
        %v7060 = vmin.f32 %v6980, 1e+12
        %v7061 = vmin.f32 %v6981, 1e+12
        %v7062 = vmin.f32 %v6982, 1e+12
        %v7063 = vmin.f32 %v6983, 1e+12
        %v7064 = vmin.f32 %v6984, 1e+12
        %v7065 = vmin.f32 %v6985, 1e+12
        %v7066 = vmin.f32 %v6986, 1e+12
        %v7067 = vmin.f32 %v6987, 1e+12
        %v7068 = vmin.f32 %v6988, 1e+12
        %v7069 = vmin.f32 %v6989, 1e+12
        %v7070 = vmin.f32 %v6990, 1e+12
        %v7071 = vmin.f32 %v6991, 1e+12
        %v7072 = vmin.f32 %v6992, 1e+12
        %v7073 = vmin.f32 %v6993, 1e+12
        %v7074 = vmin.f32 %v6994, 1e+12
        %v7075 = vmin.f32 %v6995, 1e+12
        %v7076 = vmin.f32 %v6996, 1e+12
        %v7077 = vmin.f32 %v6997, 1e+12
        %v7078 = vmin.f32 %v6998, 1e+12
        %v7079 = vmin.f32 %v6999, 1e+12
        %v7080 = vmin.f32 %v7000, 1e+12
        %v7081 = vmin.f32 %v7001, 1e+12
        %v7082 = vmin.f32 %v7002, 1e+12
        %v7083 = vmin.f32 %v7003, 1e+12
        %v7084 = vmin.f32 %v7004, 1e+12
        %v7085 = vmin.f32 %v7005, 1e+12
        %v7086 = vmin.f32 %v7006, 1e+12
        %v7087 = vmin.f32 %v7007, 1e+12
        %v7088 = vmin.f32 %v7008, 1e+12
        %v7089 = vmin.f32 %v7009, 1e+12
        %v7090 = vmin.f32 %v7010, 1e+12
        %v7091 = vmin.f32 %v7011, 1e+12
        %v7092 = vmin.f32 %v7012, 1e+12
        %v7093 = vmin.f32 %v7013, 1e+12
        %v7094 = vmul.f32 %v5086, %v6214
        %v7095 = vmul.f32 %v5089, %v6215
        %v7096 = vmul.f32 %v5092, %v6216
        %v7097 = vmul.f32 %v5095, %v6217
        %v7098 = vmul.f32 %v5098, %v6218
        %v7099 = vmul.f32 %v5101, %v6219
        %v7100 = vmul.f32 %v5104, %v6220
        %v7101 = vmul.f32 %v5107, %v6221
        %v7102 = vmul.f32 %v5110, %v6222
        %v7103 = vmul.f32 %v5113, %v6223
        %v7104 = vmul.f32 %v5116, %v6224
        %v7105 = vmul.f32 %v5119, %v6225
        %v7106 = vmul.f32 %v5122, %v6226
        %v7107 = vmul.f32 %v5125, %v6227
        %v7108 = vmul.f32 %v5128, %v6228
        %v7109 = vmul.f32 %v5131, %v6229
        %v7110 = vmul.f32 %v5134, %v6230
        %v7111 = vmul.f32 %v5137, %v6231
        %v7112 = vmul.f32 %v5140, %v6232
        %v7113 = vmul.f32 %v5143, %v6233
        %v7114 = vmul.f32 %v5146, %v6234
        %v7115 = vmul.f32 %v5149, %v6235
        %v7116 = vmul.f32 %v5152, %v6236
        %v7117 = vmul.f32 %v5155, %v6237
        %v7118 = vmul.f32 %v5158, %v6238
        %v7119 = vmul.f32 %v5161, %v6239
        %v7120 = vmul.f32 %v5164, %v6240
        %v7121 = vmul.f32 %v5167, %v6241
        %v7122 = vmul.f32 %v5170, %v6242
        %v7123 = vmul.f32 %v5173, %v6243
        %v7124 = vmul.f32 %v5176, %v6244
        %v7125 = vmul.f32 %v5179, %v6245
        %v7126 = vmul.f32 %v5182, %v6246
        %v7127 = vmul.f32 %v5185, %v6247
        %v7128 = vmul.f32 %v5188, %v6248
        %v7129 = vmul.f32 %v5191, %v6249
        %v7130 = vmul.f32 %v5194, %v6250
        %v7131 = vmul.f32 %v5197, %v6251
        %v7132 = vmul.f32 %v5200, %v6252
        %v7133 = vmul.f32 %v5203, %v6253
        %v7134 = vmul.f32 %v5206, %v6254
        %v7135 = vmul.f32 %v5209, %v6255
        %v7136 = vmul.f32 %v5212, %v6256
        %v7137 = vmul.f32 %v5215, %v6257
        %v7138 = vmul.f32 %v5218, %v6258
        %v7139 = vmul.f32 %v5221, %v6259
        %v7140 = vmul.f32 %v5224, %v6260
        %v7141 = vmul.f32 %v5227, %v6261
        %v7142 = vmul.f32 %v5230, %v6262
        %v7143 = vmul.f32 %v5233, %v6263
        %v7144 = vmul.f32 %v5236, %v6264
        %v7145 = vmul.f32 %v5239, %v6265
        %v7146 = vmul.f32 %v5242, %v6266
        %v7147 = vmul.f32 %v5245, %v6267
        %v7148 = vmul.f32 %v5248, %v6268
        %v7149 = vmul.f32 %v5251, %v6269
        %v7150 = vmul.f32 %v5254, %v6270
        %v7151 = vmul.f32 %v5257, %v6271
        %v7152 = vmul.f32 %v5260, %v6272
        %v7153 = vmul.f32 %v5263, %v6273
        %v7154 = vmul.f32 %v5266, %v6274
        %v7155 = vmul.f32 %v5269, %v6275
        %v7156 = vmul.f32 %v5272, %v6276
        %v7157 = vmul.f32 %v5275, %v6277
        %v7158 = vmul.f32 %v5278, %v6278
        %v7159 = vmul.f32 %v5281, %v6279
        %v7160 = vmul.f32 %v5284, %v6280
        %v7161 = vmul.f32 %v5287, %v6281
        %v7162 = vmul.f32 %v5290, %v6282
        %v7163 = vmul.f32 %v5293, %v6283
        %v7164 = vmul.f32 %v5296, %v6284
        %v7165 = vmul.f32 %v5299, %v6285
        %v7166 = vmul.f32 %v5302, %v6286
        %v7167 = vmul.f32 %v5305, %v6287
        %v7168 = vmul.f32 %v5308, %v6288
        %v7169 = vmul.f32 %v5311, %v6289
        %v7170 = vmul.f32 %v5314, %v6290
        %v7171 = vmul.f32 %v5317, %v6291
        %v7172 = vmul.f32 %v5320, %v6292
        %v7173 = vmul.f32 %v5323, %v6293
        %v7174 = vadd.f32 %v6294, %v7094
        %v7175 = vadd.f32 %v6295, %v7095
        %v7176 = vadd.f32 %v6296, %v7096
        %v7177 = vadd.f32 %v6297, %v7097
        %v7178 = vadd.f32 %v6298, %v7098
        %v7179 = vadd.f32 %v6299, %v7099
        %v7180 = vadd.f32 %v6300, %v7100
        %v7181 = vadd.f32 %v6301, %v7101
        %v7182 = vadd.f32 %v6302, %v7102
        %v7183 = vadd.f32 %v6303, %v7103
        %v7184 = vadd.f32 %v6304, %v7104
        %v7185 = vadd.f32 %v6305, %v7105
        %v7186 = vadd.f32 %v6306, %v7106
        %v7187 = vadd.f32 %v6307, %v7107
        %v7188 = vadd.f32 %v6308, %v7108
        %v7189 = vadd.f32 %v6309, %v7109
        %v7190 = vadd.f32 %v6310, %v7110
        %v7191 = vadd.f32 %v6311, %v7111
        %v7192 = vadd.f32 %v6312, %v7112
        %v7193 = vadd.f32 %v6313, %v7113
        %v7194 = vadd.f32 %v6314, %v7114
        %v7195 = vadd.f32 %v6315, %v7115
        %v7196 = vadd.f32 %v6316, %v7116
        %v7197 = vadd.f32 %v6317, %v7117
        %v7198 = vadd.f32 %v6318, %v7118
        %v7199 = vadd.f32 %v6319, %v7119
        %v7200 = vadd.f32 %v6320, %v7120
        %v7201 = vadd.f32 %v6321, %v7121
        %v7202 = vadd.f32 %v6322, %v7122
        %v7203 = vadd.f32 %v6323, %v7123
        %v7204 = vadd.f32 %v6324, %v7124
        %v7205 = vadd.f32 %v6325, %v7125
        %v7206 = vadd.f32 %v6326, %v7126
        %v7207 = vadd.f32 %v6327, %v7127
        %v7208 = vadd.f32 %v6328, %v7128
        %v7209 = vadd.f32 %v6329, %v7129
        %v7210 = vadd.f32 %v6330, %v7130
        %v7211 = vadd.f32 %v6331, %v7131
        %v7212 = vadd.f32 %v6332, %v7132
        %v7213 = vadd.f32 %v6333, %v7133
        %v7214 = vadd.f32 %v6334, %v7134
        %v7215 = vadd.f32 %v6335, %v7135
        %v7216 = vadd.f32 %v6336, %v7136
        %v7217 = vadd.f32 %v6337, %v7137
        %v7218 = vadd.f32 %v6338, %v7138
        %v7219 = vadd.f32 %v6339, %v7139
        %v7220 = vadd.f32 %v6340, %v7140
        %v7221 = vadd.f32 %v6341, %v7141
        %v7222 = vadd.f32 %v6342, %v7142
        %v7223 = vadd.f32 %v6343, %v7143
        %v7224 = vadd.f32 %v6344, %v7144
        %v7225 = vadd.f32 %v6345, %v7145
        %v7226 = vadd.f32 %v6346, %v7146
        %v7227 = vadd.f32 %v6347, %v7147
        %v7228 = vadd.f32 %v6348, %v7148
        %v7229 = vadd.f32 %v6349, %v7149
        %v7230 = vadd.f32 %v6350, %v7150
        %v7231 = vadd.f32 %v6351, %v7151
        %v7232 = vadd.f32 %v6352, %v7152
        %v7233 = vadd.f32 %v6353, %v7153
        %v7234 = vadd.f32 %v6354, %v7154
        %v7235 = vadd.f32 %v6355, %v7155
        %v7236 = vadd.f32 %v6356, %v7156
        %v7237 = vadd.f32 %v6357, %v7157
        %v7238 = vadd.f32 %v6358, %v7158
        %v7239 = vadd.f32 %v6359, %v7159
        %v7240 = vadd.f32 %v6360, %v7160
        %v7241 = vadd.f32 %v6361, %v7161
        %v7242 = vadd.f32 %v6362, %v7162
        %v7243 = vadd.f32 %v6363, %v7163
        %v7244 = vadd.f32 %v6364, %v7164
        %v7245 = vadd.f32 %v6365, %v7165
        %v7246 = vadd.f32 %v6366, %v7166
        %v7247 = vadd.f32 %v6367, %v7167
        %v7248 = vadd.f32 %v6368, %v7168
        %v7249 = vadd.f32 %v6369, %v7169
        %v7250 = vadd.f32 %v6370, %v7170
        %v7251 = vadd.f32 %v6371, %v7171
        %v7252 = vadd.f32 %v6372, %v7172
        %v7253 = vadd.f32 %v6373, %v7173
        %v7254 = vmul.f32 %v7174, %v7014
        %v7255 = vmul.f32 %v7175, %v7015
        %v7256 = vmul.f32 %v7176, %v7016
        %v7257 = vmul.f32 %v7177, %v7017
        %v7258 = vmul.f32 %v7178, %v7018
        %v7259 = vmul.f32 %v7179, %v7019
        %v7260 = vmul.f32 %v7180, %v7020
        %v7261 = vmul.f32 %v7181, %v7021
        %v7262 = vmul.f32 %v7182, %v7022
        %v7263 = vmul.f32 %v7183, %v7023
        %v7264 = vmul.f32 %v7184, %v7024
        %v7265 = vmul.f32 %v7185, %v7025
        %v7266 = vmul.f32 %v7186, %v7026
        %v7267 = vmul.f32 %v7187, %v7027
        %v7268 = vmul.f32 %v7188, %v7028
        %v7269 = vmul.f32 %v7189, %v7029
        %v7270 = vmul.f32 %v7190, %v7030
        %v7271 = vmul.f32 %v7191, %v7031
        %v7272 = vmul.f32 %v7192, %v7032
        %v7273 = vmul.f32 %v7193, %v7033
        %v7274 = vmul.f32 %v7194, %v7034
        %v7275 = vmul.f32 %v7195, %v7035
        %v7276 = vmul.f32 %v7196, %v7036
        %v7277 = vmul.f32 %v7197, %v7037
        %v7278 = vmul.f32 %v7198, %v7038
        %v7279 = vmul.f32 %v7199, %v7039
        %v7280 = vmul.f32 %v7200, %v7040
        %v7281 = vmul.f32 %v7201, %v7041
        %v7282 = vmul.f32 %v7202, %v7042
        %v7283 = vmul.f32 %v7203, %v7043
        %v7284 = vmul.f32 %v7204, %v7044
        %v7285 = vmul.f32 %v7205, %v7045
        %v7286 = vmul.f32 %v7206, %v7046
        %v7287 = vmul.f32 %v7207, %v7047
        %v7288 = vmul.f32 %v7208, %v7048
        %v7289 = vmul.f32 %v7209, %v7049
        %v7290 = vmul.f32 %v7210, %v7050
        %v7291 = vmul.f32 %v7211, %v7051
        %v7292 = vmul.f32 %v7212, %v7052
        %v7293 = vmul.f32 %v7213, %v7053
        %v7294 = vmul.f32 %v7214, %v7054
        %v7295 = vmul.f32 %v7215, %v7055
        %v7296 = vmul.f32 %v7216, %v7056
        %v7297 = vmul.f32 %v7217, %v7057
        %v7298 = vmul.f32 %v7218, %v7058
        %v7299 = vmul.f32 %v7219, %v7059
        %v7300 = vmul.f32 %v7220, %v7060
        %v7301 = vmul.f32 %v7221, %v7061
        %v7302 = vmul.f32 %v7222, %v7062
        %v7303 = vmul.f32 %v7223, %v7063
        %v7304 = vmul.f32 %v7224, %v7064
        %v7305 = vmul.f32 %v7225, %v7065
        %v7306 = vmul.f32 %v7226, %v7066
        %v7307 = vmul.f32 %v7227, %v7067
        %v7308 = vmul.f32 %v7228, %v7068
        %v7309 = vmul.f32 %v7229, %v7069
        %v7310 = vmul.f32 %v7230, %v7070
        %v7311 = vmul.f32 %v7231, %v7071
        %v7312 = vmul.f32 %v7232, %v7072
        %v7313 = vmul.f32 %v7233, %v7073
        %v7314 = vmul.f32 %v7234, %v7074
        %v7315 = vmul.f32 %v7235, %v7075
        %v7316 = vmul.f32 %v7236, %v7076
        %v7317 = vmul.f32 %v7237, %v7077
        %v7318 = vmul.f32 %v7238, %v7078
        %v7319 = vmul.f32 %v7239, %v7079
        %v7320 = vmul.f32 %v7240, %v7080
        %v7321 = vmul.f32 %v7241, %v7081
        %v7322 = vmul.f32 %v7242, %v7082
        %v7323 = vmul.f32 %v7243, %v7083
        %v7324 = vmul.f32 %v7244, %v7084
        %v7325 = vmul.f32 %v7245, %v7085
        %v7326 = vmul.f32 %v7246, %v7086
        %v7327 = vmul.f32 %v7247, %v7087
        %v7328 = vmul.f32 %v7248, %v7088
        %v7329 = vmul.f32 %v7249, %v7089
        %v7330 = vmul.f32 %v7250, %v7090
        %v7331 = vmul.f32 %v7251, %v7091
        %v7332 = vmul.f32 %v7252, %v7092
        %v7333 = vmul.f32 %v7253, %v7093
        %v7334 = vmul.f32 %v7254, 2.0
        %v7335 = vmul.f32 %v7255, 2.0
        %v7336 = vmul.f32 %v7256, 2.0
        %v7337 = vmul.f32 %v7257, 2.0
        %v7338 = vmul.f32 %v7258, 2.0
        %v7339 = vmul.f32 %v7259, 2.0
        %v7340 = vmul.f32 %v7260, 2.0
        %v7341 = vmul.f32 %v7261, 2.0
        %v7342 = vmul.f32 %v7262, 2.0
        %v7343 = vmul.f32 %v7263, 2.0
        %v7344 = vmul.f32 %v7264, 2.0
        %v7345 = vmul.f32 %v7265, 2.0
        %v7346 = vmul.f32 %v7266, 2.0
        %v7347 = vmul.f32 %v7267, 2.0
        %v7348 = vmul.f32 %v7268, 2.0
        %v7349 = vmul.f32 %v7269, 2.0
        %v7350 = vmul.f32 %v7270, 2.0
        %v7351 = vmul.f32 %v7271, 2.0
        %v7352 = vmul.f32 %v7272, 2.0
        %v7353 = vmul.f32 %v7273, 2.0
        %v7354 = vmul.f32 %v7274, 2.0
        %v7355 = vmul.f32 %v7275, 2.0
        %v7356 = vmul.f32 %v7276, 2.0
        %v7357 = vmul.f32 %v7277, 2.0
        %v7358 = vmul.f32 %v7278, 2.0
        %v7359 = vmul.f32 %v7279, 2.0
        %v7360 = vmul.f32 %v7280, 2.0
        %v7361 = vmul.f32 %v7281, 2.0
        %v7362 = vmul.f32 %v7282, 2.0
        %v7363 = vmul.f32 %v7283, 2.0
        %v7364 = vmul.f32 %v7284, 2.0
        %v7365 = vmul.f32 %v7285, 2.0
        %v7366 = vmul.f32 %v7286, 2.0
        %v7367 = vmul.f32 %v7287, 2.0
        %v7368 = vmul.f32 %v7288, 2.0
        %v7369 = vmul.f32 %v7289, 2.0
        %v7370 = vmul.f32 %v7290, 2.0
        %v7371 = vmul.f32 %v7291, 2.0
        %v7372 = vmul.f32 %v7292, 2.0
        %v7373 = vmul.f32 %v7293, 2.0
        %v7374 = vmul.f32 %v7294, 2.0
        %v7375 = vmul.f32 %v7295, 2.0
        %v7376 = vmul.f32 %v7296, 2.0
        %v7377 = vmul.f32 %v7297, 2.0
        %v7378 = vmul.f32 %v7298, 2.0
        %v7379 = vmul.f32 %v7299, 2.0
        %v7380 = vmul.f32 %v7300, 2.0
        %v7381 = vmul.f32 %v7301, 2.0
        %v7382 = vmul.f32 %v7302, 2.0
        %v7383 = vmul.f32 %v7303, 2.0
        %v7384 = vmul.f32 %v7304, 2.0
        %v7385 = vmul.f32 %v7305, 2.0
        %v7386 = vmul.f32 %v7306, 2.0
        %v7387 = vmul.f32 %v7307, 2.0
        %v7388 = vmul.f32 %v7308, 2.0
        %v7389 = vmul.f32 %v7309, 2.0
        %v7390 = vmul.f32 %v7310, 2.0
        %v7391 = vmul.f32 %v7311, 2.0
        %v7392 = vmul.f32 %v7312, 2.0
        %v7393 = vmul.f32 %v7313, 2.0
        %v7394 = vmul.f32 %v7314, 2.0
        %v7395 = vmul.f32 %v7315, 2.0
        %v7396 = vmul.f32 %v7316, 2.0
        %v7397 = vmul.f32 %v7317, 2.0
        %v7398 = vmul.f32 %v7318, 2.0
        %v7399 = vmul.f32 %v7319, 2.0
        %v7400 = vmul.f32 %v7320, 2.0
        %v7401 = vmul.f32 %v7321, 2.0
        %v7402 = vmul.f32 %v7322, 2.0
        %v7403 = vmul.f32 %v7323, 2.0
        %v7404 = vmul.f32 %v7324, 2.0
        %v7405 = vmul.f32 %v7325, 2.0
        %v7406 = vmul.f32 %v7326, 2.0
        %v7407 = vmul.f32 %v7327, 2.0
        %v7408 = vmul.f32 %v7328, 2.0
        %v7409 = vmul.f32 %v7329, 2.0
        %v7410 = vmul.f32 %v7330, 2.0
        %v7411 = vmul.f32 %v7331, 2.0
        %v7412 = vmul.f32 %v7332, 2.0
        %v7413 = vmul.f32 %v7333, 2.0
        %v7414 = vmul.f32 %v7334, %v7014
        %v7415 = vmul.f32 %v7335, %v7015
        %v7416 = vmul.f32 %v7336, %v7016
        %v7417 = vmul.f32 %v7337, %v7017
        %v7418 = vmul.f32 %v7338, %v7018
        %v7419 = vmul.f32 %v7339, %v7019
        %v7420 = vmul.f32 %v7340, %v7020
        %v7421 = vmul.f32 %v7341, %v7021
        %v7422 = vmul.f32 %v7342, %v7022
        %v7423 = vmul.f32 %v7343, %v7023
        %v7424 = vmul.f32 %v7344, %v7024
        %v7425 = vmul.f32 %v7345, %v7025
        %v7426 = vmul.f32 %v7346, %v7026
        %v7427 = vmul.f32 %v7347, %v7027
        %v7428 = vmul.f32 %v7348, %v7028
        %v7429 = vmul.f32 %v7349, %v7029
        %v7430 = vmul.f32 %v7350, %v7030
        %v7431 = vmul.f32 %v7351, %v7031
        %v7432 = vmul.f32 %v7352, %v7032
        %v7433 = vmul.f32 %v7353, %v7033
        %v7434 = vmul.f32 %v7354, %v7034
        %v7435 = vmul.f32 %v7355, %v7035
        %v7436 = vmul.f32 %v7356, %v7036
        %v7437 = vmul.f32 %v7357, %v7037
        %v7438 = vmul.f32 %v7358, %v7038
        %v7439 = vmul.f32 %v7359, %v7039
        %v7440 = vmul.f32 %v7360, %v7040
        %v7441 = vmul.f32 %v7361, %v7041
        %v7442 = vmul.f32 %v7362, %v7042
        %v7443 = vmul.f32 %v7363, %v7043
        %v7444 = vmul.f32 %v7364, %v7044
        %v7445 = vmul.f32 %v7365, %v7045
        %v7446 = vmul.f32 %v7366, %v7046
        %v7447 = vmul.f32 %v7367, %v7047
        %v7448 = vmul.f32 %v7368, %v7048
        %v7449 = vmul.f32 %v7369, %v7049
        %v7450 = vmul.f32 %v7370, %v7050
        %v7451 = vmul.f32 %v7371, %v7051
        %v7452 = vmul.f32 %v7372, %v7052
        %v7453 = vmul.f32 %v7373, %v7053
        %v7454 = vmul.f32 %v7374, %v7054
        %v7455 = vmul.f32 %v7375, %v7055
        %v7456 = vmul.f32 %v7376, %v7056
        %v7457 = vmul.f32 %v7377, %v7057
        %v7458 = vmul.f32 %v7378, %v7058
        %v7459 = vmul.f32 %v7379, %v7059
        %v7460 = vmul.f32 %v7380, %v7060
        %v7461 = vmul.f32 %v7381, %v7061
        %v7462 = vmul.f32 %v7382, %v7062
        %v7463 = vmul.f32 %v7383, %v7063
        %v7464 = vmul.f32 %v7384, %v7064
        %v7465 = vmul.f32 %v7385, %v7065
        %v7466 = vmul.f32 %v7386, %v7066
        %v7467 = vmul.f32 %v7387, %v7067
        %v7468 = vmul.f32 %v7388, %v7068
        %v7469 = vmul.f32 %v7389, %v7069
        %v7470 = vmul.f32 %v7390, %v7070
        %v7471 = vmul.f32 %v7391, %v7071
        %v7472 = vmul.f32 %v7392, %v7072
        %v7473 = vmul.f32 %v7393, %v7073
        %v7474 = vmul.f32 %v7394, %v7074
        %v7475 = vmul.f32 %v7395, %v7075
        %v7476 = vmul.f32 %v7396, %v7076
        %v7477 = vmul.f32 %v7397, %v7077
        %v7478 = vmul.f32 %v7398, %v7078
        %v7479 = vmul.f32 %v7399, %v7079
        %v7480 = vmul.f32 %v7400, %v7080
        %v7481 = vmul.f32 %v7401, %v7081
        %v7482 = vmul.f32 %v7402, %v7082
        %v7483 = vmul.f32 %v7403, %v7083
        %v7484 = vmul.f32 %v7404, %v7084
        %v7485 = vmul.f32 %v7405, %v7085
        %v7486 = vmul.f32 %v7406, %v7086
        %v7487 = vmul.f32 %v7407, %v7087
        %v7488 = vmul.f32 %v7408, %v7088
        %v7489 = vmul.f32 %v7409, %v7089
        %v7490 = vmul.f32 %v7410, %v7090
        %v7491 = vmul.f32 %v7411, %v7091
        %v7492 = vmul.f32 %v7412, %v7092
        %v7493 = vmul.f32 %v7413, %v7093
        %v7494 = vrsqrt.pop %v4766
        %v7495 = vmul.f32 %v4766, %v7494
        %vm7496 = vcmp.eq.f32.partialorder %v4766, inf
        %v7497 = vsel %vm7496, %v4766, %v7495
        %vm7498 = vcmp.eq.f32.partialorder %v4766, 0.0
        %v7499 = vand.u32 %v4766, 2147483648
        %v7500 = vsel %vm7498, %v7499, %v7497
        %v7501 = vrsqrt.pop %v4769
        %v7502 = vmul.f32 %v4769, %v7501
        %vm7503 = vcmp.eq.f32.partialorder %v4769, inf
        %v7504 = vsel %vm7503, %v4769, %v7502
        %vm7505 = vcmp.eq.f32.partialorder %v4769, 0.0
        %v7506 = vand.u32 %v4769, 2147483648
        %v7507 = vsel %vm7505, %v7506, %v7504
        %v7508 = vrsqrt.pop %v4772
        %v7509 = vmul.f32 %v4772, %v7508
        %vm7510 = vcmp.eq.f32.partialorder %v4772, inf
        %v7511 = vsel %vm7510, %v4772, %v7509
        %vm7512 = vcmp.eq.f32.partialorder %v4772, 0.0
        %v7513 = vand.u32 %v4772, 2147483648
        %v7514 = vsel %vm7512, %v7513, %v7511
        %v7515 = vrsqrt.pop %v4775
        %v7516 = vmul.f32 %v4775, %v7515
        %vm7517 = vcmp.eq.f32.partialorder %v4775, inf
        %v7518 = vsel %vm7517, %v4775, %v7516
        %vm7519 = vcmp.eq.f32.partialorder %v4775, 0.0
        %v7520 = vand.u32 %v4775, 2147483648
        %v7521 = vsel %vm7519, %v7520, %v7518
        %v7522 = vrsqrt.pop %v4778
        %v7523 = vmul.f32 %v4778, %v7522
        %vm7524 = vcmp.eq.f32.partialorder %v4778, inf
        %v7525 = vsel %vm7524, %v4778, %v7523
        %vm7526 = vcmp.eq.f32.partialorder %v4778, 0.0
        %v7527 = vand.u32 %v4778, 2147483648
        %v7528 = vsel %vm7526, %v7527, %v7525
        %v7529 = vrsqrt.pop %v4781
        %v7530 = vmul.f32 %v4781, %v7529
        %vm7531 = vcmp.eq.f32.partialorder %v4781, inf
        %v7532 = vsel %vm7531, %v4781, %v7530
        %vm7533 = vcmp.eq.f32.partialorder %v4781, 0.0
        %v7534 = vand.u32 %v4781, 2147483648
        %v7535 = vsel %vm7533, %v7534, %v7532
        %v7536 = vrsqrt.pop %v4784
        %v7537 = vmul.f32 %v4784, %v7536
        %vm7538 = vcmp.eq.f32.partialorder %v4784, inf
        %v7539 = vsel %vm7538, %v4784, %v7537
        %vm7540 = vcmp.eq.f32.partialorder %v4784, 0.0
        %v7541 = vand.u32 %v4784, 2147483648
        %v7542 = vsel %vm7540, %v7541, %v7539
        %v7543 = vrsqrt.pop %v4787
        %v7544 = vmul.f32 %v4787, %v7543
        %vm7545 = vcmp.eq.f32.partialorder %v4787, inf
        %v7546 = vsel %vm7545, %v4787, %v7544
        %vm7547 = vcmp.eq.f32.partialorder %v4787, 0.0
        %v7548 = vand.u32 %v4787, 2147483648
        %v7549 = vsel %vm7547, %v7548, %v7546
        %v7550 = vrsqrt.pop %v4790
        %v7551 = vmul.f32 %v4790, %v7550
        %vm7552 = vcmp.eq.f32.partialorder %v4790, inf
        %v7553 = vsel %vm7552, %v4790, %v7551
        %vm7554 = vcmp.eq.f32.partialorder %v4790, 0.0
        %v7555 = vand.u32 %v4790, 2147483648
        %v7556 = vsel %vm7554, %v7555, %v7553
        %v7557 = vrsqrt.pop %v4793
        %v7558 = vmul.f32 %v4793, %v7557
        %vm7559 = vcmp.eq.f32.partialorder %v4793, inf
        %v7560 = vsel %vm7559, %v4793, %v7558
        %vm7561 = vcmp.eq.f32.partialorder %v4793, 0.0
        %v7562 = vand.u32 %v4793, 2147483648
        %v7563 = vsel %vm7561, %v7562, %v7560
        %v7564 = vrsqrt.pop %v4796
        %v7565 = vmul.f32 %v4796, %v7564
        %vm7566 = vcmp.eq.f32.partialorder %v4796, inf
        %v7567 = vsel %vm7566, %v4796, %v7565
        %vm7568 = vcmp.eq.f32.partialorder %v4796, 0.0
        %v7569 = vand.u32 %v4796, 2147483648
        %v7570 = vsel %vm7568, %v7569, %v7567
        %v7571 = vrsqrt.pop %v4799
        %v7572 = vmul.f32 %v4799, %v7571
        %vm7573 = vcmp.eq.f32.partialorder %v4799, inf
        %v7574 = vsel %vm7573, %v4799, %v7572
        %vm7575 = vcmp.eq.f32.partialorder %v4799, 0.0
        %v7576 = vand.u32 %v4799, 2147483648
        %v7577 = vsel %vm7575, %v7576, %v7574
        %v7578 = vrsqrt.pop %v4802
        %v7579 = vmul.f32 %v4802, %v7578
        %vm7580 = vcmp.eq.f32.partialorder %v4802, inf
        %v7581 = vsel %vm7580, %v4802, %v7579
        %vm7582 = vcmp.eq.f32.partialorder %v4802, 0.0
        %v7583 = vand.u32 %v4802, 2147483648
        %v7584 = vsel %vm7582, %v7583, %v7581
        %v7585 = vrsqrt.pop %v4805
        %v7586 = vmul.f32 %v4805, %v7585
        %vm7587 = vcmp.eq.f32.partialorder %v4805, inf
        %v7588 = vsel %vm7587, %v4805, %v7586
        %vm7589 = vcmp.eq.f32.partialorder %v4805, 0.0
        %v7590 = vand.u32 %v4805, 2147483648
        %v7591 = vsel %vm7589, %v7590, %v7588
        %v7592 = vrsqrt.pop %v4808
        %v7593 = vmul.f32 %v4808, %v7592
        %vm7594 = vcmp.eq.f32.partialorder %v4808, inf
        %v7595 = vsel %vm7594, %v4808, %v7593
        %vm7596 = vcmp.eq.f32.partialorder %v4808, 0.0
        %v7597 = vand.u32 %v4808, 2147483648
        %v7598 = vsel %vm7596, %v7597, %v7595
        %v7599 = vrsqrt.pop %v4811
        %v7600 = vmul.f32 %v4811, %v7599
        %vm7601 = vcmp.eq.f32.partialorder %v4811, inf
        %v7602 = vsel %vm7601, %v4811, %v7600
        %vm7603 = vcmp.eq.f32.partialorder %v4811, 0.0
        %v7604 = vand.u32 %v4811, 2147483648
        %v7605 = vsel %vm7603, %v7604, %v7602
        %v7606 = vrsqrt.pop %v4814
        %v7607 = vmul.f32 %v4814, %v7606
        %vm7608 = vcmp.eq.f32.partialorder %v4814, inf
        %v7609 = vsel %vm7608, %v4814, %v7607
        %vm7610 = vcmp.eq.f32.partialorder %v4814, 0.0
        %v7611 = vand.u32 %v4814, 2147483648
        %v7612 = vsel %vm7610, %v7611, %v7609
        %v7613 = vrsqrt.pop %v4817
        %v7614 = vmul.f32 %v4817, %v7613
        %vm7615 = vcmp.eq.f32.partialorder %v4817, inf
        %v7616 = vsel %vm7615, %v4817, %v7614
        %vm7617 = vcmp.eq.f32.partialorder %v4817, 0.0
        %v7618 = vand.u32 %v4817, 2147483648
        %v7619 = vsel %vm7617, %v7618, %v7616
        %v7620 = vrsqrt.pop %v4820
        %v7621 = vmul.f32 %v4820, %v7620
        %vm7622 = vcmp.eq.f32.partialorder %v4820, inf
        %v7623 = vsel %vm7622, %v4820, %v7621
        %vm7624 = vcmp.eq.f32.partialorder %v4820, 0.0
        %v7625 = vand.u32 %v4820, 2147483648
        %v7626 = vsel %vm7624, %v7625, %v7623
        %v7627 = vrsqrt.pop %v4823
        %v7628 = vmul.f32 %v4823, %v7627
        %vm7629 = vcmp.eq.f32.partialorder %v4823, inf
        %v7630 = vsel %vm7629, %v4823, %v7628
        %vm7631 = vcmp.eq.f32.partialorder %v4823, 0.0
        %v7632 = vand.u32 %v4823, 2147483648
        %v7633 = vsel %vm7631, %v7632, %v7630
        %v7634 = vrsqrt.pop %v4826
        %v7635 = vmul.f32 %v4826, %v7634
        %vm7636 = vcmp.eq.f32.partialorder %v4826, inf
        %v7637 = vsel %vm7636, %v4826, %v7635
        %vm7638 = vcmp.eq.f32.partialorder %v4826, 0.0
        %v7639 = vand.u32 %v4826, 2147483648
        %v7640 = vsel %vm7638, %v7639, %v7637
        %v7641 = vrsqrt.pop %v4829
        %v7642 = vmul.f32 %v4829, %v7641
        %vm7643 = vcmp.eq.f32.partialorder %v4829, inf
        %v7644 = vsel %vm7643, %v4829, %v7642
        %vm7645 = vcmp.eq.f32.partialorder %v4829, 0.0
        %v7646 = vand.u32 %v4829, 2147483648
        %v7647 = vsel %vm7645, %v7646, %v7644
        %v7648 = vrsqrt.pop %v4832
        %v7649 = vmul.f32 %v4832, %v7648
        %vm7650 = vcmp.eq.f32.partialorder %v4832, inf
        %v7651 = vsel %vm7650, %v4832, %v7649
        %vm7652 = vcmp.eq.f32.partialorder %v4832, 0.0
        %v7653 = vand.u32 %v4832, 2147483648
        %v7654 = vsel %vm7652, %v7653, %v7651
        %v7655 = vrsqrt.pop %v4835
        %v7656 = vmul.f32 %v4835, %v7655
        %vm7657 = vcmp.eq.f32.partialorder %v4835, inf
        %v7658 = vsel %vm7657, %v4835, %v7656
        %vm7659 = vcmp.eq.f32.partialorder %v4835, 0.0
        %v7660 = vand.u32 %v4835, 2147483648
        %v7661 = vsel %vm7659, %v7660, %v7658
        %v7662 = vrsqrt.pop %v4838
        %v7663 = vmul.f32 %v4838, %v7662
        %vm7664 = vcmp.eq.f32.partialorder %v4838, inf
        %v7665 = vsel %vm7664, %v4838, %v7663
        %vm7666 = vcmp.eq.f32.partialorder %v4838, 0.0
        %v7667 = vand.u32 %v4838, 2147483648
        %v7668 = vsel %vm7666, %v7667, %v7665
        %v7669 = vrsqrt.pop %v4841
        %v7670 = vmul.f32 %v4841, %v7669
        %vm7671 = vcmp.eq.f32.partialorder %v4841, inf
        %v7672 = vsel %vm7671, %v4841, %v7670
        %vm7673 = vcmp.eq.f32.partialorder %v4841, 0.0
        %v7674 = vand.u32 %v4841, 2147483648
        %v7675 = vsel %vm7673, %v7674, %v7672
        %v7676 = vrsqrt.pop %v4844
        %v7677 = vmul.f32 %v4844, %v7676
        %vm7678 = vcmp.eq.f32.partialorder %v4844, inf
        %v7679 = vsel %vm7678, %v4844, %v7677
        %vm7680 = vcmp.eq.f32.partialorder %v4844, 0.0
        %v7681 = vand.u32 %v4844, 2147483648
        %v7682 = vsel %vm7680, %v7681, %v7679
        %v7683 = vrsqrt.pop %v4847
        %v7684 = vmul.f32 %v4847, %v7683
        %vm7685 = vcmp.eq.f32.partialorder %v4847, inf
        %v7686 = vsel %vm7685, %v4847, %v7684
        %vm7687 = vcmp.eq.f32.partialorder %v4847, 0.0
        %v7688 = vand.u32 %v4847, 2147483648
        %v7689 = vsel %vm7687, %v7688, %v7686
        %v7690 = vrsqrt.pop %v4850
        %v7691 = vmul.f32 %v4850, %v7690
        %vm7692 = vcmp.eq.f32.partialorder %v4850, inf
        %v7693 = vsel %vm7692, %v4850, %v7691
        %vm7694 = vcmp.eq.f32.partialorder %v4850, 0.0
        %v7695 = vand.u32 %v4850, 2147483648
        %v7696 = vsel %vm7694, %v7695, %v7693
        %v7697 = vrsqrt.pop %v4853
        %v7698 = vmul.f32 %v4853, %v7697
        %vm7699 = vcmp.eq.f32.partialorder %v4853, inf
        %v7700 = vsel %vm7699, %v4853, %v7698
        %vm7701 = vcmp.eq.f32.partialorder %v4853, 0.0
        %v7702 = vand.u32 %v4853, 2147483648
        %v7703 = vsel %vm7701, %v7702, %v7700
        %v7704 = vrsqrt.pop %v4856
        %v7705 = vmul.f32 %v4856, %v7704
        %vm7706 = vcmp.eq.f32.partialorder %v4856, inf
        %v7707 = vsel %vm7706, %v4856, %v7705
        %vm7708 = vcmp.eq.f32.partialorder %v4856, 0.0
        %v7709 = vand.u32 %v4856, 2147483648
        %v7710 = vsel %vm7708, %v7709, %v7707
        %v7711 = vrsqrt.pop %v4859
        %v7712 = vmul.f32 %v4859, %v7711
        %vm7713 = vcmp.eq.f32.partialorder %v4859, inf
        %v7714 = vsel %vm7713, %v4859, %v7712
        %vm7715 = vcmp.eq.f32.partialorder %v4859, 0.0
        %v7716 = vand.u32 %v4859, 2147483648
        %v7717 = vsel %vm7715, %v7716, %v7714
        %v7718 = vrsqrt.pop %v4862
        %v7719 = vmul.f32 %v4862, %v7718
        %vm7720 = vcmp.eq.f32.partialorder %v4862, inf
        %v7721 = vsel %vm7720, %v4862, %v7719
        %vm7722 = vcmp.eq.f32.partialorder %v4862, 0.0
        %v7723 = vand.u32 %v4862, 2147483648
        %v7724 = vsel %vm7722, %v7723, %v7721
        %v7725 = vrsqrt.pop %v4865
        %v7726 = vmul.f32 %v4865, %v7725
        %vm7727 = vcmp.eq.f32.partialorder %v4865, inf
        %v7728 = vsel %vm7727, %v4865, %v7726
        %vm7729 = vcmp.eq.f32.partialorder %v4865, 0.0
        %v7730 = vand.u32 %v4865, 2147483648
        %v7731 = vsel %vm7729, %v7730, %v7728
        %v7732 = vrsqrt.pop %v4868
        %v7733 = vmul.f32 %v4868, %v7732
        %vm7734 = vcmp.eq.f32.partialorder %v4868, inf
        %v7735 = vsel %vm7734, %v4868, %v7733
        %vm7736 = vcmp.eq.f32.partialorder %v4868, 0.0
        %v7737 = vand.u32 %v4868, 2147483648
        %v7738 = vsel %vm7736, %v7737, %v7735
        %v7739 = vrsqrt.pop %v4871
        %v7740 = vmul.f32 %v4871, %v7739
        %vm7741 = vcmp.eq.f32.partialorder %v4871, inf
        %v7742 = vsel %vm7741, %v4871, %v7740
        %vm7743 = vcmp.eq.f32.partialorder %v4871, 0.0
        %v7744 = vand.u32 %v4871, 2147483648
        %v7745 = vsel %vm7743, %v7744, %v7742
        %v7746 = vrsqrt.pop %v4874
        %v7747 = vmul.f32 %v4874, %v7746
        %vm7748 = vcmp.eq.f32.partialorder %v4874, inf
        %v7749 = vsel %vm7748, %v4874, %v7747
        %vm7750 = vcmp.eq.f32.partialorder %v4874, 0.0
        %v7751 = vand.u32 %v4874, 2147483648
        %v7752 = vsel %vm7750, %v7751, %v7749
        %v7753 = vrsqrt.pop %v4877
        %v7754 = vmul.f32 %v4877, %v7753
        %vm7755 = vcmp.eq.f32.partialorder %v4877, inf
        %v7756 = vsel %vm7755, %v4877, %v7754
        %vm7757 = vcmp.eq.f32.partialorder %v4877, 0.0
        %v7758 = vand.u32 %v4877, 2147483648
        %v7759 = vsel %vm7757, %v7758, %v7756
        %v7760 = vrsqrt.pop %v4880
        %v7761 = vmul.f32 %v4880, %v7760
        %vm7762 = vcmp.eq.f32.partialorder %v4880, inf
        %v7763 = vsel %vm7762, %v4880, %v7761
        %vm7764 = vcmp.eq.f32.partialorder %v4880, 0.0
        %v7765 = vand.u32 %v4880, 2147483648
        %v7766 = vsel %vm7764, %v7765, %v7763
        %v7767 = vrsqrt.pop %v4883
        %v7768 = vmul.f32 %v4883, %v7767
        %vm7769 = vcmp.eq.f32.partialorder %v4883, inf
        %v7770 = vsel %vm7769, %v4883, %v7768
        %vm7771 = vcmp.eq.f32.partialorder %v4883, 0.0
        %v7772 = vand.u32 %v4883, 2147483648
        %v7773 = vsel %vm7771, %v7772, %v7770
        %v7774 = vrsqrt.pop %v4886
        %v7775 = vmul.f32 %v4886, %v7774
        %vm7776 = vcmp.eq.f32.partialorder %v4886, inf
        %v7777 = vsel %vm7776, %v4886, %v7775
        %vm7778 = vcmp.eq.f32.partialorder %v4886, 0.0
        %v7779 = vand.u32 %v4886, 2147483648
        %v7780 = vsel %vm7778, %v7779, %v7777
        %v7781 = vrsqrt.pop %v4889
        %v7782 = vmul.f32 %v4889, %v7781
        %vm7783 = vcmp.eq.f32.partialorder %v4889, inf
        %v7784 = vsel %vm7783, %v4889, %v7782
        %vm7785 = vcmp.eq.f32.partialorder %v4889, 0.0
        %v7786 = vand.u32 %v4889, 2147483648
        %v7787 = vsel %vm7785, %v7786, %v7784
        %v7788 = vrsqrt.pop %v4892
        %v7789 = vmul.f32 %v4892, %v7788
        %vm7790 = vcmp.eq.f32.partialorder %v4892, inf
        %v7791 = vsel %vm7790, %v4892, %v7789
        %vm7792 = vcmp.eq.f32.partialorder %v4892, 0.0
        %v7793 = vand.u32 %v4892, 2147483648
        %v7794 = vsel %vm7792, %v7793, %v7791
        %v7795 = vrsqrt.pop %v4895
        %v7796 = vmul.f32 %v4895, %v7795
        %vm7797 = vcmp.eq.f32.partialorder %v4895, inf
        %v7798 = vsel %vm7797, %v4895, %v7796
        %vm7799 = vcmp.eq.f32.partialorder %v4895, 0.0
        %v7800 = vand.u32 %v4895, 2147483648
        %v7801 = vsel %vm7799, %v7800, %v7798
        %v7802 = vrsqrt.pop %v4898
        %v7803 = vmul.f32 %v4898, %v7802
        %vm7804 = vcmp.eq.f32.partialorder %v4898, inf
        %v7805 = vsel %vm7804, %v4898, %v7803
        %vm7806 = vcmp.eq.f32.partialorder %v4898, 0.0
        %v7807 = vand.u32 %v4898, 2147483648
        %v7808 = vsel %vm7806, %v7807, %v7805
        %v7809 = vrsqrt.pop %v4901
        %v7810 = vmul.f32 %v4901, %v7809
        %vm7811 = vcmp.eq.f32.partialorder %v4901, inf
        %v7812 = vsel %vm7811, %v4901, %v7810
        %vm7813 = vcmp.eq.f32.partialorder %v4901, 0.0
        %v7814 = vand.u32 %v4901, 2147483648
        %v7815 = vsel %vm7813, %v7814, %v7812
        %v7816 = vrsqrt.pop %v4904
        %v7817 = vmul.f32 %v4904, %v7816
        %vm7818 = vcmp.eq.f32.partialorder %v4904, inf
        %v7819 = vsel %vm7818, %v4904, %v7817
        %vm7820 = vcmp.eq.f32.partialorder %v4904, 0.0
        %v7821 = vand.u32 %v4904, 2147483648
        %v7822 = vsel %vm7820, %v7821, %v7819
        %v7823 = vrsqrt.pop %v4907
        %v7824 = vmul.f32 %v4907, %v7823
        %vm7825 = vcmp.eq.f32.partialorder %v4907, inf
        %v7826 = vsel %vm7825, %v4907, %v7824
        %vm7827 = vcmp.eq.f32.partialorder %v4907, 0.0
        %v7828 = vand.u32 %v4907, 2147483648
        %v7829 = vsel %vm7827, %v7828, %v7826
        %v7830 = vrsqrt.pop %v4910
        %v7831 = vmul.f32 %v4910, %v7830
        %vm7832 = vcmp.eq.f32.partialorder %v4910, inf
        %v7833 = vsel %vm7832, %v4910, %v7831
        %vm7834 = vcmp.eq.f32.partialorder %v4910, 0.0
        %v7835 = vand.u32 %v4910, 2147483648
        %v7836 = vsel %vm7834, %v7835, %v7833
        %v7837 = vrsqrt.pop %v4913
        %v7838 = vmul.f32 %v4913, %v7837
        %vm7839 = vcmp.eq.f32.partialorder %v4913, inf
        %v7840 = vsel %vm7839, %v4913, %v7838
        %vm7841 = vcmp.eq.f32.partialorder %v4913, 0.0
        %v7842 = vand.u32 %v4913, 2147483648
        %v7843 = vsel %vm7841, %v7842, %v7840
        %v7844 = vrsqrt.pop %v4916
        %v7845 = vmul.f32 %v4916, %v7844
        %vm7846 = vcmp.eq.f32.partialorder %v4916, inf
        %v7847 = vsel %vm7846, %v4916, %v7845
        %vm7848 = vcmp.eq.f32.partialorder %v4916, 0.0
        %v7849 = vand.u32 %v4916, 2147483648
        %v7850 = vsel %vm7848, %v7849, %v7847
        %v7851 = vrsqrt.pop %v4919
        %v7852 = vmul.f32 %v4919, %v7851
        %vm7853 = vcmp.eq.f32.partialorder %v4919, inf
        %v7854 = vsel %vm7853, %v4919, %v7852
        %vm7855 = vcmp.eq.f32.partialorder %v4919, 0.0
        %v7856 = vand.u32 %v4919, 2147483648
        %v7857 = vsel %vm7855, %v7856, %v7854
        %v7858 = vrsqrt.pop %v4922
        %v7859 = vmul.f32 %v4922, %v7858
        %vm7860 = vcmp.eq.f32.partialorder %v4922, inf
        %v7861 = vsel %vm7860, %v4922, %v7859
        %vm7862 = vcmp.eq.f32.partialorder %v4922, 0.0
        %v7863 = vand.u32 %v4922, 2147483648
        %v7864 = vsel %vm7862, %v7863, %v7861
        %v7865 = vrsqrt.pop %v4925
        %v7866 = vmul.f32 %v4925, %v7865
        %vm7867 = vcmp.eq.f32.partialorder %v4925, inf
        %v7868 = vsel %vm7867, %v4925, %v7866
        %vm7869 = vcmp.eq.f32.partialorder %v4925, 0.0
        %v7870 = vand.u32 %v4925, 2147483648
        %v7871 = vsel %vm7869, %v7870, %v7868
        %v7872 = vrsqrt.pop %v4928
        %v7873 = vmul.f32 %v4928, %v7872
        %vm7874 = vcmp.eq.f32.partialorder %v4928, inf
        %v7875 = vsel %vm7874, %v4928, %v7873
        %vm7876 = vcmp.eq.f32.partialorder %v4928, 0.0
        %v7877 = vand.u32 %v4928, 2147483648
        %v7878 = vsel %vm7876, %v7877, %v7875
        %v7879 = vrsqrt.pop %v4931
        %v7880 = vmul.f32 %v4931, %v7879
        %vm7881 = vcmp.eq.f32.partialorder %v4931, inf
        %v7882 = vsel %vm7881, %v4931, %v7880
        %vm7883 = vcmp.eq.f32.partialorder %v4931, 0.0
        %v7884 = vand.u32 %v4931, 2147483648
        %v7885 = vsel %vm7883, %v7884, %v7882
        %v7886 = vrsqrt.pop %v4934
        %v7887 = vmul.f32 %v4934, %v7886
        %vm7888 = vcmp.eq.f32.partialorder %v4934, inf
        %v7889 = vsel %vm7888, %v4934, %v7887
        %vm7890 = vcmp.eq.f32.partialorder %v4934, 0.0
        %v7891 = vand.u32 %v4934, 2147483648
        %v7892 = vsel %vm7890, %v7891, %v7889
        %v7893 = vrsqrt.pop %v4937
        %v7894 = vmul.f32 %v4937, %v7893
        %vm7895 = vcmp.eq.f32.partialorder %v4937, inf
        %v7896 = vsel %vm7895, %v4937, %v7894
        %vm7897 = vcmp.eq.f32.partialorder %v4937, 0.0
        %v7898 = vand.u32 %v4937, 2147483648
        %v7899 = vsel %vm7897, %v7898, %v7896
        %v7900 = vrsqrt.pop %v4940
        %v7901 = vmul.f32 %v4940, %v7900
        %vm7902 = vcmp.eq.f32.partialorder %v4940, inf
        %v7903 = vsel %vm7902, %v4940, %v7901
        %vm7904 = vcmp.eq.f32.partialorder %v4940, 0.0
        %v7905 = vand.u32 %v4940, 2147483648
        %v7906 = vsel %vm7904, %v7905, %v7903
        %v7907 = vrsqrt.pop %v4943
        %v7908 = vmul.f32 %v4943, %v7907
        %vm7909 = vcmp.eq.f32.partialorder %v4943, inf
        %v7910 = vsel %vm7909, %v4943, %v7908
        %vm7911 = vcmp.eq.f32.partialorder %v4943, 0.0
        %v7912 = vand.u32 %v4943, 2147483648
        %v7913 = vsel %vm7911, %v7912, %v7910
        %v7914 = vrsqrt.pop %v4946
        %v7915 = vmul.f32 %v4946, %v7914
        %vm7916 = vcmp.eq.f32.partialorder %v4946, inf
        %v7917 = vsel %vm7916, %v4946, %v7915
        %vm7918 = vcmp.eq.f32.partialorder %v4946, 0.0
        %v7919 = vand.u32 %v4946, 2147483648
        %v7920 = vsel %vm7918, %v7919, %v7917
        %v7921 = vrsqrt.pop %v4949
        %v7922 = vmul.f32 %v4949, %v7921
        %vm7923 = vcmp.eq.f32.partialorder %v4949, inf
        %v7924 = vsel %vm7923, %v4949, %v7922
        %vm7925 = vcmp.eq.f32.partialorder %v4949, 0.0
        %v7926 = vand.u32 %v4949, 2147483648
        %v7927 = vsel %vm7925, %v7926, %v7924
        %v7928 = vrsqrt.pop %v4952
        %v7929 = vmul.f32 %v4952, %v7928
        %vm7930 = vcmp.eq.f32.partialorder %v4952, inf
        %v7931 = vsel %vm7930, %v4952, %v7929
        %vm7932 = vcmp.eq.f32.partialorder %v4952, 0.0
        %v7933 = vand.u32 %v4952, 2147483648
        %v7934 = vsel %vm7932, %v7933, %v7931
        %v7935 = vrsqrt.pop %v4955
        %v7936 = vmul.f32 %v4955, %v7935
        %vm7937 = vcmp.eq.f32.partialorder %v4955, inf
        %v7938 = vsel %vm7937, %v4955, %v7936
        %vm7939 = vcmp.eq.f32.partialorder %v4955, 0.0
        %v7940 = vand.u32 %v4955, 2147483648
        %v7941 = vsel %vm7939, %v7940, %v7938
        %v7942 = vrsqrt.pop %v4958
        %v7943 = vmul.f32 %v4958, %v7942
        %vm7944 = vcmp.eq.f32.partialorder %v4958, inf
        %v7945 = vsel %vm7944, %v4958, %v7943
        %vm7946 = vcmp.eq.f32.partialorder %v4958, 0.0
        %v7947 = vand.u32 %v4958, 2147483648
        %v7948 = vsel %vm7946, %v7947, %v7945
        %v7949 = vrsqrt.pop %v4961
        %v7950 = vmul.f32 %v4961, %v7949
        %vm7951 = vcmp.eq.f32.partialorder %v4961, inf
        %v7952 = vsel %vm7951, %v4961, %v7950
        %vm7953 = vcmp.eq.f32.partialorder %v4961, 0.0
        %v7954 = vand.u32 %v4961, 2147483648
        %v7955 = vsel %vm7953, %v7954, %v7952
        %v7956 = vrsqrt.pop %v4964
        %v7957 = vmul.f32 %v4964, %v7956
        %vm7958 = vcmp.eq.f32.partialorder %v4964, inf
        %v7959 = vsel %vm7958, %v4964, %v7957
        %vm7960 = vcmp.eq.f32.partialorder %v4964, 0.0
        %v7961 = vand.u32 %v4964, 2147483648
        %v7962 = vsel %vm7960, %v7961, %v7959
        %v7963 = vrsqrt.pop %v4967
        %v7964 = vmul.f32 %v4967, %v7963
        %vm7965 = vcmp.eq.f32.partialorder %v4967, inf
        %v7966 = vsel %vm7965, %v4967, %v7964
        %vm7967 = vcmp.eq.f32.partialorder %v4967, 0.0
        %v7968 = vand.u32 %v4967, 2147483648
        %v7969 = vsel %vm7967, %v7968, %v7966
        %v7970 = vrsqrt.pop %v4970
        %v7971 = vmul.f32 %v4970, %v7970
        %vm7972 = vcmp.eq.f32.partialorder %v4970, inf
        %v7973 = vsel %vm7972, %v4970, %v7971
        %vm7974 = vcmp.eq.f32.partialorder %v4970, 0.0
        %v7975 = vand.u32 %v4970, 2147483648
        %v7976 = vsel %vm7974, %v7975, %v7973
        %v7977 = vrsqrt.pop %v4973
        %v7978 = vmul.f32 %v4973, %v7977
        %vm7979 = vcmp.eq.f32.partialorder %v4973, inf
        %v7980 = vsel %vm7979, %v4973, %v7978
        %vm7981 = vcmp.eq.f32.partialorder %v4973, 0.0
        %v7982 = vand.u32 %v4973, 2147483648
        %v7983 = vsel %vm7981, %v7982, %v7980
        %v7984 = vrsqrt.pop %v4976
        %v7985 = vmul.f32 %v4976, %v7984
        %vm7986 = vcmp.eq.f32.partialorder %v4976, inf
        %v7987 = vsel %vm7986, %v4976, %v7985
        %vm7988 = vcmp.eq.f32.partialorder %v4976, 0.0
        %v7989 = vand.u32 %v4976, 2147483648
        %v7990 = vsel %vm7988, %v7989, %v7987
        %v7991 = vrsqrt.pop %v4979
        %v7992 = vmul.f32 %v4979, %v7991
        %vm7993 = vcmp.eq.f32.partialorder %v4979, inf
        %v7994 = vsel %vm7993, %v4979, %v7992
        %vm7995 = vcmp.eq.f32.partialorder %v4979, 0.0
        %v7996 = vand.u32 %v4979, 2147483648
        %v7997 = vsel %vm7995, %v7996, %v7994
        %v7998 = vrsqrt.pop %v4982
        %v7999 = vmul.f32 %v4982, %v7998
        %vm8000 = vcmp.eq.f32.partialorder %v4982, inf
        %v8001 = vsel %vm8000, %v4982, %v7999
        %vm8002 = vcmp.eq.f32.partialorder %v4982, 0.0
        %v8003 = vand.u32 %v4982, 2147483648
        %v8004 = vsel %vm8002, %v8003, %v8001
        %v8005 = vrsqrt.pop %v4985
        %v8006 = vmul.f32 %v4985, %v8005
        %vm8007 = vcmp.eq.f32.partialorder %v4985, inf
        %v8008 = vsel %vm8007, %v4985, %v8006
        %vm8009 = vcmp.eq.f32.partialorder %v4985, 0.0
        %v8010 = vand.u32 %v4985, 2147483648
        %v8011 = vsel %vm8009, %v8010, %v8008
        %v8012 = vrsqrt.pop %v4988
        %v8013 = vmul.f32 %v4988, %v8012
        %vm8014 = vcmp.eq.f32.partialorder %v4988, inf
        %v8015 = vsel %vm8014, %v4988, %v8013
        %vm8016 = vcmp.eq.f32.partialorder %v4988, 0.0
        %v8017 = vand.u32 %v4988, 2147483648
        %v8018 = vsel %vm8016, %v8017, %v8015
        %v8019 = vrsqrt.pop %v4991
        %v8020 = vmul.f32 %v4991, %v8019
        %vm8021 = vcmp.eq.f32.partialorder %v4991, inf
        %v8022 = vsel %vm8021, %v4991, %v8020
        %vm8023 = vcmp.eq.f32.partialorder %v4991, 0.0
        %v8024 = vand.u32 %v4991, 2147483648
        %v8025 = vsel %vm8023, %v8024, %v8022
        %v8026 = vrsqrt.pop %v4994
        %v8027 = vmul.f32 %v4994, %v8026
        %vm8028 = vcmp.eq.f32.partialorder %v4994, inf
        %v8029 = vsel %vm8028, %v4994, %v8027
        %vm8030 = vcmp.eq.f32.partialorder %v4994, 0.0
        %v8031 = vand.u32 %v4994, 2147483648
        %v8032 = vsel %vm8030, %v8031, %v8029
        %v8033 = vrsqrt.pop %v4997
        %v8034 = vmul.f32 %v4997, %v8033
        %vm8035 = vcmp.eq.f32.partialorder %v4997, inf
        %v8036 = vsel %vm8035, %v4997, %v8034
        %vm8037 = vcmp.eq.f32.partialorder %v4997, 0.0
        %v8038 = vand.u32 %v4997, 2147483648
        %v8039 = vsel %vm8037, %v8038, %v8036
        %v8040 = vrsqrt.pop %v5000
        %v8041 = vmul.f32 %v5000, %v8040
        %vm8042 = vcmp.eq.f32.partialorder %v5000, inf
        %v8043 = vsel %vm8042, %v5000, %v8041
        %vm8044 = vcmp.eq.f32.partialorder %v5000, 0.0
        %v8045 = vand.u32 %v5000, 2147483648
        %v8046 = vsel %vm8044, %v8045, %v8043
        %v8047 = vrsqrt.pop %v5003
        %v8048 = vmul.f32 %v5003, %v8047
        %vm8049 = vcmp.eq.f32.partialorder %v5003, inf
        %v8050 = vsel %vm8049, %v5003, %v8048
        %vm8051 = vcmp.eq.f32.partialorder %v5003, 0.0
        %v8052 = vand.u32 %v5003, 2147483648
        %v8053 = vsel %vm8051, %v8052, %v8050
        %v8054 = vmul.f32 %v7500, %v6054
        %v8055 = vmul.f32 %v7507, %v6055
        %v8056 = vmul.f32 %v7514, %v6056
        %v8057 = vmul.f32 %v7521, %v6057
        %v8058 = vmul.f32 %v7528, %v6058
        %v8059 = vmul.f32 %v7535, %v6059
        %v8060 = vmul.f32 %v7542, %v6060
        %v8061 = vmul.f32 %v7549, %v6061
        %v8062 = vmul.f32 %v7556, %v6062
        %v8063 = vmul.f32 %v7563, %v6063
        %v8064 = vmul.f32 %v7570, %v6064
        %v8065 = vmul.f32 %v7577, %v6065
        %v8066 = vmul.f32 %v7584, %v6066
        %v8067 = vmul.f32 %v7591, %v6067
        %v8068 = vmul.f32 %v7598, %v6068
        %v8069 = vmul.f32 %v7605, %v6069
        %v8070 = vmul.f32 %v7612, %v6070
        %v8071 = vmul.f32 %v7619, %v6071
        %v8072 = vmul.f32 %v7626, %v6072
        %v8073 = vmul.f32 %v7633, %v6073
        %v8074 = vmul.f32 %v7640, %v6074
        %v8075 = vmul.f32 %v7647, %v6075
        %v8076 = vmul.f32 %v7654, %v6076
        %v8077 = vmul.f32 %v7661, %v6077
        %v8078 = vmul.f32 %v7668, %v6078
        %v8079 = vmul.f32 %v7675, %v6079
        %v8080 = vmul.f32 %v7682, %v6080
        %v8081 = vmul.f32 %v7689, %v6081
        %v8082 = vmul.f32 %v7696, %v6082
        %v8083 = vmul.f32 %v7703, %v6083
        %v8084 = vmul.f32 %v7710, %v6084
        %v8085 = vmul.f32 %v7717, %v6085
        %v8086 = vmul.f32 %v7724, %v6086
        %v8087 = vmul.f32 %v7731, %v6087
        %v8088 = vmul.f32 %v7738, %v6088
        %v8089 = vmul.f32 %v7745, %v6089
        %v8090 = vmul.f32 %v7752, %v6090
        %v8091 = vmul.f32 %v7759, %v6091
        %v8092 = vmul.f32 %v7766, %v6092
        %v8093 = vmul.f32 %v7773, %v6093
        %v8094 = vmul.f32 %v7780, %v6094
        %v8095 = vmul.f32 %v7787, %v6095
        %v8096 = vmul.f32 %v7794, %v6096
        %v8097 = vmul.f32 %v7801, %v6097
        %v8098 = vmul.f32 %v7808, %v6098
        %v8099 = vmul.f32 %v7815, %v6099
        %v8100 = vmul.f32 %v7822, %v6100
        %v8101 = vmul.f32 %v7829, %v6101
        %v8102 = vmul.f32 %v7836, %v6102
        %v8103 = vmul.f32 %v7843, %v6103
        %v8104 = vmul.f32 %v7850, %v6104
        %v8105 = vmul.f32 %v7857, %v6105
        %v8106 = vmul.f32 %v7864, %v6106
        %v8107 = vmul.f32 %v7871, %v6107
        %v8108 = vmul.f32 %v7878, %v6108
        %v8109 = vmul.f32 %v7885, %v6109
        %v8110 = vmul.f32 %v7892, %v6110
        %v8111 = vmul.f32 %v7899, %v6111
        %v8112 = vmul.f32 %v7906, %v6112
        %v8113 = vmul.f32 %v7913, %v6113
        %v8114 = vmul.f32 %v7920, %v6114
        %v8115 = vmul.f32 %v7927, %v6115
        %v8116 = vmul.f32 %v7934, %v6116
        %v8117 = vmul.f32 %v7941, %v6117
        %v8118 = vmul.f32 %v7948, %v6118
        %v8119 = vmul.f32 %v7955, %v6119
        %v8120 = vmul.f32 %v7962, %v6120
        %v8121 = vmul.f32 %v7969, %v6121
        %v8122 = vmul.f32 %v7976, %v6122
        %v8123 = vmul.f32 %v7983, %v6123
        %v8124 = vmul.f32 %v7990, %v6124
        %v8125 = vmul.f32 %v7997, %v6125
        %v8126 = vmul.f32 %v8004, %v6126
        %v8127 = vmul.f32 %v8011, %v6127
        %v8128 = vmul.f32 %v8018, %v6128
        %v8129 = vmul.f32 %v8025, %v6129
        %v8130 = vmul.f32 %v8032, %v6130
        %v8131 = vmul.f32 %v8039, %v6131
        %v8132 = vmul.f32 %v8046, %v6132
        %v8133 = vmul.f32 %v8053, %v6133
        %v8134 = vmul.f32 %v7414, %v6054
        %v8135 = vmul.f32 %v7415, %v6055
        %v8136 = vmul.f32 %v7416, %v6056
        %v8137 = vmul.f32 %v7417, %v6057
        %v8138 = vmul.f32 %v7418, %v6058
        %v8139 = vmul.f32 %v7419, %v6059
        %v8140 = vmul.f32 %v7420, %v6060
        %v8141 = vmul.f32 %v7421, %v6061
        %v8142 = vmul.f32 %v7422, %v6062
        %v8143 = vmul.f32 %v7423, %v6063
        %v8144 = vmul.f32 %v7424, %v6064
        %v8145 = vmul.f32 %v7425, %v6065
        %v8146 = vmul.f32 %v7426, %v6066
        %v8147 = vmul.f32 %v7427, %v6067
        %v8148 = vmul.f32 %v7428, %v6068
        %v8149 = vmul.f32 %v7429, %v6069
        %v8150 = vmul.f32 %v7430, %v6070
        %v8151 = vmul.f32 %v7431, %v6071
        %v8152 = vmul.f32 %v7432, %v6072
        %v8153 = vmul.f32 %v7433, %v6073
        %v8154 = vmul.f32 %v7434, %v6074
        %v8155 = vmul.f32 %v7435, %v6075
        %v8156 = vmul.f32 %v7436, %v6076
        %v8157 = vmul.f32 %v7437, %v6077
        %v8158 = vmul.f32 %v7438, %v6078
        %v8159 = vmul.f32 %v7439, %v6079
        %v8160 = vmul.f32 %v7440, %v6080
        %v8161 = vmul.f32 %v7441, %v6081
        %v8162 = vmul.f32 %v7442, %v6082
        %v8163 = vmul.f32 %v7443, %v6083
        %v8164 = vmul.f32 %v7444, %v6084
        %v8165 = vmul.f32 %v7445, %v6085
        %v8166 = vmul.f32 %v7446, %v6086
        %v8167 = vmul.f32 %v7447, %v6087
        %v8168 = vmul.f32 %v7448, %v6088
        %v8169 = vmul.f32 %v7449, %v6089
        %v8170 = vmul.f32 %v7450, %v6090
        %v8171 = vmul.f32 %v7451, %v6091
        %v8172 = vmul.f32 %v7452, %v6092
        %v8173 = vmul.f32 %v7453, %v6093
        %v8174 = vmul.f32 %v7454, %v6094
        %v8175 = vmul.f32 %v7455, %v6095
        %v8176 = vmul.f32 %v7456, %v6096
        %v8177 = vmul.f32 %v7457, %v6097
        %v8178 = vmul.f32 %v7458, %v6098
        %v8179 = vmul.f32 %v7459, %v6099
        %v8180 = vmul.f32 %v7460, %v6100
        %v8181 = vmul.f32 %v7461, %v6101
        %v8182 = vmul.f32 %v7462, %v6102
        %v8183 = vmul.f32 %v7463, %v6103
        %v8184 = vmul.f32 %v7464, %v6104
        %v8185 = vmul.f32 %v7465, %v6105
        %v8186 = vmul.f32 %v7466, %v6106
        %v8187 = vmul.f32 %v7467, %v6107
        %v8188 = vmul.f32 %v7468, %v6108
        %v8189 = vmul.f32 %v7469, %v6109
        %v8190 = vmul.f32 %v7470, %v6110
        %v8191 = vmul.f32 %v7471, %v6111
        %v8192 = vmul.f32 %v7472, %v6112
        %v8193 = vmul.f32 %v7473, %v6113
        %v8194 = vmul.f32 %v7474, %v6114
        %v8195 = vmul.f32 %v7475, %v6115
        %v8196 = vmul.f32 %v7476, %v6116
        %v8197 = vmul.f32 %v7477, %v6117
        %v8198 = vmul.f32 %v7478, %v6118
        %v8199 = vmul.f32 %v7479, %v6119
        %v8200 = vmul.f32 %v7480, %v6120
        %v8201 = vmul.f32 %v7481, %v6121
        %v8202 = vmul.f32 %v7482, %v6122
        %v8203 = vmul.f32 %v7483, %v6123
        %v8204 = vmul.f32 %v7484, %v6124
        %v8205 = vmul.f32 %v7485, %v6125
        %v8206 = vmul.f32 %v7486, %v6126
        %v8207 = vmul.f32 %v7487, %v6127
        %v8208 = vmul.f32 %v7488, %v6128
        %v8209 = vmul.f32 %v7489, %v6129
        %v8210 = vmul.f32 %v7490, %v6130
        %v8211 = vmul.f32 %v7491, %v6131
        %v8212 = vmul.f32 %v7492, %v6132
        %v8213 = vmul.f32 %v7493, %v6133
        %v8214 = vsub.f32 1.0, %v8134
        %v8215 = vsub.f32 1.0, %v8135
        %v8216 = vsub.f32 1.0, %v8136
        %v8217 = vsub.f32 1.0, %v8137
        %v8218 = vsub.f32 1.0, %v8138
        %v8219 = vsub.f32 1.0, %v8139
        %v8220 = vsub.f32 1.0, %v8140
        %v8221 = vsub.f32 1.0, %v8141
        %v8222 = vsub.f32 1.0, %v8142
        %v8223 = vsub.f32 1.0, %v8143
        %v8224 = vsub.f32 1.0, %v8144
        %v8225 = vsub.f32 1.0, %v8145
        %v8226 = vsub.f32 1.0, %v8146
        %v8227 = vsub.f32 1.0, %v8147
        %v8228 = vsub.f32 1.0, %v8148
        %v8229 = vsub.f32 1.0, %v8149
        %v8230 = vsub.f32 1.0, %v8150
        %v8231 = vsub.f32 1.0, %v8151
        %v8232 = vsub.f32 1.0, %v8152
        %v8233 = vsub.f32 1.0, %v8153
        %v8234 = vsub.f32 1.0, %v8154
        %v8235 = vsub.f32 1.0, %v8155
        %v8236 = vsub.f32 1.0, %v8156
        %v8237 = vsub.f32 1.0, %v8157
        %v8238 = vsub.f32 1.0, %v8158
        %v8239 = vsub.f32 1.0, %v8159
        %v8240 = vsub.f32 1.0, %v8160
        %v8241 = vsub.f32 1.0, %v8161
        %v8242 = vsub.f32 1.0, %v8162
        %v8243 = vsub.f32 1.0, %v8163
        %v8244 = vsub.f32 1.0, %v8164
        %v8245 = vsub.f32 1.0, %v8165
        %v8246 = vsub.f32 1.0, %v8166
        %v8247 = vsub.f32 1.0, %v8167
        %v8248 = vsub.f32 1.0, %v8168
        %v8249 = vsub.f32 1.0, %v8169
        %v8250 = vsub.f32 1.0, %v8170
        %v8251 = vsub.f32 1.0, %v8171
        %v8252 = vsub.f32 1.0, %v8172
        %v8253 = vsub.f32 1.0, %v8173
        %v8254 = vsub.f32 1.0, %v8174
        %v8255 = vsub.f32 1.0, %v8175
        %v8256 = vsub.f32 1.0, %v8176
        %v8257 = vsub.f32 1.0, %v8177
        %v8258 = vsub.f32 1.0, %v8178
        %v8259 = vsub.f32 1.0, %v8179
        %v8260 = vsub.f32 1.0, %v8180
        %v8261 = vsub.f32 1.0, %v8181
        %v8262 = vsub.f32 1.0, %v8182
        %v8263 = vsub.f32 1.0, %v8183
        %v8264 = vsub.f32 1.0, %v8184
        %v8265 = vsub.f32 1.0, %v8185
        %v8266 = vsub.f32 1.0, %v8186
        %v8267 = vsub.f32 1.0, %v8187
        %v8268 = vsub.f32 1.0, %v8188
        %v8269 = vsub.f32 1.0, %v8189
        %v8270 = vsub.f32 1.0, %v8190
        %v8271 = vsub.f32 1.0, %v8191
        %v8272 = vsub.f32 1.0, %v8192
        %v8273 = vsub.f32 1.0, %v8193
        %v8274 = vsub.f32 1.0, %v8194
        %v8275 = vsub.f32 1.0, %v8195
        %v8276 = vsub.f32 1.0, %v8196
        %v8277 = vsub.f32 1.0, %v8197
        %v8278 = vsub.f32 1.0, %v8198
        %v8279 = vsub.f32 1.0, %v8199
        %v8280 = vsub.f32 1.0, %v8200
        %v8281 = vsub.f32 1.0, %v8201
        %v8282 = vsub.f32 1.0, %v8202
        %v8283 = vsub.f32 1.0, %v8203
        %v8284 = vsub.f32 1.0, %v8204
        %v8285 = vsub.f32 1.0, %v8205
        %v8286 = vsub.f32 1.0, %v8206
        %v8287 = vsub.f32 1.0, %v8207
        %v8288 = vsub.f32 1.0, %v8208
        %v8289 = vsub.f32 1.0, %v8209
        %v8290 = vsub.f32 1.0, %v8210
        %v8291 = vsub.f32 1.0, %v8211
        %v8292 = vsub.f32 1.0, %v8212
        %v8293 = vsub.f32 1.0, %v8213
        %v8294 = vmul.f32 %v8214, %v8054
        %v8295 = vmul.f32 %v8215, %v8055
        %v8296 = vmul.f32 %v8216, %v8056
        %v8297 = vmul.f32 %v8217, %v8057
        %v8298 = vmul.f32 %v8218, %v8058
        %v8299 = vmul.f32 %v8219, %v8059
        %v8300 = vmul.f32 %v8220, %v8060
        %v8301 = vmul.f32 %v8221, %v8061
        %v8302 = vmul.f32 %v8222, %v8062
        %v8303 = vmul.f32 %v8223, %v8063
        %v8304 = vmul.f32 %v8224, %v8064
        %v8305 = vmul.f32 %v8225, %v8065
        %v8306 = vmul.f32 %v8226, %v8066
        %v8307 = vmul.f32 %v8227, %v8067
        %v8308 = vmul.f32 %v8228, %v8068
        %v8309 = vmul.f32 %v8229, %v8069
        %v8310 = vmul.f32 %v8230, %v8070
        %v8311 = vmul.f32 %v8231, %v8071
        %v8312 = vmul.f32 %v8232, %v8072
        %v8313 = vmul.f32 %v8233, %v8073
        %v8314 = vmul.f32 %v8234, %v8074
        %v8315 = vmul.f32 %v8235, %v8075
        %v8316 = vmul.f32 %v8236, %v8076
        %v8317 = vmul.f32 %v8237, %v8077
        %v8318 = vmul.f32 %v8238, %v8078
        %v8319 = vmul.f32 %v8239, %v8079
        %v8320 = vmul.f32 %v8240, %v8080
        %v8321 = vmul.f32 %v8241, %v8081
        %v8322 = vmul.f32 %v8242, %v8082
        %v8323 = vmul.f32 %v8243, %v8083
        %v8324 = vmul.f32 %v8244, %v8084
        %v8325 = vmul.f32 %v8245, %v8085
        %v8326 = vmul.f32 %v8246, %v8086
        %v8327 = vmul.f32 %v8247, %v8087
        %v8328 = vmul.f32 %v8248, %v8088
        %v8329 = vmul.f32 %v8249, %v8089
        %v8330 = vmul.f32 %v8250, %v8090
        %v8331 = vmul.f32 %v8251, %v8091
        %v8332 = vmul.f32 %v8252, %v8092
        %v8333 = vmul.f32 %v8253, %v8093
        %v8334 = vmul.f32 %v8254, %v8094
        %v8335 = vmul.f32 %v8255, %v8095
        %v8336 = vmul.f32 %v8256, %v8096
        %v8337 = vmul.f32 %v8257, %v8097
        %v8338 = vmul.f32 %v8258, %v8098
        %v8339 = vmul.f32 %v8259, %v8099
        %v8340 = vmul.f32 %v8260, %v8100
        %v8341 = vmul.f32 %v8261, %v8101
        %v8342 = vmul.f32 %v8262, %v8102
        %v8343 = vmul.f32 %v8263, %v8103
        %v8344 = vmul.f32 %v8264, %v8104
        %v8345 = vmul.f32 %v8265, %v8105
        %v8346 = vmul.f32 %v8266, %v8106
        %v8347 = vmul.f32 %v8267, %v8107
        %v8348 = vmul.f32 %v8268, %v8108
        %v8349 = vmul.f32 %v8269, %v8109
        %v8350 = vmul.f32 %v8270, %v8110
        %v8351 = vmul.f32 %v8271, %v8111
        %v8352 = vmul.f32 %v8272, %v8112
        %v8353 = vmul.f32 %v8273, %v8113
        %v8354 = vmul.f32 %v8274, %v8114
        %v8355 = vmul.f32 %v8275, %v8115
        %v8356 = vmul.f32 %v8276, %v8116
        %v8357 = vmul.f32 %v8277, %v8117
        %v8358 = vmul.f32 %v8278, %v8118
        %v8359 = vmul.f32 %v8279, %v8119
        %v8360 = vmul.f32 %v8280, %v8120
        %v8361 = vmul.f32 %v8281, %v8121
        %v8362 = vmul.f32 %v8282, %v8122
        %v8363 = vmul.f32 %v8283, %v8123
        %v8364 = vmul.f32 %v8284, %v8124
        %v8365 = vmul.f32 %v8285, %v8125
        %v8366 = vmul.f32 %v8286, %v8126
        %v8367 = vmul.f32 %v8287, %v8127
        %v8368 = vmul.f32 %v8288, %v8128
        %v8369 = vmul.f32 %v8289, %v8129
        %v8370 = vmul.f32 %v8290, %v8130
        %v8371 = vmul.f32 %v8291, %v8131
        %v8372 = vmul.f32 %v8292, %v8132
        %v8373 = vmul.f32 %v8293, %v8133
        %v8374 = vmul.f32 %v6294, 2.0
        %v8375 = vmul.f32 %v6295, 2.0
        %v8376 = vmul.f32 %v6296, 2.0
        %v8377 = vmul.f32 %v6297, 2.0
        %v8378 = vmul.f32 %v6298, 2.0
        %v8379 = vmul.f32 %v6299, 2.0
        %v8380 = vmul.f32 %v6300, 2.0
        %v8381 = vmul.f32 %v6301, 2.0
        %v8382 = vmul.f32 %v6302, 2.0
        %v8383 = vmul.f32 %v6303, 2.0
        %v8384 = vmul.f32 %v6304, 2.0
        %v8385 = vmul.f32 %v6305, 2.0
        %v8386 = vmul.f32 %v6306, 2.0
        %v8387 = vmul.f32 %v6307, 2.0
        %v8388 = vmul.f32 %v6308, 2.0
        %v8389 = vmul.f32 %v6309, 2.0
        %v8390 = vmul.f32 %v6310, 2.0
        %v8391 = vmul.f32 %v6311, 2.0
        %v8392 = vmul.f32 %v6312, 2.0
        %v8393 = vmul.f32 %v6313, 2.0
        %v8394 = vmul.f32 %v6314, 2.0
        %v8395 = vmul.f32 %v6315, 2.0
        %v8396 = vmul.f32 %v6316, 2.0
        %v8397 = vmul.f32 %v6317, 2.0
        %v8398 = vmul.f32 %v6318, 2.0
        %v8399 = vmul.f32 %v6319, 2.0
        %v8400 = vmul.f32 %v6320, 2.0
        %v8401 = vmul.f32 %v6321, 2.0
        %v8402 = vmul.f32 %v6322, 2.0
        %v8403 = vmul.f32 %v6323, 2.0
        %v8404 = vmul.f32 %v6324, 2.0
        %v8405 = vmul.f32 %v6325, 2.0
        %v8406 = vmul.f32 %v6326, 2.0
        %v8407 = vmul.f32 %v6327, 2.0
        %v8408 = vmul.f32 %v6328, 2.0
        %v8409 = vmul.f32 %v6329, 2.0
        %v8410 = vmul.f32 %v6330, 2.0
        %v8411 = vmul.f32 %v6331, 2.0
        %v8412 = vmul.f32 %v6332, 2.0
        %v8413 = vmul.f32 %v6333, 2.0
        %v8414 = vmul.f32 %v6334, 2.0
        %v8415 = vmul.f32 %v6335, 2.0
        %v8416 = vmul.f32 %v6336, 2.0
        %v8417 = vmul.f32 %v6337, 2.0
        %v8418 = vmul.f32 %v6338, 2.0
        %v8419 = vmul.f32 %v6339, 2.0
        %v8420 = vmul.f32 %v6340, 2.0
        %v8421 = vmul.f32 %v6341, 2.0
        %v8422 = vmul.f32 %v6342, 2.0
        %v8423 = vmul.f32 %v6343, 2.0
        %v8424 = vmul.f32 %v6344, 2.0
        %v8425 = vmul.f32 %v6345, 2.0
        %v8426 = vmul.f32 %v6346, 2.0
        %v8427 = vmul.f32 %v6347, 2.0
        %v8428 = vmul.f32 %v6348, 2.0
        %v8429 = vmul.f32 %v6349, 2.0
        %v8430 = vmul.f32 %v6350, 2.0
        %v8431 = vmul.f32 %v6351, 2.0
        %v8432 = vmul.f32 %v6352, 2.0
        %v8433 = vmul.f32 %v6353, 2.0
        %v8434 = vmul.f32 %v6354, 2.0
        %v8435 = vmul.f32 %v6355, 2.0
        %v8436 = vmul.f32 %v6356, 2.0
        %v8437 = vmul.f32 %v6357, 2.0
        %v8438 = vmul.f32 %v6358, 2.0
        %v8439 = vmul.f32 %v6359, 2.0
        %v8440 = vmul.f32 %v6360, 2.0
        %v8441 = vmul.f32 %v6361, 2.0
        %v8442 = vmul.f32 %v6362, 2.0
        %v8443 = vmul.f32 %v6363, 2.0
        %v8444 = vmul.f32 %v6364, 2.0
        %v8445 = vmul.f32 %v6365, 2.0
        %v8446 = vmul.f32 %v6366, 2.0
        %v8447 = vmul.f32 %v6367, 2.0
        %v8448 = vmul.f32 %v6368, 2.0
        %v8449 = vmul.f32 %v6369, 2.0
        %v8450 = vmul.f32 %v6370, 2.0
        %v8451 = vmul.f32 %v6371, 2.0
        %v8452 = vmul.f32 %v6372, 2.0
        %v8453 = vmul.f32 %v6373, 2.0
        %v8454 = vsub.f32 %v8374, %v7414
        %v8455 = vsub.f32 %v8375, %v7415
        %v8456 = vsub.f32 %v8376, %v7416
        %v8457 = vsub.f32 %v8377, %v7417
        %v8458 = vsub.f32 %v8378, %v7418
        %v8459 = vsub.f32 %v8379, %v7419
        %v8460 = vsub.f32 %v8380, %v7420
        %v8461 = vsub.f32 %v8381, %v7421
        %v8462 = vsub.f32 %v8382, %v7422
        %v8463 = vsub.f32 %v8383, %v7423
        %v8464 = vsub.f32 %v8384, %v7424
        %v8465 = vsub.f32 %v8385, %v7425
        %v8466 = vsub.f32 %v8386, %v7426
        %v8467 = vsub.f32 %v8387, %v7427
        %v8468 = vsub.f32 %v8388, %v7428
        %v8469 = vsub.f32 %v8389, %v7429
        %v8470 = vsub.f32 %v8390, %v7430
        %v8471 = vsub.f32 %v8391, %v7431
        %v8472 = vsub.f32 %v8392, %v7432
        %v8473 = vsub.f32 %v8393, %v7433
        %v8474 = vsub.f32 %v8394, %v7434
        %v8475 = vsub.f32 %v8395, %v7435
        %v8476 = vsub.f32 %v8396, %v7436
        %v8477 = vsub.f32 %v8397, %v7437
        %v8478 = vsub.f32 %v8398, %v7438
        %v8479 = vsub.f32 %v8399, %v7439
        %v8480 = vsub.f32 %v8400, %v7440
        %v8481 = vsub.f32 %v8401, %v7441
        %v8482 = vsub.f32 %v8402, %v7442
        %v8483 = vsub.f32 %v8403, %v7443
        %v8484 = vsub.f32 %v8404, %v7444
        %v8485 = vsub.f32 %v8405, %v7445
        %v8486 = vsub.f32 %v8406, %v7446
        %v8487 = vsub.f32 %v8407, %v7447
        %v8488 = vsub.f32 %v8408, %v7448
        %v8489 = vsub.f32 %v8409, %v7449
        %v8490 = vsub.f32 %v8410, %v7450
        %v8491 = vsub.f32 %v8411, %v7451
        %v8492 = vsub.f32 %v8412, %v7452
        %v8493 = vsub.f32 %v8413, %v7453
        %v8494 = vsub.f32 %v8414, %v7454
        %v8495 = vsub.f32 %v8415, %v7455
        %v8496 = vsub.f32 %v8416, %v7456
        %v8497 = vsub.f32 %v8417, %v7457
        %v8498 = vsub.f32 %v8418, %v7458
        %v8499 = vsub.f32 %v8419, %v7459
        %v8500 = vsub.f32 %v8420, %v7460
        %v8501 = vsub.f32 %v8421, %v7461
        %v8502 = vsub.f32 %v8422, %v7462
        %v8503 = vsub.f32 %v8423, %v7463
        %v8504 = vsub.f32 %v8424, %v7464
        %v8505 = vsub.f32 %v8425, %v7465
        %v8506 = vsub.f32 %v8426, %v7466
        %v8507 = vsub.f32 %v8427, %v7467
        %v8508 = vsub.f32 %v8428, %v7468
        %v8509 = vsub.f32 %v8429, %v7469
        %v8510 = vsub.f32 %v8430, %v7470
        %v8511 = vsub.f32 %v8431, %v7471
        %v8512 = vsub.f32 %v8432, %v7472
        %v8513 = vsub.f32 %v8433, %v7473
        %v8514 = vsub.f32 %v8434, %v7474
        %v8515 = vsub.f32 %v8435, %v7475
        %v8516 = vsub.f32 %v8436, %v7476
        %v8517 = vsub.f32 %v8437, %v7477
        %v8518 = vsub.f32 %v8438, %v7478
        %v8519 = vsub.f32 %v8439, %v7479
        %v8520 = vsub.f32 %v8440, %v7480
        %v8521 = vsub.f32 %v8441, %v7481
        %v8522 = vsub.f32 %v8442, %v7482
        %v8523 = vsub.f32 %v8443, %v7483
        %v8524 = vsub.f32 %v8444, %v7484
        %v8525 = vsub.f32 %v8445, %v7485
        %v8526 = vsub.f32 %v8446, %v7486
        %v8527 = vsub.f32 %v8447, %v7487
        %v8528 = vsub.f32 %v8448, %v7488
        %v8529 = vsub.f32 %v8449, %v7489
        %v8530 = vsub.f32 %v8450, %v7490
        %v8531 = vsub.f32 %v8451, %v7491
        %v8532 = vsub.f32 %v8452, %v7492
        %v8533 = vsub.f32 %v8453, %v7493
        %v8534 = vmul.f32 %v8454, %v6214
        %v8535 = vmul.f32 %v8455, %v6215
        %v8536 = vmul.f32 %v8456, %v6216
        %v8537 = vmul.f32 %v8457, %v6217
        %v8538 = vmul.f32 %v8458, %v6218
        %v8539 = vmul.f32 %v8459, %v6219
        %v8540 = vmul.f32 %v8460, %v6220
        %v8541 = vmul.f32 %v8461, %v6221
        %v8542 = vmul.f32 %v8462, %v6222
        %v8543 = vmul.f32 %v8463, %v6223
        %v8544 = vmul.f32 %v8464, %v6224
        %v8545 = vmul.f32 %v8465, %v6225
        %v8546 = vmul.f32 %v8466, %v6226
        %v8547 = vmul.f32 %v8467, %v6227
        %v8548 = vmul.f32 %v8468, %v6228
        %v8549 = vmul.f32 %v8469, %v6229
        %v8550 = vmul.f32 %v8470, %v6230
        %v8551 = vmul.f32 %v8471, %v6231
        %v8552 = vmul.f32 %v8472, %v6232
        %v8553 = vmul.f32 %v8473, %v6233
        %v8554 = vmul.f32 %v8474, %v6234
        %v8555 = vmul.f32 %v8475, %v6235
        %v8556 = vmul.f32 %v8476, %v6236
        %v8557 = vmul.f32 %v8477, %v6237
        %v8558 = vmul.f32 %v8478, %v6238
        %v8559 = vmul.f32 %v8479, %v6239
        %v8560 = vmul.f32 %v8480, %v6240
        %v8561 = vmul.f32 %v8481, %v6241
        %v8562 = vmul.f32 %v8482, %v6242
        %v8563 = vmul.f32 %v8483, %v6243
        %v8564 = vmul.f32 %v8484, %v6244
        %v8565 = vmul.f32 %v8485, %v6245
        %v8566 = vmul.f32 %v8486, %v6246
        %v8567 = vmul.f32 %v8487, %v6247
        %v8568 = vmul.f32 %v8488, %v6248
        %v8569 = vmul.f32 %v8489, %v6249
        %v8570 = vmul.f32 %v8490, %v6250
        %v8571 = vmul.f32 %v8491, %v6251
        %v8572 = vmul.f32 %v8492, %v6252
        %v8573 = vmul.f32 %v8493, %v6253
        %v8574 = vmul.f32 %v8494, %v6254
        %v8575 = vmul.f32 %v8495, %v6255
        %v8576 = vmul.f32 %v8496, %v6256
        %v8577 = vmul.f32 %v8497, %v6257
        %v8578 = vmul.f32 %v8498, %v6258
        %v8579 = vmul.f32 %v8499, %v6259
        %v8580 = vmul.f32 %v8500, %v6260
        %v8581 = vmul.f32 %v8501, %v6261
        %v8582 = vmul.f32 %v8502, %v6262
        %v8583 = vmul.f32 %v8503, %v6263
        %v8584 = vmul.f32 %v8504, %v6264
        %v8585 = vmul.f32 %v8505, %v6265
        %v8586 = vmul.f32 %v8506, %v6266
        %v8587 = vmul.f32 %v8507, %v6267
        %v8588 = vmul.f32 %v8508, %v6268
        %v8589 = vmul.f32 %v8509, %v6269
        %v8590 = vmul.f32 %v8510, %v6270
        %v8591 = vmul.f32 %v8511, %v6271
        %v8592 = vmul.f32 %v8512, %v6272
        %v8593 = vmul.f32 %v8513, %v6273
        %v8594 = vmul.f32 %v8514, %v6274
        %v8595 = vmul.f32 %v8515, %v6275
        %v8596 = vmul.f32 %v8516, %v6276
        %v8597 = vmul.f32 %v8517, %v6277
        %v8598 = vmul.f32 %v8518, %v6278
        %v8599 = vmul.f32 %v8519, %v6279
        %v8600 = vmul.f32 %v8520, %v6280
        %v8601 = vmul.f32 %v8521, %v6281
        %v8602 = vmul.f32 %v8522, %v6282
        %v8603 = vmul.f32 %v8523, %v6283
        %v8604 = vmul.f32 %v8524, %v6284
        %v8605 = vmul.f32 %v8525, %v6285
        %v8606 = vmul.f32 %v8526, %v6286
        %v8607 = vmul.f32 %v8527, %v6287
        %v8608 = vmul.f32 %v8528, %v6288
        %v8609 = vmul.f32 %v8529, %v6289
        %v8610 = vmul.f32 %v8530, %v6290
        %v8611 = vmul.f32 %v8531, %v6291
        %v8612 = vmul.f32 %v8532, %v6292
        %v8613 = vmul.f32 %v8533, %v6293
        %v8614 = vmul.f32 %v8534, %v8054
        %v8615 = vmul.f32 %v8535, %v8055
        %v8616 = vmul.f32 %v8536, %v8056
        %v8617 = vmul.f32 %v8537, %v8057
        %v8618 = vmul.f32 %v8538, %v8058
        %v8619 = vmul.f32 %v8539, %v8059
        %v8620 = vmul.f32 %v8540, %v8060
        %v8621 = vmul.f32 %v8541, %v8061
        %v8622 = vmul.f32 %v8542, %v8062
        %v8623 = vmul.f32 %v8543, %v8063
        %v8624 = vmul.f32 %v8544, %v8064
        %v8625 = vmul.f32 %v8545, %v8065
        %v8626 = vmul.f32 %v8546, %v8066
        %v8627 = vmul.f32 %v8547, %v8067
        %v8628 = vmul.f32 %v8548, %v8068
        %v8629 = vmul.f32 %v8549, %v8069
        %v8630 = vmul.f32 %v8550, %v8070
        %v8631 = vmul.f32 %v8551, %v8071
        %v8632 = vmul.f32 %v8552, %v8072
        %v8633 = vmul.f32 %v8553, %v8073
        %v8634 = vmul.f32 %v8554, %v8074
        %v8635 = vmul.f32 %v8555, %v8075
        %v8636 = vmul.f32 %v8556, %v8076
        %v8637 = vmul.f32 %v8557, %v8077
        %v8638 = vmul.f32 %v8558, %v8078
        %v8639 = vmul.f32 %v8559, %v8079
        %v8640 = vmul.f32 %v8560, %v8080
        %v8641 = vmul.f32 %v8561, %v8081
        %v8642 = vmul.f32 %v8562, %v8082
        %v8643 = vmul.f32 %v8563, %v8083
        %v8644 = vmul.f32 %v8564, %v8084
        %v8645 = vmul.f32 %v8565, %v8085
        %v8646 = vmul.f32 %v8566, %v8086
        %v8647 = vmul.f32 %v8567, %v8087
        %v8648 = vmul.f32 %v8568, %v8088
        %v8649 = vmul.f32 %v8569, %v8089
        %v8650 = vmul.f32 %v8570, %v8090
        %v8651 = vmul.f32 %v8571, %v8091
        %v8652 = vmul.f32 %v8572, %v8092
        %v8653 = vmul.f32 %v8573, %v8093
        %v8654 = vmul.f32 %v8574, %v8094
        %v8655 = vmul.f32 %v8575, %v8095
        %v8656 = vmul.f32 %v8576, %v8096
        %v8657 = vmul.f32 %v8577, %v8097
        %v8658 = vmul.f32 %v8578, %v8098
        %v8659 = vmul.f32 %v8579, %v8099
        %v8660 = vmul.f32 %v8580, %v8100
        %v8661 = vmul.f32 %v8581, %v8101
        %v8662 = vmul.f32 %v8582, %v8102
        %v8663 = vmul.f32 %v8583, %v8103
        %v8664 = vmul.f32 %v8584, %v8104
        %v8665 = vmul.f32 %v8585, %v8105
        %v8666 = vmul.f32 %v8586, %v8106
        %v8667 = vmul.f32 %v8587, %v8107
        %v8668 = vmul.f32 %v8588, %v8108
        %v8669 = vmul.f32 %v8589, %v8109
        %v8670 = vmul.f32 %v8590, %v8110
        %v8671 = vmul.f32 %v8591, %v8111
        %v8672 = vmul.f32 %v8592, %v8112
        %v8673 = vmul.f32 %v8593, %v8113
        %v8674 = vmul.f32 %v8594, %v8114
        %v8675 = vmul.f32 %v8595, %v8115
        %v8676 = vmul.f32 %v8596, %v8116
        %v8677 = vmul.f32 %v8597, %v8117
        %v8678 = vmul.f32 %v8598, %v8118
        %v8679 = vmul.f32 %v8599, %v8119
        %v8680 = vmul.f32 %v8600, %v8120
        %v8681 = vmul.f32 %v8601, %v8121
        %v8682 = vmul.f32 %v8602, %v8122
        %v8683 = vmul.f32 %v8603, %v8123
        %v8684 = vmul.f32 %v8604, %v8124
        %v8685 = vmul.f32 %v8605, %v8125
        %v8686 = vmul.f32 %v8606, %v8126
        %v8687 = vmul.f32 %v8607, %v8127
        %v8688 = vmul.f32 %v8608, %v8128
        %v8689 = vmul.f32 %v8609, %v8129
        %v8690 = vmul.f32 %v8610, %v8130
        %v8691 = vmul.f32 %v8611, %v8131
        %v8692 = vmul.f32 %v8612, %v8132
        %v8693 = vmul.f32 %v8613, %v8133
        %v8694 = vmul.f32 %v275, %v8294
        %v8695 = vmul.f32 %v276, %v8295
        %v8696 = vmul.f32 %v277, %v8296
        %v8697 = vmul.f32 %v278, %v8297
        %v8698 = vmul.f32 %v279, %v8298
        %v8699 = vmul.f32 %v280, %v8299
        %v8700 = vmul.f32 %v281, %v8300
        %v8701 = vmul.f32 %v282, %v8301
        %v8702 = vmul.f32 %v283, %v8302
        %v8703 = vmul.f32 %v284, %v8303
        %v8704 = vmul.f32 %v285, %v8304
        %v8705 = vmul.f32 %v286, %v8305
        %v8706 = vmul.f32 %v287, %v8306
        %v8707 = vmul.f32 %v288, %v8307
        %v8708 = vmul.f32 %v289, %v8308
        %v8709 = vmul.f32 %v290, %v8309
        %v8710 = vmul.f32 %v291, %v8310
        %v8711 = vmul.f32 %v292, %v8311
        %v8712 = vmul.f32 %v293, %v8312
        %v8713 = vmul.f32 %v294, %v8313
        %v8714 = vmul.f32 %v295, %v8314
        %v8715 = vmul.f32 %v296, %v8315
        %v8716 = vmul.f32 %v297, %v8316
        %v8717 = vmul.f32 %v298, %v8317
        %v8718 = vmul.f32 %v299, %v8318
        %v8719 = vmul.f32 %v300, %v8319
        %v8720 = vmul.f32 %v301, %v8320
        %v8721 = vmul.f32 %v302, %v8321
        %v8722 = vmul.f32 %v303, %v8322
        %v8723 = vmul.f32 %v304, %v8323
        %v8724 = vmul.f32 %v305, %v8324
        %v8725 = vmul.f32 %v306, %v8325
        %v8726 = vmul.f32 %v307, %v8326
        %v8727 = vmul.f32 %v308, %v8327
        %v8728 = vmul.f32 %v309, %v8328
        %v8729 = vmul.f32 %v310, %v8329
        %v8730 = vmul.f32 %v311, %v8330
        %v8731 = vmul.f32 %v312, %v8331
        %v8732 = vmul.f32 %v313, %v8332
        %v8733 = vmul.f32 %v314, %v8333
        %v8734 = vmul.f32 %v315, %v8334
        %v8735 = vmul.f32 %v316, %v8335
        %v8736 = vmul.f32 %v317, %v8336
        %v8737 = vmul.f32 %v318, %v8337
        %v8738 = vmul.f32 %v319, %v8338
        %v8739 = vmul.f32 %v320, %v8339
        %v8740 = vmul.f32 %v321, %v8340
        %v8741 = vmul.f32 %v322, %v8341
        %v8742 = vmul.f32 %v323, %v8342
        %v8743 = vmul.f32 %v324, %v8343
        %v8744 = vmul.f32 %v325, %v8344
        %v8745 = vmul.f32 %v326, %v8345
        %v8746 = vmul.f32 %v327, %v8346
        %v8747 = vmul.f32 %v328, %v8347
        %v8748 = vmul.f32 %v329, %v8348
        %v8749 = vmul.f32 %v330, %v8349
        %v8750 = vmul.f32 %v331, %v8350
        %v8751 = vmul.f32 %v332, %v8351
        %v8752 = vmul.f32 %v333, %v8352
        %v8753 = vmul.f32 %v334, %v8353
        %v8754 = vmul.f32 %v335, %v8354
        %v8755 = vmul.f32 %v336, %v8355
        %v8756 = vmul.f32 %v337, %v8356
        %v8757 = vmul.f32 %v338, %v8357
        %v8758 = vmul.f32 %v339, %v8358
        %v8759 = vmul.f32 %v340, %v8359
        %v8760 = vmul.f32 %v341, %v8360
        %v8761 = vmul.f32 %v342, %v8361
        %v8762 = vmul.f32 %v343, %v8362
        %v8763 = vmul.f32 %v344, %v8363
        %v8764 = vmul.f32 %v345, %v8364
        %v8765 = vmul.f32 %v346, %v8365
        %v8766 = vmul.f32 %v347, %v8366
        %v8767 = vmul.f32 %v348, %v8367
        %v8768 = vmul.f32 %v349, %v8368
        %v8769 = vmul.f32 %v350, %v8369
        %v8770 = vmul.f32 %v351, %v8370
        %v8771 = vmul.f32 %v352, %v8371
        %v8772 = vmul.f32 %v353, %v8372
        %v8773 = vmul.f32 %v354, %v8373
        %v8774 = vmul.f32 %v3703, %v8614
        %v8775 = vmul.f32 %v3708, %v8615
        %v8776 = vmul.f32 %v3713, %v8616
        %v8777 = vmul.f32 %v3718, %v8617
        %v8778 = vmul.f32 %v3723, %v8618
        %v8779 = vmul.f32 %v3728, %v8619
        %v8780 = vmul.f32 %v3733, %v8620
        %v8781 = vmul.f32 %v3738, %v8621
        %v8782 = vmul.f32 %v3743, %v8622
        %v8783 = vmul.f32 %v3748, %v8623
        %v8784 = vmul.f32 %v3753, %v8624
        %v8785 = vmul.f32 %v3758, %v8625
        %v8786 = vmul.f32 %v3763, %v8626
        %v8787 = vmul.f32 %v3768, %v8627
        %v8788 = vmul.f32 %v3773, %v8628
        %v8789 = vmul.f32 %v3778, %v8629
        %v8790 = vmul.f32 %v3783, %v8630
        %v8791 = vmul.f32 %v3788, %v8631
        %v8792 = vmul.f32 %v3793, %v8632
        %v8793 = vmul.f32 %v3798, %v8633
        %v8794 = vmul.f32 %v3803, %v8634
        %v8795 = vmul.f32 %v3808, %v8635
        %v8796 = vmul.f32 %v3813, %v8636
        %v8797 = vmul.f32 %v3818, %v8637
        %v8798 = vmul.f32 %v3823, %v8638
        %v8799 = vmul.f32 %v3828, %v8639
        %v8800 = vmul.f32 %v3833, %v8640
        %v8801 = vmul.f32 %v3838, %v8641
        %v8802 = vmul.f32 %v3843, %v8642
        %v8803 = vmul.f32 %v3848, %v8643
        %v8804 = vmul.f32 %v3853, %v8644
        %v8805 = vmul.f32 %v3858, %v8645
        %v8806 = vmul.f32 %v3863, %v8646
        %v8807 = vmul.f32 %v3868, %v8647
        %v8808 = vmul.f32 %v3873, %v8648
        %v8809 = vmul.f32 %v3878, %v8649
        %v8810 = vmul.f32 %v3883, %v8650
        %v8811 = vmul.f32 %v3888, %v8651
        %v8812 = vmul.f32 %v3893, %v8652
        %v8813 = vmul.f32 %v3898, %v8653
        %v8814 = vmul.f32 %v3903, %v8654
        %v8815 = vmul.f32 %v3908, %v8655
        %v8816 = vmul.f32 %v3913, %v8656
        %v8817 = vmul.f32 %v3918, %v8657
        %v8818 = vmul.f32 %v3923, %v8658
        %v8819 = vmul.f32 %v3928, %v8659
        %v8820 = vmul.f32 %v3933, %v8660
        %v8821 = vmul.f32 %v3938, %v8661
        %v8822 = vmul.f32 %v3943, %v8662
        %v8823 = vmul.f32 %v3948, %v8663
        %v8824 = vmul.f32 %v3953, %v8664
        %v8825 = vmul.f32 %v3958, %v8665
        %v8826 = vmul.f32 %v3963, %v8666
        %v8827 = vmul.f32 %v3968, %v8667
        %v8828 = vmul.f32 %v3973, %v8668
        %v8829 = vmul.f32 %v3978, %v8669
        %v8830 = vmul.f32 %v3983, %v8670
        %v8831 = vmul.f32 %v3988, %v8671
        %v8832 = vmul.f32 %v3993, %v8672
        %v8833 = vmul.f32 %v3998, %v8673
        %v8834 = vmul.f32 %v4003, %v8674
        %v8835 = vmul.f32 %v4008, %v8675
        %v8836 = vmul.f32 %v4013, %v8676
        %v8837 = vmul.f32 %v4018, %v8677
        %v8838 = vmul.f32 %v4023, %v8678
        %v8839 = vmul.f32 %v4028, %v8679
        %v8840 = vmul.f32 %v4033, %v8680
        %v8841 = vmul.f32 %v4038, %v8681
        %v8842 = vmul.f32 %v4043, %v8682
        %v8843 = vmul.f32 %v4048, %v8683
        %v8844 = vmul.f32 %v4053, %v8684
        %v8845 = vmul.f32 %v4058, %v8685
        %v8846 = vmul.f32 %v4063, %v8686
        %v8847 = vmul.f32 %v4068, %v8687
        %v8848 = vmul.f32 %v4073, %v8688
        %v8849 = vmul.f32 %v4078, %v8689
        %v8850 = vmul.f32 %v4083, %v8690
        %v8851 = vmul.f32 %v4088, %v8691
        %v8852 = vmul.f32 %v4093, %v8692
        %v8853 = vmul.f32 %v4098, %v8693
        %v8854 = vadd.f32 %v8694, %v8774
        %v8855 = vadd.f32 %v8695, %v8775
        %v8856 = vadd.f32 %v8696, %v8776
        %v8857 = vadd.f32 %v8697, %v8777
        %v8858 = vadd.f32 %v8698, %v8778
        %v8859 = vadd.f32 %v8699, %v8779
        %v8860 = vadd.f32 %v8700, %v8780
        %v8861 = vadd.f32 %v8701, %v8781
        %v8862 = vadd.f32 %v8702, %v8782
        %v8863 = vadd.f32 %v8703, %v8783
        %v8864 = vadd.f32 %v8704, %v8784
        %v8865 = vadd.f32 %v8705, %v8785
        %v8866 = vadd.f32 %v8706, %v8786
        %v8867 = vadd.f32 %v8707, %v8787
        %v8868 = vadd.f32 %v8708, %v8788
        %v8869 = vadd.f32 %v8709, %v8789
        %v8870 = vadd.f32 %v8710, %v8790
        %v8871 = vadd.f32 %v8711, %v8791
        %v8872 = vadd.f32 %v8712, %v8792
        %v8873 = vadd.f32 %v8713, %v8793
        %v8874 = vadd.f32 %v8714, %v8794
        %v8875 = vadd.f32 %v8715, %v8795
        %v8876 = vadd.f32 %v8716, %v8796
        %v8877 = vadd.f32 %v8717, %v8797
        %v8878 = vadd.f32 %v8718, %v8798
        %v8879 = vadd.f32 %v8719, %v8799
        %v8880 = vadd.f32 %v8720, %v8800
        %v8881 = vadd.f32 %v8721, %v8801
        %v8882 = vadd.f32 %v8722, %v8802
        %v8883 = vadd.f32 %v8723, %v8803
        %v8884 = vadd.f32 %v8724, %v8804
        %v8885 = vadd.f32 %v8725, %v8805
        %v8886 = vadd.f32 %v8726, %v8806
        %v8887 = vadd.f32 %v8727, %v8807
        %v8888 = vadd.f32 %v8728, %v8808
        %v8889 = vadd.f32 %v8729, %v8809
        %v8890 = vadd.f32 %v8730, %v8810
        %v8891 = vadd.f32 %v8731, %v8811
        %v8892 = vadd.f32 %v8732, %v8812
        %v8893 = vadd.f32 %v8733, %v8813
        %v8894 = vadd.f32 %v8734, %v8814
        %v8895 = vadd.f32 %v8735, %v8815
        %v8896 = vadd.f32 %v8736, %v8816
        %v8897 = vadd.f32 %v8737, %v8817
        %v8898 = vadd.f32 %v8738, %v8818
        %v8899 = vadd.f32 %v8739, %v8819
        %v8900 = vadd.f32 %v8740, %v8820
        %v8901 = vadd.f32 %v8741, %v8821
        %v8902 = vadd.f32 %v8742, %v8822
        %v8903 = vadd.f32 %v8743, %v8823
        %v8904 = vadd.f32 %v8744, %v8824
        %v8905 = vadd.f32 %v8745, %v8825
        %v8906 = vadd.f32 %v8746, %v8826
        %v8907 = vadd.f32 %v8747, %v8827
        %v8908 = vadd.f32 %v8748, %v8828
        %v8909 = vadd.f32 %v8749, %v8829
        %v8910 = vadd.f32 %v8750, %v8830
        %v8911 = vadd.f32 %v8751, %v8831
        %v8912 = vadd.f32 %v8752, %v8832
        %v8913 = vadd.f32 %v8753, %v8833
        %v8914 = vadd.f32 %v8754, %v8834
        %v8915 = vadd.f32 %v8755, %v8835
        %v8916 = vadd.f32 %v8756, %v8836
        %v8917 = vadd.f32 %v8757, %v8837
        %v8918 = vadd.f32 %v8758, %v8838
        %v8919 = vadd.f32 %v8759, %v8839
        %v8920 = vadd.f32 %v8760, %v8840
        %v8921 = vadd.f32 %v8761, %v8841
        %v8922 = vadd.f32 %v8762, %v8842
        %v8923 = vadd.f32 %v8763, %v8843
        %v8924 = vadd.f32 %v8764, %v8844
        %v8925 = vadd.f32 %v8765, %v8845
        %v8926 = vadd.f32 %v8766, %v8846
        %v8927 = vadd.f32 %v8767, %v8847
        %v8928 = vadd.f32 %v8768, %v8848
        %v8929 = vadd.f32 %v8769, %v8849
        %v8930 = vadd.f32 %v8770, %v8850
        %v8931 = vadd.f32 %v8771, %v8851
        %v8932 = vadd.f32 %v8772, %v8852
        %v8933 = vadd.f32 %v8773, %v8853
        %8934 = vst.msk [vmem:[%s269] sm:$0xff] %vm540, %v8854
        %8935 = vst.msk [vmem:[%s269 + $0x8] sm:$0xff] %vm540, %v8855
        %8936 = vst.msk [vmem:[%s269 + $0x10] sm:$0xff] %vm540, %v8856
        %8937 = vst.msk [vmem:[%s269 + $0x18] sm:$0xff] %vm540, %v8857
        %8938 = vst.msk [vmem:[%s269 + $0x20] sm:$0xff] %vm540, %v8858
        %8939 = vst.msk [vmem:[%s269 + $0x28] sm:$0xff] %vm540, %v8859
        %8940 = vst.msk [vmem:[%s269 + $0x30] sm:$0xff] %vm540, %v8860
        %8941 = vst.msk [vmem:[%s269 + $0x38] sm:$0xff] %vm540, %v8861
        %8942 = vst.msk [vmem:[%s269 + $0x40] sm:$0xff] %vm540, %v8862
        %8943 = vst.msk [vmem:[%s269 + $0x48] sm:$0xff] %vm540, %v8863
        %8944 = vst.msk [vmem:[%s269 + $0x50] sm:$0xff] %vm540, %v8864
        %8945 = vst.msk [vmem:[%s269 + $0x58] sm:$0xff] %vm540, %v8865
        %8946 = vst.msk [vmem:[%s269 + $0x60] sm:$0xff] %vm540, %v8866
        %8947 = vst.msk [vmem:[%s269 + $0x68] sm:$0xff] %vm540, %v8867
        %8948 = vst.msk [vmem:[%s269 + $0x70] sm:$0xff] %vm540, %v8868
        %8949 = vst.msk [vmem:[%s269 + $0x78] sm:$0xff] %vm540, %v8869
        %8950 = vst.msk [vmem:[%s269 + $0x80] sm:$0xff] %vm540, %v8870
        %8951 = vst.msk [vmem:[%s269 + $0x88] sm:$0xff] %vm540, %v8871
        %8952 = vst.msk [vmem:[%s269 + $0x90] sm:$0xff] %vm540, %v8872
        %8953 = vst.msk [vmem:[%s269 + $0x98] sm:$0xff] %vm540, %v8873
        %8954 = vst.msk [vmem:[%s269 + $0xa0] sm:$0xff] %vm540, %v8874
        %8955 = vst.msk [vmem:[%s269 + $0xa8] sm:$0xff] %vm540, %v8875
        %8956 = vst.msk [vmem:[%s269 + $0xb0] sm:$0xff] %vm540, %v8876
        %8957 = vst.msk [vmem:[%s269 + $0xb8] sm:$0xff] %vm540, %v8877
        %8958 = vst.msk [vmem:[%s269 + $0xc0] sm:$0xff] %vm540, %v8878
        %8959 = vst.msk [vmem:[%s269 + $0xc8] sm:$0xff] %vm540, %v8879
        %8960 = vst.msk [vmem:[%s269 + $0xd0] sm:$0xff] %vm540, %v8880
        %8961 = vst.msk [vmem:[%s269 + $0xd8] sm:$0xff] %vm540, %v8881
        %8962 = vst.msk [vmem:[%s269 + $0xe0] sm:$0xff] %vm540, %v8882
        %8963 = vst.msk [vmem:[%s269 + $0xe8] sm:$0xff] %vm540, %v8883
        %8964 = vst.msk [vmem:[%s269 + $0xf0] sm:$0xff] %vm540, %v8884
        %8965 = vst.msk [vmem:[%s269 + $0xf8] sm:$0xff] %vm540, %v8885
        %8966 = vst.msk [vmem:[%s269 + $0x100] sm:$0xff] %vm540, %v8886
        %8967 = vst.msk [vmem:[%s269 + $0x108] sm:$0xff] %vm540, %v8887
        %8968 = vst.msk [vmem:[%s269 + $0x110] sm:$0xff] %vm540, %v8888
        %8969 = vst.msk [vmem:[%s269 + $0x118] sm:$0xff] %vm540, %v8889
        %8970 = vst.msk [vmem:[%s269 + $0x120] sm:$0xff] %vm540, %v8890
        %8971 = vst.msk [vmem:[%s269 + $0x128] sm:$0xff] %vm540, %v8891
        %8972 = vst.msk [vmem:[%s269 + $0x130] sm:$0xff] %vm540, %v8892
        %8973 = vst.msk [vmem:[%s269 + $0x138] sm:$0xff] %vm540, %v8893
        %8974 = vst.msk [vmem:[%s269 + $0x140] sm:$0xff] %vm540, %v8894
        %8975 = vst.msk [vmem:[%s269 + $0x148] sm:$0xff] %vm540, %v8895
        %8976 = vst.msk [vmem:[%s269 + $0x150] sm:$0xff] %vm540, %v8896
        %8977 = vst.msk [vmem:[%s269 + $0x158] sm:$0xff] %vm540, %v8897
        %8978 = vst.msk [vmem:[%s269 + $0x160] sm:$0xff] %vm540, %v8898
        %8979 = vst.msk [vmem:[%s269 + $0x168] sm:$0xff] %vm540, %v8899
        %8980 = vst.msk [vmem:[%s269 + $0x170] sm:$0xff] %vm540, %v8900
        %8981 = vst.msk [vmem:[%s269 + $0x178] sm:$0xff] %vm540, %v8901
        %8982 = vst.msk [vmem:[%s269 + $0x180] sm:$0xff] %vm540, %v8902
        %8983 = vst.msk [vmem:[%s269 + $0x188] sm:$0xff] %vm540, %v8903
        %8984 = vst.msk [vmem:[%s269 + $0x190] sm:$0xff] %vm540, %v8904
        %8985 = vst.msk [vmem:[%s269 + $0x198] sm:$0xff] %vm540, %v8905
        %8986 = vst.msk [vmem:[%s269 + $0x1a0] sm:$0xff] %vm540, %v8906
        %8987 = vst.msk [vmem:[%s269 + $0x1a8] sm:$0xff] %vm540, %v8907
        %8988 = vst.msk [vmem:[%s269 + $0x1b0] sm:$0xff] %vm540, %v8908
        %8989 = vst.msk [vmem:[%s269 + $0x1b8] sm:$0xff] %vm540, %v8909
        %8990 = vst.msk [vmem:[%s269 + $0x1c0] sm:$0xff] %vm540, %v8910
        %8991 = vst.msk [vmem:[%s269 + $0x1c8] sm:$0xff] %vm540, %v8911
        %8992 = vst.msk [vmem:[%s269 + $0x1d0] sm:$0xff] %vm540, %v8912
        %8993 = vst.msk [vmem:[%s269 + $0x1d8] sm:$0xff] %vm540, %v8913
        %8994 = vst.msk [vmem:[%s269 + $0x1e0] sm:$0xff] %vm540, %v8914
        %8995 = vst.msk [vmem:[%s269 + $0x1e8] sm:$0xff] %vm540, %v8915
        %8996 = vst.msk [vmem:[%s269 + $0x1f0] sm:$0xff] %vm540, %v8916
        %8997 = vst.msk [vmem:[%s269 + $0x1f8] sm:$0xff] %vm540, %v8917
        %8998 = vst.msk [vmem:[%s269 + $0x200] sm:$0xff] %vm540, %v8918
        %8999 = vst.msk [vmem:[%s269 + $0x208] sm:$0xff] %vm540, %v8919
        %9000 = vst.msk [vmem:[%s269 + $0x210] sm:$0xff] %vm540, %v8920
        %9001 = vst.msk [vmem:[%s269 + $0x218] sm:$0xff] %vm540, %v8921
        %9002 = vst.msk [vmem:[%s269 + $0x220] sm:$0xff] %vm540, %v8922
        %9003 = vst.msk [vmem:[%s269 + $0x228] sm:$0xff] %vm540, %v8923
        %9004 = vst.msk [vmem:[%s269 + $0x230] sm:$0xff] %vm540, %v8924
        %9005 = vst.msk [vmem:[%s269 + $0x238] sm:$0xff] %vm540, %v8925
        %9006 = vst.msk [vmem:[%s269 + $0x240] sm:$0xff] %vm540, %v8926
        %9007 = vst.msk [vmem:[%s269 + $0x248] sm:$0xff] %vm540, %v8927
        %9008 = vst.msk [vmem:[%s269 + $0x250] sm:$0xff] %vm540, %v8928
        %9009 = vst.msk [vmem:[%s269 + $0x258] sm:$0xff] %vm540, %v8929
        %9010 = vst.msk [vmem:[%s269 + $0x260] sm:$0xff] %vm540, %v8930
        %9011 = vst.msk [vmem:[%s269 + $0x268] sm:$0xff] %vm540, %v8931
        %9012 = vst.msk [vmem:[%s269 + $0x270] sm:$0xff] %vm540, %v8932
        %9013 = vst.msk [vmem:[%s269 + $0x278] sm:$0xff] %vm540, %v8933
        %s9014 = smul.u32 80, %s21
        %p9015 = scmp.lt.s32.totalorder %s9014, 159
        %s9016 = scalar_select %p9015, %s9014, 159
        %s9017 = smul.addr %s9016, 8
        %s9018 = scalar_lea.vmem %s4, %s9017
        %s9019 = sand.u32 %s144, 1
        %s9020 = scalar_lea.sflag [#allocation3], %s9019
        %s9021 = sand.u32 %s144, 1
        %s9022 = smul.addr %s9021, 5
        %s9023 = scalar_lea.vmem [#allocation2], %s9022
        %p9024 = scmp.lt.s32.totalorder %s21, 1
        %s9025 = scalar_select %p9024, %s21, 1
        %s9026 = scalar_lea.vmem %s6, %s9025
        // Predicated region
        $region37: #{tpu_custom_call.1} parent=35 // pred_check
          %p9027 = pneg %p128
        $region38: #{tpu_custom_call.1} parent=35 // pred_check_branch
          %9029 = sbr.rel (%p9027) target = $region40
        $region39: #{tpu_custom_call.1} parent=35 // pred_region
          %s9030 = smul.u32 80, %s21
        $region40: #{tpu_custom_call.1} parent=35 // pred_fallthru
          _
        // Predicated region
        $region41: #{tpu_custom_call.1} parent=35 // pred_check
          %p9031 = pneg %p154
        $region42: #{tpu_custom_call.1} parent=35 // pred_check_branch
          %9033 = sbr.rel (%p9031) target = $region44
        $region43: #{tpu_custom_call.1} parent=35 // pred_region
          %s9035 = ssub.s32 80, 80
          %9036 = vsyncadd %s9020, %s9035
          %s9037 = smul.addr %s21, 5
          %s9038 = smul.addr %s9037, 16
          %s9039 = scalar_lea.hbm %s5, %s9038
          %s9041 = sshll.u32 %s9023, 4
          %s9042 = int_to_ptr.vmem [resolvable:$true] %s9041
          %9044 = dma.vmem_to_hbm [thread:$0]  %s9042, 80, %s9039, %s9020
        $region44: #{tpu_custom_call.1} parent=35 // pred_fallthru
          _
        // Predicated region
        $region45: #{tpu_custom_call.1} parent=35 // pred_check
          %p9045 = pneg %p180
        $region46: #{tpu_custom_call.1} parent=35 // pred_check_branch
          %9047 = sbr.rel (%p9045) target = $region48
        $region47: #{tpu_custom_call.1} parent=35 // pred_region
          _
        $region48: #{tpu_custom_call.1} parent=35 // pred_fallthru
          _
      $region36: #{tpu_custom_call.1} parent=5 // pred_fallthru
        _
      %p9048 = scmp.le.s32.totalorder 2, %s16
      // Predicated region
      $region49: #{tpu_custom_call.1} parent=5 // pred_check
        %p9049 = pneg %p9048
      $region50: #{tpu_custom_call.1} parent=5 // pred_check_branch
        %9051 = sbr.rel (%p9049) target = $region52
      $region51: #{tpu_custom_call.1} parent=5 // pred_region
        %s9052 = ssub.s32 %s16, 2
        // Predicated region
        $region53: #{tpu_custom_call.1} parent=51 // pred_check
          %p9053 = pneg %p134
        $region54: #{tpu_custom_call.1} parent=51 // pred_check_branch
          %9055 = sbr.rel (%p9053) target = $region56
        $region55: #{tpu_custom_call.1} parent=51 // pred_region
          %s9056 = smul.u32 80, %s22
          %p9057 = scmp.lt.s32.totalorder %s9056, 159
          %s9058 = scalar_select %p9057, %s9056, 159
          %s9059 = smul.addr %s9058, 8
          %s9060 = scalar_lea.vmem %s4, %s9059
        $region56: #{tpu_custom_call.1} parent=51 // pred_fallthru
          _
        // Predicated region
        $region57: #{tpu_custom_call.1} parent=51 // pred_check
          %p9061 = pneg %p160
        $region58: #{tpu_custom_call.1} parent=51 // pred_check_branch
          %9063 = sbr.rel (%p9061) target = $region60
        $region59: #{tpu_custom_call.1} parent=51 // pred_region
          %s9064 = sand.u32 %s145, 1
          %s9065 = scalar_lea.sflag [#allocation3], %s9064
          %s9066 = sand.u32 %s145, 1
          %s9067 = smul.addr %s9066, 5
          %s9068 = scalar_lea.vmem [#allocation2], %s9067
          %9069 = dma.done %s9065, 80
        $region60: #{tpu_custom_call.1} parent=51 // pred_fallthru
          _
        // Predicated region
        $region61: #{tpu_custom_call.1} parent=51 // pred_check
          %p9070 = pneg %p186
        $region62: #{tpu_custom_call.1} parent=51 // pred_check_branch
          %9072 = sbr.rel (%p9070) target = $region64
        $region63: #{tpu_custom_call.1} parent=51 // pred_region
          %p9073 = scmp.lt.s32.totalorder %s22, 1
          %s9074 = scalar_select %p9073, %s22, 1
          %s9075 = scalar_lea.vmem %s6, %s9074
        $region64: #{tpu_custom_call.1} parent=51 // pred_fallthru
          _
      $region52: #{tpu_custom_call.1} parent=5 // pred_fallthru
        _
    $region6: #{tpu_custom_call.1} parent=1 // loop_footer
      %s20 = sadd.s32 1, %s16
    $region7: #{tpu_custom_call.1} parent=1 // loop_footer_branch
      %15 = sbr.rel target = $region3
    $region8: #{tpu_custom_call.1} parent=1 // loop_exit
      _
    %9076 = vsyncpa [#allocation3], 1
    %s9077 = scalar_lea.sflag [#allocation3], 1
    %9078 = vsyncpa %s9077, 1

</llo_original>
